<compile_context>
chip_gen: v5e
topology: v5e:2x2
jax: 0.10.0
libtpu: 0.0.40
codegen_flags: <defaults>
</compile_context>

<pallas_src>
import functools

import jax
import jax.numpy as jnp
from jax.experimental import pallas as pl
from jax.experimental.pallas import tpu as pltpu


def _round_up(x: int, m: int) -> int:
    return ((x + m - 1) // m) * m


# ---------------------------------------------------------------------------
# Fused kernel: init MLP + Euler–Maruyama SDE loop + packed readouts.
# ---------------------------------------------------------------------------
def _nsde_kernel(v0_ref, dw_ref, w1_ref, b1_ref, w2_ref, b2_ref,
                 wsde_ref, lam_ref, rho5_ref, wr_ref, br_ref, o_ref,
                 *, n_lags, reservoir_dim, brownian_dim, out_pad,
                 use_bf16, activation):
    f32 = jnp.float32

    def mxu_dot(a, w):
        # bf16 MXU inputs, f32 accumulation; elementwise epilogue stays in f32.
        if use_bf16:
            a = a.astype(jnp.bfloat16)
            w = w.astype(jnp.bfloat16)
        return jnp.dot(a, w, preferred_element_type=f32)

    tb = v0_ref.shape[0]
    rho5 = rho5_ref[...]                                   # (1, 1) f32

    # ---- initial-condition MLP: Linear -> activation -> Linear == R[:, 0] ----
    v0 = v0_ref[...].astype(f32)                           # (tb, input_dim)
    h = activation(mxu_dot(v0, w1_ref[...]) + b1_ref[...])  # (tb, hidden)
    r = mxu_dot(h, w2_ref[...]) + b2_ref[...]               # (tb, reservoir)

    # Output tile starts as the lane-packed readout biases; each lag's readout
    # accumulates into its own disjoint column block -> one dense 128-lane store.
    o_ref[...] = jnp.zeros((tb, out_pad), f32) + br_ref[...]
    o_ref[...] += mxu_dot(r, wr_ref[0])                     # readout at lag 0

    # ---- Euler–Maruyama reservoir SDE, unrolled over the small static n_lags --
    # TODO(synk): for large n_lags switch to lax.fori_loop + a VMEM scratch for R.
    for t in range(1, n_lags):
        # drift: act((rho1*B1) @ R + rho2*lambda1)   (rho1, rho2 folded in weights)
        drift = activation(mxu_dot(r, wsde_ref[0]) + lam_ref[0])
        # diffusion: sum_j act((rho3*B2_j) @ R + rho4*lambda2_j) * rho5 * dW_j
        diff = jnp.zeros((tb, reservoir_dim), f32)
        for j in range(brownian_dim):
            g = activation(mxu_dot(r, wsde_ref[1 + j]) + lam_ref[1 + j])
            c = (t - 1) * brownian_dim + j
            diff = diff + g * rho5 * dw_ref[:, c:c + 1]
        r = r + drift + diff
        o_ref[...] += mxu_dot(r, wr_ref[t])                 # readout at lag t


# ---------------------------------------------------------------------------
# One-time parameter re-layout (hoisted out of the per-forward path).
# ---------------------------------------------------------------------------
def prepare_params(raw, *, out_pad_multiple=128):
    res = raw["B1"].shape[0]
    bd = raw["B2"].shape[0]
    n_lags, out_dim, _ = raw["readout_w"].shape

    w1t = raw["init_w1"].T                                   # (in, hidden)
    b1 = raw["init_b1"].reshape(1, -1)
    w2t = raw["init_w2"].T                                   # (hidden, res)
    b2 = raw["init_b2"].reshape(1, -1)

    # Fold rho1..rho4 exactly as torch computes them: (rho*M) @ R, rho*lambda.
    w_drift = (raw["rho1"] * raw["B1"]).T                    # (res, res)
    w_diff = jnp.transpose(raw["rho3"] * raw["B2"], (0, 2, 1))   # (bd, res, res)
    w_sde = jnp.concatenate([w_drift[None], w_diff], axis=0)     # (1+bd, res, res)

    lam_drift = (raw["rho2"] * raw["lambda1"]).reshape(1, 1, res)
    lam_diff = (raw["rho4"] * raw["lambda2"]).reshape(bd, 1, res)
    lam = jnp.concatenate([lam_drift, lam_diff], axis=0)         # (1+bd, 1, res)

    # Lane-dense readout packing: lag t's readout occupies columns
    # [t*out_dim : (t+1)*out_dim] of a 128-multiple-wide slab (rest zeros).
    out_pad = _round_up(n_lags * out_dim, out_pad_multiple)
    wr_wide = jnp.zeros((n_lags, res, out_pad), jnp.float32)
    br_row = jnp.zeros((1, out_pad), jnp.float32)
    for t in range(n_lags):
        c = t * out_dim
        wr_wide = wr_wide.at[t, :, c:c + out_dim].set(raw["readout_w"][t].T)
        br_row = br_row.at[0, c:c + out_dim].set(raw["readout_b"][t])

    return dict(w1t=w1t, b1=b1, w2t=w2t, b2=b2,
                w_sde=w_sde, lam=lam,
                rho5=raw["rho5"].reshape(1, 1).astype(jnp.float32),
                wr_wide=wr_wide, br_row=br_row)


# ---------------------------------------------------------------------------
# Forward wrapper.
# ---------------------------------------------------------------------------
def neural_sde_forward(prepared, v_noise, increments, *, output_dim,
                       block_b=128, use_bf16=True, activation=jnp.tanh):
    B, input_dim = v_noise.shape
    _, n_lags, brownian_dim = increments.shape
    assert n_lags >= 2
    assert block_b % 8 == 0
    reservoir_dim = prepared["w_sde"].shape[-1]
    out_pad = prepared["wr_wide"].shape[-1]
    assert prepared["wr_wide"].shape[0] == n_lags

    # Brownian path exactly as in torch: cumsum over time, first step forced to 0,
    # then per-step differences (flattened: column (t-1)*bd + j == dW_t[:, j]).
    W = jnp.cumsum(increments, axis=1)
    W = W.at[:, 0, :].set(0.0)
    dW = (W[:, 1:, :] - W[:, :-1, :]).reshape(B, (n_lags - 1) * brownian_dim)

    # Ragged batch: pad to a multiple of block_b (zeros), slice result back.
    B_pad = pl.cdiv(B, block_b) * block_b
    if B_pad != B:
        v_noise = jnp.pad(v_noise, ((0, B_pad - B), (0, 0)))
        dW = jnp.pad(dW, ((0, B_pad - B), (0, 0)))

    kernel = functools.partial(
        _nsde_kernel, n_lags=n_lags, reservoir_dim=reservoir_dim,
        brownian_dim=brownian_dim, out_pad=out_pad,
        use_bf16=use_bf16, activation=activation)

    full2 = lambda i: (0, 0)
    full3 = lambda i: (0, 0, 0)

    out = pl.pallas_call(
        kernel,
        out_shape=jax.ShapeDtypeStruct((B_pad, out_pad), jnp.float32),
        grid=(B_pad // block_b,),
        in_specs=[
            pl.BlockSpec((block_b, input_dim), lambda i: (i, 0)),                     # V0 tile
            pl.BlockSpec((block_b, (n_lags - 1) * brownian_dim), lambda i: (i, 0)),   # dW tile
            pl.BlockSpec(prepared["w1t"].shape, full2),      # resident weights below
            pl.BlockSpec(prepared["b1"].shape, full2),
            pl.BlockSpec(prepared["w2t"].shape, full2),
            pl.BlockSpec(prepared["b2"].shape, full2),
            pl.BlockSpec(prepared["w_sde"].shape, full3),
            pl.BlockSpec(prepared["lam"].shape, full3),
            pl.BlockSpec(prepared["rho5"].shape, full2),
            pl.BlockSpec(prepared["wr_wide"].shape, full3),
            pl.BlockSpec(prepared["br_row"].shape, full2),
        ],
        out_specs=pl.BlockSpec((block_b, out_pad), lambda i: (i, 0)),
        compiler_params=pltpu.CompilerParams(
            dimension_semantics=("parallel",),
            vmem_limit_bytes=32 * 1024 * 1024,
        ),
    )(v_noise, dW, prepared["w1t"], prepared["b1"], prepared["w2t"], prepared["b2"],
      prepared["w_sde"], prepared["lam"], prepared["rho5"],
      prepared["wr_wide"], prepared["br_row"])

    x = out[:B, : n_lags * output_dim]
    return x.reshape(B, n_lags * output_dim, 1)


# ---------------------------------------------------------------------------
# Pure-JAX reference following the PyTorch code (same bf16 MXU casting).
# ---------------------------------------------------------------------------
def reference_forward(raw, v_noise, increments, *, activation=jnp.tanh, use_bf16=True):
    def mxu_dot(a, w):
        if use_bf16:
            a = a.astype(jnp.bfloat16)
            w = w.astype(jnp.bfloat16)
        return jnp.dot(a, w, preferred_element_type=jnp.float32)

    B, _ = v_noise.shape
    _, n_lags, bd = increments.shape
    out_dim = raw["readout_w"].shape[1]
    rho1, rho2, rho3, rho4, rho5 = (raw[k] for k in ("rho1", "rho2", "rho3", "rho4", "rho5"))

    V = mxu_dot(v_noise, raw["init_w1"].T) + raw["init_b1"]
    V = activation(V)
    V = mxu_dot(V, raw["init_w2"].T) + raw["init_b2"]            # (B, res)

    W = jnp.cumsum(increments, axis=1)
    W = W.at[:, 0, :].set(0.0)

    R = [V]
    for t in range(1, n_lags):
        r_prev = R[-1]
        drift = activation(mxu_dot(r_prev, (rho1 * raw["B1"]).T)
                           + (rho2 * raw["lambda1"]).reshape(1, -1))
        dW = W[:, t, :] - W[:, t - 1, :]
        diff = jnp.zeros_like(r_prev)
        for j in range(bd):
            g = activation(mxu_dot(r_prev, (rho3 * raw["B2"][j]).T)
                           + (rho4 * raw["lambda2"][j]).reshape(1, -1))
            diff = diff + g * rho5 * dW[:, j:j + 1]
        R.append(r_prev + drift + diff)

    outs = [mxu_dot(R[t], raw["readout_w"][t].T) + raw["readout_b"][t]
            for t in range(n_lags)]
    x = jnp.concatenate(outs, axis=1)
    return x.reshape(B, n_lags * out_dim, 1)


if __name__ == "__main__":
    key = jax.random.PRNGKey(0)
    keys = jax.random.split(key, 16)

    batch_size = 256
    n_lags = 8
    input_dim = 8
    hidden_dim = 32
    reservoir_dim = 64
    brownian_dim = 4
    output_dim = 8

    def linear_init(kw, kb, fan_out, fan_in):
        bound = 1.0 / jnp.sqrt(jnp.float32(fan_in))
        w = jax.random.uniform(kw, (fan_out, fan_in), minval=-bound, maxval=bound,
                               dtype=jnp.float32)
        b = jax.random.uniform(kb, (fan_out,), minval=-bound, maxval=bound,
                               dtype=jnp.float32)
        return w, b

    init_w1, init_b1 = linear_init(keys[0], keys[1], hidden_dim, input_dim)
    init_w2, init_b2 = linear_init(keys[2], keys[3], reservoir_dim, hidden_dim)

    B1 = jax.random.normal(keys[4], (reservoir_dim, reservoir_dim), jnp.float32)
    B2 = jax.random.normal(keys[5], (brownian_dim, reservoir_dim, reservoir_dim), jnp.float32)
    lambda1 = jax.random.normal(keys[6], (reservoir_dim, 1), jnp.float32)
    lambda2 = jax.random.normal(keys[7], (brownian_dim, reservoir_dim, 1), jnp.float32)

    rho1 = jax.random.normal(keys[8], (1, 1), jnp.float32)
    rho2 = jax.random.normal(keys[9], (1, 1), jnp.float32)
    rho3 = jax.random.normal(keys[10], (1, 1), jnp.float32)
    rho4 = jax.random.normal(keys[11], (1, 1), jnp.float32)
    rho5 = jnp.ones((1, 1), jnp.float32)       # TRAINABLE_VARIANCE = False branch

    # Per-lag readouts (nn.ModuleList branch); time-homogeneous readout is the
    # special case of identical per-lag weights.
    ro_bound = 1.0 / jnp.sqrt(jnp.float32(reservoir_dim))
    readout_w = jax.random.uniform(keys[12], (n_lags, output_dim, reservoir_dim),
                                   minval=-ro_bound, maxval=ro_bound, dtype=jnp.float32)
    readout_b = jax.random.uniform(keys[13], (n_lags, output_dim),
                                   minval=-ro_bound, maxval=ro_bound, dtype=jnp.float32)

    raw = dict(init_w1=init_w1, init_b1=init_b1, init_w2=init_w2, init_b2=init_b2,
               B1=B1, B2=B2, lambda1=lambda1, lambda2=lambda2,
               rho1=rho1, rho2=rho2, rho3=rho3, rho4=rho4, rho5=rho5,
               readout_w=readout_w, readout_b=readout_b)

    # The torch module draws its noise inside forward(); here the same noise is
    # drawn once with jax.random and fed to both kernel and reference.
    v_noise = jax.random.normal(keys[14], (batch_size, input_dim), jnp.float32)
    increments = jax.random.normal(keys[15], (batch_size, n_lags, brownian_dim), jnp.float32)

    prepared = prepare_params(raw)
    out = neural_sde_forward(prepared, v_noise, increments, output_dim=output_dim,
                             block_b=128, use_bf16=True, activation=jnp.tanh)
    out = jax.block_until_ready(out)

    ref = jax.block_until_ready(
        reference_forward(raw, v_noise, increments, activation=jnp.tanh, use_bf16=True))

    assert out.shape == (batch_size, n_lags * output_dim, 1)
    # bf16 MXU inputs (same casting on both sides) -> loose-but-safe tolerance.
    assert bool(jnp.allclose(out, ref, atol=1e-2, rtol=1e-2)), \
        f"mismatch: max abs err {float(jnp.max(jnp.abs(out - ref)))}"
    print("KERNEL_OK")
</pallas_src>

<mosaic_0001>
module attributes {stable_mosaic.version = 11 : i64} {
  func.func @_nsde_kernel(%arg0: i32, %arg1: memref<128x8xf32, #tpu.memory_space<vmem>>, %arg2: memref<128x28xf32, #tpu.memory_space<vmem>>, %arg3: memref<8x32xf32, #tpu.memory_space<vmem>>, %arg4: memref<1x32xf32, #tpu.memory_space<vmem>>, %arg5: memref<32x64xf32, #tpu.memory_space<vmem>>, %arg6: memref<1x64xf32, #tpu.memory_space<vmem>>, %arg7: memref<5x64x64xf32, #tpu.memory_space<vmem>>, %arg8: memref<5x1x64xf32, #tpu.memory_space<vmem>>, %arg9: memref<1x1xf32, #tpu.memory_space<vmem>>, %arg10: memref<8x64x128xf32, #tpu.memory_space<vmem>>, %arg11: memref<1x128xf32, #tpu.memory_space<vmem>>, %arg12: memref<128x128xf32, #tpu.memory_space<vmem>>) attributes {dimension_semantics = [#tpu.dimension_semantics<parallel>], iteration_bounds = array<i64: 2>, scalar_prefetch = 0 : i64, scratch_operands = 0 : i64, tpu.core_type = #tpu.core_type<tc>, window_params = [{transform_indices = @transform_0, window_bounds = array<i64: 128, 8>}, {transform_indices = @transform_1, window_bounds = array<i64: 128, 28>}, {pipeline_mode = #tpu.pipeline_mode<synchronous>, transform_indices = @transform_2, window_bounds = array<i64: 8, 32>}, {pipeline_mode = #tpu.pipeline_mode<synchronous>, transform_indices = @transform_3, window_bounds = array<i64: 1, 32>}, {pipeline_mode = #tpu.pipeline_mode<synchronous>, transform_indices = @transform_4, window_bounds = array<i64: 32, 64>}, {pipeline_mode = #tpu.pipeline_mode<synchronous>, transform_indices = @transform_5, window_bounds = array<i64: 1, 64>}, {pipeline_mode = #tpu.pipeline_mode<synchronous>, transform_indices = @transform_6, window_bounds = array<i64: 5, 64, 64>}, {pipeline_mode = #tpu.pipeline_mode<synchronous>, transform_indices = @transform_7, window_bounds = array<i64: 5, 1, 64>}, {pipeline_mode = #tpu.pipeline_mode<synchronous>, transform_indices = @transform_8, window_bounds = array<i64: 1, 1>}, {pipeline_mode = #tpu.pipeline_mode<synchronous>, transform_indices = @transform_9, window_bounds = array<i64: 8, 64, 128>}, {pipeline_mode = #tpu.pipeline_mode<synchronous>, transform_indices = @transform_10, window_bounds = array<i64: 1, 128>}, {transform_indices = @transform_11, window_bounds = array<i64: 128, 128>}]} {
    %c0 = arith.constant 0 : index
    %c0_0 = arith.constant 0 : index
    %0 = vector.load %arg9[%c0, %c0_0] : memref<1x1xf32, #tpu.memory_space<vmem>>, vector<1x1xf32>
    %c0_1 = arith.constant 0 : index
    %c0_2 = arith.constant 0 : index
    %1 = vector.load %arg1[%c0_1, %c0_2] : memref<128x8xf32, #tpu.memory_space<vmem>>, vector<128x8xf32>
    %c0_3 = arith.constant 0 : index
    %c0_4 = arith.constant 0 : index
    %2 = vector.load %arg3[%c0_3, %c0_4] : memref<8x32xf32, #tpu.memory_space<vmem>>, vector<8x32xf32>
    %3 = arith.truncf %1 : vector<128x8xf32> to vector<128x8xbf16>
    %4 = arith.truncf %2 : vector<8x32xf32> to vector<8x32xbf16>
    %cst = arith.constant dense<0.000000e+00> : vector<128x32xf32>
    %5 = tpu.matmul %3, %4, %cst {dimension_numbers = #tpu.dot_dimension_numbers<[1], [0], [0], [1], [0, 0, 1, 1], [], []>} : vector<128x8xbf16>, vector<8x32xbf16>, vector<128x32xf32> -> vector<128x32xf32>
    %c0_5 = arith.constant 0 : index
    %c0_6 = arith.constant 0 : index
    %6 = vector.load %arg4[%c0_5, %c0_6] : memref<1x32xf32, #tpu.memory_space<vmem>>, vector<1x32xf32>
    %7 = vector.broadcast %6 : vector<1x32xf32> to vector<128x32xf32>
    %8 = arith.addf %5, %7 : vector<128x32xf32>
    %9 = math.tanh %8 : vector<128x32xf32>
    %c0_7 = arith.constant 0 : index
    %c0_8 = arith.constant 0 : index
    %10 = vector.load %arg5[%c0_7, %c0_8] : memref<32x64xf32, #tpu.memory_space<vmem>>, vector<32x64xf32>
    %11 = arith.truncf %9 : vector<128x32xf32> to vector<128x32xbf16>
    %12 = arith.truncf %10 : vector<32x64xf32> to vector<32x64xbf16>
    %cst_9 = arith.constant dense<0.000000e+00> : vector<128x64xf32>
    %13 = tpu.matmul %11, %12, %cst_9 {dimension_numbers = #tpu.dot_dimension_numbers<[1], [0], [0], [1], [0, 0, 1, 1], [], []>} : vector<128x32xbf16>, vector<32x64xbf16>, vector<128x64xf32> -> vector<128x64xf32>
    %c0_10 = arith.constant 0 : index
    %c0_11 = arith.constant 0 : index
    %14 = vector.load %arg6[%c0_10, %c0_11] : memref<1x64xf32, #tpu.memory_space<vmem>>, vector<1x64xf32>
    %15 = vector.broadcast %14 : vector<1x64xf32> to vector<128x64xf32>
    %16 = arith.addf %13, %15 : vector<128x64xf32>
    %cst_12 = arith.constant 0.000000e+00 : f32
    %17 = vector.broadcast %cst_12 : f32 to vector<128x128xf32>
    %c0_13 = arith.constant 0 : index
    %c0_14 = arith.constant 0 : index
    %18 = vector.load %arg11[%c0_13, %c0_14] : memref<1x128xf32, #tpu.memory_space<vmem>>, vector<1x128xf32>
    %19 = vector.broadcast %18 : vector<1x128xf32> to vector<128x128xf32>
    %20 = arith.addf %17, %19 : vector<128x128xf32>
    %c0_15 = arith.constant 0 : index
    %c0_16 = arith.constant 0 : index
    %21 = vector.load %arg12[%c0_15, %c0_16] : memref<128x128xf32, #tpu.memory_space<vmem>>, vector<128x128xf32>
    tpu.vector_store %arg12[%c0_15, %c0_16], %20 {strides = array<i32>} : memref<128x128xf32, #tpu.memory_space<vmem>>, vector<128x128xf32>,
    %c0_17 = arith.constant 0 : index
    %c0_18 = arith.constant 0 : index
    %22 = vector.load %arg12[%c0_17, %c0_18] : memref<128x128xf32, #tpu.memory_space<vmem>>, vector<128x128xf32>
    %c0_19 = arith.constant 0 : index
    %c0_20 = arith.constant 0 : index
    %c0_21 = arith.constant 0 : index
    %23 = vector.load %arg10[%c0_19, %c0_20, %c0_21] : memref<8x64x128xf32, #tpu.memory_space<vmem>>, vector<1x64x128xf32>
    %24 = vector.shape_cast %23 : vector<1x64x128xf32> to vector<64x128xf32>
    %25 = arith.truncf %16 : vector<128x64xf32> to vector<128x64xbf16>
    %26 = arith.truncf %24 : vector<64x128xf32> to vector<64x128xbf16>
    %cst_22 = arith.constant dense<0.000000e+00> : vector<128x128xf32>
    %27 = tpu.matmul %25, %26, %cst_22 {dimension_numbers = #tpu.dot_dimension_numbers<[1], [0], [0], [1], [0, 0, 1, 1], [], []>} : vector<128x64xbf16>, vector<64x128xbf16>, vector<128x128xf32> -> vector<128x128xf32>
    %28 = arith.addf %22, %27 : vector<128x128xf32>
    %c0_23 = arith.constant 0 : index
    %c0_24 = arith.constant 0 : index
    %29 = vector.load %arg12[%c0_23, %c0_24] : memref<128x128xf32, #tpu.memory_space<vmem>>, vector<128x128xf32>
    tpu.vector_store %arg12[%c0_23, %c0_24], %28 {strides = array<i32>} : memref<128x128xf32, #tpu.memory_space<vmem>>, vector<128x128xf32>,
    %c0_25 = arith.constant 0 : index
    %c0_26 = arith.constant 0 : index
    %c0_27 = arith.constant 0 : index
    %30 = vector.load %arg7[%c0_25, %c0_26, %c0_27] : memref<5x64x64xf32, #tpu.memory_space<vmem>>, vector<1x64x64xf32>
    %31 = vector.shape_cast %30 : vector<1x64x64xf32> to vector<64x64xf32>
    %32 = arith.truncf %16 : vector<128x64xf32> to vector<128x64xbf16>
    %33 = arith.truncf %31 : vector<64x64xf32> to vector<64x64xbf16>
    %cst_28 = arith.constant dense<0.000000e+00> : vector<128x64xf32>
    %34 = tpu.matmul %32, %33, %cst_28 {dimension_numbers = #tpu.dot_dimension_numbers<[1], [0], [0], [1], [0, 0, 1, 1], [], []>} : vector<128x64xbf16>, vector<64x64xbf16>, vector<128x64xf32> -> vector<128x64xf32>
    %c0_29 = arith.constant 0 : index
    %c0_30 = arith.constant 0 : index
    %c0_31 = arith.constant 0 : index
    %35 = vector.load %arg8[%c0_29, %c0_30, %c0_31] : memref<5x1x64xf32, #tpu.memory_space<vmem>>, vector<1x1x64xf32>
    %36 = vector.shape_cast %35 : vector<1x1x64xf32> to vector<1x64xf32>
    %37 = vector.broadcast %36 : vector<1x64xf32> to vector<128x64xf32>
    %38 = arith.addf %34, %37 : vector<128x64xf32>
    %39 = math.tanh %38 : vector<128x64xf32>
    %cst_32 = arith.constant 0.000000e+00 : f32
    %40 = vector.broadcast %cst_32 : f32 to vector<128x64xf32>
    %c1 = arith.constant 1 : index
    %c0_33 = arith.constant 0 : index
    %c0_34 = arith.constant 0 : index
    %41 = vector.load %arg7[%c1, %c0_33, %c0_34] : memref<5x64x64xf32, #tpu.memory_space<vmem>>, vector<1x64x64xf32>
    %42 = vector.shape_cast %41 : vector<1x64x64xf32> to vector<64x64xf32>
    %43 = arith.truncf %16 : vector<128x64xf32> to vector<128x64xbf16>
    %44 = arith.truncf %42 : vector<64x64xf32> to vector<64x64xbf16>
    %cst_35 = arith.constant dense<0.000000e+00> : vector<128x64xf32>
    %45 = tpu.matmul %43, %44, %cst_35 {dimension_numbers = #tpu.dot_dimension_numbers<[1], [0], [0], [1], [0, 0, 1, 1], [], []>} : vector<128x64xbf16>, vector<64x64xbf16>, vector<128x64xf32> -> vector<128x64xf32>
    %c1_36 = arith.constant 1 : index
    %c0_37 = arith.constant 0 : index
    %c0_38 = arith.constant 0 : index
    %46 = vector.load %arg8[%c1_36, %c0_37, %c0_38] : memref<5x1x64xf32, #tpu.memory_space<vmem>>, vector<1x1x64xf32>
    %47 = vector.shape_cast %46 : vector<1x1x64xf32> to vector<1x64xf32>
    %48 = vector.broadcast %47 : vector<1x64xf32> to vector<128x64xf32>
    %49 = arith.addf %45, %48 : vector<128x64xf32>
    %50 = math.tanh %49 : vector<128x64xf32>
    %51 = vector.broadcast %0 : vector<1x1xf32> to vector<128x64xf32>
    %52 = arith.mulf %50, %51 : vector<128x64xf32>
    %c0_39 = arith.constant 0 : index
    %c0_40 = arith.constant 0 : index
    %53 = vector.load %arg2[%c0_39, %c0_40] : memref<128x28xf32, #tpu.memory_space<vmem>>, vector<128x1xf32>
    %54 = vector.broadcast %53 : vector<128x1xf32> to vector<128x64xf32>
    %55 = arith.mulf %52, %54 : vector<128x64xf32>
    %56 = arith.addf %40, %55 : vector<128x64xf32>
    %c2 = arith.constant 2 : index
    %c0_41 = arith.constant 0 : index
    %c0_42 = arith.constant 0 : index
    %57 = vector.load %arg7[%c2, %c0_41, %c0_42] : memref<5x64x64xf32, #tpu.memory_space<vmem>>, vector<1x64x64xf32>
    %58 = vector.shape_cast %57 : vector<1x64x64xf32> to vector<64x64xf32>
    %59 = arith.truncf %16 : vector<128x64xf32> to vector<128x64xbf16>
    %60 = arith.truncf %58 : vector<64x64xf32> to vector<64x64xbf16>
    %cst_43 = arith.constant dense<0.000000e+00> : vector<128x64xf32>
    %61 = tpu.matmul %59, %60, %cst_43 {dimension_numbers = #tpu.dot_dimension_numbers<[1], [0], [0], [1], [0, 0, 1, 1], [], []>} : vector<128x64xbf16>, vector<64x64xbf16>, vector<128x64xf32> -> vector<128x64xf32>
    %c2_44 = arith.constant 2 : index
    %c0_45 = arith.constant 0 : index
    %c0_46 = arith.constant 0 : index
    %62 = vector.load %arg8[%c2_44, %c0_45, %c0_46] : memref<5x1x64xf32, #tpu.memory_space<vmem>>, vector<1x1x64xf32>
    %63 = vector.shape_cast %62 : vector<1x1x64xf32> to vector<1x64xf32>
    %64 = vector.broadcast %63 : vector<1x64xf32> to vector<128x64xf32>
    %65 = arith.addf %61, %64 : vector<128x64xf32>
    %66 = math.tanh %65 : vector<128x64xf32>
    %67 = vector.broadcast %0 : vector<1x1xf32> to vector<128x64xf32>
    %68 = arith.mulf %66, %67 : vector<128x64xf32>
    %c0_47 = arith.constant 0 : index
    %c1_48 = arith.constant 1 : index
    %69 = vector.load %arg2[%c0_47, %c1_48] : memref<128x28xf32, #tpu.memory_space<vmem>>, vector<128x1xf32>
    %70 = vector.broadcast %69 : vector<128x1xf32> to vector<128x64xf32>
    %71 = arith.mulf %68, %70 : vector<128x64xf32>
    %72 = arith.addf %56, %71 : vector<128x64xf32>
    %c3 = arith.constant 3 : index
    %c0_49 = arith.constant 0 : index
    %c0_50 = arith.constant 0 : index
    %73 = vector.load %arg7[%c3, %c0_49, %c0_50] : memref<5x64x64xf32, #tpu.memory_space<vmem>>, vector<1x64x64xf32>
    %74 = vector.shape_cast %73 : vector<1x64x64xf32> to vector<64x64xf32>
    %75 = arith.truncf %16 : vector<128x64xf32> to vector<128x64xbf16>
    %76 = arith.truncf %74 : vector<64x64xf32> to vector<64x64xbf16>
    %cst_51 = arith.constant dense<0.000000e+00> : vector<128x64xf32>
    %77 = tpu.matmul %75, %76, %cst_51 {dimension_numbers = #tpu.dot_dimension_numbers<[1], [0], [0], [1], [0, 0, 1, 1], [], []>} : vector<128x64xbf16>, vector<64x64xbf16>, vector<128x64xf32> -> vector<128x64xf32>
    %c3_52 = arith.constant 3 : index
    %c0_53 = arith.constant 0 : index
    %c0_54 = arith.constant 0 : index
    %78 = vector.load %arg8[%c3_52, %c0_53, %c0_54] : memref<5x1x64xf32, #tpu.memory_space<vmem>>, vector<1x1x64xf32>
    %79 = vector.shape_cast %78 : vector<1x1x64xf32> to vector<1x64xf32>
    %80 = vector.broadcast %79 : vector<1x64xf32> to vector<128x64xf32>
    %81 = arith.addf %77, %80 : vector<128x64xf32>
    %82 = math.tanh %81 : vector<128x64xf32>
    %83 = vector.broadcast %0 : vector<1x1xf32> to vector<128x64xf32>
    %84 = arith.mulf %82, %83 : vector<128x64xf32>
    %c0_55 = arith.constant 0 : index
    %c2_56 = arith.constant 2 : index
    %85 = vector.load %arg2[%c0_55, %c2_56] : memref<128x28xf32, #tpu.memory_space<vmem>>, vector<128x1xf32>
    %86 = vector.broadcast %85 : vector<128x1xf32> to vector<128x64xf32>
    %87 = arith.mulf %84, %86 : vector<128x64xf32>
    %88 = arith.addf %72, %87 : vector<128x64xf32>
    %c4 = arith.constant 4 : index
    %c0_57 = arith.constant 0 : index
    %c0_58 = arith.constant 0 : index
    %89 = vector.load %arg7[%c4, %c0_57, %c0_58] : memref<5x64x64xf32, #tpu.memory_space<vmem>>, vector<1x64x64xf32>
    %90 = vector.shape_cast %89 : vector<1x64x64xf32> to vector<64x64xf32>
    %91 = arith.truncf %16 : vector<128x64xf32> to vector<128x64xbf16>
    %92 = arith.truncf %90 : vector<64x64xf32> to vector<64x64xbf16>
    %cst_59 = arith.constant dense<0.000000e+00> : vector<128x64xf32>
    %93 = tpu.matmul %91, %92, %cst_59 {dimension_numbers = #tpu.dot_dimension_numbers<[1], [0], [0], [1], [0, 0, 1, 1], [], []>} : vector<128x64xbf16>, vector<64x64xbf16>, vector<128x64xf32> -> vector<128x64xf32>
    %c4_60 = arith.constant 4 : index
    %c0_61 = arith.constant 0 : index
    %c0_62 = arith.constant 0 : index
    %94 = vector.load %arg8[%c4_60, %c0_61, %c0_62] : memref<5x1x64xf32, #tpu.memory_space<vmem>>, vector<1x1x64xf32>
    %95 = vector.shape_cast %94 : vector<1x1x64xf32> to vector<1x64xf32>
    %96 = vector.broadcast %95 : vector<1x64xf32> to vector<128x64xf32>
    %97 = arith.addf %93, %96 : vector<128x64xf32>
    %98 = math.tanh %97 : vector<128x64xf32>
    %99 = vector.broadcast %0 : vector<1x1xf32> to vector<128x64xf32>
    %100 = arith.mulf %98, %99 : vector<128x64xf32>
    %c0_63 = arith.constant 0 : index
    %c3_64 = arith.constant 3 : index
    %101 = vector.load %arg2[%c0_63, %c3_64] : memref<128x28xf32, #tpu.memory_space<vmem>>, vector<128x1xf32>
    %102 = vector.broadcast %101 : vector<128x1xf32> to vector<128x64xf32>
    %103 = arith.mulf %100, %102 : vector<128x64xf32>
    %104 = arith.addf %88, %103 : vector<128x64xf32>
    %105 = arith.addf %16, %39 : vector<128x64xf32>
    %106 = arith.addf %105, %104 : vector<128x64xf32>
    %c0_65 = arith.constant 0 : index
    %c0_66 = arith.constant 0 : index
    %107 = vector.load %arg12[%c0_65, %c0_66] : memref<128x128xf32, #tpu.memory_space<vmem>>, vector<128x128xf32>
    %c1_67 = arith.constant 1 : index
    %c0_68 = arith.constant 0 : index
    %c0_69 = arith.constant 0 : index
    %108 = vector.load %arg10[%c1_67, %c0_68, %c0_69] : memref<8x64x128xf32, #tpu.memory_space<vmem>>, vector<1x64x128xf32>
    %109 = vector.shape_cast %108 : vector<1x64x128xf32> to vector<64x128xf32>
    %110 = arith.truncf %106 : vector<128x64xf32> to vector<128x64xbf16>
    %111 = arith.truncf %109 : vector<64x128xf32> to vector<64x128xbf16>
    %cst_70 = arith.constant dense<0.000000e+00> : vector<128x128xf32>
    %112 = tpu.matmul %110, %111, %cst_70 {dimension_numbers = #tpu.dot_dimension_numbers<[1], [0], [0], [1], [0, 0, 1, 1], [], []>} : vector<128x64xbf16>, vector<64x128xbf16>, vector<128x128xf32> -> vector<128x128xf32>
    %113 = arith.addf %107, %112 : vector<128x128xf32>
    %c0_71 = arith.constant 0 : index
    %c0_72 = arith.constant 0 : index
    %114 = vector.load %arg12[%c0_71, %c0_72] : memref<128x128xf32, #tpu.memory_space<vmem>>, vector<128x128xf32>
    tpu.vector_store %arg12[%c0_71, %c0_72], %113 {strides = array<i32>} : memref<128x128xf32, #tpu.memory_space<vmem>>, vector<128x128xf32>,
    %c0_73 = arith.constant 0 : index
    %c0_74 = arith.constant 0 : index
    %c0_75 = arith.constant 0 : index
    %115 = vector.load %arg7[%c0_73, %c0_74, %c0_75] : memref<5x64x64xf32, #tpu.memory_space<vmem>>, vector<1x64x64xf32>
    %116 = vector.shape_cast %115 : vector<1x64x64xf32> to vector<64x64xf32>
    %117 = arith.truncf %106 : vector<128x64xf32> to vector<128x64xbf16>
    %118 = arith.truncf %116 : vector<64x64xf32> to vector<64x64xbf16>
    %cst_76 = arith.constant dense<0.000000e+00> : vector<128x64xf32>
    %119 = tpu.matmul %117, %118, %cst_76 {dimension_numbers = #tpu.dot_dimension_numbers<[1], [0], [0], [1], [0, 0, 1, 1], [], []>} : vector<128x64xbf16>, vector<64x64xbf16>, vector<128x64xf32> -> vector<128x64xf32>
    %c0_77 = arith.constant 0 : index
    %c0_78 = arith.constant 0 : index
    %c0_79 = arith.constant 0 : index
    %120 = vector.load %arg8[%c0_77, %c0_78, %c0_79] : memref<5x1x64xf32, #tpu.memory_space<vmem>>, vector<1x1x64xf32>
    %121 = vector.shape_cast %120 : vector<1x1x64xf32> to vector<1x64xf32>
    %122 = vector.broadcast %121 : vector<1x64xf32> to vector<128x64xf32>
    %123 = arith.addf %119, %122 : vector<128x64xf32>
    %124 = math.tanh %123 : vector<128x64xf32>
    %cst_80 = arith.constant 0.000000e+00 : f32
    %125 = vector.broadcast %cst_80 : f32 to vector<128x64xf32>
    %c1_81 = arith.constant 1 : index
    %c0_82 = arith.constant 0 : index
    %c0_83 = arith.constant 0 : index
    %126 = vector.load %arg7[%c1_81, %c0_82, %c0_83] : memref<5x64x64xf32, #tpu.memory_space<vmem>>, vector<1x64x64xf32>
    %127 = vector.shape_cast %126 : vector<1x64x64xf32> to vector<64x64xf32>
    %128 = arith.truncf %106 : vector<128x64xf32> to vector<128x64xbf16>
    %129 = arith.truncf %127 : vector<64x64xf32> to vector<64x64xbf16>
    %cst_84 = arith.constant dense<0.000000e+00> : vector<128x64xf32>
    %130 = tpu.matmul %128, %129, %cst_84 {dimension_numbers = #tpu.dot_dimension_numbers<[1], [0], [0], [1], [0, 0, 1, 1], [], []>} : vector<128x64xbf16>, vector<64x64xbf16>, vector<128x64xf32> -> vector<128x64xf32>
    %c1_85 = arith.constant 1 : index
    %c0_86 = arith.constant 0 : index
    %c0_87 = arith.constant 0 : index
    %131 = vector.load %arg8[%c1_85, %c0_86, %c0_87] : memref<5x1x64xf32, #tpu.memory_space<vmem>>, vector<1x1x64xf32>
    %132 = vector.shape_cast %131 : vector<1x1x64xf32> to vector<1x64xf32>
    %133 = vector.broadcast %132 : vector<1x64xf32> to vector<128x64xf32>
    %134 = arith.addf %130, %133 : vector<128x64xf32>
    %135 = math.tanh %134 : vector<128x64xf32>
    %136 = vector.broadcast %0 : vector<1x1xf32> to vector<128x64xf32>
    %137 = arith.mulf %135, %136 : vector<128x64xf32>
    %c0_88 = arith.constant 0 : index
    %c4_89 = arith.constant 4 : index
    %138 = vector.load %arg2[%c0_88, %c4_89] : memref<128x28xf32, #tpu.memory_space<vmem>>, vector<128x1xf32>
    %139 = vector.broadcast %138 : vector<128x1xf32> to vector<128x64xf32>
    %140 = arith.mulf %137, %139 : vector<128x64xf32>
    %141 = arith.addf %125, %140 : vector<128x64xf32>
    %c2_90 = arith.constant 2 : index
    %c0_91 = arith.constant 0 : index
    %c0_92 = arith.constant 0 : index
    %142 = vector.load %arg7[%c2_90, %c0_91, %c0_92] : memref<5x64x64xf32, #tpu.memory_space<vmem>>, vector<1x64x64xf32>
    %143 = vector.shape_cast %142 : vector<1x64x64xf32> to vector<64x64xf32>
    %144 = arith.truncf %106 : vector<128x64xf32> to vector<128x64xbf16>
    %145 = arith.truncf %143 : vector<64x64xf32> to vector<64x64xbf16>
    %cst_93 = arith.constant dense<0.000000e+00> : vector<128x64xf32>
    %146 = tpu.matmul %144, %145, %cst_93 {dimension_numbers = #tpu.dot_dimension_numbers<[1], [0], [0], [1], [0, 0, 1, 1], [], []>} : vector<128x64xbf16>, vector<64x64xbf16>, vector<128x64xf32> -> vector<128x64xf32>
    %c2_94 = arith.constant 2 : index
    %c0_95 = arith.constant 0 : index
    %c0_96 = arith.constant 0 : index
    %147 = vector.load %arg8[%c2_94, %c0_95, %c0_96] : memref<5x1x64xf32, #tpu.memory_space<vmem>>, vector<1x1x64xf32>
    %148 = vector.shape_cast %147 : vector<1x1x64xf32> to vector<1x64xf32>
    %149 = vector.broadcast %148 : vector<1x64xf32> to vector<128x64xf32>
    %150 = arith.addf %146, %149 : vector<128x64xf32>
    %151 = math.tanh %150 : vector<128x64xf32>
    %152 = vector.broadcast %0 : vector<1x1xf32> to vector<128x64xf32>
    %153 = arith.mulf %151, %152 : vector<128x64xf32>
    %c0_97 = arith.constant 0 : index
    %c5 = arith.constant 5 : index
    %154 = vector.load %arg2[%c0_97, %c5] : memref<128x28xf32, #tpu.memory_space<vmem>>, vector<128x1xf32>
    %155 = vector.broadcast %154 : vector<128x1xf32> to vector<128x64xf32>
    %156 = arith.mulf %153, %155 : vector<128x64xf32>
    %157 = arith.addf %141, %156 : vector<128x64xf32>
    %c3_98 = arith.constant 3 : index
    %c0_99 = arith.constant 0 : index
    %c0_100 = arith.constant 0 : index
    %158 = vector.load %arg7[%c3_98, %c0_99, %c0_100] : memref<5x64x64xf32, #tpu.memory_space<vmem>>, vector<1x64x64xf32>
    %159 = vector.shape_cast %158 : vector<1x64x64xf32> to vector<64x64xf32>
    %160 = arith.truncf %106 : vector<128x64xf32> to vector<128x64xbf16>
    %161 = arith.truncf %159 : vector<64x64xf32> to vector<64x64xbf16>
    %cst_101 = arith.constant dense<0.000000e+00> : vector<128x64xf32>
    %162 = tpu.matmul %160, %161, %cst_101 {dimension_numbers = #tpu.dot_dimension_numbers<[1], [0], [0], [1], [0, 0, 1, 1], [], []>} : vector<128x64xbf16>, vector<64x64xbf16>, vector<128x64xf32> -> vector<128x64xf32>
    %c3_102 = arith.constant 3 : index
    %c0_103 = arith.constant 0 : index
    %c0_104 = arith.constant 0 : index
    %163 = vector.load %arg8[%c3_102, %c0_103, %c0_104] : memref<5x1x64xf32, #tpu.memory_space<vmem>>, vector<1x1x64xf32>
    %164 = vector.shape_cast %163 : vector<1x1x64xf32> to vector<1x64xf32>
    %165 = vector.broadcast %164 : vector<1x64xf32> to vector<128x64xf32>
    %166 = arith.addf %162, %165 : vector<128x64xf32>
    %167 = math.tanh %166 : vector<128x64xf32>
    %168 = vector.broadcast %0 : vector<1x1xf32> to vector<128x64xf32>
    %169 = arith.mulf %167, %168 : vector<128x64xf32>
    %c0_105 = arith.constant 0 : index
    %c6 = arith.constant 6 : index
    %170 = vector.load %arg2[%c0_105, %c6] : memref<128x28xf32, #tpu.memory_space<vmem>>, vector<128x1xf32>
    %171 = vector.broadcast %170 : vector<128x1xf32> to vector<128x64xf32>
    %172 = arith.mulf %169, %171 : vector<128x64xf32>
    %173 = arith.addf %157, %172 : vector<128x64xf32>
    %c4_106 = arith.constant 4 : index
    %c0_107 = arith.constant 0 : index
    %c0_108 = arith.constant 0 : index
    %174 = vector.load %arg7[%c4_106, %c0_107, %c0_108] : memref<5x64x64xf32, #tpu.memory_space<vmem>>, vector<1x64x64xf32>
    %175 = vector.shape_cast %174 : vector<1x64x64xf32> to vector<64x64xf32>
    %176 = arith.truncf %106 : vector<128x64xf32> to vector<128x64xbf16>
    %177 = arith.truncf %175 : vector<64x64xf32> to vector<64x64xbf16>
    %cst_109 = arith.constant dense<0.000000e+00> : vector<128x64xf32>
    %178 = tpu.matmul %176, %177, %cst_109 {dimension_numbers = #tpu.dot_dimension_numbers<[1], [0], [0], [1], [0, 0, 1, 1], [], []>} : vector<128x64xbf16>, vector<64x64xbf16>, vector<128x64xf32> -> vector<128x64xf32>
    %c4_110 = arith.constant 4 : index
    %c0_111 = arith.constant 0 : index
    %c0_112 = arith.constant 0 : index
    %179 = vector.load %arg8[%c4_110, %c0_111, %c0_112] : memref<5x1x64xf32, #tpu.memory_space<vmem>>, vector<1x1x64xf32>
    %180 = vector.shape_cast %179 : vector<1x1x64xf32> to vector<1x64xf32>
    %181 = vector.broadcast %180 : vector<1x64xf32> to vector<128x64xf32>
    %182 = arith.addf %178, %181 : vector<128x64xf32>
    %183 = math.tanh %182 : vector<128x64xf32>
    %184 = vector.broadcast %0 : vector<1x1xf32> to vector<128x64xf32>
    %185 = arith.mulf %183, %184 : vector<128x64xf32>
    %c0_113 = arith.constant 0 : index
    %c7 = arith.constant 7 : index
    %186 = vector.load %arg2[%c0_113, %c7] : memref<128x28xf32, #tpu.memory_space<vmem>>, vector<128x1xf32>
    %187 = vector.broadcast %186 : vector<128x1xf32> to vector<128x64xf32>
    %188 = arith.mulf %185, %187 : vector<128x64xf32>
    %189 = arith.addf %173, %188 : vector<128x64xf32>
    %190 = arith.addf %106, %124 : vector<128x64xf32>
    %191 = arith.addf %190, %189 : vector<128x64xf32>
    %c0_114 = arith.constant 0 : index
    %c0_115 = arith.constant 0 : index
    %192 = vector.load %arg12[%c0_114, %c0_115] : memref<128x128xf32, #tpu.memory_space<vmem>>, vector<128x128xf32>
    %c2_116 = arith.constant 2 : index
    %c0_117 = arith.constant 0 : index
    %c0_118 = arith.constant 0 : index
    %193 = vector.load %arg10[%c2_116, %c0_117, %c0_118] : memref<8x64x128xf32, #tpu.memory_space<vmem>>, vector<1x64x128xf32>
    %194 = vector.shape_cast %193 : vector<1x64x128xf32> to vector<64x128xf32>
    %195 = arith.truncf %191 : vector<128x64xf32> to vector<128x64xbf16>
    %196 = arith.truncf %194 : vector<64x128xf32> to vector<64x128xbf16>
    %cst_119 = arith.constant dense<0.000000e+00> : vector<128x128xf32>
    %197 = tpu.matmul %195, %196, %cst_119 {dimension_numbers = #tpu.dot_dimension_numbers<[1], [0], [0], [1], [0, 0, 1, 1], [], []>} : vector<128x64xbf16>, vector<64x128xbf16>, vector<128x128xf32> -> vector<128x128xf32>
    %198 = arith.addf %192, %197 : vector<128x128xf32>
    %c0_120 = arith.constant 0 : index
    %c0_121 = arith.constant 0 : index
    %199 = vector.load %arg12[%c0_120, %c0_121] : memref<128x128xf32, #tpu.memory_space<vmem>>, vector<128x128xf32>
    tpu.vector_store %arg12[%c0_120, %c0_121], %198 {strides = array<i32>} : memref<128x128xf32, #tpu.memory_space<vmem>>, vector<128x128xf32>,
    %c0_122 = arith.constant 0 : index
    %c0_123 = arith.constant 0 : index
    %c0_124 = arith.constant 0 : index
    %200 = vector.load %arg7[%c0_122, %c0_123, %c0_124] : memref<5x64x64xf32, #tpu.memory_space<vmem>>, vector<1x64x64xf32>
    %201 = vector.shape_cast %200 : vector<1x64x64xf32> to vector<64x64xf32>
    %202 = arith.truncf %191 : vector<128x64xf32> to vector<128x64xbf16>
    %203 = arith.truncf %201 : vector<64x64xf32> to vector<64x64xbf16>
    %cst_125 = arith.constant dense<0.000000e+00> : vector<128x64xf32>
    %204 = tpu.matmul %202, %203, %cst_125 {dimension_numbers = #tpu.dot_dimension_numbers<[1], [0], [0], [1], [0, 0, 1, 1], [], []>} : vector<128x64xbf16>, vector<64x64xbf16>, vector<128x64xf32> -> vector<128x64xf32>
    %c0_126 = arith.constant 0 : index
    %c0_127 = arith.constant 0 : index
    %c0_128 = arith.constant 0 : index
    %205 = vector.load %arg8[%c0_126, %c0_127, %c0_128] : memref<5x1x64xf32, #tpu.memory_space<vmem>>, vector<1x1x64xf32>
    %206 = vector.shape_cast %205 : vector<1x1x64xf32> to vector<1x64xf32>
    %207 = vector.broadcast %206 : vector<1x64xf32> to vector<128x64xf32>
    %208 = arith.addf %204, %207 : vector<128x64xf32>
    %209 = math.tanh %208 : vector<128x64xf32>
    %cst_129 = arith.constant 0.000000e+00 : f32
    %210 = vector.broadcast %cst_129 : f32 to vector<128x64xf32>
    %c1_130 = arith.constant 1 : index
    %c0_131 = arith.constant 0 : index
    %c0_132 = arith.constant 0 : index
    %211 = vector.load %arg7[%c1_130, %c0_131, %c0_132] : memref<5x64x64xf32, #tpu.memory_space<vmem>>, vector<1x64x64xf32>
    %212 = vector.shape_cast %211 : vector<1x64x64xf32> to vector<64x64xf32>
    %213 = arith.truncf %191 : vector<128x64xf32> to vector<128x64xbf16>
    %214 = arith.truncf %212 : vector<64x64xf32> to vector<64x64xbf16>
    %cst_133 = arith.constant dense<0.000000e+00> : vector<128x64xf32>
    %215 = tpu.matmul %213, %214, %cst_133 {dimension_numbers = #tpu.dot_dimension_numbers<[1], [0], [0], [1], [0, 0, 1, 1], [], []>} : vector<128x64xbf16>, vector<64x64xbf16>, vector<128x64xf32> -> vector<128x64xf32>
    %c1_134 = arith.constant 1 : index
    %c0_135 = arith.constant 0 : index
    %c0_136 = arith.constant 0 : index
    %216 = vector.load %arg8[%c1_134, %c0_135, %c0_136] : memref<5x1x64xf32, #tpu.memory_space<vmem>>, vector<1x1x64xf32>
    %217 = vector.shape_cast %216 : vector<1x1x64xf32> to vector<1x64xf32>
    %218 = vector.broadcast %217 : vector<1x64xf32> to vector<128x64xf32>
    %219 = arith.addf %215, %218 : vector<128x64xf32>
    %220 = math.tanh %219 : vector<128x64xf32>
    %221 = vector.broadcast %0 : vector<1x1xf32> to vector<128x64xf32>
    %222 = arith.mulf %220, %221 : vector<128x64xf32>
    %c0_137 = arith.constant 0 : index
    %c8 = arith.constant 8 : index
    %223 = vector.load %arg2[%c0_137, %c8] : memref<128x28xf32, #tpu.memory_space<vmem>>, vector<128x1xf32>
    %224 = vector.broadcast %223 : vector<128x1xf32> to vector<128x64xf32>
    %225 = arith.mulf %222, %224 : vector<128x64xf32>
    %226 = arith.addf %210, %225 : vector<128x64xf32>
    %c2_138 = arith.constant 2 : index
    %c0_139 = arith.constant 0 : index
    %c0_140 = arith.constant 0 : index
    %227 = vector.load %arg7[%c2_138, %c0_139, %c0_140] : memref<5x64x64xf32, #tpu.memory_space<vmem>>, vector<1x64x64xf32>
    %228 = vector.shape_cast %227 : vector<1x64x64xf32> to vector<64x64xf32>
    %229 = arith.truncf %191 : vector<128x64xf32> to vector<128x64xbf16>
    %230 = arith.truncf %228 : vector<64x64xf32> to vector<64x64xbf16>
    %cst_141 = arith.constant dense<0.000000e+00> : vector<128x64xf32>
    %231 = tpu.matmul %229, %230, %cst_141 {dimension_numbers = #tpu.dot_dimension_numbers<[1], [0], [0], [1], [0, 0, 1, 1], [], []>} : vector<128x64xbf16>, vector<64x64xbf16>, vector<128x64xf32> -> vector<128x64xf32>
    %c2_142 = arith.constant 2 : index
    %c0_143 = arith.constant 0 : index
    %c0_144 = arith.constant 0 : index
    %232 = vector.load %arg8[%c2_142, %c0_143, %c0_144] : memref<5x1x64xf32, #tpu.memory_space<vmem>>, vector<1x1x64xf32>
    %233 = vector.shape_cast %232 : vector<1x1x64xf32> to vector<1x64xf32>
    %234 = vector.broadcast %233 : vector<1x64xf32> to vector<128x64xf32>
    %235 = arith.addf %231, %234 : vector<128x64xf32>
    %236 = math.tanh %235 : vector<128x64xf32>
    %237 = vector.broadcast %0 : vector<1x1xf32> to vector<128x64xf32>
    %238 = arith.mulf %236, %237 : vector<128x64xf32>
    %c0_145 = arith.constant 0 : index
    %c9 = arith.constant 9 : index
    %239 = vector.load %arg2[%c0_145, %c9] : memref<128x28xf32, #tpu.memory_space<vmem>>, vector<128x1xf32>
    %240 = vector.broadcast %239 : vector<128x1xf32> to vector<128x64xf32>
    %241 = arith.mulf %238, %240 : vector<128x64xf32>
    %242 = arith.addf %226, %241 : vector<128x64xf32>
    %c3_146 = arith.constant 3 : index
    %c0_147 = arith.constant 0 : index
    %c0_148 = arith.constant 0 : index
    %243 = vector.load %arg7[%c3_146, %c0_147, %c0_148] : memref<5x64x64xf32, #tpu.memory_space<vmem>>, vector<1x64x64xf32>
    %244 = vector.shape_cast %243 : vector<1x64x64xf32> to vector<64x64xf32>
    %245 = arith.truncf %191 : vector<128x64xf32> to vector<128x64xbf16>
    %246 = arith.truncf %244 : vector<64x64xf32> to vector<64x64xbf16>
    %cst_149 = arith.constant dense<0.000000e+00> : vector<128x64xf32>
    %247 = tpu.matmul %245, %246, %cst_149 {dimension_numbers = #tpu.dot_dimension_numbers<[1], [0], [0], [1], [0, 0, 1, 1], [], []>} : vector<128x64xbf16>, vector<64x64xbf16>, vector<128x64xf32> -> vector<128x64xf32>
    %c3_150 = arith.constant 3 : index
    %c0_151 = arith.constant 0 : index
    %c0_152 = arith.constant 0 : index
    %248 = vector.load %arg8[%c3_150, %c0_151, %c0_152] : memref<5x1x64xf32, #tpu.memory_space<vmem>>, vector<1x1x64xf32>
    %249 = vector.shape_cast %248 : vector<1x1x64xf32> to vector<1x64xf32>
    %250 = vector.broadcast %249 : vector<1x64xf32> to vector<128x64xf32>
    %251 = arith.addf %247, %250 : vector<128x64xf32>
    %252 = math.tanh %251 : vector<128x64xf32>
    %253 = vector.broadcast %0 : vector<1x1xf32> to vector<128x64xf32>
    %254 = arith.mulf %252, %253 : vector<128x64xf32>
    %c0_153 = arith.constant 0 : index
    %c10 = arith.constant 10 : index
    %255 = vector.load %arg2[%c0_153, %c10] : memref<128x28xf32, #tpu.memory_space<vmem>>, vector<128x1xf32>
    %256 = vector.broadcast %255 : vector<128x1xf32> to vector<128x64xf32>
    %257 = arith.mulf %254, %256 : vector<128x64xf32>
    %258 = arith.addf %242, %257 : vector<128x64xf32>
    %c4_154 = arith.constant 4 : index
    %c0_155 = arith.constant 0 : index
    %c0_156 = arith.constant 0 : index
    %259 = vector.load %arg7[%c4_154, %c0_155, %c0_156] : memref<5x64x64xf32, #tpu.memory_space<vmem>>, vector<1x64x64xf32>
    %260 = vector.shape_cast %259 : vector<1x64x64xf32> to vector<64x64xf32>
    %261 = arith.truncf %191 : vector<128x64xf32> to vector<128x64xbf16>
    %262 = arith.truncf %260 : vector<64x64xf32> to vector<64x64xbf16>
    %cst_157 = arith.constant dense<0.000000e+00> : vector<128x64xf32>
    %263 = tpu.matmul %261, %262, %cst_157 {dimension_numbers = #tpu.dot_dimension_numbers<[1], [0], [0], [1], [0, 0, 1, 1], [], []>} : vector<128x64xbf16>, vector<64x64xbf16>, vector<128x64xf32> -> vector<128x64xf32>
    %c4_158 = arith.constant 4 : index
    %c0_159 = arith.constant 0 : index
    %c0_160 = arith.constant 0 : index
    %264 = vector.load %arg8[%c4_158, %c0_159, %c0_160] : memref<5x1x64xf32, #tpu.memory_space<vmem>>, vector<1x1x64xf32>
    %265 = vector.shape_cast %264 : vector<1x1x64xf32> to vector<1x64xf32>
    %266 = vector.broadcast %265 : vector<1x64xf32> to vector<128x64xf32>
    %267 = arith.addf %263, %266 : vector<128x64xf32>
    %268 = math.tanh %267 : vector<128x64xf32>
    %269 = vector.broadcast %0 : vector<1x1xf32> to vector<128x64xf32>
    %270 = arith.mulf %268, %269 : vector<128x64xf32>
    %c0_161 = arith.constant 0 : index
    %c11 = arith.constant 11 : index
    %271 = vector.load %arg2[%c0_161, %c11] : memref<128x28xf32, #tpu.memory_space<vmem>>, vector<128x1xf32>
    %272 = vector.broadcast %271 : vector<128x1xf32> to vector<128x64xf32>
    %273 = arith.mulf %270, %272 : vector<128x64xf32>
    %274 = arith.addf %258, %273 : vector<128x64xf32>
    %275 = arith.addf %191, %209 : vector<128x64xf32>
    %276 = arith.addf %275, %274 : vector<128x64xf32>
    %c0_162 = arith.constant 0 : index
    %c0_163 = arith.constant 0 : index
    %277 = vector.load %arg12[%c0_162, %c0_163] : memref<128x128xf32, #tpu.memory_space<vmem>>, vector<128x128xf32>
    %c3_164 = arith.constant 3 : index
    %c0_165 = arith.constant 0 : index
    %c0_166 = arith.constant 0 : index
    %278 = vector.load %arg10[%c3_164, %c0_165, %c0_166] : memref<8x64x128xf32, #tpu.memory_space<vmem>>, vector<1x64x128xf32>
    %279 = vector.shape_cast %278 : vector<1x64x128xf32> to vector<64x128xf32>
    %280 = arith.truncf %276 : vector<128x64xf32> to vector<128x64xbf16>
    %281 = arith.truncf %279 : vector<64x128xf32> to vector<64x128xbf16>
    %cst_167 = arith.constant dense<0.000000e+00> : vector<128x128xf32>
    %282 = tpu.matmul %280, %281, %cst_167 {dimension_numbers = #tpu.dot_dimension_numbers<[1], [0], [0], [1], [0, 0, 1, 1], [], []>} : vector<128x64xbf16>, vector<64x128xbf16>, vector<128x128xf32> -> vector<128x128xf32>
    %283 = arith.addf %277, %282 : vector<128x128xf32>
    %c0_168 = arith.constant 0 : index
    %c0_169 = arith.constant 0 : index
    %284 = vector.load %arg12[%c0_168, %c0_169] : memref<128x128xf32, #tpu.memory_space<vmem>>, vector<128x128xf32>
    tpu.vector_store %arg12[%c0_168, %c0_169], %283 {strides = array<i32>} : memref<128x128xf32, #tpu.memory_space<vmem>>, vector<128x128xf32>,
    %c0_170 = arith.constant 0 : index
    %c0_171 = arith.constant 0 : index
    %c0_172 = arith.constant 0 : index
    %285 = vector.load %arg7[%c0_170, %c0_171, %c0_172] : memref<5x64x64xf32, #tpu.memory_space<vmem>>, vector<1x64x64xf32>
    %286 = vector.shape_cast %285 : vector<1x64x64xf32> to vector<64x64xf32>
    %287 = arith.truncf %276 : vector<128x64xf32> to vector<128x64xbf16>
    %288 = arith.truncf %286 : vector<64x64xf32> to vector<64x64xbf16>
    %cst_173 = arith.constant dense<0.000000e+00> : vector<128x64xf32>
    %289 = tpu.matmul %287, %288, %cst_173 {dimension_numbers = #tpu.dot_dimension_numbers<[1], [0], [0], [1], [0, 0, 1, 1], [], []>} : vector<128x64xbf16>, vector<64x64xbf16>, vector<128x64xf32> -> vector<128x64xf32>
    %c0_174 = arith.constant 0 : index
    %c0_175 = arith.constant 0 : index
    %c0_176 = arith.constant 0 : index
    %290 = vector.load %arg8[%c0_174, %c0_175, %c0_176] : memref<5x1x64xf32, #tpu.memory_space<vmem>>, vector<1x1x64xf32>
    %291 = vector.shape_cast %290 : vector<1x1x64xf32> to vector<1x64xf32>
    %292 = vector.broadcast %291 : vector<1x64xf32> to vector<128x64xf32>
    %293 = arith.addf %289, %292 : vector<128x64xf32>
    %294 = math.tanh %293 : vector<128x64xf32>
    %cst_177 = arith.constant 0.000000e+00 : f32
    %295 = vector.broadcast %cst_177 : f32 to vector<128x64xf32>
    %c1_178 = arith.constant 1 : index
    %c0_179 = arith.constant 0 : index
    %c0_180 = arith.constant 0 : index
    %296 = vector.load %arg7[%c1_178, %c0_179, %c0_180] : memref<5x64x64xf32, #tpu.memory_space<vmem>>, vector<1x64x64xf32>
    %297 = vector.shape_cast %296 : vector<1x64x64xf32> to vector<64x64xf32>
    %298 = arith.truncf %276 : vector<128x64xf32> to vector<128x64xbf16>
    %299 = arith.truncf %297 : vector<64x64xf32> to vector<64x64xbf16>
    %cst_181 = arith.constant dense<0.000000e+00> : vector<128x64xf32>
    %300 = tpu.matmul %298, %299, %cst_181 {dimension_numbers = #tpu.dot_dimension_numbers<[1], [0], [0], [1], [0, 0, 1, 1], [], []>} : vector<128x64xbf16>, vector<64x64xbf16>, vector<128x64xf32> -> vector<128x64xf32>
    %c1_182 = arith.constant 1 : index
    %c0_183 = arith.constant 0 : index
    %c0_184 = arith.constant 0 : index
    %301 = vector.load %arg8[%c1_182, %c0_183, %c0_184] : memref<5x1x64xf32, #tpu.memory_space<vmem>>, vector<1x1x64xf32>
    %302 = vector.shape_cast %301 : vector<1x1x64xf32> to vector<1x64xf32>
    %303 = vector.broadcast %302 : vector<1x64xf32> to vector<128x64xf32>
    %304 = arith.addf %300, %303 : vector<128x64xf32>
    %305 = math.tanh %304 : vector<128x64xf32>
    %306 = vector.broadcast %0 : vector<1x1xf32> to vector<128x64xf32>
    %307 = arith.mulf %305, %306 : vector<128x64xf32>
    %c0_185 = arith.constant 0 : index
    %c12 = arith.constant 12 : index
    %308 = vector.load %arg2[%c0_185, %c12] : memref<128x28xf32, #tpu.memory_space<vmem>>, vector<128x1xf32>
    %309 = vector.broadcast %308 : vector<128x1xf32> to vector<128x64xf32>
    %310 = arith.mulf %307, %309 : vector<128x64xf32>
    %311 = arith.addf %295, %310 : vector<128x64xf32>
    %c2_186 = arith.constant 2 : index
    %c0_187 = arith.constant 0 : index
    %c0_188 = arith.constant 0 : index
    %312 = vector.load %arg7[%c2_186, %c0_187, %c0_188] : memref<5x64x64xf32, #tpu.memory_space<vmem>>, vector<1x64x64xf32>
    %313 = vector.shape_cast %312 : vector<1x64x64xf32> to vector<64x64xf32>
    %314 = arith.truncf %276 : vector<128x64xf32> to vector<128x64xbf16>
    %315 = arith.truncf %313 : vector<64x64xf32> to vector<64x64xbf16>
    %cst_189 = arith.constant dense<0.000000e+00> : vector<128x64xf32>
    %316 = tpu.matmul %314, %315, %cst_189 {dimension_numbers = #tpu.dot_dimension_numbers<[1], [0], [0], [1], [0, 0, 1, 1], [], []>} : vector<128x64xbf16>, vector<64x64xbf16>, vector<128x64xf32> -> vector<128x64xf32>
    %c2_190 = arith.constant 2 : index
    %c0_191 = arith.constant 0 : index
    %c0_192 = arith.constant 0 : index
    %317 = vector.load %arg8[%c2_190, %c0_191, %c0_192] : memref<5x1x64xf32, #tpu.memory_space<vmem>>, vector<1x1x64xf32>
    %318 = vector.shape_cast %317 : vector<1x1x64xf32> to vector<1x64xf32>
    %319 = vector.broadcast %318 : vector<1x64xf32> to vector<128x64xf32>
    %320 = arith.addf %316, %319 : vector<128x64xf32>
    %321 = math.tanh %320 : vector<128x64xf32>
    %322 = vector.broadcast %0 : vector<1x1xf32> to vector<128x64xf32>
    %323 = arith.mulf %321, %322 : vector<128x64xf32>
    %c0_193 = arith.constant 0 : index
    %c13 = arith.constant 13 : index
    %324 = vector.load %arg2[%c0_193, %c13] : memref<128x28xf32, #tpu.memory_space<vmem>>, vector<128x1xf32>
    %325 = vector.broadcast %324 : vector<128x1xf32> to vector<128x64xf32>
    %326 = arith.mulf %323, %325 : vector<128x64xf32>
    %327 = arith.addf %311, %326 : vector<128x64xf32>
    %c3_194 = arith.constant 3 : index
    %c0_195 = arith.constant 0 : index
    %c0_196 = arith.constant 0 : index
    %328 = vector.load %arg7[%c3_194, %c0_195, %c0_196] : memref<5x64x64xf32, #tpu.memory_space<vmem>>, vector<1x64x64xf32>
    %329 = vector.shape_cast %328 : vector<1x64x64xf32> to vector<64x64xf32>
    %330 = arith.truncf %276 : vector<128x64xf32> to vector<128x64xbf16>
    %331 = arith.truncf %329 : vector<64x64xf32> to vector<64x64xbf16>
    %cst_197 = arith.constant dense<0.000000e+00> : vector<128x64xf32>
    %332 = tpu.matmul %330, %331, %cst_197 {dimension_numbers = #tpu.dot_dimension_numbers<[1], [0], [0], [1], [0, 0, 1, 1], [], []>} : vector<128x64xbf16>, vector<64x64xbf16>, vector<128x64xf32> -> vector<128x64xf32>
    %c3_198 = arith.constant 3 : index
    %c0_199 = arith.constant 0 : index
    %c0_200 = arith.constant 0 : index
    %333 = vector.load %arg8[%c3_198, %c0_199, %c0_200] : memref<5x1x64xf32, #tpu.memory_space<vmem>>, vector<1x1x64xf32>
    %334 = vector.shape_cast %333 : vector<1x1x64xf32> to vector<1x64xf32>
    %335 = vector.broadcast %334 : vector<1x64xf32> to vector<128x64xf32>
    %336 = arith.addf %332, %335 : vector<128x64xf32>
    %337 = math.tanh %336 : vector<128x64xf32>
    %338 = vector.broadcast %0 : vector<1x1xf32> to vector<128x64xf32>
    %339 = arith.mulf %337, %338 : vector<128x64xf32>
    %c0_201 = arith.constant 0 : index
    %c14 = arith.constant 14 : index
    %340 = vector.load %arg2[%c0_201, %c14] : memref<128x28xf32, #tpu.memory_space<vmem>>, vector<128x1xf32>
    %341 = vector.broadcast %340 : vector<128x1xf32> to vector<128x64xf32>
    %342 = arith.mulf %339, %341 : vector<128x64xf32>
    %343 = arith.addf %327, %342 : vector<128x64xf32>
    %c4_202 = arith.constant 4 : index
    %c0_203 = arith.constant 0 : index
    %c0_204 = arith.constant 0 : index
    %344 = vector.load %arg7[%c4_202, %c0_203, %c0_204] : memref<5x64x64xf32, #tpu.memory_space<vmem>>, vector<1x64x64xf32>
    %345 = vector.shape_cast %344 : vector<1x64x64xf32> to vector<64x64xf32>
    %346 = arith.truncf %276 : vector<128x64xf32> to vector<128x64xbf16>
    %347 = arith.truncf %345 : vector<64x64xf32> to vector<64x64xbf16>
    %cst_205 = arith.constant dense<0.000000e+00> : vector<128x64xf32>
    %348 = tpu.matmul %346, %347, %cst_205 {dimension_numbers = #tpu.dot_dimension_numbers<[1], [0], [0], [1], [0, 0, 1, 1], [], []>} : vector<128x64xbf16>, vector<64x64xbf16>, vector<128x64xf32> -> vector<128x64xf32>
    %c4_206 = arith.constant 4 : index
    %c0_207 = arith.constant 0 : index
    %c0_208 = arith.constant 0 : index
    %349 = vector.load %arg8[%c4_206, %c0_207, %c0_208] : memref<5x1x64xf32, #tpu.memory_space<vmem>>, vector<1x1x64xf32>
    %350 = vector.shape_cast %349 : vector<1x1x64xf32> to vector<1x64xf32>
    %351 = vector.broadcast %350 : vector<1x64xf32> to vector<128x64xf32>
    %352 = arith.addf %348, %351 : vector<128x64xf32>
    %353 = math.tanh %352 : vector<128x64xf32>
    %354 = vector.broadcast %0 : vector<1x1xf32> to vector<128x64xf32>
    %355 = arith.mulf %353, %354 : vector<128x64xf32>
    %c0_209 = arith.constant 0 : index
    %c15 = arith.constant 15 : index
    %356 = vector.load %arg2[%c0_209, %c15] : memref<128x28xf32, #tpu.memory_space<vmem>>, vector<128x1xf32>
    %357 = vector.broadcast %356 : vector<128x1xf32> to vector<128x64xf32>
    %358 = arith.mulf %355, %357 : vector<128x64xf32>
    %359 = arith.addf %343, %358 : vector<128x64xf32>
    %360 = arith.addf %276, %294 : vector<128x64xf32>
    %361 = arith.addf %360, %359 : vector<128x64xf32>
    %c0_210 = arith.constant 0 : index
    %c0_211 = arith.constant 0 : index
    %362 = vector.load %arg12[%c0_210, %c0_211] : memref<128x128xf32, #tpu.memory_space<vmem>>, vector<128x128xf32>
    %c4_212 = arith.constant 4 : index
    %c0_213 = arith.constant 0 : index
    %c0_214 = arith.constant 0 : index
    %363 = vector.load %arg10[%c4_212, %c0_213, %c0_214] : memref<8x64x128xf32, #tpu.memory_space<vmem>>, vector<1x64x128xf32>
    %364 = vector.shape_cast %363 : vector<1x64x128xf32> to vector<64x128xf32>
    %365 = arith.truncf %361 : vector<128x64xf32> to vector<128x64xbf16>
    %366 = arith.truncf %364 : vector<64x128xf32> to vector<64x128xbf16>
    %cst_215 = arith.constant dense<0.000000e+00> : vector<128x128xf32>
    %367 = tpu.matmul %365, %366, %cst_215 {dimension_numbers = #tpu.dot_dimension_numbers<[1], [0], [0], [1], [0, 0, 1, 1], [], []>} : vector<128x64xbf16>, vector<64x128xbf16>, vector<128x128xf32> -> vector<128x128xf32>
    %368 = arith.addf %362, %367 : vector<128x128xf32>
    %c0_216 = arith.constant 0 : index
    %c0_217 = arith.constant 0 : index
    %369 = vector.load %arg12[%c0_216, %c0_217] : memref<128x128xf32, #tpu.memory_space<vmem>>, vector<128x128xf32>
    tpu.vector_store %arg12[%c0_216, %c0_217], %368 {strides = array<i32>} : memref<128x128xf32, #tpu.memory_space<vmem>>, vector<128x128xf32>,
    %c0_218 = arith.constant 0 : index
    %c0_219 = arith.constant 0 : index
    %c0_220 = arith.constant 0 : index
    %370 = vector.load %arg7[%c0_218, %c0_219, %c0_220] : memref<5x64x64xf32, #tpu.memory_space<vmem>>, vector<1x64x64xf32>
    %371 = vector.shape_cast %370 : vector<1x64x64xf32> to vector<64x64xf32>
    %372 = arith.truncf %361 : vector<128x64xf32> to vector<128x64xbf16>
    %373 = arith.truncf %371 : vector<64x64xf32> to vector<64x64xbf16>
    %cst_221 = arith.constant dense<0.000000e+00> : vector<128x64xf32>
    %374 = tpu.matmul %372, %373, %cst_221 {dimension_numbers = #tpu.dot_dimension_numbers<[1], [0], [0], [1], [0, 0, 1, 1], [], []>} : vector<128x64xbf16>, vector<64x64xbf16>, vector<128x64xf32> -> vector<128x64xf32>
    %c0_222 = arith.constant 0 : index
    %c0_223 = arith.constant 0 : index
    %c0_224 = arith.constant 0 : index
    %375 = vector.load %arg8[%c0_222, %c0_223, %c0_224] : memref<5x1x64xf32, #tpu.memory_space<vmem>>, vector<1x1x64xf32>
    %376 = vector.shape_cast %375 : vector<1x1x64xf32> to vector<1x64xf32>
    %377 = vector.broadcast %376 : vector<1x64xf32> to vector<128x64xf32>
    %378 = arith.addf %374, %377 : vector<128x64xf32>
    %379 = math.tanh %378 : vector<128x64xf32>
    %cst_225 = arith.constant 0.000000e+00 : f32
    %380 = vector.broadcast %cst_225 : f32 to vector<128x64xf32>
    %c1_226 = arith.constant 1 : index
    %c0_227 = arith.constant 0 : index
    %c0_228 = arith.constant 0 : index
    %381 = vector.load %arg7[%c1_226, %c0_227, %c0_228] : memref<5x64x64xf32, #tpu.memory_space<vmem>>, vector<1x64x64xf32>
    %382 = vector.shape_cast %381 : vector<1x64x64xf32> to vector<64x64xf32>
    %383 = arith.truncf %361 : vector<128x64xf32> to vector<128x64xbf16>
    %384 = arith.truncf %382 : vector<64x64xf32> to vector<64x64xbf16>
    %cst_229 = arith.constant dense<0.000000e+00> : vector<128x64xf32>
    %385 = tpu.matmul %383, %384, %cst_229 {dimension_numbers = #tpu.dot_dimension_numbers<[1], [0], [0], [1], [0, 0, 1, 1], [], []>} : vector<128x64xbf16>, vector<64x64xbf16>, vector<128x64xf32> -> vector<128x64xf32>
    %c1_230 = arith.constant 1 : index
    %c0_231 = arith.constant 0 : index
    %c0_232 = arith.constant 0 : index
    %386 = vector.load %arg8[%c1_230, %c0_231, %c0_232] : memref<5x1x64xf32, #tpu.memory_space<vmem>>, vector<1x1x64xf32>
    %387 = vector.shape_cast %386 : vector<1x1x64xf32> to vector<1x64xf32>
    %388 = vector.broadcast %387 : vector<1x64xf32> to vector<128x64xf32>
    %389 = arith.addf %385, %388 : vector<128x64xf32>
    %390 = math.tanh %389 : vector<128x64xf32>
    %391 = vector.broadcast %0 : vector<1x1xf32> to vector<128x64xf32>
    %392 = arith.mulf %390, %391 : vector<128x64xf32>
    %c0_233 = arith.constant 0 : index
    %c16 = arith.constant 16 : index
    %393 = vector.load %arg2[%c0_233, %c16] : memref<128x28xf32, #tpu.memory_space<vmem>>, vector<128x1xf32>
    %394 = vector.broadcast %393 : vector<128x1xf32> to vector<128x64xf32>
    %395 = arith.mulf %392, %394 : vector<128x64xf32>
    %396 = arith.addf %380, %395 : vector<128x64xf32>
    %c2_234 = arith.constant 2 : index
    %c0_235 = arith.constant 0 : index
    %c0_236 = arith.constant 0 : index
    %397 = vector.load %arg7[%c2_234, %c0_235, %c0_236] : memref<5x64x64xf32, #tpu.memory_space<vmem>>, vector<1x64x64xf32>
    %398 = vector.shape_cast %397 : vector<1x64x64xf32> to vector<64x64xf32>
    %399 = arith.truncf %361 : vector<128x64xf32> to vector<128x64xbf16>
    %400 = arith.truncf %398 : vector<64x64xf32> to vector<64x64xbf16>
    %cst_237 = arith.constant dense<0.000000e+00> : vector<128x64xf32>
    %401 = tpu.matmul %399, %400, %cst_237 {dimension_numbers = #tpu.dot_dimension_numbers<[1], [0], [0], [1], [0, 0, 1, 1], [], []>} : vector<128x64xbf16>, vector<64x64xbf16>, vector<128x64xf32> -> vector<128x64xf32>
    %c2_238 = arith.constant 2 : index
    %c0_239 = arith.constant 0 : index
    %c0_240 = arith.constant 0 : index
    %402 = vector.load %arg8[%c2_238, %c0_239, %c0_240] : memref<5x1x64xf32, #tpu.memory_space<vmem>>, vector<1x1x64xf32>
    %403 = vector.shape_cast %402 : vector<1x1x64xf32> to vector<1x64xf32>
    %404 = vector.broadcast %403 : vector<1x64xf32> to vector<128x64xf32>
    %405 = arith.addf %401, %404 : vector<128x64xf32>
    %406 = math.tanh %405 : vector<128x64xf32>
    %407 = vector.broadcast %0 : vector<1x1xf32> to vector<128x64xf32>
    %408 = arith.mulf %406, %407 : vector<128x64xf32>
    %c0_241 = arith.constant 0 : index
    %c17 = arith.constant 17 : index
    %409 = vector.load %arg2[%c0_241, %c17] : memref<128x28xf32, #tpu.memory_space<vmem>>, vector<128x1xf32>
    %410 = vector.broadcast %409 : vector<128x1xf32> to vector<128x64xf32>
    %411 = arith.mulf %408, %410 : vector<128x64xf32>
    %412 = arith.addf %396, %411 : vector<128x64xf32>
    %c3_242 = arith.constant 3 : index
    %c0_243 = arith.constant 0 : index
    %c0_244 = arith.constant 0 : index
    %413 = vector.load %arg7[%c3_242, %c0_243, %c0_244] : memref<5x64x64xf32, #tpu.memory_space<vmem>>, vector<1x64x64xf32>
    %414 = vector.shape_cast %413 : vector<1x64x64xf32> to vector<64x64xf32>
    %415 = arith.truncf %361 : vector<128x64xf32> to vector<128x64xbf16>
    %416 = arith.truncf %414 : vector<64x64xf32> to vector<64x64xbf16>
    %cst_245 = arith.constant dense<0.000000e+00> : vector<128x64xf32>
    %417 = tpu.matmul %415, %416, %cst_245 {dimension_numbers = #tpu.dot_dimension_numbers<[1], [0], [0], [1], [0, 0, 1, 1], [], []>} : vector<128x64xbf16>, vector<64x64xbf16>, vector<128x64xf32> -> vector<128x64xf32>
    %c3_246 = arith.constant 3 : index
    %c0_247 = arith.constant 0 : index
    %c0_248 = arith.constant 0 : index
    %418 = vector.load %arg8[%c3_246, %c0_247, %c0_248] : memref<5x1x64xf32, #tpu.memory_space<vmem>>, vector<1x1x64xf32>
    %419 = vector.shape_cast %418 : vector<1x1x64xf32> to vector<1x64xf32>
    %420 = vector.broadcast %419 : vector<1x64xf32> to vector<128x64xf32>
    %421 = arith.addf %417, %420 : vector<128x64xf32>
    %422 = math.tanh %421 : vector<128x64xf32>
    %423 = vector.broadcast %0 : vector<1x1xf32> to vector<128x64xf32>
    %424 = arith.mulf %422, %423 : vector<128x64xf32>
    %c0_249 = arith.constant 0 : index
    %c18 = arith.constant 18 : index
    %425 = vector.load %arg2[%c0_249, %c18] : memref<128x28xf32, #tpu.memory_space<vmem>>, vector<128x1xf32>
    %426 = vector.broadcast %425 : vector<128x1xf32> to vector<128x64xf32>
    %427 = arith.mulf %424, %426 : vector<128x64xf32>
    %428 = arith.addf %412, %427 : vector<128x64xf32>
    %c4_250 = arith.constant 4 : index
    %c0_251 = arith.constant 0 : index
    %c0_252 = arith.constant 0 : index
    %429 = vector.load %arg7[%c4_250, %c0_251, %c0_252] : memref<5x64x64xf32, #tpu.memory_space<vmem>>, vector<1x64x64xf32>
    %430 = vector.shape_cast %429 : vector<1x64x64xf32> to vector<64x64xf32>
    %431 = arith.truncf %361 : vector<128x64xf32> to vector<128x64xbf16>
    %432 = arith.truncf %430 : vector<64x64xf32> to vector<64x64xbf16>
    %cst_253 = arith.constant dense<0.000000e+00> : vector<128x64xf32>
    %433 = tpu.matmul %431, %432, %cst_253 {dimension_numbers = #tpu.dot_dimension_numbers<[1], [0], [0], [1], [0, 0, 1, 1], [], []>} : vector<128x64xbf16>, vector<64x64xbf16>, vector<128x64xf32> -> vector<128x64xf32>
    %c4_254 = arith.constant 4 : index
    %c0_255 = arith.constant 0 : index
    %c0_256 = arith.constant 0 : index
    %434 = vector.load %arg8[%c4_254, %c0_255, %c0_256] : memref<5x1x64xf32, #tpu.memory_space<vmem>>, vector<1x1x64xf32>
    %435 = vector.shape_cast %434 : vector<1x1x64xf32> to vector<1x64xf32>
    %436 = vector.broadcast %435 : vector<1x64xf32> to vector<128x64xf32>
    %437 = arith.addf %433, %436 : vector<128x64xf32>
    %438 = math.tanh %437 : vector<128x64xf32>
    %439 = vector.broadcast %0 : vector<1x1xf32> to vector<128x64xf32>
    %440 = arith.mulf %438, %439 : vector<128x64xf32>
    %c0_257 = arith.constant 0 : index
    %c19 = arith.constant 19 : index
    %441 = vector.load %arg2[%c0_257, %c19] : memref<128x28xf32, #tpu.memory_space<vmem>>, vector<128x1xf32>
    %442 = vector.broadcast %441 : vector<128x1xf32> to vector<128x64xf32>
    %443 = arith.mulf %440, %442 : vector<128x64xf32>
    %444 = arith.addf %428, %443 : vector<128x64xf32>
    %445 = arith.addf %361, %379 : vector<128x64xf32>
    %446 = arith.addf %445, %444 : vector<128x64xf32>
    %c0_258 = arith.constant 0 : index
    %c0_259 = arith.constant 0 : index
    %447 = vector.load %arg12[%c0_258, %c0_259] : memref<128x128xf32, #tpu.memory_space<vmem>>, vector<128x128xf32>
    %c5_260 = arith.constant 5 : index
    %c0_261 = arith.constant 0 : index
    %c0_262 = arith.constant 0 : index
    %448 = vector.load %arg10[%c5_260, %c0_261, %c0_262] : memref<8x64x128xf32, #tpu.memory_space<vmem>>, vector<1x64x128xf32>
    %449 = vector.shape_cast %448 : vector<1x64x128xf32> to vector<64x128xf32>
    %450 = arith.truncf %446 : vector<128x64xf32> to vector<128x64xbf16>
    %451 = arith.truncf %449 : vector<64x128xf32> to vector<64x128xbf16>
    %cst_263 = arith.constant dense<0.000000e+00> : vector<128x128xf32>
    %452 = tpu.matmul %450, %451, %cst_263 {dimension_numbers = #tpu.dot_dimension_numbers<[1], [0], [0], [1], [0, 0, 1, 1], [], []>} : vector<128x64xbf16>, vector<64x128xbf16>, vector<128x128xf32> -> vector<128x128xf32>
    %453 = arith.addf %447, %452 : vector<128x128xf32>
    %c0_264 = arith.constant 0 : index
    %c0_265 = arith.constant 0 : index
    %454 = vector.load %arg12[%c0_264, %c0_265] : memref<128x128xf32, #tpu.memory_space<vmem>>, vector<128x128xf32>
    tpu.vector_store %arg12[%c0_264, %c0_265], %453 {strides = array<i32>} : memref<128x128xf32, #tpu.memory_space<vmem>>, vector<128x128xf32>,
    %c0_266 = arith.constant 0 : index
    %c0_267 = arith.constant 0 : index
    %c0_268 = arith.constant 0 : index
    %455 = vector.load %arg7[%c0_266, %c0_267, %c0_268] : memref<5x64x64xf32, #tpu.memory_space<vmem>>, vector<1x64x64xf32>
    %456 = vector.shape_cast %455 : vector<1x64x64xf32> to vector<64x64xf32>
    %457 = arith.truncf %446 : vector<128x64xf32> to vector<128x64xbf16>
    %458 = arith.truncf %456 : vector<64x64xf32> to vector<64x64xbf16>
    %cst_269 = arith.constant dense<0.000000e+00> : vector<128x64xf32>
    %459 = tpu.matmul %457, %458, %cst_269 {dimension_numbers = #tpu.dot_dimension_numbers<[1], [0], [0], [1], [0, 0, 1, 1], [], []>} : vector<128x64xbf16>, vector<64x64xbf16>, vector<128x64xf32> -> vector<128x64xf32>
    %c0_270 = arith.constant 0 : index
    %c0_271 = arith.constant 0 : index
    %c0_272 = arith.constant 0 : index
    %460 = vector.load %arg8[%c0_270, %c0_271, %c0_272] : memref<5x1x64xf32, #tpu.memory_space<vmem>>, vector<1x1x64xf32>
    %461 = vector.shape_cast %460 : vector<1x1x64xf32> to vector<1x64xf32>
    %462 = vector.broadcast %461 : vector<1x64xf32> to vector<128x64xf32>
    %463 = arith.addf %459, %462 : vector<128x64xf32>
    %464 = math.tanh %463 : vector<128x64xf32>
    %cst_273 = arith.constant 0.000000e+00 : f32
    %465 = vector.broadcast %cst_273 : f32 to vector<128x64xf32>
    %c1_274 = arith.constant 1 : index
    %c0_275 = arith.constant 0 : index
    %c0_276 = arith.constant 0 : index
    %466 = vector.load %arg7[%c1_274, %c0_275, %c0_276] : memref<5x64x64xf32, #tpu.memory_space<vmem>>, vector<1x64x64xf32>
    %467 = vector.shape_cast %466 : vector<1x64x64xf32> to vector<64x64xf32>
    %468 = arith.truncf %446 : vector<128x64xf32> to vector<128x64xbf16>
    %469 = arith.truncf %467 : vector<64x64xf32> to vector<64x64xbf16>
    %cst_277 = arith.constant dense<0.000000e+00> : vector<128x64xf32>
    %470 = tpu.matmul %468, %469, %cst_277 {dimension_numbers = #tpu.dot_dimension_numbers<[1], [0], [0], [1], [0, 0, 1, 1], [], []>} : vector<128x64xbf16>, vector<64x64xbf16>, vector<128x64xf32> -> vector<128x64xf32>
    %c1_278 = arith.constant 1 : index
    %c0_279 = arith.constant 0 : index
    %c0_280 = arith.constant 0 : index
    %471 = vector.load %arg8[%c1_278, %c0_279, %c0_280] : memref<5x1x64xf32, #tpu.memory_space<vmem>>, vector<1x1x64xf32>
    %472 = vector.shape_cast %471 : vector<1x1x64xf32> to vector<1x64xf32>
    %473 = vector.broadcast %472 : vector<1x64xf32> to vector<128x64xf32>
    %474 = arith.addf %470, %473 : vector<128x64xf32>
    %475 = math.tanh %474 : vector<128x64xf32>
    %476 = vector.broadcast %0 : vector<1x1xf32> to vector<128x64xf32>
    %477 = arith.mulf %475, %476 : vector<128x64xf32>
    %c0_281 = arith.constant 0 : index
    %c20 = arith.constant 20 : index
    %478 = vector.load %arg2[%c0_281, %c20] : memref<128x28xf32, #tpu.memory_space<vmem>>, vector<128x1xf32>
    %479 = vector.broadcast %478 : vector<128x1xf32> to vector<128x64xf32>
    %480 = arith.mulf %477, %479 : vector<128x64xf32>
    %481 = arith.addf %465, %480 : vector<128x64xf32>
    %c2_282 = arith.constant 2 : index
    %c0_283 = arith.constant 0 : index
    %c0_284 = arith.constant 0 : index
    %482 = vector.load %arg7[%c2_282, %c0_283, %c0_284] : memref<5x64x64xf32, #tpu.memory_space<vmem>>, vector<1x64x64xf32>
    %483 = vector.shape_cast %482 : vector<1x64x64xf32> to vector<64x64xf32>
    %484 = arith.truncf %446 : vector<128x64xf32> to vector<128x64xbf16>
    %485 = arith.truncf %483 : vector<64x64xf32> to vector<64x64xbf16>
    %cst_285 = arith.constant dense<0.000000e+00> : vector<128x64xf32>
    %486 = tpu.matmul %484, %485, %cst_285 {dimension_numbers = #tpu.dot_dimension_numbers<[1], [0], [0], [1], [0, 0, 1, 1], [], []>} : vector<128x64xbf16>, vector<64x64xbf16>, vector<128x64xf32> -> vector<128x64xf32>
    %c2_286 = arith.constant 2 : index
    %c0_287 = arith.constant 0 : index
    %c0_288 = arith.constant 0 : index
    %487 = vector.load %arg8[%c2_286, %c0_287, %c0_288] : memref<5x1x64xf32, #tpu.memory_space<vmem>>, vector<1x1x64xf32>
    %488 = vector.shape_cast %487 : vector<1x1x64xf32> to vector<1x64xf32>
    %489 = vector.broadcast %488 : vector<1x64xf32> to vector<128x64xf32>
    %490 = arith.addf %486, %489 : vector<128x64xf32>
    %491 = math.tanh %490 : vector<128x64xf32>
    %492 = vector.broadcast %0 : vector<1x1xf32> to vector<128x64xf32>
    %493 = arith.mulf %491, %492 : vector<128x64xf32>
    %c0_289 = arith.constant 0 : index
    %c21 = arith.constant 21 : index
    %494 = vector.load %arg2[%c0_289, %c21] : memref<128x28xf32, #tpu.memory_space<vmem>>, vector<128x1xf32>
    %495 = vector.broadcast %494 : vector<128x1xf32> to vector<128x64xf32>
    %496 = arith.mulf %493, %495 : vector<128x64xf32>
    %497 = arith.addf %481, %496 : vector<128x64xf32>
    %c3_290 = arith.constant 3 : index
    %c0_291 = arith.constant 0 : index
    %c0_292 = arith.constant 0 : index
    %498 = vector.load %arg7[%c3_290, %c0_291, %c0_292] : memref<5x64x64xf32, #tpu.memory_space<vmem>>, vector<1x64x64xf32>
    %499 = vector.shape_cast %498 : vector<1x64x64xf32> to vector<64x64xf32>
    %500 = arith.truncf %446 : vector<128x64xf32> to vector<128x64xbf16>
    %501 = arith.truncf %499 : vector<64x64xf32> to vector<64x64xbf16>
    %cst_293 = arith.constant dense<0.000000e+00> : vector<128x64xf32>
    %502 = tpu.matmul %500, %501, %cst_293 {dimension_numbers = #tpu.dot_dimension_numbers<[1], [0], [0], [1], [0, 0, 1, 1], [], []>} : vector<128x64xbf16>, vector<64x64xbf16>, vector<128x64xf32> -> vector<128x64xf32>
    %c3_294 = arith.constant 3 : index
    %c0_295 = arith.constant 0 : index
    %c0_296 = arith.constant 0 : index
    %503 = vector.load %arg8[%c3_294, %c0_295, %c0_296] : memref<5x1x64xf32, #tpu.memory_space<vmem>>, vector<1x1x64xf32>
    %504 = vector.shape_cast %503 : vector<1x1x64xf32> to vector<1x64xf32>
    %505 = vector.broadcast %504 : vector<1x64xf32> to vector<128x64xf32>
    %506 = arith.addf %502, %505 : vector<128x64xf32>
    %507 = math.tanh %506 : vector<128x64xf32>
    %508 = vector.broadcast %0 : vector<1x1xf32> to vector<128x64xf32>
    %509 = arith.mulf %507, %508 : vector<128x64xf32>
    %c0_297 = arith.constant 0 : index
    %c22 = arith.constant 22 : index
    %510 = vector.load %arg2[%c0_297, %c22] : memref<128x28xf32, #tpu.memory_space<vmem>>, vector<128x1xf32>
    %511 = vector.broadcast %510 : vector<128x1xf32> to vector<128x64xf32>
    %512 = arith.mulf %509, %511 : vector<128x64xf32>
    %513 = arith.addf %497, %512 : vector<128x64xf32>
    %c4_298 = arith.constant 4 : index
    %c0_299 = arith.constant 0 : index
    %c0_300 = arith.constant 0 : index
    %514 = vector.load %arg7[%c4_298, %c0_299, %c0_300] : memref<5x64x64xf32, #tpu.memory_space<vmem>>, vector<1x64x64xf32>
    %515 = vector.shape_cast %514 : vector<1x64x64xf32> to vector<64x64xf32>
    %516 = arith.truncf %446 : vector<128x64xf32> to vector<128x64xbf16>
    %517 = arith.truncf %515 : vector<64x64xf32> to vector<64x64xbf16>
    %cst_301 = arith.constant dense<0.000000e+00> : vector<128x64xf32>
    %518 = tpu.matmul %516, %517, %cst_301 {dimension_numbers = #tpu.dot_dimension_numbers<[1], [0], [0], [1], [0, 0, 1, 1], [], []>} : vector<128x64xbf16>, vector<64x64xbf16>, vector<128x64xf32> -> vector<128x64xf32>
    %c4_302 = arith.constant 4 : index
    %c0_303 = arith.constant 0 : index
    %c0_304 = arith.constant 0 : index
    %519 = vector.load %arg8[%c4_302, %c0_303, %c0_304] : memref<5x1x64xf32, #tpu.memory_space<vmem>>, vector<1x1x64xf32>
    %520 = vector.shape_cast %519 : vector<1x1x64xf32> to vector<1x64xf32>
    %521 = vector.broadcast %520 : vector<1x64xf32> to vector<128x64xf32>
    %522 = arith.addf %518, %521 : vector<128x64xf32>
    %523 = math.tanh %522 : vector<128x64xf32>
    %524 = vector.broadcast %0 : vector<1x1xf32> to vector<128x64xf32>
    %525 = arith.mulf %523, %524 : vector<128x64xf32>
    %c0_305 = arith.constant 0 : index
    %c23 = arith.constant 23 : index
    %526 = vector.load %arg2[%c0_305, %c23] : memref<128x28xf32, #tpu.memory_space<vmem>>, vector<128x1xf32>
    %527 = vector.broadcast %526 : vector<128x1xf32> to vector<128x64xf32>
    %528 = arith.mulf %525, %527 : vector<128x64xf32>
    %529 = arith.addf %513, %528 : vector<128x64xf32>
    %530 = arith.addf %446, %464 : vector<128x64xf32>
    %531 = arith.addf %530, %529 : vector<128x64xf32>
    %c0_306 = arith.constant 0 : index
    %c0_307 = arith.constant 0 : index
    %532 = vector.load %arg12[%c0_306, %c0_307] : memref<128x128xf32, #tpu.memory_space<vmem>>, vector<128x128xf32>
    %c6_308 = arith.constant 6 : index
    %c0_309 = arith.constant 0 : index
    %c0_310 = arith.constant 0 : index
    %533 = vector.load %arg10[%c6_308, %c0_309, %c0_310] : memref<8x64x128xf32, #tpu.memory_space<vmem>>, vector<1x64x128xf32>
    %534 = vector.shape_cast %533 : vector<1x64x128xf32> to vector<64x128xf32>
    %535 = arith.truncf %531 : vector<128x64xf32> to vector<128x64xbf16>
    %536 = arith.truncf %534 : vector<64x128xf32> to vector<64x128xbf16>
    %cst_311 = arith.constant dense<0.000000e+00> : vector<128x128xf32>
    %537 = tpu.matmul %535, %536, %cst_311 {dimension_numbers = #tpu.dot_dimension_numbers<[1], [0], [0], [1], [0, 0, 1, 1], [], []>} : vector<128x64xbf16>, vector<64x128xbf16>, vector<128x128xf32> -> vector<128x128xf32>
    %538 = arith.addf %532, %537 : vector<128x128xf32>
    %c0_312 = arith.constant 0 : index
    %c0_313 = arith.constant 0 : index
    %539 = vector.load %arg12[%c0_312, %c0_313] : memref<128x128xf32, #tpu.memory_space<vmem>>, vector<128x128xf32>
    tpu.vector_store %arg12[%c0_312, %c0_313], %538 {strides = array<i32>} : memref<128x128xf32, #tpu.memory_space<vmem>>, vector<128x128xf32>,
    %c0_314 = arith.constant 0 : index
    %c0_315 = arith.constant 0 : index
    %c0_316 = arith.constant 0 : index
    %540 = vector.load %arg7[%c0_314, %c0_315, %c0_316] : memref<5x64x64xf32, #tpu.memory_space<vmem>>, vector<1x64x64xf32>
    %541 = vector.shape_cast %540 : vector<1x64x64xf32> to vector<64x64xf32>
    %542 = arith.truncf %531 : vector<128x64xf32> to vector<128x64xbf16>
    %543 = arith.truncf %541 : vector<64x64xf32> to vector<64x64xbf16>
    %cst_317 = arith.constant dense<0.000000e+00> : vector<128x64xf32>
    %544 = tpu.matmul %542, %543, %cst_317 {dimension_numbers = #tpu.dot_dimension_numbers<[1], [0], [0], [1], [0, 0, 1, 1], [], []>} : vector<128x64xbf16>, vector<64x64xbf16>, vector<128x64xf32> -> vector<128x64xf32>
    %c0_318 = arith.constant 0 : index
    %c0_319 = arith.constant 0 : index
    %c0_320 = arith.constant 0 : index
    %545 = vector.load %arg8[%c0_318, %c0_319, %c0_320] : memref<5x1x64xf32, #tpu.memory_space<vmem>>, vector<1x1x64xf32>
    %546 = vector.shape_cast %545 : vector<1x1x64xf32> to vector<1x64xf32>
    %547 = vector.broadcast %546 : vector<1x64xf32> to vector<128x64xf32>
    %548 = arith.addf %544, %547 : vector<128x64xf32>
    %549 = math.tanh %548 : vector<128x64xf32>
    %cst_321 = arith.constant 0.000000e+00 : f32
    %550 = vector.broadcast %cst_321 : f32 to vector<128x64xf32>
    %c1_322 = arith.constant 1 : index
    %c0_323 = arith.constant 0 : index
    %c0_324 = arith.constant 0 : index
    %551 = vector.load %arg7[%c1_322, %c0_323, %c0_324] : memref<5x64x64xf32, #tpu.memory_space<vmem>>, vector<1x64x64xf32>
    %552 = vector.shape_cast %551 : vector<1x64x64xf32> to vector<64x64xf32>
    %553 = arith.truncf %531 : vector<128x64xf32> to vector<128x64xbf16>
    %554 = arith.truncf %552 : vector<64x64xf32> to vector<64x64xbf16>
    %cst_325 = arith.constant dense<0.000000e+00> : vector<128x64xf32>
    %555 = tpu.matmul %553, %554, %cst_325 {dimension_numbers = #tpu.dot_dimension_numbers<[1], [0], [0], [1], [0, 0, 1, 1], [], []>} : vector<128x64xbf16>, vector<64x64xbf16>, vector<128x64xf32> -> vector<128x64xf32>
    %c1_326 = arith.constant 1 : index
    %c0_327 = arith.constant 0 : index
    %c0_328 = arith.constant 0 : index
    %556 = vector.load %arg8[%c1_326, %c0_327, %c0_328] : memref<5x1x64xf32, #tpu.memory_space<vmem>>, vector<1x1x64xf32>
    %557 = vector.shape_cast %556 : vector<1x1x64xf32> to vector<1x64xf32>
    %558 = vector.broadcast %557 : vector<1x64xf32> to vector<128x64xf32>
    %559 = arith.addf %555, %558 : vector<128x64xf32>
    %560 = math.tanh %559 : vector<128x64xf32>
    %561 = vector.broadcast %0 : vector<1x1xf32> to vector<128x64xf32>
    %562 = arith.mulf %560, %561 : vector<128x64xf32>
    %c0_329 = arith.constant 0 : index
    %c24 = arith.constant 24 : index
    %563 = vector.load %arg2[%c0_329, %c24] : memref<128x28xf32, #tpu.memory_space<vmem>>, vector<128x1xf32>
    %564 = vector.broadcast %563 : vector<128x1xf32> to vector<128x64xf32>
    %565 = arith.mulf %562, %564 : vector<128x64xf32>
    %566 = arith.addf %550, %565 : vector<128x64xf32>
    %c2_330 = arith.constant 2 : index
    %c0_331 = arith.constant 0 : index
    %c0_332 = arith.constant 0 : index
    %567 = vector.load %arg7[%c2_330, %c0_331, %c0_332] : memref<5x64x64xf32, #tpu.memory_space<vmem>>, vector<1x64x64xf32>
    %568 = vector.shape_cast %567 : vector<1x64x64xf32> to vector<64x64xf32>
    %569 = arith.truncf %531 : vector<128x64xf32> to vector<128x64xbf16>
    %570 = arith.truncf %568 : vector<64x64xf32> to vector<64x64xbf16>
    %cst_333 = arith.constant dense<0.000000e+00> : vector<128x64xf32>
    %571 = tpu.matmul %569, %570, %cst_333 {dimension_numbers = #tpu.dot_dimension_numbers<[1], [0], [0], [1], [0, 0, 1, 1], [], []>} : vector<128x64xbf16>, vector<64x64xbf16>, vector<128x64xf32> -> vector<128x64xf32>
    %c2_334 = arith.constant 2 : index
    %c0_335 = arith.constant 0 : index
    %c0_336 = arith.constant 0 : index
    %572 = vector.load %arg8[%c2_334, %c0_335, %c0_336] : memref<5x1x64xf32, #tpu.memory_space<vmem>>, vector<1x1x64xf32>
    %573 = vector.shape_cast %572 : vector<1x1x64xf32> to vector<1x64xf32>
    %574 = vector.broadcast %573 : vector<1x64xf32> to vector<128x64xf32>
    %575 = arith.addf %571, %574 : vector<128x64xf32>
    %576 = math.tanh %575 : vector<128x64xf32>
    %577 = vector.broadcast %0 : vector<1x1xf32> to vector<128x64xf32>
    %578 = arith.mulf %576, %577 : vector<128x64xf32>
    %c0_337 = arith.constant 0 : index
    %c25 = arith.constant 25 : index
    %579 = vector.load %arg2[%c0_337, %c25] : memref<128x28xf32, #tpu.memory_space<vmem>>, vector<128x1xf32>
    %580 = vector.broadcast %579 : vector<128x1xf32> to vector<128x64xf32>
    %581 = arith.mulf %578, %580 : vector<128x64xf32>
    %582 = arith.addf %566, %581 : vector<128x64xf32>
    %c3_338 = arith.constant 3 : index
    %c0_339 = arith.constant 0 : index
    %c0_340 = arith.constant 0 : index
    %583 = vector.load %arg7[%c3_338, %c0_339, %c0_340] : memref<5x64x64xf32, #tpu.memory_space<vmem>>, vector<1x64x64xf32>
    %584 = vector.shape_cast %583 : vector<1x64x64xf32> to vector<64x64xf32>
    %585 = arith.truncf %531 : vector<128x64xf32> to vector<128x64xbf16>
    %586 = arith.truncf %584 : vector<64x64xf32> to vector<64x64xbf16>
    %cst_341 = arith.constant dense<0.000000e+00> : vector<128x64xf32>
    %587 = tpu.matmul %585, %586, %cst_341 {dimension_numbers = #tpu.dot_dimension_numbers<[1], [0], [0], [1], [0, 0, 1, 1], [], []>} : vector<128x64xbf16>, vector<64x64xbf16>, vector<128x64xf32> -> vector<128x64xf32>
    %c3_342 = arith.constant 3 : index
    %c0_343 = arith.constant 0 : index
    %c0_344 = arith.constant 0 : index
    %588 = vector.load %arg8[%c3_342, %c0_343, %c0_344] : memref<5x1x64xf32, #tpu.memory_space<vmem>>, vector<1x1x64xf32>
    %589 = vector.shape_cast %588 : vector<1x1x64xf32> to vector<1x64xf32>
    %590 = vector.broadcast %589 : vector<1x64xf32> to vector<128x64xf32>
    %591 = arith.addf %587, %590 : vector<128x64xf32>
    %592 = math.tanh %591 : vector<128x64xf32>
    %593 = vector.broadcast %0 : vector<1x1xf32> to vector<128x64xf32>
    %594 = arith.mulf %592, %593 : vector<128x64xf32>
    %c0_345 = arith.constant 0 : index
    %c26 = arith.constant 26 : index
    %595 = vector.load %arg2[%c0_345, %c26] : memref<128x28xf32, #tpu.memory_space<vmem>>, vector<128x1xf32>
    %596 = vector.broadcast %595 : vector<128x1xf32> to vector<128x64xf32>
    %597 = arith.mulf %594, %596 : vector<128x64xf32>
    %598 = arith.addf %582, %597 : vector<128x64xf32>
    %c4_346 = arith.constant 4 : index
    %c0_347 = arith.constant 0 : index
    %c0_348 = arith.constant 0 : index
    %599 = vector.load %arg7[%c4_346, %c0_347, %c0_348] : memref<5x64x64xf32, #tpu.memory_space<vmem>>, vector<1x64x64xf32>
    %600 = vector.shape_cast %599 : vector<1x64x64xf32> to vector<64x64xf32>
    %601 = arith.truncf %531 : vector<128x64xf32> to vector<128x64xbf16>
    %602 = arith.truncf %600 : vector<64x64xf32> to vector<64x64xbf16>
    %cst_349 = arith.constant dense<0.000000e+00> : vector<128x64xf32>
    %603 = tpu.matmul %601, %602, %cst_349 {dimension_numbers = #tpu.dot_dimension_numbers<[1], [0], [0], [1], [0, 0, 1, 1], [], []>} : vector<128x64xbf16>, vector<64x64xbf16>, vector<128x64xf32> -> vector<128x64xf32>
    %c4_350 = arith.constant 4 : index
    %c0_351 = arith.constant 0 : index
    %c0_352 = arith.constant 0 : index
    %604 = vector.load %arg8[%c4_350, %c0_351, %c0_352] : memref<5x1x64xf32, #tpu.memory_space<vmem>>, vector<1x1x64xf32>
    %605 = vector.shape_cast %604 : vector<1x1x64xf32> to vector<1x64xf32>
    %606 = vector.broadcast %605 : vector<1x64xf32> to vector<128x64xf32>
    %607 = arith.addf %603, %606 : vector<128x64xf32>
    %608 = math.tanh %607 : vector<128x64xf32>
    %609 = vector.broadcast %0 : vector<1x1xf32> to vector<128x64xf32>
    %610 = arith.mulf %608, %609 : vector<128x64xf32>
    %c0_353 = arith.constant 0 : index
    %c27 = arith.constant 27 : index
    %611 = vector.load %arg2[%c0_353, %c27] : memref<128x28xf32, #tpu.memory_space<vmem>>, vector<128x1xf32>
    %612 = vector.broadcast %611 : vector<128x1xf32> to vector<128x64xf32>
    %613 = arith.mulf %610, %612 : vector<128x64xf32>
    %614 = arith.addf %598, %613 : vector<128x64xf32>
    %615 = arith.addf %531, %549 : vector<128x64xf32>
    %616 = arith.addf %615, %614 : vector<128x64xf32>
    %c0_354 = arith.constant 0 : index
    %c0_355 = arith.constant 0 : index
    %617 = vector.load %arg12[%c0_354, %c0_355] : memref<128x128xf32, #tpu.memory_space<vmem>>, vector<128x128xf32>
    %c7_356 = arith.constant 7 : index
    %c0_357 = arith.constant 0 : index
    %c0_358 = arith.constant 0 : index
    %618 = vector.load %arg10[%c7_356, %c0_357, %c0_358] : memref<8x64x128xf32, #tpu.memory_space<vmem>>, vector<1x64x128xf32>
    %619 = vector.shape_cast %618 : vector<1x64x128xf32> to vector<64x128xf32>
    %620 = arith.truncf %616 : vector<128x64xf32> to vector<128x64xbf16>
    %621 = arith.truncf %619 : vector<64x128xf32> to vector<64x128xbf16>
    %cst_359 = arith.constant dense<0.000000e+00> : vector<128x128xf32>
    %622 = tpu.matmul %620, %621, %cst_359 {dimension_numbers = #tpu.dot_dimension_numbers<[1], [0], [0], [1], [0, 0, 1, 1], [], []>} : vector<128x64xbf16>, vector<64x128xbf16>, vector<128x128xf32> -> vector<128x128xf32>
    %623 = arith.addf %617, %622 : vector<128x128xf32>
    %c0_360 = arith.constant 0 : index
    %c0_361 = arith.constant 0 : index
    %624 = vector.load %arg12[%c0_360, %c0_361] : memref<128x128xf32, #tpu.memory_space<vmem>>, vector<128x128xf32>
    tpu.vector_store %arg12[%c0_360, %c0_361], %623 {strides = array<i32>} : memref<128x128xf32, #tpu.memory_space<vmem>>, vector<128x128xf32>,
    return
  }
  func.func @transform_0(%arg0: i32) -> (i32, i32) {
    %c0_i32 = arith.constant 0 : i32
    %c0_i32_0 = arith.constant 0 : i32
    return %arg0, %c0_i32 : i32, i32
  }
  func.func @transform_1(%arg0: i32) -> (i32, i32) {
    %c0_i32 = arith.constant 0 : i32
    %c0_i32_0 = arith.constant 0 : i32
    return %arg0, %c0_i32 : i32, i32
  }
  func.func @transform_2(%arg0: i32) -> (i32, i32) {
    %c0_i32 = arith.constant 0 : i32
    %c0_i32_0 = arith.constant 0 : i32
    %c0_i32_1 = arith.constant 0 : i32
    return %c0_i32, %c0_i32_0 : i32, i32
  }
  func.func @transform_3(%arg0: i32) -> (i32, i32) {
    %c0_i32 = arith.constant 0 : i32
    %c0_i32_0 = arith.constant 0 : i32
    %c0_i32_1 = arith.constant 0 : i32
    return %c0_i32, %c0_i32_0 : i32, i32
  }
  func.func @transform_4(%arg0: i32) -> (i32, i32) {
    %c0_i32 = arith.constant 0 : i32
    %c0_i32_0 = arith.constant 0 : i32
    %c0_i32_1 = arith.constant 0 : i32
    return %c0_i32, %c0_i32_0 : i32, i32
  }
  func.func @transform_5(%arg0: i32) -> (i32, i32) {
    %c0_i32 = arith.constant 0 : i32
    %c0_i32_0 = arith.constant 0 : i32
    %c0_i32_1 = arith.constant 0 : i32
    return %c0_i32, %c0_i32_0 : i32, i32
  }
  func.func @transform_6(%arg0: i32) -> (i32, i32, i32) {
    %c0_i32 = arith.constant 0 : i32
    %c0_i32_0 = arith.constant 0 : i32
    %c0_i32_1 = arith.constant 0 : i32
    %c0_i32_2 = arith.constant 0 : i32
    return %c0_i32, %c0_i32_0, %c0_i32_1 : i32, i32, i32
  }
  func.func @transform_7(%arg0: i32) -> (i32, i32, i32) {
    %c0_i32 = arith.constant 0 : i32
    %c0_i32_0 = arith.constant 0 : i32
    %c0_i32_1 = arith.constant 0 : i32
    %c0_i32_2 = arith.constant 0 : i32
    return %c0_i32, %c0_i32_0, %c0_i32_1 : i32, i32, i32
  }
  func.func @transform_8(%arg0: i32) -> (i32, i32) {
    %c0_i32 = arith.constant 0 : i32
    %c0_i32_0 = arith.constant 0 : i32
    %c0_i32_1 = arith.constant 0 : i32
    return %c0_i32, %c0_i32_0 : i32, i32
  }
  func.func @transform_9(%arg0: i32) -> (i32, i32, i32) {
    %c0_i32 = arith.constant 0 : i32
    %c0_i32_0 = arith.constant 0 : i32
    %c0_i32_1 = arith.constant 0 : i32
    %c0_i32_2 = arith.constant 0 : i32
    return %c0_i32, %c0_i32_0, %c0_i32_1 : i32, i32, i32
  }
  func.func @transform_10(%arg0: i32) -> (i32, i32) {
    %c0_i32 = arith.constant 0 : i32
    %c0_i32_0 = arith.constant 0 : i32
    %c0_i32_1 = arith.constant 0 : i32
    return %c0_i32, %c0_i32_0 : i32, i32
  }
  func.func @transform_11(%arg0: i32) -> (i32, i32) {
    %c0_i32 = arith.constant 0 : i32
    %c0_i32_0 = arith.constant 0 : i32
    return %arg0, %c0_i32 : i32, i32
  }
}

</mosaic_0001>

<llo_original>
// kernel: tpu_custom_call.1
$region0: #{tpu_custom_call.1}
  #allocation0 [shape = 'u32[]', space=smem, size = 0x4, offset = 0x4, fixed_abs, tag = 'smem constant byte address 0x4 - core index']
  #allocation1 [shape = 'u32[72,128]{1,0:T(1,128)}', space=vmem, size = 0x9000, scoped, tag = 'internal scratch']
  #allocation2 [shape = 'f32[1,1]{1,0:T(1,128)S(1)}', space=vmem, size = 0x200, scoped, tag = 'scoped memory for tpu_custom_call.1']
  %s0 = inlined_call_operand.vmem [shape: f32[256,8], index: 0, kind: input, shape index: {}]
  %s1 = inlined_call_operand.vmem [shape: f32[256,28], index: 1, kind: input, shape index: {}]
  %s2 = inlined_call_operand.vmem [shape: f32[8,32], index: 2, kind: input, shape index: {}]
  %s3 = inlined_call_operand.vmem [shape: f32[1,32], index: 3, kind: input, shape index: {}]
  %s4 = inlined_call_operand.hbm [shape: f32[32,64], index: 4, kind: input, shape index: {}]
  %s5 = inlined_call_operand.vmem [shape: f32[1,64], index: 5, kind: input, shape index: {}]
  %s6 = inlined_call_operand.hbm [shape: f32[5,64,64], index: 6, kind: input, shape index: {}]
  %s7 = inlined_call_operand.vmem [shape: f32[5,1,64], index: 7, kind: input, shape index: {}]
  %s8 = inlined_call_operand.<no memory space> [shape: f32[1,1], index: 8, kind: input, shape index: {}]
  %s9 = inlined_call_operand.vmem [shape: f32[8,64,128], index: 9, kind: input, shape index: {}]
  %s10 = inlined_call_operand.vmem [shape: f32[1,128], index: 10, kind: input, shape index: {}]
  %s11 = inlined_call_operand.hbm [shape: f32[256,128], index: 11, kind: output, shape index: {}]
  %s12 = sld [smem:[#allocation0]]
  $region85: #{tpu_custom_call.1} parent=0
    _
  %s14 = ssub.s32 1, %s12
  %s15 = scalar_select 0, %s14, %s12
  %v16 = vstv %s8
  %17 = vst [vmem:[#allocation2] sm:$0x1] %v16
  $region1: #{tpu_custom_call.1} parent=0
    #allocation3 [shape = 'u8[16384]{0}', space=vmem, size = 0x4000, scoped, tag = 'input window, operand 4, single buffered']
    #allocation4 [shape = 's32[2]{0}', space=sflag, size = 0x8, scoped, tag = 'scoped memory for tpu_custom_call.1']
    #allocation5 [shape = 's32[2]{0}', space=sflag, size = 0x8, scoped, tag = 'scoped memory for tpu_custom_call.1']
    #allocation6 [shape = 'u8[163840]{0}', space=vmem, size = 0x28000, scoped, tag = 'input window, operand 6, single buffered']
    #allocation7 [shape = 's32[1]{0}', space=sflag, size = 0x4, scoped, tag = 'scoped memory for tpu_custom_call.1']
    #allocation8 [shape = 'u8[131072]{0}', space=vmem, size = 0x20000, scoped, tag = 'output window, operand 0']
    %18 = vsyncpa [#allocation4], 0
    %19 = vsyncpa [#allocation7], 0
    %20 = vsyncpa [#allocation5], 0
    %s21 = scalar_lea.sflag [#allocation5], 1
    %22 = vsyncpa %s21, 0
    loop: start=0, step=1, limit=4
    $region2: #{tpu_custom_call.1} parent=1 // loop_pre_header
      _
    $region3: #{tpu_custom_call.1} parent=1 // loop_header
      %s24 = sphi 0, %s28
      %p25 = scmp.ge.s32.totalorder %s24, 4
      %s34 = sphi 0, %s36
      %s37 = sphi 0, %s34
      %s38 = sphi 0, %s37
      %s54 = sphi 0, %s38
      %s60 = sphi 0, %s62
      %s63 = sphi 0, %s60
      %s64 = sphi 0, %s63
      %s80 = sphi 0, %s64
      %s84 = sphi 0, %s84
      %s86 = sphi 0, %s84
      %s87 = sphi 0, %s86
      %s101 = sphi 0, %s87
      %s105 = sphi 0, %s105
      %s107 = sphi 0, %s105
      %s108 = sphi 0, %s107
      %s122 = sphi 0, %s108
      %s126 = sphi 0, %s126
      %s128 = sphi 0, %s126
      %s129 = sphi 0, %s128
      %s143 = sphi 0, %s129
      %s147 = sphi 0, %s147
      %s149 = sphi 0, %s147
      %s150 = sphi 0, %s149
      %s164 = sphi 0, %s150
      %s168 = sphi 0, %s168
      %s170 = sphi 0, %s168
      %s171 = sphi 0, %s170
      %s185 = sphi 0, %s171
      %s189 = sphi 0, %s189
      %s191 = sphi 0, %s189
      %s192 = sphi 0, %s191
      %s206 = sphi 0, %s192
      %s210 = sphi 0, %s210
      %s212 = sphi 0, %s210
      %s213 = sphi 0, %s212
      %s227 = sphi 0, %s213
      %s231 = sphi 0, %s231
      %s233 = sphi 0, %s231
      %s234 = sphi 0, %s233
      %s248 = sphi 0, %s234
      %s252 = sphi 0, %s252
      %s254 = sphi 0, %s252
      %s255 = sphi 0, %s254
      %s269 = sphi 0, %s255
      %s275 = sphi 0, %s277
      %s278 = sphi 0, %s275
      %s279 = sphi 0, %s278
      %s295 = sphi 0, %s279
    $region4: #{tpu_custom_call.1} parent=1 // loop_header_branch
      %27 = sbr.rel (%p25) target = $region8
    $region5: #{tpu_custom_call.1} parent=1 // loop_body
      %s29 = ssub.s32 %s24, 1
      %s30 = ssub.s32 %s24, 2
      %s31 = sadd.s32 %s24, 1
      %s32 = ssub.s32 %s24, %s31
      %p33 = scmp.eq.s32.totalorder %s32, 0
      %s35 = sadd.s32 %s34, 1
      %s36 = scalar_select %p33, %s34, %s35
      %p39 = pneg %p33
      %p40 = scmp.eq.s32.totalorder %s24, 1
      %p41 = por %p39, %p40
      %p42 = scmp.ne.s32.totalorder %s34, %s37
      %p43 = scmp.eq.s32.totalorder %s24, 0
      %p44 = por %p42, %p43
      %p45 = scmp.ne.s32.totalorder %s34, %s37
      %p46 = scmp.eq.s32.totalorder %s29, 1
      %p47 = por %p45, %p46
      %p48 = scmp.ne.s32.totalorder %s37, %s38
      %p49 = scmp.eq.s32.totalorder %s29, 0
      %p50 = por %p48, %p49
      %p51 = scmp.ne.s32.totalorder %s37, %s38
      %p52 = scmp.eq.s32.totalorder %s30, 1
      %p53 = por %p51, %p52
      %p55 = scmp.ne.s32.totalorder %s38, %s54
      %p56 = scmp.eq.s32.totalorder %s30, 0
      %p57 = por %p55, %p56
      %s58 = ssub.s32 %s24, %s31
      %p59 = scmp.eq.s32.totalorder %s58, 0
      %s61 = sadd.s32 %s60, 1
      %s62 = scalar_select %p59, %s60, %s61
      %p65 = pneg %p59
      %p66 = scmp.eq.s32.totalorder %s24, 1
      %p67 = por %p65, %p66
      %p68 = scmp.ne.s32.totalorder %s60, %s63
      %p69 = scmp.eq.s32.totalorder %s24, 0
      %p70 = por %p68, %p69
      %p71 = scmp.ne.s32.totalorder %s60, %s63
      %p72 = scmp.eq.s32.totalorder %s29, 1
      %p73 = por %p71, %p72
      %p74 = scmp.ne.s32.totalorder %s63, %s64
      %p75 = scmp.eq.s32.totalorder %s29, 0
      %p76 = por %p74, %p75
      %p77 = scmp.ne.s32.totalorder %s63, %s64
      %p78 = scmp.eq.s32.totalorder %s30, 1
      %p79 = por %p77, %p78
      %p81 = scmp.ne.s32.totalorder %s64, %s80
      %p82 = scmp.eq.s32.totalorder %s30, 0
      %p83 = por %p81, %p82
      %s85 = sadd.s32 %s84, 1
      %p88 = scmp.eq.s32.totalorder %s24, 1
      %p89 = scmp.ne.s32.totalorder %s84, %s86
      %p90 = scmp.eq.s32.totalorder %s24, 0
      %p91 = por %p89, %p90
      %p92 = scmp.ne.s32.totalorder %s84, %s86
      %p93 = scmp.eq.s32.totalorder %s29, 1
      %p94 = por %p92, %p93
      %p95 = scmp.ne.s32.totalorder %s86, %s87
      %p96 = scmp.eq.s32.totalorder %s29, 0
      %p97 = por %p95, %p96
      %p98 = scmp.ne.s32.totalorder %s86, %s87
      %p99 = scmp.eq.s32.totalorder %s30, 1
      %p100 = por %p98, %p99
      %p102 = scmp.ne.s32.totalorder %s87, %s101
      %p103 = scmp.eq.s32.totalorder %s30, 0
      %p104 = por %p102, %p103
      %s106 = sadd.s32 %s105, 1
      %p109 = scmp.eq.s32.totalorder %s24, 1
      %p110 = scmp.ne.s32.totalorder %s105, %s107
      %p111 = scmp.eq.s32.totalorder %s24, 0
      %p112 = por %p110, %p111
      %p113 = scmp.ne.s32.totalorder %s105, %s107
      %p114 = scmp.eq.s32.totalorder %s29, 1
      %p115 = por %p113, %p114
      %p116 = scmp.ne.s32.totalorder %s107, %s108
      %p117 = scmp.eq.s32.totalorder %s29, 0
      %p118 = por %p116, %p117
      %p119 = scmp.ne.s32.totalorder %s107, %s108
      %p120 = scmp.eq.s32.totalorder %s30, 1
      %p121 = por %p119, %p120
      %p123 = scmp.ne.s32.totalorder %s108, %s122
      %p124 = scmp.eq.s32.totalorder %s30, 0
      %p125 = por %p123, %p124
      %s127 = sadd.s32 %s126, 1
      %p130 = scmp.eq.s32.totalorder %s24, 1
      %p131 = scmp.ne.s32.totalorder %s126, %s128
      %p132 = scmp.eq.s32.totalorder %s24, 0
      %p133 = por %p131, %p132
      %p134 = scmp.ne.s32.totalorder %s126, %s128
      %p135 = scmp.eq.s32.totalorder %s29, 1
      %p136 = por %p134, %p135
      %p137 = scmp.ne.s32.totalorder %s128, %s129
      %p138 = scmp.eq.s32.totalorder %s29, 0
      %p139 = por %p137, %p138
      %p140 = scmp.ne.s32.totalorder %s128, %s129
      %p141 = scmp.eq.s32.totalorder %s30, 1
      %p142 = por %p140, %p141
      %p144 = scmp.ne.s32.totalorder %s129, %s143
      %p145 = scmp.eq.s32.totalorder %s30, 0
      %p146 = por %p144, %p145
      %s148 = sadd.s32 %s147, 1
      %p151 = scmp.eq.s32.totalorder %s24, 1
      %p152 = scmp.ne.s32.totalorder %s147, %s149
      %p153 = scmp.eq.s32.totalorder %s24, 0
      %p154 = por %p152, %p153
      %p155 = scmp.ne.s32.totalorder %s147, %s149
      %p156 = scmp.eq.s32.totalorder %s29, 1
      %p157 = por %p155, %p156
      %p158 = scmp.ne.s32.totalorder %s149, %s150
      %p159 = scmp.eq.s32.totalorder %s29, 0
      %p160 = por %p158, %p159
      %p161 = scmp.ne.s32.totalorder %s149, %s150
      %p162 = scmp.eq.s32.totalorder %s30, 1
      %p163 = por %p161, %p162
      %p165 = scmp.ne.s32.totalorder %s150, %s164
      %p166 = scmp.eq.s32.totalorder %s30, 0
      %p167 = por %p165, %p166
      %s169 = sadd.s32 %s168, 1
      %p172 = scmp.eq.s32.totalorder %s24, 1
      %p173 = scmp.ne.s32.totalorder %s168, %s170
      %p174 = scmp.eq.s32.totalorder %s24, 0
      %p175 = por %p173, %p174
      %p176 = scmp.ne.s32.totalorder %s168, %s170
      %p177 = scmp.eq.s32.totalorder %s29, 1
      %p178 = por %p176, %p177
      %p179 = scmp.ne.s32.totalorder %s170, %s171
      %p180 = scmp.eq.s32.totalorder %s29, 0
      %p181 = por %p179, %p180
      %p182 = scmp.ne.s32.totalorder %s170, %s171
      %p183 = scmp.eq.s32.totalorder %s30, 1
      %p184 = por %p182, %p183
      %p186 = scmp.ne.s32.totalorder %s171, %s185
      %p187 = scmp.eq.s32.totalorder %s30, 0
      %p188 = por %p186, %p187
      %s190 = sadd.s32 %s189, 1
      %p193 = scmp.eq.s32.totalorder %s24, 1
      %p194 = scmp.ne.s32.totalorder %s189, %s191
      %p195 = scmp.eq.s32.totalorder %s24, 0
      %p196 = por %p194, %p195
      %p197 = scmp.ne.s32.totalorder %s189, %s191
      %p198 = scmp.eq.s32.totalorder %s29, 1
      %p199 = por %p197, %p198
      %p200 = scmp.ne.s32.totalorder %s191, %s192
      %p201 = scmp.eq.s32.totalorder %s29, 0
      %p202 = por %p200, %p201
      %p203 = scmp.ne.s32.totalorder %s191, %s192
      %p204 = scmp.eq.s32.totalorder %s30, 1
      %p205 = por %p203, %p204
      %p207 = scmp.ne.s32.totalorder %s192, %s206
      %p208 = scmp.eq.s32.totalorder %s30, 0
      %p209 = por %p207, %p208
      %s211 = sadd.s32 %s210, 1
      %p214 = scmp.eq.s32.totalorder %s24, 1
      %p215 = scmp.ne.s32.totalorder %s210, %s212
      %p216 = scmp.eq.s32.totalorder %s24, 0
      %p217 = por %p215, %p216
      %p218 = scmp.ne.s32.totalorder %s210, %s212
      %p219 = scmp.eq.s32.totalorder %s29, 1
      %p220 = por %p218, %p219
      %p221 = scmp.ne.s32.totalorder %s212, %s213
      %p222 = scmp.eq.s32.totalorder %s29, 0
      %p223 = por %p221, %p222
      %p224 = scmp.ne.s32.totalorder %s212, %s213
      %p225 = scmp.eq.s32.totalorder %s30, 1
      %p226 = por %p224, %p225
      %p228 = scmp.ne.s32.totalorder %s213, %s227
      %p229 = scmp.eq.s32.totalorder %s30, 0
      %p230 = por %p228, %p229
      %s232 = sadd.s32 %s231, 1
      %p235 = scmp.eq.s32.totalorder %s24, 1
      %p236 = scmp.ne.s32.totalorder %s231, %s233
      %p237 = scmp.eq.s32.totalorder %s24, 0
      %p238 = por %p236, %p237
      %p239 = scmp.ne.s32.totalorder %s231, %s233
      %p240 = scmp.eq.s32.totalorder %s29, 1
      %p241 = por %p239, %p240
      %p242 = scmp.ne.s32.totalorder %s233, %s234
      %p243 = scmp.eq.s32.totalorder %s29, 0
      %p244 = por %p242, %p243
      %p245 = scmp.ne.s32.totalorder %s233, %s234
      %p246 = scmp.eq.s32.totalorder %s30, 1
      %p247 = por %p245, %p246
      %p249 = scmp.ne.s32.totalorder %s234, %s248
      %p250 = scmp.eq.s32.totalorder %s30, 0
      %p251 = por %p249, %p250
      %s253 = sadd.s32 %s252, 1
      %p256 = scmp.eq.s32.totalorder %s24, 1
      %p257 = scmp.ne.s32.totalorder %s252, %s254
      %p258 = scmp.eq.s32.totalorder %s24, 0
      %p259 = por %p257, %p258
      %p260 = scmp.ne.s32.totalorder %s252, %s254
      %p261 = scmp.eq.s32.totalorder %s29, 1
      %p262 = por %p260, %p261
      %p263 = scmp.ne.s32.totalorder %s254, %s255
      %p264 = scmp.eq.s32.totalorder %s29, 0
      %p265 = por %p263, %p264
      %p266 = scmp.ne.s32.totalorder %s254, %s255
      %p267 = scmp.eq.s32.totalorder %s30, 1
      %p268 = por %p266, %p267
      %p270 = scmp.ne.s32.totalorder %s255, %s269
      %p271 = scmp.eq.s32.totalorder %s30, 0
      %p272 = por %p270, %p271
      %s273 = ssub.s32 %s24, %s31
      %p274 = scmp.eq.s32.totalorder %s273, 0
      %s276 = sadd.s32 %s275, 1
      %s277 = scalar_select %p274, %s275, %s276
      %p280 = pneg %p274
      %p281 = scmp.eq.s32.totalorder %s24, 1
      %p282 = por %p280, %p281
      %p283 = scmp.ne.s32.totalorder %s275, %s278
      %p284 = scmp.eq.s32.totalorder %s24, 0
      %p285 = por %p283, %p284
      %p286 = scmp.ne.s32.totalorder %s275, %s278
      %p287 = scmp.eq.s32.totalorder %s29, 1
      %p288 = por %p286, %p287
      %p289 = scmp.ne.s32.totalorder %s278, %s279
      %p290 = scmp.eq.s32.totalorder %s29, 0
      %p291 = por %p289, %p290
      %p292 = scmp.ne.s32.totalorder %s278, %s279
      %p293 = scmp.eq.s32.totalorder %s30, 1
      %p294 = por %p292, %p293
      %p296 = scmp.ne.s32.totalorder %s279, %s295
      %p297 = scmp.eq.s32.totalorder %s30, 0
      %p298 = por %p296, %p297
      %p299 = scmp.le.s32.totalorder 1, %s24
      %p300 = scmp.lt.s32.totalorder %s24, 3
      %p301 = pnand %p299, %p300
      %p302 = pneg %p301
      // Predicated region
      $region9: #{tpu_custom_call.1} parent=5 // pred_check
        _
      $region10: #{tpu_custom_call.1} parent=5 // pred_check_branch
        %304 = sbr.rel (%p301) target = $region12
      $region11: #{tpu_custom_call.1} parent=5 // pred_region
        %s305 = ssub.s32 %s24, 1
        // Predicated region
        $region13: #{tpu_custom_call.1} parent=11 // pred_check
          %p306 = pneg %p97
        $region14: #{tpu_custom_call.1} parent=11 // pred_check_branch
          %308 = sbr.rel (%p306) target = $region16
        $region15: #{tpu_custom_call.1} parent=11 // pred_region
          _
        $region16: #{tpu_custom_call.1} parent=11 // pred_fallthru
          _
        // Predicated region
        $region17: #{tpu_custom_call.1} parent=11 // pred_check
          %p309 = pneg %p118
        $region18: #{tpu_custom_call.1} parent=11 // pred_check_branch
          %311 = sbr.rel (%p309) target = $region20
        $region19: #{tpu_custom_call.1} parent=11 // pred_region
          _
        $region20: #{tpu_custom_call.1} parent=11 // pred_fallthru
          _
        // Predicated region
        $region21: #{tpu_custom_call.1} parent=11 // pred_check
          %p312 = pneg %p139
        $region22: #{tpu_custom_call.1} parent=11 // pred_check_branch
          %314 = sbr.rel (%p312) target = $region24
        $region23: #{tpu_custom_call.1} parent=11 // pred_region
          %316 = vsyncadd [#allocation4], 0
          %s317 = sshll.u32 %s4, 4
          %s318 = int_to_ptr.hbm [resolvable:$true] %s317
          %s319 = sshll.u32 [#allocation3], 4
          %s320 = int_to_ptr.vmem [resolvable:$true] %s319
          %325 = dma.hbm_to_vmem [thread:$0]  %s318, 512, %s320, [#allocation4], 128, 128, 8
        $region24: #{tpu_custom_call.1} parent=11 // pred_fallthru
          _
        // Predicated region
        $region25: #{tpu_custom_call.1} parent=11 // pred_check
          %p326 = pneg %p160
        $region26: #{tpu_custom_call.1} parent=11 // pred_check_branch
          %328 = sbr.rel (%p326) target = $region28
        $region27: #{tpu_custom_call.1} parent=11 // pred_region
          _
        $region28: #{tpu_custom_call.1} parent=11 // pred_fallthru
          _
        // Predicated region
        $region29: #{tpu_custom_call.1} parent=11 // pred_check
          %p329 = pneg %p181
        $region30: #{tpu_custom_call.1} parent=11 // pred_check_branch
          %331 = sbr.rel (%p329) target = $region32
        $region31: #{tpu_custom_call.1} parent=11 // pred_region
          %333 = vsyncadd [#allocation7], 0
          %s334 = sshll.u32 %s6, 4
          %s335 = int_to_ptr.hbm [resolvable:$true] %s334
          %s336 = sshll.u32 [#allocation6], 4
          %s337 = int_to_ptr.vmem [resolvable:$true] %s336
          %342 = dma.hbm_to_vmem [thread:$0]  %s335, 5120, %s337, [#allocation7], 128, 128, 8
        $region32: #{tpu_custom_call.1} parent=11 // pred_fallthru
          _
        // Predicated region
        $region33: #{tpu_custom_call.1} parent=11 // pred_check
          %p343 = pneg %p202
        $region34: #{tpu_custom_call.1} parent=11 // pred_check_branch
          %345 = sbr.rel (%p343) target = $region36
        $region35: #{tpu_custom_call.1} parent=11 // pred_region
          _
        $region36: #{tpu_custom_call.1} parent=11 // pred_fallthru
          _
        // Predicated region
        $region37: #{tpu_custom_call.1} parent=11 // pred_check
          %p346 = pneg %p223
        $region38: #{tpu_custom_call.1} parent=11 // pred_check_branch
          %348 = sbr.rel (%p346) target = $region40
        $region39: #{tpu_custom_call.1} parent=11 // pred_region
          _
        $region40: #{tpu_custom_call.1} parent=11 // pred_fallthru
          _
        // Predicated region
        $region41: #{tpu_custom_call.1} parent=11 // pred_check
          %p349 = pneg %p244
        $region42: #{tpu_custom_call.1} parent=11 // pred_check_branch
          %351 = sbr.rel (%p349) target = $region44
        $region43: #{tpu_custom_call.1} parent=11 // pred_region
          _
        $region44: #{tpu_custom_call.1} parent=11 // pred_fallthru
          _
        // Predicated region
        $region45: #{tpu_custom_call.1} parent=11 // pred_check
          %p352 = pneg %p265
        $region46: #{tpu_custom_call.1} parent=11 // pred_check_branch
          %354 = sbr.rel (%p352) target = $region48
        $region47: #{tpu_custom_call.1} parent=11 // pred_region
          _
        $region48: #{tpu_custom_call.1} parent=11 // pred_fallthru
          _
      $region12: #{tpu_custom_call.1} parent=5 // pred_fallthru
        _
      %p355 = scmp.lt.s32.totalorder %s24, 2
      // Predicated region
      $region49: #{tpu_custom_call.1} parent=5 // pred_check
        %p356 = pneg %p355
      $region50: #{tpu_custom_call.1} parent=5 // pred_check_branch
        %358 = sbr.rel (%p356) target = $region52
      $region51: #{tpu_custom_call.1} parent=5 // pred_region
        // Predicated region
        $region53: #{tpu_custom_call.1} parent=51 // pred_check
          %p359 = pneg %p44
        $region54: #{tpu_custom_call.1} parent=51 // pred_check_branch
          %361 = sbr.rel (%p359) target = $region56
        $region55: #{tpu_custom_call.1} parent=51 // pred_region
          %s362 = smul.u32 16, %s24
          %p363 = scmp.lt.s32.totalorder %s362, 31
          %s364 = scalar_select %p363, %s362, 31
          %s365 = smul.addr %s364, 8
          %s366 = scalar_lea.vmem %s0, %s365
          %s367 = smul.u32 16, %s24
        $region56: #{tpu_custom_call.1} parent=51 // pred_fallthru
          _
        // Predicated region
        $region57: #{tpu_custom_call.1} parent=51 // pred_check
          %p368 = pneg %p70
        $region58: #{tpu_custom_call.1} parent=51 // pred_check_branch
          %370 = sbr.rel (%p368) target = $region60
        $region59: #{tpu_custom_call.1} parent=51 // pred_region
          %s371 = smul.u32 16, %s24
          %p372 = scmp.lt.s32.totalorder %s371, 31
          %s373 = scalar_select %p372, %s371, 31
          %s374 = smul.addr %s373, 8
          %s375 = scalar_lea.vmem %s1, %s374
          %s376 = smul.u32 16, %s24
        $region60: #{tpu_custom_call.1} parent=51 // pred_fallthru
          _
      $region52: #{tpu_custom_call.1} parent=5 // pred_fallthru
        _
      %p377 = scmp.le.s32.totalorder 1, %s24
      %p378 = scmp.lt.s32.totalorder %s24, 3
      %p379 = pnand %p377, %p378
      %p380 = pneg %p379
      // Predicated region
      $region61: #{tpu_custom_call.1} parent=5 // pred_check
        _
      $region62: #{tpu_custom_call.1} parent=5 // pred_check_branch
        %382 = sbr.rel (%p379) target = $region64
      $region63: #{tpu_custom_call.1} parent=5 // pred_region
        %s383 = ssub.s32 %s24, 1
        // Predicated region
        $region65: #{tpu_custom_call.1} parent=63 // pred_check
          %p384 = pneg %p139
        $region66: #{tpu_custom_call.1} parent=63 // pred_check_branch
          %386 = sbr.rel (%p384) target = $region68
        $region67: #{tpu_custom_call.1} parent=63 // pred_region
          %388 = dma.done [#allocation4], 512
        $region68: #{tpu_custom_call.1} parent=63 // pred_fallthru
          _
        // Predicated region
        $region69: #{tpu_custom_call.1} parent=63 // pred_check
          %p389 = pneg %p181
        $region70: #{tpu_custom_call.1} parent=63 // pred_check_branch
          %391 = sbr.rel (%p389) target = $region72
        $region71: #{tpu_custom_call.1} parent=63 // pred_region
          %393 = dma.done [#allocation7], 5120
        $region72: #{tpu_custom_call.1} parent=63 // pred_fallthru
          _
        %s394 = smul.u32 16, %s29
        %p395 = scmp.lt.s32.totalorder %s394, 31
        %s396 = scalar_select %p395, %s394, 31
        %s397 = smul.addr %s396, 8
        %s398 = scalar_lea.vmem %s0, %s397
        %p399 = pneg %p50
        %p400 = pneg %p47
        %s401 = smul.u32 16, %s29
        %p402 = scmp.lt.s32.totalorder %s401, 31
        %s403 = scalar_select %p402, %s401, 31
        %s404 = smul.addr %s403, 8
        %s405 = scalar_lea.vmem %s1, %s404
        %p406 = pneg %p76
        %p407 = pneg %p73
        %p408 = pneg %p97
        %p409 = pneg %p94
        %p410 = pneg %p118
        %p411 = pneg %p115
        %p412 = pneg %p139
        %p413 = pneg %p136
        %p414 = pneg %p160
        %p415 = pneg %p157
        %p416 = pneg %p181
        %p417 = pneg %p178
        %p418 = pneg %p202
        %p419 = pneg %p199
        %p420 = pneg %p223
        %p421 = pneg %p220
        %p422 = pneg %p244
        %p423 = pneg %p241
        %p424 = pneg %p265
        %p425 = pneg %p262
        %p426 = pneg %p291
        %p427 = pneg %p288
        %s428 = sand.u32 %s278, 1
        %s429 = scalar_lea.sflag [#allocation5], %s428
        %s430 = sand.u32 %s278, 1
        %s431 = smul.addr %s430, 128
        %s432 = scalar_lea.vmem [#allocation8], %s431
        %s433 = smul.u32 16, %s29
        %p434 = scmp.lt.s32.totalorder %s433, 31
        %s435 = scalar_select %p434, %s433, 31
        %s436 = smul.addr %s435, 8
        %s437 = scalar_lea.vmem %s0, %s436
        %s438 = smul.u32 16, %s29
        %s439 = smul.u32 16, %s29
        %p440 = scmp.lt.s32.totalorder %s439, 31
        %s441 = scalar_select %p440, %s439, 31
        %s442 = smul.addr %s441, 8
        %s443 = scalar_lea.vmem %s1, %s442
        %s444 = smul.u32 16, %s29
        %s445 = smul.u32 16, %s29
        %v447 = vld [vmem:[#allocation2] sm:$0x1]
        %v448 = vld [vmem:[%s437] sm:$0xff]
        %v449 = vld [vmem:[%s437 + $0x8] sm:$0xff]
        %v450 = vld [vmem:[%s437 + $0x10] sm:$0xff]
        %v451 = vld [vmem:[%s437 + $0x18] sm:$0xff]
        %v452 = vld [vmem:[%s437 + $0x20] sm:$0xff]
        %v453 = vld [vmem:[%s437 + $0x28] sm:$0xff]
        %v454 = vld [vmem:[%s437 + $0x30] sm:$0xff]
        %v455 = vld [vmem:[%s437 + $0x38] sm:$0xff]
        %v456 = vld [vmem:[%s437 + $0x40] sm:$0xff]
        %v457 = vld [vmem:[%s437 + $0x48] sm:$0xff]
        %v458 = vld [vmem:[%s437 + $0x50] sm:$0xff]
        %v459 = vld [vmem:[%s437 + $0x58] sm:$0xff]
        %v460 = vld [vmem:[%s437 + $0x60] sm:$0xff]
        %v461 = vld [vmem:[%s437 + $0x68] sm:$0xff]
        %v462 = vld [vmem:[%s437 + $0x70] sm:$0xff]
        %v463 = vld [vmem:[%s437 + $0x78] sm:$0xff]
        %v464 = vld [vmem:[%s2] sm:$0xff]
        %v465 = vpack.c.bf16 %v449, %v448
        %v466 = vpack.c.bf16 %v451, %v450
        %v467 = vpack.c.bf16 %v453, %v452
        %v468 = vpack.c.bf16 %v455, %v454
        %v469 = vpack.c.bf16 %v457, %v456
        %v470 = vpack.c.bf16 %v459, %v458
        %v471 = vpack.c.bf16 %v461, %v460
        %v472 = vpack.c.bf16 %v463, %v462
        %v473 = vpack.c.bf16 %v464, %v464
        %v474 = vld [vmem:[%s3] sm:$0x1]
        %v476 = vperm.slane %v474, 0
        %vm478 = vcmask 64512
        %v480 = vsel %vm478, %v465, 0
        %v483 = vsel %vm478, %v466, 0
        %v486 = vsel %vm478, %v467, 0
        %v489 = vsel %vm478, %v468, 0
        %v492 = vsel %vm478, %v469, 0
        %v495 = vsel %vm478, %v470, 0
        %v498 = vsel %vm478, %v471, 0
        %v501 = vsel %vm478, %v472, 0
        %vm503 = vcmask 1043456
        %v505 = vsel %vm503, %v473, 0
        %507 = vmatpush.bf16.msra.mxu0 0
        %508 = vmatpush.bf16.msra.mxu0 0
        %509 = vmatpush.bf16.msra.mxu0 0
        %510 = vmatpush.bf16.msra.mxu0 0
        %511 = vmatpush.bf16.msra.mxu0 0
        %512 = vmatpush.bf16.msra.mxu0 0
        %513 = vmatpush.bf16.msra.mxu0 0
        %514 = vmatpush.bf16.msra.mxu0 %v505
        %515 = vmatmul.bf16.gmra.mxu0 %v480
        %v516 = vpop.f32.mrf.mxu0
        %v517 = vadd.f32 %v476, %v516
        %v518 = vpop.f32.mrf.mxu0
        %v519 = vadd.f32 %v476, %v518
        %520 = vmatmul.bf16.gmra.mxu0 %v483
        %v521 = vpop.f32.mrf.mxu0
        %v522 = vadd.f32 %v476, %v521
        %v523 = vpop.f32.mrf.mxu0
        %v524 = vadd.f32 %v476, %v523
        %525 = vmatmul.bf16.gmra.mxu0 %v486
        %v526 = vpop.f32.mrf.mxu0
        %v527 = vadd.f32 %v476, %v526
        %v528 = vpop.f32.mrf.mxu0
        %v529 = vadd.f32 %v476, %v528
        %530 = vmatmul.bf16.gmra.mxu0 %v489
        %v531 = vpop.f32.mrf.mxu0
        %v532 = vadd.f32 %v476, %v531
        %v533 = vpop.f32.mrf.mxu0
        %v534 = vadd.f32 %v476, %v533
        %535 = vmatmul.bf16.gmra.mxu0 %v492
        %v536 = vpop.f32.mrf.mxu0
        %v537 = vadd.f32 %v476, %v536
        %v538 = vpop.f32.mrf.mxu0
        %v539 = vadd.f32 %v476, %v538
        %540 = vmatmul.bf16.gmra.mxu0 %v495
        %v541 = vpop.f32.mrf.mxu0
        %v542 = vadd.f32 %v476, %v541
        %v543 = vpop.f32.mrf.mxu0
        %v544 = vadd.f32 %v476, %v543
        %545 = vmatmul.bf16.gmra.mxu0 %v498
        %v546 = vpop.f32.mrf.mxu0
        %v547 = vadd.f32 %v476, %v546
        %v548 = vpop.f32.mrf.mxu0
        %v549 = vadd.f32 %v476, %v548
        %550 = vmatmul.bf16.gmra.mxu0 %v501
        %v551 = vpop.f32.mrf.mxu0
        %v552 = vadd.f32 %v476, %v551
        %v553 = vpop.f32.mrf.mxu0
        %v554 = vadd.f32 %v476, %v553
        %555 = vdwg.mxu0
        %v556 = vtanh.pop %v517
        %v557 = vtanh.pop %v519
        %v558 = vtanh.pop %v522
        %v559 = vtanh.pop %v524
        %v560 = vtanh.pop %v527
        %v561 = vtanh.pop %v529
        %v562 = vtanh.pop %v532
        %v563 = vtanh.pop %v534
        %v564 = vtanh.pop %v537
        %v565 = vtanh.pop %v539
        %v566 = vtanh.pop %v542
        %v567 = vtanh.pop %v544
        %v568 = vtanh.pop %v547
        %v569 = vtanh.pop %v549
        %v570 = vtanh.pop %v552
        %v571 = vtanh.pop %v554
        %v572 = vld [vmem:[#allocation3] sm:$0xff]
        %v573 = vld [vmem:[#allocation3 + $0x8] sm:$0xff]
        %v574 = vld [vmem:[#allocation3 + $0x10] sm:$0xff]
        %v575 = vld [vmem:[#allocation3 + $0x18] sm:$0xff]
        %v576 = vpack.c.bf16 %v557, %v556
        %v577 = vpack.c.bf16 %v559, %v558
        %v578 = vpack.c.bf16 %v561, %v560
        %v579 = vpack.c.bf16 %v563, %v562
        %v580 = vpack.c.bf16 %v565, %v564
        %v581 = vpack.c.bf16 %v567, %v566
        %v582 = vpack.c.bf16 %v569, %v568
        %v583 = vpack.c.bf16 %v571, %v570
        %v584 = vpack.c.bf16 %v573, %v572
        %v585 = vpack.c.bf16 %v575, %v574
        %v586 = vld [vmem:[%s5] sm:$0x1]
        %v588 = vperm.slane %v586, 0
        %vm590 = vcmask 261120
        %v592 = vsel %vm590, %v576, 0
        %v595 = vsel %vm590, %v577, 0
        %v598 = vsel %vm590, %v578, 0
        %v601 = vsel %vm590, %v579, 0
        %v604 = vsel %vm590, %v580, 0
        %v607 = vsel %vm590, %v581, 0
        %v610 = vsel %vm590, %v582, 0
        %v613 = vsel %vm590, %v583, 0
        %615 = vmatpush.bf16.msra.mxu0 0
        %616 = vmatpush.bf16.msra.mxu0 0
        %617 = vmatpush.bf16.msra.mxu0 0
        %618 = vmatpush.bf16.msra.mxu0 0
        %619 = vmatpush.bf16.msra.mxu0 0
        %620 = vmatpush.bf16.msra.mxu0 0
        %621 = vmatpush.bf16.msra.mxu0 %v585
        %622 = vmatpush.bf16.msra.mxu0 %v584
        %623 = vmatmul.bf16.gmra.mxu0 %v592
        %v624 = vpop.f32.mrf.mxu0
        %v625 = vadd.f32 %v588, %v624
        %v626 = vpop.f32.mrf.mxu0
        %v627 = vadd.f32 %v588, %v626
        %628 = vmatmul.bf16.gmra.mxu0 %v595
        %v629 = vpop.f32.mrf.mxu0
        %v630 = vadd.f32 %v588, %v629
        %v631 = vpop.f32.mrf.mxu0
        %v632 = vadd.f32 %v588, %v631
        %633 = vmatmul.bf16.gmra.mxu0 %v598
        %v634 = vpop.f32.mrf.mxu0
        %v635 = vadd.f32 %v588, %v634
        %v636 = vpop.f32.mrf.mxu0
        %v637 = vadd.f32 %v588, %v636
        %638 = vmatmul.bf16.gmra.mxu0 %v601
        %v639 = vpop.f32.mrf.mxu0
        %v640 = vadd.f32 %v588, %v639
        %v641 = vpop.f32.mrf.mxu0
        %v642 = vadd.f32 %v588, %v641
        %643 = vmatmul.bf16.gmra.mxu0 %v604
        %v644 = vpop.f32.mrf.mxu0
        %v645 = vadd.f32 %v588, %v644
        %v646 = vpop.f32.mrf.mxu0
        %v647 = vadd.f32 %v588, %v646
        %648 = vmatmul.bf16.gmra.mxu0 %v607
        %v649 = vpop.f32.mrf.mxu0
        %v650 = vadd.f32 %v588, %v649
        %v651 = vpop.f32.mrf.mxu0
        %v652 = vadd.f32 %v588, %v651
        %653 = vmatmul.bf16.gmra.mxu0 %v610
        %v654 = vpop.f32.mrf.mxu0
        %v655 = vadd.f32 %v588, %v654
        %v656 = vpop.f32.mrf.mxu0
        %v657 = vadd.f32 %v588, %v656
        %658 = vmatmul.bf16.gmra.mxu0 %v613
        %v659 = vpop.f32.mrf.mxu0
        %v660 = vadd.f32 %v588, %v659
        %v661 = vpop.f32.mrf.mxu0
        %v662 = vadd.f32 %v588, %v661
        %663 = vdwg.mxu0
        %v664 = vld [vmem:[%s10] sm:$0x1]
        %v666 = vperm.slane %v664, 0
        %v668 = vadd.f32 %v666, 0.0
        %669 = vst [vmem:[%s432] sm:$0xff] %v668
        %670 = vst [vmem:[%s432 + $0x8] sm:$0xff] %v668
        %671 = vst [vmem:[%s432 + $0x10] sm:$0xff] %v668
        %672 = vst [vmem:[%s432 + $0x18] sm:$0xff] %v668
        %673 = vst [vmem:[%s432 + $0x20] sm:$0xff] %v668
        %674 = vst [vmem:[%s432 + $0x28] sm:$0xff] %v668
        %675 = vst [vmem:[%s432 + $0x30] sm:$0xff] %v668
        %676 = vst [vmem:[%s432 + $0x38] sm:$0xff] %v668
        %677 = vst [vmem:[%s432 + $0x40] sm:$0xff] %v668
        %678 = vst [vmem:[%s432 + $0x48] sm:$0xff] %v668
        %679 = vst [vmem:[%s432 + $0x50] sm:$0xff] %v668
        %680 = vst [vmem:[%s432 + $0x58] sm:$0xff] %v668
        %681 = vst [vmem:[%s432 + $0x60] sm:$0xff] %v668
        %682 = vst [vmem:[%s432 + $0x68] sm:$0xff] %v668
        %683 = vst [vmem:[%s432 + $0x70] sm:$0xff] %v668
        %684 = vst [vmem:[%s432 + $0x78] sm:$0xff] %v668
        %v685 = vld [vmem:[%s432] sm:$0xff]
        %v686 = vld [vmem:[%s432 + $0x8] sm:$0xff]
        %v687 = vld [vmem:[%s432 + $0x10] sm:$0xff]
        %v688 = vld [vmem:[%s432 + $0x18] sm:$0xff]
        %v689 = vld [vmem:[%s432 + $0x20] sm:$0xff]
        %v690 = vld [vmem:[%s432 + $0x28] sm:$0xff]
        %v691 = vld [vmem:[%s432 + $0x30] sm:$0xff]
        %v692 = vld [vmem:[%s432 + $0x38] sm:$0xff]
        %v693 = vld [vmem:[%s432 + $0x40] sm:$0xff]
        %v694 = vld [vmem:[%s432 + $0x48] sm:$0xff]
        %v695 = vld [vmem:[%s432 + $0x50] sm:$0xff]
        %v696 = vld [vmem:[%s432 + $0x58] sm:$0xff]
        %v697 = vld [vmem:[%s432 + $0x60] sm:$0xff]
        %v698 = vld [vmem:[%s432 + $0x68] sm:$0xff]
        %v699 = vld [vmem:[%s432 + $0x70] sm:$0xff]
        %v700 = vld [vmem:[%s432 + $0x78] sm:$0xff]
        %v701 = vld [vmem:[%s9] sm:$0xff]
        %v702 = vld [vmem:[%s9 + $0x8] sm:$0xff]
        %v703 = vld [vmem:[%s9 + $0x10] sm:$0xff]
        %v704 = vld [vmem:[%s9 + $0x18] sm:$0xff]
        %v705 = vld [vmem:[%s9 + $0x20] sm:$0xff]
        %v706 = vld [vmem:[%s9 + $0x28] sm:$0xff]
        %v707 = vld [vmem:[%s9 + $0x30] sm:$0xff]
        %v708 = vld [vmem:[%s9 + $0x38] sm:$0xff]
        %v709 = vpack.c.bf16 %v627, %v625
        %v710 = vpack.c.bf16 %v632, %v630
        %v711 = vpack.c.bf16 %v637, %v635
        %v712 = vpack.c.bf16 %v642, %v640
        %v713 = vpack.c.bf16 %v647, %v645
        %v714 = vpack.c.bf16 %v652, %v650
        %v715 = vpack.c.bf16 %v657, %v655
        %v716 = vpack.c.bf16 %v662, %v660
        %v717 = vpack.c.bf16 %v702, %v701
        %v718 = vpack.c.bf16 %v704, %v703
        %v719 = vpack.c.bf16 %v706, %v705
        %v720 = vpack.c.bf16 %v708, %v707
        %vm721 = vcmask 523264
        %v723 = vsel %vm721, %v709, 0
        %v726 = vsel %vm721, %v710, 0
        %v729 = vsel %vm721, %v711, 0
        %v732 = vsel %vm721, %v712, 0
        %v735 = vsel %vm721, %v713, 0
        %v738 = vsel %vm721, %v714, 0
        %v741 = vsel %vm721, %v715, 0
        %v744 = vsel %vm721, %v716, 0
        %746 = vmatpush.bf16.msra.mxu0 0
        %747 = vmatpush.bf16.msra.mxu0 0
        %748 = vmatpush.bf16.msra.mxu0 0
        %749 = vmatpush.bf16.msra.mxu0 0
        %750 = vmatpush.bf16.msra.mxu0 %v720
        %751 = vmatpush.bf16.msra.mxu0 %v719
        %752 = vmatpush.bf16.msra.mxu0 %v718
        %753 = vmatpush.bf16.msra.mxu0 %v717
        %754 = vmatmul.bf16.gmra.mxu0 %v723
        %v755 = vpop.f32.mrf.mxu0
        %v756 = vadd.f32 0.0, %v755
        %v757 = vpop.f32.mrf.mxu0
        %v758 = vadd.f32 0.0, %v757
        %759 = vmatmul.bf16.gmra.mxu0 %v726
        %v760 = vpop.f32.mrf.mxu0
        %v761 = vadd.f32 0.0, %v760
        %v762 = vpop.f32.mrf.mxu0
        %v763 = vadd.f32 0.0, %v762
        %764 = vmatmul.bf16.gmra.mxu0 %v729
        %v765 = vpop.f32.mrf.mxu0
        %v766 = vadd.f32 0.0, %v765
        %v767 = vpop.f32.mrf.mxu0
        %v768 = vadd.f32 0.0, %v767
        %769 = vmatmul.bf16.gmra.mxu0 %v732
        %v770 = vpop.f32.mrf.mxu0
        %v771 = vadd.f32 0.0, %v770
        %v772 = vpop.f32.mrf.mxu0
        %v773 = vadd.f32 0.0, %v772
        %774 = vmatmul.bf16.gmra.mxu0 %v735
        %v775 = vpop.f32.mrf.mxu0
        %v776 = vadd.f32 0.0, %v775
        %v777 = vpop.f32.mrf.mxu0
        %v778 = vadd.f32 0.0, %v777
        %779 = vmatmul.bf16.gmra.mxu0 %v738
        %v780 = vpop.f32.mrf.mxu0
        %v781 = vadd.f32 0.0, %v780
        %v782 = vpop.f32.mrf.mxu0
        %v783 = vadd.f32 0.0, %v782
        %784 = vmatmul.bf16.gmra.mxu0 %v741
        %v785 = vpop.f32.mrf.mxu0
        %v786 = vadd.f32 0.0, %v785
        %v787 = vpop.f32.mrf.mxu0
        %v788 = vadd.f32 0.0, %v787
        %789 = vmatmul.bf16.gmra.mxu0 %v744
        %v790 = vpop.f32.mrf.mxu0
        %v791 = vadd.f32 0.0, %v790
        %v792 = vpop.f32.mrf.mxu0
        %v793 = vadd.f32 0.0, %v792
        %794 = vdwg.mxu0
        %v795 = vadd.f32 %v685, %v756
        %v796 = vadd.f32 %v686, %v758
        %v797 = vadd.f32 %v687, %v761
        %v798 = vadd.f32 %v688, %v763
        %v799 = vadd.f32 %v689, %v766
        %v800 = vadd.f32 %v690, %v768
        %v801 = vadd.f32 %v691, %v771
        %v802 = vadd.f32 %v692, %v773
        %v803 = vadd.f32 %v693, %v776
        %v804 = vadd.f32 %v694, %v778
        %v805 = vadd.f32 %v695, %v781
        %v806 = vadd.f32 %v696, %v783
        %v807 = vadd.f32 %v697, %v786
        %v808 = vadd.f32 %v698, %v788
        %v809 = vadd.f32 %v699, %v791
        %v810 = vadd.f32 %v700, %v793
        %811 = vst [vmem:[%s432] sm:$0xff] %v795
        %812 = vst [vmem:[%s432 + $0x8] sm:$0xff] %v796
        %813 = vst [vmem:[%s432 + $0x10] sm:$0xff] %v797
        %814 = vst [vmem:[%s432 + $0x18] sm:$0xff] %v798
        %815 = vst [vmem:[%s432 + $0x20] sm:$0xff] %v799
        %816 = vst [vmem:[%s432 + $0x28] sm:$0xff] %v800
        %817 = vst [vmem:[%s432 + $0x30] sm:$0xff] %v801
        %818 = vst [vmem:[%s432 + $0x38] sm:$0xff] %v802
        %819 = vst [vmem:[%s432 + $0x40] sm:$0xff] %v803
        %820 = vst [vmem:[%s432 + $0x48] sm:$0xff] %v804
        %821 = vst [vmem:[%s432 + $0x50] sm:$0xff] %v805
        %822 = vst [vmem:[%s432 + $0x58] sm:$0xff] %v806
        %823 = vst [vmem:[%s432 + $0x60] sm:$0xff] %v807
        %824 = vst [vmem:[%s432 + $0x68] sm:$0xff] %v808
        %825 = vst [vmem:[%s432 + $0x70] sm:$0xff] %v809
        %826 = vst [vmem:[%s432 + $0x78] sm:$0xff] %v810
        %v827 = vld [vmem:[#allocation6] sm:$0xff]
        %v828 = vld [vmem:[#allocation6 + $0x8] sm:$0xff]
        %v829 = vld [vmem:[#allocation6 + $0x10] sm:$0xff]
        %v830 = vld [vmem:[#allocation6 + $0x18] sm:$0xff]
        %v831 = vld [vmem:[#allocation6 + $0x20] sm:$0xff]
        %v832 = vld [vmem:[#allocation6 + $0x28] sm:$0xff]
        %v833 = vld [vmem:[#allocation6 + $0x30] sm:$0xff]
        %v834 = vld [vmem:[#allocation6 + $0x38] sm:$0xff]
        %v835 = vpack.c.bf16 %v828, %v827
        %v836 = vpack.c.bf16 %v830, %v829
        %v837 = vpack.c.bf16 %v832, %v831
        %v838 = vpack.c.bf16 %v834, %v833
        %v839 = vld [vmem:[%s7] sm:$0x1]
        %v841 = vperm.slane %v839, 0
        %843 = vmatpush.bf16.msra.mxu0 0
        %844 = vmatpush.bf16.msra.mxu0 0
        %845 = vmatpush.bf16.msra.mxu0 0
        %846 = vmatpush.bf16.msra.mxu0 0
        %847 = vmatpush.bf16.msra.mxu0 %v838
        %848 = vmatpush.bf16.msra.mxu0 %v837
        %849 = vmatpush.bf16.msra.mxu0 %v836
        %850 = vmatpush.bf16.msra.mxu0 %v835
        %851 = vmatmul.bf16.gmra.mxu0 %v723
        %v852 = vpop.f32.mrf.mxu0
        %v853 = vadd.f32 %v841, %v852
        %v854 = vpop.f32.mrf.mxu0
        %v855 = vadd.f32 %v841, %v854
        %856 = vmatmul.bf16.gmra.mxu0 %v726
        %v857 = vpop.f32.mrf.mxu0
        %v858 = vadd.f32 %v841, %v857
        %v859 = vpop.f32.mrf.mxu0
        %v860 = vadd.f32 %v841, %v859
        %861 = vmatmul.bf16.gmra.mxu0 %v729
        %v862 = vpop.f32.mrf.mxu0
        %v863 = vadd.f32 %v841, %v862
        %v864 = vpop.f32.mrf.mxu0
        %v865 = vadd.f32 %v841, %v864
        %866 = vmatmul.bf16.gmra.mxu0 %v732
        %v867 = vpop.f32.mrf.mxu0
        %v868 = vadd.f32 %v841, %v867
        %v869 = vpop.f32.mrf.mxu0
        %v870 = vadd.f32 %v841, %v869
        %871 = vmatmul.bf16.gmra.mxu0 %v735
        %v872 = vpop.f32.mrf.mxu0
        %v873 = vadd.f32 %v841, %v872
        %v874 = vpop.f32.mrf.mxu0
        %v875 = vadd.f32 %v841, %v874
        %876 = vmatmul.bf16.gmra.mxu0 %v738
        %v877 = vpop.f32.mrf.mxu0
        %v878 = vadd.f32 %v841, %v877
        %v879 = vpop.f32.mrf.mxu0
        %v880 = vadd.f32 %v841, %v879
        %881 = vmatmul.bf16.gmra.mxu0 %v741
        %v882 = vpop.f32.mrf.mxu0
        %v883 = vadd.f32 %v841, %v882
        %v884 = vpop.f32.mrf.mxu0
        %v885 = vadd.f32 %v841, %v884
        %886 = vmatmul.bf16.gmra.mxu0 %v744
        %v887 = vpop.f32.mrf.mxu0
        %v888 = vadd.f32 %v841, %v887
        %v889 = vpop.f32.mrf.mxu0
        %v890 = vadd.f32 %v841, %v889
        %891 = vdwg.mxu0
        %v892 = vtanh.pop %v853
        %v893 = vtanh.pop %v855
        %v894 = vtanh.pop %v858
        %v895 = vtanh.pop %v860
        %v896 = vtanh.pop %v863
        %v897 = vtanh.pop %v865
        %v898 = vtanh.pop %v868
        %v899 = vtanh.pop %v870
        %v900 = vtanh.pop %v873
        %v901 = vtanh.pop %v875
        %v902 = vtanh.pop %v878
        %v903 = vtanh.pop %v880
        %v904 = vtanh.pop %v883
        %v905 = vtanh.pop %v885
        %v906 = vtanh.pop %v888
        %v907 = vtanh.pop %v890
        %s908 = scalar_lea.vmem [#allocation6], 64
        %v909 = vld [vmem:[%s908] sm:$0xff]
        %v910 = vld [vmem:[%s908 + $0x8] sm:$0xff]
        %v911 = vld [vmem:[%s908 + $0x10] sm:$0xff]
        %v912 = vld [vmem:[%s908 + $0x18] sm:$0xff]
        %v913 = vld [vmem:[%s908 + $0x20] sm:$0xff]
        %v914 = vld [vmem:[%s908 + $0x28] sm:$0xff]
        %v915 = vld [vmem:[%s908 + $0x30] sm:$0xff]
        %v916 = vld [vmem:[%s908 + $0x38] sm:$0xff]
        %v917 = vpack.c.bf16 %v910, %v909
        %v918 = vpack.c.bf16 %v912, %v911
        %v919 = vpack.c.bf16 %v914, %v913
        %v920 = vpack.c.bf16 %v916, %v915
        %s921 = scalar_lea.vmem %s7, 1
        %v922 = vld [vmem:[%s921] sm:$0x1]
        %v924 = vperm.slane %v922, 0
        %926 = vmatpush.bf16.msra.mxu0 0
        %927 = vmatpush.bf16.msra.mxu0 0
        %928 = vmatpush.bf16.msra.mxu0 0
        %929 = vmatpush.bf16.msra.mxu0 0
        %930 = vmatpush.bf16.msra.mxu0 %v920
        %931 = vmatpush.bf16.msra.mxu0 %v919
        %932 = vmatpush.bf16.msra.mxu0 %v918
        %933 = vmatpush.bf16.msra.mxu0 %v917
        %934 = vmatmul.bf16.gmra.mxu0 %v723
        %v935 = vpop.f32.mrf.mxu0
        %v936 = vadd.f32 %v924, %v935
        %v937 = vpop.f32.mrf.mxu0
        %v938 = vadd.f32 %v924, %v937
        %939 = vmatmul.bf16.gmra.mxu0 %v726
        %v940 = vpop.f32.mrf.mxu0
        %v941 = vadd.f32 %v924, %v940
        %v942 = vpop.f32.mrf.mxu0
        %v943 = vadd.f32 %v924, %v942
        %944 = vmatmul.bf16.gmra.mxu0 %v729
        %v945 = vpop.f32.mrf.mxu0
        %v946 = vadd.f32 %v924, %v945
        %v947 = vpop.f32.mrf.mxu0
        %v948 = vadd.f32 %v924, %v947
        %949 = vmatmul.bf16.gmra.mxu0 %v732
        %v950 = vpop.f32.mrf.mxu0
        %v951 = vadd.f32 %v924, %v950
        %v952 = vpop.f32.mrf.mxu0
        %v953 = vadd.f32 %v924, %v952
        %954 = vmatmul.bf16.gmra.mxu0 %v735
        %v955 = vpop.f32.mrf.mxu0
        %v956 = vadd.f32 %v924, %v955
        %v957 = vpop.f32.mrf.mxu0
        %v958 = vadd.f32 %v924, %v957
        %959 = vmatmul.bf16.gmra.mxu0 %v738
        %v960 = vpop.f32.mrf.mxu0
        %v961 = vadd.f32 %v924, %v960
        %v962 = vpop.f32.mrf.mxu0
        %v963 = vadd.f32 %v924, %v962
        %964 = vmatmul.bf16.gmra.mxu0 %v741
        %v965 = vpop.f32.mrf.mxu0
        %v966 = vadd.f32 %v924, %v965
        %v967 = vpop.f32.mrf.mxu0
        %v968 = vadd.f32 %v924, %v967
        %969 = vmatmul.bf16.gmra.mxu0 %v744
        %v970 = vpop.f32.mrf.mxu0
        %v971 = vadd.f32 %v924, %v970
        %v972 = vpop.f32.mrf.mxu0
        %v973 = vadd.f32 %v924, %v972
        %974 = vdwg.mxu0
        %v975 = vtanh.pop %v936
        %v976 = vtanh.pop %v938
        %v977 = vtanh.pop %v941
        %v978 = vtanh.pop %v943
        %v979 = vtanh.pop %v946
        %v980 = vtanh.pop %v948
        %v981 = vtanh.pop %v951
        %v982 = vtanh.pop %v953
        %v983 = vtanh.pop %v956
        %v984 = vtanh.pop %v958
        %v985 = vtanh.pop %v961
        %v986 = vtanh.pop %v963
        %v987 = vtanh.pop %v966
        %v988 = vtanh.pop %v968
        %v989 = vtanh.pop %v971
        %v990 = vtanh.pop %v973
        %v992 = vperm.slane %v447, 0
        %993 = vset.pattern.permute.xlu0 0
        %994 = vperm.xlu0 %993, %v992
        %v995 = vpop.permute.xlu0 %994
        %v997 = vmul.f32 %v975, %v995
        %v998 = vmul.f32 %v976, %v995
        %v999 = vmul.f32 %v977, %v995
        %v1000 = vmul.f32 %v978, %v995
        %v1001 = vmul.f32 %v979, %v995
        %v1002 = vmul.f32 %v980, %v995
        %v1003 = vmul.f32 %v981, %v995
        %v1004 = vmul.f32 %v982, %v995
        %v1005 = vmul.f32 %v983, %v995
        %v1006 = vmul.f32 %v984, %v995
        %v1007 = vmul.f32 %v985, %v995
        %v1008 = vmul.f32 %v986, %v995
        %v1009 = vmul.f32 %v987, %v995
        %v1010 = vmul.f32 %v988, %v995
        %v1011 = vmul.f32 %v989, %v995
        %v1012 = vmul.f32 %v990, %v995
        %v1013 = vld [vmem:[%s443] sm:$0xff]
        %v1014 = vld [vmem:[%s443 + $0x8] sm:$0xff]
        %v1015 = vld [vmem:[%s443 + $0x10] sm:$0xff]
        %v1016 = vld [vmem:[%s443 + $0x18] sm:$0xff]
        %v1017 = vld [vmem:[%s443 + $0x20] sm:$0xff]
        %v1018 = vld [vmem:[%s443 + $0x28] sm:$0xff]
        %v1019 = vld [vmem:[%s443 + $0x30] sm:$0xff]
        %v1020 = vld [vmem:[%s443 + $0x38] sm:$0xff]
        %v1021 = vld [vmem:[%s443 + $0x40] sm:$0xff]
        %v1022 = vld [vmem:[%s443 + $0x48] sm:$0xff]
        %v1023 = vld [vmem:[%s443 + $0x50] sm:$0xff]
        %v1024 = vld [vmem:[%s443 + $0x58] sm:$0xff]
        %v1025 = vld [vmem:[%s443 + $0x60] sm:$0xff]
        %v1026 = vld [vmem:[%s443 + $0x68] sm:$0xff]
        %v1027 = vld [vmem:[%s443 + $0x70] sm:$0xff]
        %v1028 = vld [vmem:[%s443 + $0x78] sm:$0xff]
        %1030 = vset.pattern.permute.xlu0 0
        %1031 = vperm.xlu0 %1030, %v1013
        %v1032 = vpop.permute.xlu0 %1031
        %1035 = vset.pattern.permute.xlu0 0
        %1036 = vperm.xlu0 %1035, %v1014
        %v1037 = vpop.permute.xlu0 %1036
        %1040 = vset.pattern.permute.xlu0 0
        %1041 = vperm.xlu0 %1040, %v1015
        %v1042 = vpop.permute.xlu0 %1041
        %1045 = vset.pattern.permute.xlu0 0
        %1046 = vperm.xlu0 %1045, %v1016
        %v1047 = vpop.permute.xlu0 %1046
        %1050 = vset.pattern.permute.xlu0 0
        %1051 = vperm.xlu0 %1050, %v1017
        %v1052 = vpop.permute.xlu0 %1051
        %1055 = vset.pattern.permute.xlu0 0
        %1056 = vperm.xlu0 %1055, %v1018
        %v1057 = vpop.permute.xlu0 %1056
        %1060 = vset.pattern.permute.xlu0 0
        %1061 = vperm.xlu0 %1060, %v1019
        %v1062 = vpop.permute.xlu0 %1061
        %1065 = vset.pattern.permute.xlu0 0
        %1066 = vperm.xlu0 %1065, %v1020
        %v1067 = vpop.permute.xlu0 %1066
        %1070 = vset.pattern.permute.xlu0 0
        %1071 = vperm.xlu0 %1070, %v1021
        %v1072 = vpop.permute.xlu0 %1071
        %1075 = vset.pattern.permute.xlu0 0
        %1076 = vperm.xlu0 %1075, %v1022
        %v1077 = vpop.permute.xlu0 %1076
        %1080 = vset.pattern.permute.xlu0 0
        %1081 = vperm.xlu0 %1080, %v1023
        %v1082 = vpop.permute.xlu0 %1081
        %1085 = vset.pattern.permute.xlu0 0
        %1086 = vperm.xlu0 %1085, %v1024
        %v1087 = vpop.permute.xlu0 %1086
        %1090 = vset.pattern.permute.xlu0 0
        %1091 = vperm.xlu0 %1090, %v1025
        %v1092 = vpop.permute.xlu0 %1091
        %1095 = vset.pattern.permute.xlu0 0
        %1096 = vperm.xlu0 %1095, %v1026
        %v1097 = vpop.permute.xlu0 %1096
        %1100 = vset.pattern.permute.xlu0 0
        %1101 = vperm.xlu0 %1100, %v1027
        %v1102 = vpop.permute.xlu0 %1101
        %1105 = vset.pattern.permute.xlu0 0
        %1106 = vperm.xlu0 %1105, %v1028
        %v1107 = vpop.permute.xlu0 %1106
        %v1109 = vmul.f32 %v997, %v1032
        %v1110 = vmul.f32 %v998, %v1037
        %v1111 = vmul.f32 %v999, %v1042
        %v1112 = vmul.f32 %v1000, %v1047
        %v1113 = vmul.f32 %v1001, %v1052
        %v1114 = vmul.f32 %v1002, %v1057
        %v1115 = vmul.f32 %v1003, %v1062
        %v1116 = vmul.f32 %v1004, %v1067
        %v1117 = vmul.f32 %v1005, %v1072
        %v1118 = vmul.f32 %v1006, %v1077
        %v1119 = vmul.f32 %v1007, %v1082
        %v1120 = vmul.f32 %v1008, %v1087
        %v1121 = vmul.f32 %v1009, %v1092
        %v1122 = vmul.f32 %v1010, %v1097
        %v1123 = vmul.f32 %v1011, %v1102
        %v1124 = vmul.f32 %v1012, %v1107
        %v1125 = vadd.f32 %v1109, 0.0
        %v1126 = vadd.f32 %v1110, 0.0
        %v1127 = vadd.f32 %v1111, 0.0
        %v1128 = vadd.f32 %v1112, 0.0
        %v1129 = vadd.f32 %v1113, 0.0
        %v1130 = vadd.f32 %v1114, 0.0
        %v1131 = vadd.f32 %v1115, 0.0
        %v1132 = vadd.f32 %v1116, 0.0
        %v1133 = vadd.f32 %v1117, 0.0
        %v1134 = vadd.f32 %v1118, 0.0
        %v1135 = vadd.f32 %v1119, 0.0
        %v1136 = vadd.f32 %v1120, 0.0
        %v1137 = vadd.f32 %v1121, 0.0
        %v1138 = vadd.f32 %v1122, 0.0
        %v1139 = vadd.f32 %v1123, 0.0
        %v1140 = vadd.f32 %v1124, 0.0
        %s1141 = scalar_lea.vmem [#allocation6], 128
        %v1142 = vld [vmem:[%s1141] sm:$0xff]
        %v1143 = vld [vmem:[%s1141 + $0x8] sm:$0xff]
        %v1144 = vld [vmem:[%s1141 + $0x10] sm:$0xff]
        %v1145 = vld [vmem:[%s1141 + $0x18] sm:$0xff]
        %v1146 = vld [vmem:[%s1141 + $0x20] sm:$0xff]
        %v1147 = vld [vmem:[%s1141 + $0x28] sm:$0xff]
        %v1148 = vld [vmem:[%s1141 + $0x30] sm:$0xff]
        %v1149 = vld [vmem:[%s1141 + $0x38] sm:$0xff]
        %v1150 = vpack.c.bf16 %v1143, %v1142
        %v1151 = vpack.c.bf16 %v1145, %v1144
        %v1152 = vpack.c.bf16 %v1147, %v1146
        %v1153 = vpack.c.bf16 %v1149, %v1148
        %s1154 = scalar_lea.vmem %s7, 2
        %v1155 = vld [vmem:[%s1154] sm:$0x1]
        %v1157 = vperm.slane %v1155, 0
        %1159 = vmatpush.bf16.msra.mxu0 0
        %1160 = vmatpush.bf16.msra.mxu0 0
        %1161 = vmatpush.bf16.msra.mxu0 0
        %1162 = vmatpush.bf16.msra.mxu0 0
        %1163 = vmatpush.bf16.msra.mxu0 %v1153
        %1164 = vmatpush.bf16.msra.mxu0 %v1152
        %1165 = vmatpush.bf16.msra.mxu0 %v1151
        %1166 = vmatpush.bf16.msra.mxu0 %v1150
        %1167 = vmatmul.bf16.gmra.mxu0 %v723
        %v1168 = vpop.f32.mrf.mxu0
        %v1169 = vadd.f32 %v1157, %v1168
        %v1170 = vpop.f32.mrf.mxu0
        %v1171 = vadd.f32 %v1157, %v1170
        %1172 = vmatmul.bf16.gmra.mxu0 %v726
        %v1173 = vpop.f32.mrf.mxu0
        %v1174 = vadd.f32 %v1157, %v1173
        %v1175 = vpop.f32.mrf.mxu0
        %v1176 = vadd.f32 %v1157, %v1175
        %1177 = vmatmul.bf16.gmra.mxu0 %v729
        %v1178 = vpop.f32.mrf.mxu0
        %v1179 = vadd.f32 %v1157, %v1178
        %v1180 = vpop.f32.mrf.mxu0
        %v1181 = vadd.f32 %v1157, %v1180
        %1182 = vmatmul.bf16.gmra.mxu0 %v732
        %v1183 = vpop.f32.mrf.mxu0
        %v1184 = vadd.f32 %v1157, %v1183
        %v1185 = vpop.f32.mrf.mxu0
        %v1186 = vadd.f32 %v1157, %v1185
        %1187 = vmatmul.bf16.gmra.mxu0 %v735
        %v1188 = vpop.f32.mrf.mxu0
        %v1189 = vadd.f32 %v1157, %v1188
        %v1190 = vpop.f32.mrf.mxu0
        %v1191 = vadd.f32 %v1157, %v1190
        %1192 = vmatmul.bf16.gmra.mxu0 %v738
        %v1193 = vpop.f32.mrf.mxu0
        %v1194 = vadd.f32 %v1157, %v1193
        %v1195 = vpop.f32.mrf.mxu0
        %v1196 = vadd.f32 %v1157, %v1195
        %1197 = vmatmul.bf16.gmra.mxu0 %v741
        %v1198 = vpop.f32.mrf.mxu0
        %v1199 = vadd.f32 %v1157, %v1198
        %v1200 = vpop.f32.mrf.mxu0
        %v1201 = vadd.f32 %v1157, %v1200
        %1202 = vmatmul.bf16.gmra.mxu0 %v744
        %v1203 = vpop.f32.mrf.mxu0
        %v1204 = vadd.f32 %v1157, %v1203
        %v1205 = vpop.f32.mrf.mxu0
        %v1206 = vadd.f32 %v1157, %v1205
        %1207 = vdwg.mxu0
        %v1208 = vtanh.pop %v1169
        %v1209 = vtanh.pop %v1171
        %v1210 = vtanh.pop %v1174
        %v1211 = vtanh.pop %v1176
        %v1212 = vtanh.pop %v1179
        %v1213 = vtanh.pop %v1181
        %v1214 = vtanh.pop %v1184
        %v1215 = vtanh.pop %v1186
        %v1216 = vtanh.pop %v1189
        %v1217 = vtanh.pop %v1191
        %v1218 = vtanh.pop %v1194
        %v1219 = vtanh.pop %v1196
        %v1220 = vtanh.pop %v1199
        %v1221 = vtanh.pop %v1201
        %v1222 = vtanh.pop %v1204
        %v1223 = vtanh.pop %v1206
        %v1224 = vmul.f32 %v1208, %v995
        %v1225 = vmul.f32 %v1209, %v995
        %v1226 = vmul.f32 %v1210, %v995
        %v1227 = vmul.f32 %v1211, %v995
        %v1228 = vmul.f32 %v1212, %v995
        %v1229 = vmul.f32 %v1213, %v995
        %v1230 = vmul.f32 %v1214, %v995
        %v1231 = vmul.f32 %v1215, %v995
        %v1232 = vmul.f32 %v1216, %v995
        %v1233 = vmul.f32 %v1217, %v995
        %v1234 = vmul.f32 %v1218, %v995
        %v1235 = vmul.f32 %v1219, %v995
        %v1236 = vmul.f32 %v1220, %v995
        %v1237 = vmul.f32 %v1221, %v995
        %v1238 = vmul.f32 %v1222, %v995
        %v1239 = vmul.f32 %v1223, %v995
        %1240 = vset.pattern.permute.xlu0 1
        %1241 = vperm.xlu0 %1240, %v1013
        %v1242 = vpop.permute.xlu0 %1241
        %1244 = vset.pattern.permute.xlu0 1
        %1245 = vperm.xlu0 %1244, %v1014
        %v1246 = vpop.permute.xlu0 %1245
        %1248 = vset.pattern.permute.xlu0 1
        %1249 = vperm.xlu0 %1248, %v1015
        %v1250 = vpop.permute.xlu0 %1249
        %1252 = vset.pattern.permute.xlu0 1
        %1253 = vperm.xlu0 %1252, %v1016
        %v1254 = vpop.permute.xlu0 %1253
        %1256 = vset.pattern.permute.xlu0 1
        %1257 = vperm.xlu0 %1256, %v1017
        %v1258 = vpop.permute.xlu0 %1257
        %1260 = vset.pattern.permute.xlu0 1
        %1261 = vperm.xlu0 %1260, %v1018
        %v1262 = vpop.permute.xlu0 %1261
        %1264 = vset.pattern.permute.xlu0 1
        %1265 = vperm.xlu0 %1264, %v1019
        %v1266 = vpop.permute.xlu0 %1265
        %1268 = vset.pattern.permute.xlu0 1
        %1269 = vperm.xlu0 %1268, %v1020
        %v1270 = vpop.permute.xlu0 %1269
        %1272 = vset.pattern.permute.xlu0 1
        %1273 = vperm.xlu0 %1272, %v1021
        %v1274 = vpop.permute.xlu0 %1273
        %1276 = vset.pattern.permute.xlu0 1
        %1277 = vperm.xlu0 %1276, %v1022
        %v1278 = vpop.permute.xlu0 %1277
        %1280 = vset.pattern.permute.xlu0 1
        %1281 = vperm.xlu0 %1280, %v1023
        %v1282 = vpop.permute.xlu0 %1281
        %1284 = vset.pattern.permute.xlu0 1
        %1285 = vperm.xlu0 %1284, %v1024
        %v1286 = vpop.permute.xlu0 %1285
        %1288 = vset.pattern.permute.xlu0 1
        %1289 = vperm.xlu0 %1288, %v1025
        %v1290 = vpop.permute.xlu0 %1289
        %1292 = vset.pattern.permute.xlu0 1
        %1293 = vperm.xlu0 %1292, %v1026
        %v1294 = vpop.permute.xlu0 %1293
        %1296 = vset.pattern.permute.xlu0 1
        %1297 = vperm.xlu0 %1296, %v1027
        %v1298 = vpop.permute.xlu0 %1297
        %1300 = vset.pattern.permute.xlu0 1
        %1301 = vperm.xlu0 %1300, %v1028
        %v1302 = vpop.permute.xlu0 %1301
        %v1304 = vmul.f32 %v1224, %v1242
        %v1305 = vmul.f32 %v1225, %v1246
        %v1306 = vmul.f32 %v1226, %v1250
        %v1307 = vmul.f32 %v1227, %v1254
        %v1308 = vmul.f32 %v1228, %v1258
        %v1309 = vmul.f32 %v1229, %v1262
        %v1310 = vmul.f32 %v1230, %v1266
        %v1311 = vmul.f32 %v1231, %v1270
        %v1312 = vmul.f32 %v1232, %v1274
        %v1313 = vmul.f32 %v1233, %v1278
        %v1314 = vmul.f32 %v1234, %v1282
        %v1315 = vmul.f32 %v1235, %v1286
        %v1316 = vmul.f32 %v1236, %v1290
        %v1317 = vmul.f32 %v1237, %v1294
        %v1318 = vmul.f32 %v1238, %v1298
        %v1319 = vmul.f32 %v1239, %v1302
        %v1320 = vadd.f32 %v1125, %v1304
        %v1321 = vadd.f32 %v1126, %v1305
        %v1322 = vadd.f32 %v1127, %v1306
        %v1323 = vadd.f32 %v1128, %v1307
        %v1324 = vadd.f32 %v1129, %v1308
        %v1325 = vadd.f32 %v1130, %v1309
        %v1326 = vadd.f32 %v1131, %v1310
        %v1327 = vadd.f32 %v1132, %v1311
        %v1328 = vadd.f32 %v1133, %v1312
        %v1329 = vadd.f32 %v1134, %v1313
        %v1330 = vadd.f32 %v1135, %v1314
        %v1331 = vadd.f32 %v1136, %v1315
        %v1332 = vadd.f32 %v1137, %v1316
        %v1333 = vadd.f32 %v1138, %v1317
        %v1334 = vadd.f32 %v1139, %v1318
        %v1335 = vadd.f32 %v1140, %v1319
        %s1336 = scalar_lea.vmem [#allocation6], 192
        %v1337 = vld [vmem:[%s1336] sm:$0xff]
        %v1338 = vld [vmem:[%s1336 + $0x8] sm:$0xff]
        %v1339 = vld [vmem:[%s1336 + $0x10] sm:$0xff]
        %v1340 = vld [vmem:[%s1336 + $0x18] sm:$0xff]
        %v1341 = vld [vmem:[%s1336 + $0x20] sm:$0xff]
        %v1342 = vld [vmem:[%s1336 + $0x28] sm:$0xff]
        %v1343 = vld [vmem:[%s1336 + $0x30] sm:$0xff]
        %v1344 = vld [vmem:[%s1336 + $0x38] sm:$0xff]
        %v1345 = vpack.c.bf16 %v1338, %v1337
        %v1346 = vpack.c.bf16 %v1340, %v1339
        %v1347 = vpack.c.bf16 %v1342, %v1341
        %v1348 = vpack.c.bf16 %v1344, %v1343
        %s1349 = scalar_lea.vmem %s7, 3
        %v1350 = vld [vmem:[%s1349] sm:$0x1]
        %v1352 = vperm.slane %v1350, 0
        %1354 = vmatpush.bf16.msra.mxu0 0
        %1355 = vmatpush.bf16.msra.mxu0 0
        %1356 = vmatpush.bf16.msra.mxu0 0
        %1357 = vmatpush.bf16.msra.mxu0 0
        %1358 = vmatpush.bf16.msra.mxu0 %v1348
        %1359 = vmatpush.bf16.msra.mxu0 %v1347
        %1360 = vmatpush.bf16.msra.mxu0 %v1346
        %1361 = vmatpush.bf16.msra.mxu0 %v1345
        %1362 = vmatmul.bf16.gmra.mxu0 %v723
        %v1363 = vpop.f32.mrf.mxu0
        %v1364 = vadd.f32 %v1352, %v1363
        %v1365 = vpop.f32.mrf.mxu0
        %v1366 = vadd.f32 %v1352, %v1365
        %1367 = vmatmul.bf16.gmra.mxu0 %v726
        %v1368 = vpop.f32.mrf.mxu0
        %v1369 = vadd.f32 %v1352, %v1368
        %v1370 = vpop.f32.mrf.mxu0
        %v1371 = vadd.f32 %v1352, %v1370
        %1372 = vmatmul.bf16.gmra.mxu0 %v729
        %v1373 = vpop.f32.mrf.mxu0
        %v1374 = vadd.f32 %v1352, %v1373
        %v1375 = vpop.f32.mrf.mxu0
        %v1376 = vadd.f32 %v1352, %v1375
        %1377 = vmatmul.bf16.gmra.mxu0 %v732
        %v1378 = vpop.f32.mrf.mxu0
        %v1379 = vadd.f32 %v1352, %v1378
        %v1380 = vpop.f32.mrf.mxu0
        %v1381 = vadd.f32 %v1352, %v1380
        %1382 = vmatmul.bf16.gmra.mxu0 %v735
        %v1383 = vpop.f32.mrf.mxu0
        %v1384 = vadd.f32 %v1352, %v1383
        %v1385 = vpop.f32.mrf.mxu0
        %v1386 = vadd.f32 %v1352, %v1385
        %1387 = vmatmul.bf16.gmra.mxu0 %v738
        %v1388 = vpop.f32.mrf.mxu0
        %v1389 = vadd.f32 %v1352, %v1388
        %v1390 = vpop.f32.mrf.mxu0
        %v1391 = vadd.f32 %v1352, %v1390
        %1392 = vmatmul.bf16.gmra.mxu0 %v741
        %v1393 = vpop.f32.mrf.mxu0
        %v1394 = vadd.f32 %v1352, %v1393
        %v1395 = vpop.f32.mrf.mxu0
        %v1396 = vadd.f32 %v1352, %v1395
        %1397 = vmatmul.bf16.gmra.mxu0 %v744
        %v1398 = vpop.f32.mrf.mxu0
        %v1399 = vadd.f32 %v1352, %v1398
        %v1400 = vpop.f32.mrf.mxu0
        %v1401 = vadd.f32 %v1352, %v1400
        %1402 = vdwg.mxu0
        %v1403 = vtanh.pop %v1364
        %v1404 = vtanh.pop %v1366
        %v1405 = vtanh.pop %v1369
        %v1406 = vtanh.pop %v1371
        %v1407 = vtanh.pop %v1374
        %v1408 = vtanh.pop %v1376
        %v1409 = vtanh.pop %v1379
        %v1410 = vtanh.pop %v1381
        %v1411 = vtanh.pop %v1384
        %v1412 = vtanh.pop %v1386
        %v1413 = vtanh.pop %v1389
        %v1414 = vtanh.pop %v1391
        %v1415 = vtanh.pop %v1394
        %v1416 = vtanh.pop %v1396
        %v1417 = vtanh.pop %v1399
        %v1418 = vtanh.pop %v1401
        %v1419 = vmul.f32 %v1403, %v995
        %v1420 = vmul.f32 %v1404, %v995
        %v1421 = vmul.f32 %v1405, %v995
        %v1422 = vmul.f32 %v1406, %v995
        %v1423 = vmul.f32 %v1407, %v995
        %v1424 = vmul.f32 %v1408, %v995
        %v1425 = vmul.f32 %v1409, %v995
        %v1426 = vmul.f32 %v1410, %v995
        %v1427 = vmul.f32 %v1411, %v995
        %v1428 = vmul.f32 %v1412, %v995
        %v1429 = vmul.f32 %v1413, %v995
        %v1430 = vmul.f32 %v1414, %v995
        %v1431 = vmul.f32 %v1415, %v995
        %v1432 = vmul.f32 %v1416, %v995
        %v1433 = vmul.f32 %v1417, %v995
        %v1434 = vmul.f32 %v1418, %v995
        %1435 = vset.pattern.permute.xlu0 2
        %1436 = vperm.xlu0 %1435, %v1013
        %v1437 = vpop.permute.xlu0 %1436
        %1439 = vset.pattern.permute.xlu0 2
        %1440 = vperm.xlu0 %1439, %v1014
        %v1441 = vpop.permute.xlu0 %1440
        %1443 = vset.pattern.permute.xlu0 2
        %1444 = vperm.xlu0 %1443, %v1015
        %v1445 = vpop.permute.xlu0 %1444
        %1447 = vset.pattern.permute.xlu0 2
        %1448 = vperm.xlu0 %1447, %v1016
        %v1449 = vpop.permute.xlu0 %1448
        %1451 = vset.pattern.permute.xlu0 2
        %1452 = vperm.xlu0 %1451, %v1017
        %v1453 = vpop.permute.xlu0 %1452
        %1455 = vset.pattern.permute.xlu0 2
        %1456 = vperm.xlu0 %1455, %v1018
        %v1457 = vpop.permute.xlu0 %1456
        %1459 = vset.pattern.permute.xlu0 2
        %1460 = vperm.xlu0 %1459, %v1019
        %v1461 = vpop.permute.xlu0 %1460
        %1463 = vset.pattern.permute.xlu0 2
        %1464 = vperm.xlu0 %1463, %v1020
        %v1465 = vpop.permute.xlu0 %1464
        %1467 = vset.pattern.permute.xlu0 2
        %1468 = vperm.xlu0 %1467, %v1021
        %v1469 = vpop.permute.xlu0 %1468
        %1471 = vset.pattern.permute.xlu0 2
        %1472 = vperm.xlu0 %1471, %v1022
        %v1473 = vpop.permute.xlu0 %1472
        %1475 = vset.pattern.permute.xlu0 2
        %1476 = vperm.xlu0 %1475, %v1023
        %v1477 = vpop.permute.xlu0 %1476
        %1479 = vset.pattern.permute.xlu0 2
        %1480 = vperm.xlu0 %1479, %v1024
        %v1481 = vpop.permute.xlu0 %1480
        %1483 = vset.pattern.permute.xlu0 2
        %1484 = vperm.xlu0 %1483, %v1025
        %v1485 = vpop.permute.xlu0 %1484
        %1487 = vset.pattern.permute.xlu0 2
        %1488 = vperm.xlu0 %1487, %v1026
        %v1489 = vpop.permute.xlu0 %1488
        %1491 = vset.pattern.permute.xlu0 2
        %1492 = vperm.xlu0 %1491, %v1027
        %v1493 = vpop.permute.xlu0 %1492
        %1495 = vset.pattern.permute.xlu0 2
        %1496 = vperm.xlu0 %1495, %v1028
        %v1497 = vpop.permute.xlu0 %1496
        %v1499 = vmul.f32 %v1419, %v1437
        %v1500 = vmul.f32 %v1420, %v1441
        %v1501 = vmul.f32 %v1421, %v1445
        %v1502 = vmul.f32 %v1422, %v1449
        %v1503 = vmul.f32 %v1423, %v1453
        %v1504 = vmul.f32 %v1424, %v1457
        %v1505 = vmul.f32 %v1425, %v1461
        %v1506 = vmul.f32 %v1426, %v1465
        %v1507 = vmul.f32 %v1427, %v1469
        %v1508 = vmul.f32 %v1428, %v1473
        %v1509 = vmul.f32 %v1429, %v1477
        %v1510 = vmul.f32 %v1430, %v1481
        %v1511 = vmul.f32 %v1431, %v1485
        %v1512 = vmul.f32 %v1432, %v1489
        %v1513 = vmul.f32 %v1433, %v1493
        %v1514 = vmul.f32 %v1434, %v1497
        %v1515 = vadd.f32 %v1320, %v1499
        %v1516 = vadd.f32 %v1321, %v1500
        %v1517 = vadd.f32 %v1322, %v1501
        %v1518 = vadd.f32 %v1323, %v1502
        %v1519 = vadd.f32 %v1324, %v1503
        %v1520 = vadd.f32 %v1325, %v1504
        %v1521 = vadd.f32 %v1326, %v1505
        %v1522 = vadd.f32 %v1327, %v1506
        %v1523 = vadd.f32 %v1328, %v1507
        %v1524 = vadd.f32 %v1329, %v1508
        %v1525 = vadd.f32 %v1330, %v1509
        %v1526 = vadd.f32 %v1331, %v1510
        %v1527 = vadd.f32 %v1332, %v1511
        %v1528 = vadd.f32 %v1333, %v1512
        %v1529 = vadd.f32 %v1334, %v1513
        %v1530 = vadd.f32 %v1335, %v1514
        %s1531 = scalar_lea.vmem [#allocation6], 256
        %v1532 = vld [vmem:[%s1531] sm:$0xff]
        %v1533 = vld [vmem:[%s1531 + $0x8] sm:$0xff]
        %v1534 = vld [vmem:[%s1531 + $0x10] sm:$0xff]
        %v1535 = vld [vmem:[%s1531 + $0x18] sm:$0xff]
        %v1536 = vld [vmem:[%s1531 + $0x20] sm:$0xff]
        %v1537 = vld [vmem:[%s1531 + $0x28] sm:$0xff]
        %v1538 = vld [vmem:[%s1531 + $0x30] sm:$0xff]
        %v1539 = vld [vmem:[%s1531 + $0x38] sm:$0xff]
        %v1540 = vpack.c.bf16 %v1533, %v1532
        %v1541 = vpack.c.bf16 %v1535, %v1534
        %v1542 = vpack.c.bf16 %v1537, %v1536
        %v1543 = vpack.c.bf16 %v1539, %v1538
        %s1544 = scalar_lea.vmem %s7, 4
        %v1545 = vld [vmem:[%s1544] sm:$0x1]
        %v1547 = vperm.slane %v1545, 0
        %1549 = vmatpush.bf16.msra.mxu0 0
        %1550 = vmatpush.bf16.msra.mxu0 0
        %1551 = vmatpush.bf16.msra.mxu0 0
        %1552 = vmatpush.bf16.msra.mxu0 0
        %1553 = vmatpush.bf16.msra.mxu0 %v1543
        %1554 = vmatpush.bf16.msra.mxu0 %v1542
        %1555 = vmatpush.bf16.msra.mxu0 %v1541
        %1556 = vmatpush.bf16.msra.mxu0 %v1540
        %1557 = vmatmul.bf16.gmra.mxu0 %v723
        %v1558 = vpop.f32.mrf.mxu0
        %v1559 = vadd.f32 %v1547, %v1558
        %v1560 = vpop.f32.mrf.mxu0
        %v1561 = vadd.f32 %v1547, %v1560
        %1562 = vmatmul.bf16.gmra.mxu0 %v726
        %v1563 = vpop.f32.mrf.mxu0
        %v1564 = vadd.f32 %v1547, %v1563
        %v1565 = vpop.f32.mrf.mxu0
        %v1566 = vadd.f32 %v1547, %v1565
        %1567 = vmatmul.bf16.gmra.mxu0 %v729
        %v1568 = vpop.f32.mrf.mxu0
        %v1569 = vadd.f32 %v1547, %v1568
        %v1570 = vpop.f32.mrf.mxu0
        %v1571 = vadd.f32 %v1547, %v1570
        %1572 = vmatmul.bf16.gmra.mxu0 %v732
        %v1573 = vpop.f32.mrf.mxu0
        %v1574 = vadd.f32 %v1547, %v1573
        %v1575 = vpop.f32.mrf.mxu0
        %v1576 = vadd.f32 %v1547, %v1575
        %1577 = vmatmul.bf16.gmra.mxu0 %v735
        %v1578 = vpop.f32.mrf.mxu0
        %v1579 = vadd.f32 %v1547, %v1578
        %v1580 = vpop.f32.mrf.mxu0
        %v1581 = vadd.f32 %v1547, %v1580
        %1582 = vmatmul.bf16.gmra.mxu0 %v738
        %v1583 = vpop.f32.mrf.mxu0
        %v1584 = vadd.f32 %v1547, %v1583
        %v1585 = vpop.f32.mrf.mxu0
        %v1586 = vadd.f32 %v1547, %v1585
        %1587 = vmatmul.bf16.gmra.mxu0 %v741
        %v1588 = vpop.f32.mrf.mxu0
        %v1589 = vadd.f32 %v1547, %v1588
        %v1590 = vpop.f32.mrf.mxu0
        %v1591 = vadd.f32 %v1547, %v1590
        %1592 = vmatmul.bf16.gmra.mxu0 %v744
        %v1593 = vpop.f32.mrf.mxu0
        %v1594 = vadd.f32 %v1547, %v1593
        %v1595 = vpop.f32.mrf.mxu0
        %v1596 = vadd.f32 %v1547, %v1595
        %1597 = vdwg.mxu0
        %v1598 = vtanh.pop %v1559
        %v1599 = vtanh.pop %v1561
        %v1600 = vtanh.pop %v1564
        %v1601 = vtanh.pop %v1566
        %v1602 = vtanh.pop %v1569
        %v1603 = vtanh.pop %v1571
        %v1604 = vtanh.pop %v1574
        %v1605 = vtanh.pop %v1576
        %v1606 = vtanh.pop %v1579
        %v1607 = vtanh.pop %v1581
        %v1608 = vtanh.pop %v1584
        %v1609 = vtanh.pop %v1586
        %v1610 = vtanh.pop %v1589
        %v1611 = vtanh.pop %v1591
        %v1612 = vtanh.pop %v1594
        %v1613 = vtanh.pop %v1596
        %v1614 = vmul.f32 %v1598, %v995
        %v1615 = vmul.f32 %v1599, %v995
        %v1616 = vmul.f32 %v1600, %v995
        %v1617 = vmul.f32 %v1601, %v995
        %v1618 = vmul.f32 %v1602, %v995
        %v1619 = vmul.f32 %v1603, %v995
        %v1620 = vmul.f32 %v1604, %v995
        %v1621 = vmul.f32 %v1605, %v995
        %v1622 = vmul.f32 %v1606, %v995
        %v1623 = vmul.f32 %v1607, %v995
        %v1624 = vmul.f32 %v1608, %v995
        %v1625 = vmul.f32 %v1609, %v995
        %v1626 = vmul.f32 %v1610, %v995
        %v1627 = vmul.f32 %v1611, %v995
        %v1628 = vmul.f32 %v1612, %v995
        %v1629 = vmul.f32 %v1613, %v995
        %1630 = vset.pattern.permute.xlu0 3
        %1631 = vperm.xlu0 %1630, %v1013
        %v1632 = vpop.permute.xlu0 %1631
        %1634 = vset.pattern.permute.xlu0 3
        %1635 = vperm.xlu0 %1634, %v1014
        %v1636 = vpop.permute.xlu0 %1635
        %1638 = vset.pattern.permute.xlu0 3
        %1639 = vperm.xlu0 %1638, %v1015
        %v1640 = vpop.permute.xlu0 %1639
        %1642 = vset.pattern.permute.xlu0 3
        %1643 = vperm.xlu0 %1642, %v1016
        %v1644 = vpop.permute.xlu0 %1643
        %1646 = vset.pattern.permute.xlu0 3
        %1647 = vperm.xlu0 %1646, %v1017
        %v1648 = vpop.permute.xlu0 %1647
        %1650 = vset.pattern.permute.xlu0 3
        %1651 = vperm.xlu0 %1650, %v1018
        %v1652 = vpop.permute.xlu0 %1651
        %1654 = vset.pattern.permute.xlu0 3
        %1655 = vperm.xlu0 %1654, %v1019
        %v1656 = vpop.permute.xlu0 %1655
        %1658 = vset.pattern.permute.xlu0 3
        %1659 = vperm.xlu0 %1658, %v1020
        %v1660 = vpop.permute.xlu0 %1659
        %1662 = vset.pattern.permute.xlu0 3
        %1663 = vperm.xlu0 %1662, %v1021
        %v1664 = vpop.permute.xlu0 %1663
        %1666 = vset.pattern.permute.xlu0 3
        %1667 = vperm.xlu0 %1666, %v1022
        %v1668 = vpop.permute.xlu0 %1667
        %1670 = vset.pattern.permute.xlu0 3
        %1671 = vperm.xlu0 %1670, %v1023
        %v1672 = vpop.permute.xlu0 %1671
        %1674 = vset.pattern.permute.xlu0 3
        %1675 = vperm.xlu0 %1674, %v1024
        %v1676 = vpop.permute.xlu0 %1675
        %1678 = vset.pattern.permute.xlu0 3
        %1679 = vperm.xlu0 %1678, %v1025
        %v1680 = vpop.permute.xlu0 %1679
        %1682 = vset.pattern.permute.xlu0 3
        %1683 = vperm.xlu0 %1682, %v1026
        %v1684 = vpop.permute.xlu0 %1683
        %1686 = vset.pattern.permute.xlu0 3
        %1687 = vperm.xlu0 %1686, %v1027
        %v1688 = vpop.permute.xlu0 %1687
        %1690 = vset.pattern.permute.xlu0 3
        %1691 = vperm.xlu0 %1690, %v1028
        %v1692 = vpop.permute.xlu0 %1691
        %v1694 = vmul.f32 %v1614, %v1632
        %v1695 = vmul.f32 %v1615, %v1636
        %v1696 = vmul.f32 %v1616, %v1640
        %v1697 = vmul.f32 %v1617, %v1644
        %v1698 = vmul.f32 %v1618, %v1648
        %v1699 = vmul.f32 %v1619, %v1652
        %v1700 = vmul.f32 %v1620, %v1656
        %v1701 = vmul.f32 %v1621, %v1660
        %v1702 = vmul.f32 %v1622, %v1664
        %v1703 = vmul.f32 %v1623, %v1668
        %v1704 = vmul.f32 %v1624, %v1672
        %v1705 = vmul.f32 %v1625, %v1676
        %v1706 = vmul.f32 %v1626, %v1680
        %v1707 = vmul.f32 %v1627, %v1684
        %v1708 = vmul.f32 %v1628, %v1688
        %v1709 = vmul.f32 %v1629, %v1692
        %v1710 = vadd.f32 %v1515, %v1694
        %v1711 = vadd.f32 %v1516, %v1695
        %v1712 = vadd.f32 %v1517, %v1696
        %v1713 = vadd.f32 %v1518, %v1697
        %v1714 = vadd.f32 %v1519, %v1698
        %v1715 = vadd.f32 %v1520, %v1699
        %v1716 = vadd.f32 %v1521, %v1700
        %v1717 = vadd.f32 %v1522, %v1701
        %v1718 = vadd.f32 %v1523, %v1702
        %v1719 = vadd.f32 %v1524, %v1703
        %v1720 = vadd.f32 %v1525, %v1704
        %v1721 = vadd.f32 %v1526, %v1705
        %v1722 = vadd.f32 %v1527, %v1706
        %v1723 = vadd.f32 %v1528, %v1707
        %v1724 = vadd.f32 %v1529, %v1708
        %v1725 = vadd.f32 %v1530, %v1709
        %v1726 = vadd.f32 %v625, %v892
        %v1727 = vadd.f32 %v627, %v893
        %v1728 = vadd.f32 %v630, %v894
        %v1729 = vadd.f32 %v632, %v895
        %v1730 = vadd.f32 %v635, %v896
        %v1731 = vadd.f32 %v637, %v897
        %v1732 = vadd.f32 %v640, %v898
        %v1733 = vadd.f32 %v642, %v899
        %v1734 = vadd.f32 %v645, %v900
        %v1735 = vadd.f32 %v647, %v901
        %v1736 = vadd.f32 %v650, %v902
        %v1737 = vadd.f32 %v652, %v903
        %v1738 = vadd.f32 %v655, %v904
        %v1739 = vadd.f32 %v657, %v905
        %v1740 = vadd.f32 %v660, %v906
        %v1741 = vadd.f32 %v662, %v907
        %v1742 = vadd.f32 %v1726, %v1710
        %v1743 = vadd.f32 %v1727, %v1711
        %v1744 = vadd.f32 %v1728, %v1712
        %v1745 = vadd.f32 %v1729, %v1713
        %v1746 = vadd.f32 %v1730, %v1714
        %v1747 = vadd.f32 %v1731, %v1715
        %v1748 = vadd.f32 %v1732, %v1716
        %v1749 = vadd.f32 %v1733, %v1717
        %v1750 = vadd.f32 %v1734, %v1718
        %v1751 = vadd.f32 %v1735, %v1719
        %v1752 = vadd.f32 %v1736, %v1720
        %v1753 = vadd.f32 %v1737, %v1721
        %v1754 = vadd.f32 %v1738, %v1722
        %v1755 = vadd.f32 %v1739, %v1723
        %v1756 = vadd.f32 %v1740, %v1724
        %v1757 = vadd.f32 %v1741, %v1725
        %v1758 = vld [vmem:[%s432] sm:$0xff]
        %v1759 = vld [vmem:[%s432 + $0x8] sm:$0xff]
        %v1760 = vld [vmem:[%s432 + $0x10] sm:$0xff]
        %v1761 = vld [vmem:[%s432 + $0x18] sm:$0xff]
        %v1762 = vld [vmem:[%s432 + $0x20] sm:$0xff]
        %v1763 = vld [vmem:[%s432 + $0x28] sm:$0xff]
        %v1764 = vld [vmem:[%s432 + $0x30] sm:$0xff]
        %v1765 = vld [vmem:[%s432 + $0x38] sm:$0xff]
        %v1766 = vld [vmem:[%s432 + $0x40] sm:$0xff]
        %v1767 = vld [vmem:[%s432 + $0x48] sm:$0xff]
        %v1768 = vld [vmem:[%s432 + $0x50] sm:$0xff]
        %v1769 = vld [vmem:[%s432 + $0x58] sm:$0xff]
        %v1770 = vld [vmem:[%s432 + $0x60] sm:$0xff]
        %v1771 = vld [vmem:[%s432 + $0x68] sm:$0xff]
        %v1772 = vld [vmem:[%s432 + $0x70] sm:$0xff]
        %v1773 = vld [vmem:[%s432 + $0x78] sm:$0xff]
        %s1774 = scalar_lea.vmem %s9, 64
        %v1775 = vld [vmem:[%s1774] sm:$0xff]
        %v1776 = vld [vmem:[%s1774 + $0x8] sm:$0xff]
        %v1777 = vld [vmem:[%s1774 + $0x10] sm:$0xff]
        %v1778 = vld [vmem:[%s1774 + $0x18] sm:$0xff]
        %v1779 = vld [vmem:[%s1774 + $0x20] sm:$0xff]
        %v1780 = vld [vmem:[%s1774 + $0x28] sm:$0xff]
        %v1781 = vld [vmem:[%s1774 + $0x30] sm:$0xff]
        %v1782 = vld [vmem:[%s1774 + $0x38] sm:$0xff]
        %v1783 = vpack.c.bf16 %v1743, %v1742
        %v1784 = vpack.c.bf16 %v1745, %v1744
        %v1785 = vpack.c.bf16 %v1747, %v1746
        %v1786 = vpack.c.bf16 %v1749, %v1748
        %v1787 = vpack.c.bf16 %v1751, %v1750
        %v1788 = vpack.c.bf16 %v1753, %v1752
        %v1789 = vpack.c.bf16 %v1755, %v1754
        %v1790 = vpack.c.bf16 %v1757, %v1756
        %v1791 = vpack.c.bf16 %v1776, %v1775
        %v1792 = vpack.c.bf16 %v1778, %v1777
        %v1793 = vpack.c.bf16 %v1780, %v1779
        %v1794 = vpack.c.bf16 %v1782, %v1781
        %v1796 = vsel %vm721, %v1783, 0
        %v1799 = vsel %vm721, %v1784, 0
        %v1802 = vsel %vm721, %v1785, 0
        %v1805 = vsel %vm721, %v1786, 0
        %v1808 = vsel %vm721, %v1787, 0
        %v1811 = vsel %vm721, %v1788, 0
        %v1814 = vsel %vm721, %v1789, 0
        %v1817 = vsel %vm721, %v1790, 0
        %1819 = vmatpush.bf16.msra.mxu0 0
        %1820 = vmatpush.bf16.msra.mxu0 0
        %1821 = vmatpush.bf16.msra.mxu0 0
        %1822 = vmatpush.bf16.msra.mxu0 0
        %1823 = vmatpush.bf16.msra.mxu0 %v1794
        %1824 = vmatpush.bf16.msra.mxu0 %v1793
        %1825 = vmatpush.bf16.msra.mxu0 %v1792
        %1826 = vmatpush.bf16.msra.mxu0 %v1791
        %1827 = vmatmul.bf16.gmra.mxu0 %v1796
        %v1828 = vpop.f32.mrf.mxu0
        %v1829 = vadd.f32 0.0, %v1828
        %v1830 = vpop.f32.mrf.mxu0
        %v1831 = vadd.f32 0.0, %v1830
        %1832 = vmatmul.bf16.gmra.mxu0 %v1799
        %v1833 = vpop.f32.mrf.mxu0
        %v1834 = vadd.f32 0.0, %v1833
        %v1835 = vpop.f32.mrf.mxu0
        %v1836 = vadd.f32 0.0, %v1835
        %1837 = vmatmul.bf16.gmra.mxu0 %v1802
        %v1838 = vpop.f32.mrf.mxu0
        %v1839 = vadd.f32 0.0, %v1838
        %v1840 = vpop.f32.mrf.mxu0
        %v1841 = vadd.f32 0.0, %v1840
        %1842 = vmatmul.bf16.gmra.mxu0 %v1805
        %v1843 = vpop.f32.mrf.mxu0
        %v1844 = vadd.f32 0.0, %v1843
        %v1845 = vpop.f32.mrf.mxu0
        %v1846 = vadd.f32 0.0, %v1845
        %1847 = vmatmul.bf16.gmra.mxu0 %v1808
        %v1848 = vpop.f32.mrf.mxu0
        %v1849 = vadd.f32 0.0, %v1848
        %v1850 = vpop.f32.mrf.mxu0
        %v1851 = vadd.f32 0.0, %v1850
        %1852 = vmatmul.bf16.gmra.mxu0 %v1811
        %v1853 = vpop.f32.mrf.mxu0
        %v1854 = vadd.f32 0.0, %v1853
        %v1855 = vpop.f32.mrf.mxu0
        %v1856 = vadd.f32 0.0, %v1855
        %1857 = vmatmul.bf16.gmra.mxu0 %v1814
        %v1858 = vpop.f32.mrf.mxu0
        %v1859 = vadd.f32 0.0, %v1858
        %v1860 = vpop.f32.mrf.mxu0
        %v1861 = vadd.f32 0.0, %v1860
        %1862 = vmatmul.bf16.gmra.mxu0 %v1817
        %v1863 = vpop.f32.mrf.mxu0
        %v1864 = vadd.f32 0.0, %v1863
        %v1865 = vpop.f32.mrf.mxu0
        %v1866 = vadd.f32 0.0, %v1865
        %1867 = vdwg.mxu0
        %v1868 = vadd.f32 %v1758, %v1829
        %v1869 = vadd.f32 %v1759, %v1831
        %v1870 = vadd.f32 %v1760, %v1834
        %v1871 = vadd.f32 %v1761, %v1836
        %v1872 = vadd.f32 %v1762, %v1839
        %v1873 = vadd.f32 %v1763, %v1841
        %v1874 = vadd.f32 %v1764, %v1844
        %v1875 = vadd.f32 %v1765, %v1846
        %v1876 = vadd.f32 %v1766, %v1849
        %v1877 = vadd.f32 %v1767, %v1851
        %v1878 = vadd.f32 %v1768, %v1854
        %v1879 = vadd.f32 %v1769, %v1856
        %v1880 = vadd.f32 %v1770, %v1859
        %v1881 = vadd.f32 %v1771, %v1861
        %v1882 = vadd.f32 %v1772, %v1864
        %v1883 = vadd.f32 %v1773, %v1866
        %1884 = vst [vmem:[%s432] sm:$0xff] %v1868
        %1885 = vst [vmem:[%s432 + $0x8] sm:$0xff] %v1869
        %1886 = vst [vmem:[%s432 + $0x10] sm:$0xff] %v1870
        %1887 = vst [vmem:[%s432 + $0x18] sm:$0xff] %v1871
        %1888 = vst [vmem:[%s432 + $0x20] sm:$0xff] %v1872
        %1889 = vst [vmem:[%s432 + $0x28] sm:$0xff] %v1873
        %1890 = vst [vmem:[%s432 + $0x30] sm:$0xff] %v1874
        %1891 = vst [vmem:[%s432 + $0x38] sm:$0xff] %v1875
        %1892 = vst [vmem:[%s432 + $0x40] sm:$0xff] %v1876
        %1893 = vst [vmem:[%s432 + $0x48] sm:$0xff] %v1877
        %1894 = vst [vmem:[%s432 + $0x50] sm:$0xff] %v1878
        %1895 = vst [vmem:[%s432 + $0x58] sm:$0xff] %v1879
        %1896 = vst [vmem:[%s432 + $0x60] sm:$0xff] %v1880
        %1897 = vst [vmem:[%s432 + $0x68] sm:$0xff] %v1881
        %1898 = vst [vmem:[%s432 + $0x70] sm:$0xff] %v1882
        %1899 = vst [vmem:[%s432 + $0x78] sm:$0xff] %v1883
        %v1900 = vld [vmem:[#allocation6] sm:$0xff]
        %v1901 = vld [vmem:[#allocation6 + $0x8] sm:$0xff]
        %v1902 = vld [vmem:[#allocation6 + $0x10] sm:$0xff]
        %v1903 = vld [vmem:[#allocation6 + $0x18] sm:$0xff]
        %v1904 = vld [vmem:[#allocation6 + $0x20] sm:$0xff]
        %v1905 = vld [vmem:[#allocation6 + $0x28] sm:$0xff]
        %v1906 = vld [vmem:[#allocation6 + $0x30] sm:$0xff]
        %v1907 = vld [vmem:[#allocation6 + $0x38] sm:$0xff]
        %v1908 = vpack.c.bf16 %v1901, %v1900
        %v1909 = vpack.c.bf16 %v1903, %v1902
        %v1910 = vpack.c.bf16 %v1905, %v1904
        %v1911 = vpack.c.bf16 %v1907, %v1906
        %v1912 = vld [vmem:[%s7] sm:$0x1]
        %v1914 = vperm.slane %v1912, 0
        %1916 = vmatpush.bf16.msra.mxu0 0
        %1917 = vmatpush.bf16.msra.mxu0 0
        %1918 = vmatpush.bf16.msra.mxu0 0
        %1919 = vmatpush.bf16.msra.mxu0 0
        %1920 = vmatpush.bf16.msra.mxu0 %v1911
        %1921 = vmatpush.bf16.msra.mxu0 %v1910
        %1922 = vmatpush.bf16.msra.mxu0 %v1909
        %1923 = vmatpush.bf16.msra.mxu0 %v1908
        %1924 = vmatmul.bf16.gmra.mxu0 %v1796
        %v1925 = vpop.f32.mrf.mxu0
        %v1926 = vadd.f32 %v1914, %v1925
        %v1927 = vpop.f32.mrf.mxu0
        %v1928 = vadd.f32 %v1914, %v1927
        %1929 = vmatmul.bf16.gmra.mxu0 %v1799
        %v1930 = vpop.f32.mrf.mxu0
        %v1931 = vadd.f32 %v1914, %v1930
        %v1932 = vpop.f32.mrf.mxu0
        %v1933 = vadd.f32 %v1914, %v1932
        %1934 = vmatmul.bf16.gmra.mxu0 %v1802
        %v1935 = vpop.f32.mrf.mxu0
        %v1936 = vadd.f32 %v1914, %v1935
        %v1937 = vpop.f32.mrf.mxu0
        %v1938 = vadd.f32 %v1914, %v1937
        %1939 = vmatmul.bf16.gmra.mxu0 %v1805
        %v1940 = vpop.f32.mrf.mxu0
        %v1941 = vadd.f32 %v1914, %v1940
        %v1942 = vpop.f32.mrf.mxu0
        %v1943 = vadd.f32 %v1914, %v1942
        %1944 = vmatmul.bf16.gmra.mxu0 %v1808
        %v1945 = vpop.f32.mrf.mxu0
        %v1946 = vadd.f32 %v1914, %v1945
        %v1947 = vpop.f32.mrf.mxu0
        %v1948 = vadd.f32 %v1914, %v1947
        %1949 = vmatmul.bf16.gmra.mxu0 %v1811
        %v1950 = vpop.f32.mrf.mxu0
        %v1951 = vadd.f32 %v1914, %v1950
        %v1952 = vpop.f32.mrf.mxu0
        %v1953 = vadd.f32 %v1914, %v1952
        %1954 = vmatmul.bf16.gmra.mxu0 %v1814
        %v1955 = vpop.f32.mrf.mxu0
        %v1956 = vadd.f32 %v1914, %v1955
        %v1957 = vpop.f32.mrf.mxu0
        %v1958 = vadd.f32 %v1914, %v1957
        %1959 = vmatmul.bf16.gmra.mxu0 %v1817
        %v1960 = vpop.f32.mrf.mxu0
        %v1961 = vadd.f32 %v1914, %v1960
        %v1962 = vpop.f32.mrf.mxu0
        %v1963 = vadd.f32 %v1914, %v1962
        %1964 = vdwg.mxu0
        %v1965 = vtanh.pop %v1926
        %v1966 = vtanh.pop %v1928
        %v1967 = vtanh.pop %v1931
        %v1968 = vtanh.pop %v1933
        %v1969 = vtanh.pop %v1936
        %v1970 = vtanh.pop %v1938
        %v1971 = vtanh.pop %v1941
        %v1972 = vtanh.pop %v1943
        %v1973 = vtanh.pop %v1946
        %v1974 = vtanh.pop %v1948
        %v1975 = vtanh.pop %v1951
        %v1976 = vtanh.pop %v1953
        %v1977 = vtanh.pop %v1956
        %v1978 = vtanh.pop %v1958
        %v1979 = vtanh.pop %v1961
        %v1980 = vtanh.pop %v1963
        %v1981 = vld [vmem:[%s908] sm:$0xff]
        %v1982 = vld [vmem:[%s908 + $0x8] sm:$0xff]
        %v1983 = vld [vmem:[%s908 + $0x10] sm:$0xff]
        %v1984 = vld [vmem:[%s908 + $0x18] sm:$0xff]
        %v1985 = vld [vmem:[%s908 + $0x20] sm:$0xff]
        %v1986 = vld [vmem:[%s908 + $0x28] sm:$0xff]
        %v1987 = vld [vmem:[%s908 + $0x30] sm:$0xff]
        %v1988 = vld [vmem:[%s908 + $0x38] sm:$0xff]
        %v1989 = vpack.c.bf16 %v1982, %v1981
        %v1990 = vpack.c.bf16 %v1984, %v1983
        %v1991 = vpack.c.bf16 %v1986, %v1985
        %v1992 = vpack.c.bf16 %v1988, %v1987
        %v1993 = vld [vmem:[%s921] sm:$0x1]
        %v1995 = vperm.slane %v1993, 0
        %1997 = vmatpush.bf16.msra.mxu0 0
        %1998 = vmatpush.bf16.msra.mxu0 0
        %1999 = vmatpush.bf16.msra.mxu0 0
        %2000 = vmatpush.bf16.msra.mxu0 0
        %2001 = vmatpush.bf16.msra.mxu0 %v1992
        %2002 = vmatpush.bf16.msra.mxu0 %v1991
        %2003 = vmatpush.bf16.msra.mxu0 %v1990
        %2004 = vmatpush.bf16.msra.mxu0 %v1989
        %2005 = vmatmul.bf16.gmra.mxu0 %v1796
        %v2006 = vpop.f32.mrf.mxu0
        %v2007 = vadd.f32 %v1995, %v2006
        %v2008 = vpop.f32.mrf.mxu0
        %v2009 = vadd.f32 %v1995, %v2008
        %2010 = vmatmul.bf16.gmra.mxu0 %v1799
        %v2011 = vpop.f32.mrf.mxu0
        %v2012 = vadd.f32 %v1995, %v2011
        %v2013 = vpop.f32.mrf.mxu0
        %v2014 = vadd.f32 %v1995, %v2013
        %2015 = vmatmul.bf16.gmra.mxu0 %v1802
        %v2016 = vpop.f32.mrf.mxu0
        %v2017 = vadd.f32 %v1995, %v2016
        %v2018 = vpop.f32.mrf.mxu0
        %v2019 = vadd.f32 %v1995, %v2018
        %2020 = vmatmul.bf16.gmra.mxu0 %v1805
        %v2021 = vpop.f32.mrf.mxu0
        %v2022 = vadd.f32 %v1995, %v2021
        %v2023 = vpop.f32.mrf.mxu0
        %v2024 = vadd.f32 %v1995, %v2023
        %2025 = vmatmul.bf16.gmra.mxu0 %v1808
        %v2026 = vpop.f32.mrf.mxu0
        %v2027 = vadd.f32 %v1995, %v2026
        %v2028 = vpop.f32.mrf.mxu0
        %v2029 = vadd.f32 %v1995, %v2028
        %2030 = vmatmul.bf16.gmra.mxu0 %v1811
        %v2031 = vpop.f32.mrf.mxu0
        %v2032 = vadd.f32 %v1995, %v2031
        %v2033 = vpop.f32.mrf.mxu0
        %v2034 = vadd.f32 %v1995, %v2033
        %2035 = vmatmul.bf16.gmra.mxu0 %v1814
        %v2036 = vpop.f32.mrf.mxu0
        %v2037 = vadd.f32 %v1995, %v2036
        %v2038 = vpop.f32.mrf.mxu0
        %v2039 = vadd.f32 %v1995, %v2038
        %2040 = vmatmul.bf16.gmra.mxu0 %v1817
        %v2041 = vpop.f32.mrf.mxu0
        %v2042 = vadd.f32 %v1995, %v2041
        %v2043 = vpop.f32.mrf.mxu0
        %v2044 = vadd.f32 %v1995, %v2043
        %2045 = vdwg.mxu0
        %v2046 = vtanh.pop %v2007
        %v2047 = vtanh.pop %v2009
        %v2048 = vtanh.pop %v2012
        %v2049 = vtanh.pop %v2014
        %v2050 = vtanh.pop %v2017
        %v2051 = vtanh.pop %v2019
        %v2052 = vtanh.pop %v2022
        %v2053 = vtanh.pop %v2024
        %v2054 = vtanh.pop %v2027
        %v2055 = vtanh.pop %v2029
        %v2056 = vtanh.pop %v2032
        %v2057 = vtanh.pop %v2034
        %v2058 = vtanh.pop %v2037
        %v2059 = vtanh.pop %v2039
        %v2060 = vtanh.pop %v2042
        %v2061 = vtanh.pop %v2044
        %v2062 = vmul.f32 %v2046, %v995
        %v2063 = vmul.f32 %v2047, %v995
        %v2064 = vmul.f32 %v2048, %v995
        %v2065 = vmul.f32 %v2049, %v995
        %v2066 = vmul.f32 %v2050, %v995
        %v2067 = vmul.f32 %v2051, %v995
        %v2068 = vmul.f32 %v2052, %v995
        %v2069 = vmul.f32 %v2053, %v995
        %v2070 = vmul.f32 %v2054, %v995
        %v2071 = vmul.f32 %v2055, %v995
        %v2072 = vmul.f32 %v2056, %v995
        %v2073 = vmul.f32 %v2057, %v995
        %v2074 = vmul.f32 %v2058, %v995
        %v2075 = vmul.f32 %v2059, %v995
        %v2076 = vmul.f32 %v2060, %v995
        %v2077 = vmul.f32 %v2061, %v995
        %v2078 = vld [vmem:[%s443] sm:$0xff]
        %v2079 = vld [vmem:[%s443 + $0x8] sm:$0xff]
        %v2080 = vld [vmem:[%s443 + $0x10] sm:$0xff]
        %v2081 = vld [vmem:[%s443 + $0x18] sm:$0xff]
        %v2082 = vld [vmem:[%s443 + $0x20] sm:$0xff]
        %v2083 = vld [vmem:[%s443 + $0x28] sm:$0xff]
        %v2084 = vld [vmem:[%s443 + $0x30] sm:$0xff]
        %v2085 = vld [vmem:[%s443 + $0x38] sm:$0xff]
        %v2086 = vld [vmem:[%s443 + $0x40] sm:$0xff]
        %v2087 = vld [vmem:[%s443 + $0x48] sm:$0xff]
        %v2088 = vld [vmem:[%s443 + $0x50] sm:$0xff]
        %v2089 = vld [vmem:[%s443 + $0x58] sm:$0xff]
        %v2090 = vld [vmem:[%s443 + $0x60] sm:$0xff]
        %v2091 = vld [vmem:[%s443 + $0x68] sm:$0xff]
        %v2092 = vld [vmem:[%s443 + $0x70] sm:$0xff]
        %v2093 = vld [vmem:[%s443 + $0x78] sm:$0xff]
        %2095 = vset.pattern.permute.xlu0 4
        %2096 = vperm.xlu0 %2095, %v2078
        %v2097 = vpop.permute.xlu0 %2096
        %2100 = vset.pattern.permute.xlu0 4
        %2101 = vperm.xlu0 %2100, %v2079
        %v2102 = vpop.permute.xlu0 %2101
        %2105 = vset.pattern.permute.xlu0 4
        %2106 = vperm.xlu0 %2105, %v2080
        %v2107 = vpop.permute.xlu0 %2106
        %2110 = vset.pattern.permute.xlu0 4
        %2111 = vperm.xlu0 %2110, %v2081
        %v2112 = vpop.permute.xlu0 %2111
        %2115 = vset.pattern.permute.xlu0 4
        %2116 = vperm.xlu0 %2115, %v2082
        %v2117 = vpop.permute.xlu0 %2116
        %2120 = vset.pattern.permute.xlu0 4
        %2121 = vperm.xlu0 %2120, %v2083
        %v2122 = vpop.permute.xlu0 %2121
        %2125 = vset.pattern.permute.xlu0 4
        %2126 = vperm.xlu0 %2125, %v2084
        %v2127 = vpop.permute.xlu0 %2126
        %2130 = vset.pattern.permute.xlu0 4
        %2131 = vperm.xlu0 %2130, %v2085
        %v2132 = vpop.permute.xlu0 %2131
        %2135 = vset.pattern.permute.xlu0 4
        %2136 = vperm.xlu0 %2135, %v2086
        %v2137 = vpop.permute.xlu0 %2136
        %2140 = vset.pattern.permute.xlu0 4
        %2141 = vperm.xlu0 %2140, %v2087
        %v2142 = vpop.permute.xlu0 %2141
        %2145 = vset.pattern.permute.xlu0 4
        %2146 = vperm.xlu0 %2145, %v2088
        %v2147 = vpop.permute.xlu0 %2146
        %2150 = vset.pattern.permute.xlu0 4
        %2151 = vperm.xlu0 %2150, %v2089
        %v2152 = vpop.permute.xlu0 %2151
        %2155 = vset.pattern.permute.xlu0 4
        %2156 = vperm.xlu0 %2155, %v2090
        %v2157 = vpop.permute.xlu0 %2156
        %2160 = vset.pattern.permute.xlu0 4
        %2161 = vperm.xlu0 %2160, %v2091
        %v2162 = vpop.permute.xlu0 %2161
        %2165 = vset.pattern.permute.xlu0 4
        %2166 = vperm.xlu0 %2165, %v2092
        %v2167 = vpop.permute.xlu0 %2166
        %2170 = vset.pattern.permute.xlu0 4
        %2171 = vperm.xlu0 %2170, %v2093
        %v2172 = vpop.permute.xlu0 %2171
        %v2174 = vmul.f32 %v2062, %v2097
        %v2175 = vmul.f32 %v2063, %v2102
        %v2176 = vmul.f32 %v2064, %v2107
        %v2177 = vmul.f32 %v2065, %v2112
        %v2178 = vmul.f32 %v2066, %v2117
        %v2179 = vmul.f32 %v2067, %v2122
        %v2180 = vmul.f32 %v2068, %v2127
        %v2181 = vmul.f32 %v2069, %v2132
        %v2182 = vmul.f32 %v2070, %v2137
        %v2183 = vmul.f32 %v2071, %v2142
        %v2184 = vmul.f32 %v2072, %v2147
        %v2185 = vmul.f32 %v2073, %v2152
        %v2186 = vmul.f32 %v2074, %v2157
        %v2187 = vmul.f32 %v2075, %v2162
        %v2188 = vmul.f32 %v2076, %v2167
        %v2189 = vmul.f32 %v2077, %v2172
        %v2190 = vadd.f32 %v2174, 0.0
        %v2191 = vadd.f32 %v2175, 0.0
        %v2192 = vadd.f32 %v2176, 0.0
        %v2193 = vadd.f32 %v2177, 0.0
        %v2194 = vadd.f32 %v2178, 0.0
        %v2195 = vadd.f32 %v2179, 0.0
        %v2196 = vadd.f32 %v2180, 0.0
        %v2197 = vadd.f32 %v2181, 0.0
        %v2198 = vadd.f32 %v2182, 0.0
        %v2199 = vadd.f32 %v2183, 0.0
        %v2200 = vadd.f32 %v2184, 0.0
        %v2201 = vadd.f32 %v2185, 0.0
        %v2202 = vadd.f32 %v2186, 0.0
        %v2203 = vadd.f32 %v2187, 0.0
        %v2204 = vadd.f32 %v2188, 0.0
        %v2205 = vadd.f32 %v2189, 0.0
        %v2206 = vld [vmem:[%s1141] sm:$0xff]
        %v2207 = vld [vmem:[%s1141 + $0x8] sm:$0xff]
        %v2208 = vld [vmem:[%s1141 + $0x10] sm:$0xff]
        %v2209 = vld [vmem:[%s1141 + $0x18] sm:$0xff]
        %v2210 = vld [vmem:[%s1141 + $0x20] sm:$0xff]
        %v2211 = vld [vmem:[%s1141 + $0x28] sm:$0xff]
        %v2212 = vld [vmem:[%s1141 + $0x30] sm:$0xff]
        %v2213 = vld [vmem:[%s1141 + $0x38] sm:$0xff]
        %v2214 = vpack.c.bf16 %v2207, %v2206
        %v2215 = vpack.c.bf16 %v2209, %v2208
        %v2216 = vpack.c.bf16 %v2211, %v2210
        %v2217 = vpack.c.bf16 %v2213, %v2212
        %v2218 = vld [vmem:[%s1154] sm:$0x1]
        %v2220 = vperm.slane %v2218, 0
        %2222 = vmatpush.bf16.msra.mxu0 0
        %2223 = vmatpush.bf16.msra.mxu0 0
        %2224 = vmatpush.bf16.msra.mxu0 0
        %2225 = vmatpush.bf16.msra.mxu0 0
        %2226 = vmatpush.bf16.msra.mxu0 %v2217
        %2227 = vmatpush.bf16.msra.mxu0 %v2216
        %2228 = vmatpush.bf16.msra.mxu0 %v2215
        %2229 = vmatpush.bf16.msra.mxu0 %v2214
        %2230 = vmatmul.bf16.gmra.mxu0 %v1796
        %v2231 = vpop.f32.mrf.mxu0
        %v2232 = vadd.f32 %v2220, %v2231
        %v2233 = vpop.f32.mrf.mxu0
        %v2234 = vadd.f32 %v2220, %v2233
        %2235 = vmatmul.bf16.gmra.mxu0 %v1799
        %v2236 = vpop.f32.mrf.mxu0
        %v2237 = vadd.f32 %v2220, %v2236
        %v2238 = vpop.f32.mrf.mxu0
        %v2239 = vadd.f32 %v2220, %v2238
        %2240 = vmatmul.bf16.gmra.mxu0 %v1802
        %v2241 = vpop.f32.mrf.mxu0
        %v2242 = vadd.f32 %v2220, %v2241
        %v2243 = vpop.f32.mrf.mxu0
        %v2244 = vadd.f32 %v2220, %v2243
        %2245 = vmatmul.bf16.gmra.mxu0 %v1805
        %v2246 = vpop.f32.mrf.mxu0
        %v2247 = vadd.f32 %v2220, %v2246
        %v2248 = vpop.f32.mrf.mxu0
        %v2249 = vadd.f32 %v2220, %v2248
        %2250 = vmatmul.bf16.gmra.mxu0 %v1808
        %v2251 = vpop.f32.mrf.mxu0
        %v2252 = vadd.f32 %v2220, %v2251
        %v2253 = vpop.f32.mrf.mxu0
        %v2254 = vadd.f32 %v2220, %v2253
        %2255 = vmatmul.bf16.gmra.mxu0 %v1811
        %v2256 = vpop.f32.mrf.mxu0
        %v2257 = vadd.f32 %v2220, %v2256
        %v2258 = vpop.f32.mrf.mxu0
        %v2259 = vadd.f32 %v2220, %v2258
        %2260 = vmatmul.bf16.gmra.mxu0 %v1814
        %v2261 = vpop.f32.mrf.mxu0
        %v2262 = vadd.f32 %v2220, %v2261
        %v2263 = vpop.f32.mrf.mxu0
        %v2264 = vadd.f32 %v2220, %v2263
        %2265 = vmatmul.bf16.gmra.mxu0 %v1817
        %v2266 = vpop.f32.mrf.mxu0
        %v2267 = vadd.f32 %v2220, %v2266
        %v2268 = vpop.f32.mrf.mxu0
        %v2269 = vadd.f32 %v2220, %v2268
        %2270 = vdwg.mxu0
        %v2271 = vtanh.pop %v2232
        %v2272 = vtanh.pop %v2234
        %v2273 = vtanh.pop %v2237
        %v2274 = vtanh.pop %v2239
        %v2275 = vtanh.pop %v2242
        %v2276 = vtanh.pop %v2244
        %v2277 = vtanh.pop %v2247
        %v2278 = vtanh.pop %v2249
        %v2279 = vtanh.pop %v2252
        %v2280 = vtanh.pop %v2254
        %v2281 = vtanh.pop %v2257
        %v2282 = vtanh.pop %v2259
        %v2283 = vtanh.pop %v2262
        %v2284 = vtanh.pop %v2264
        %v2285 = vtanh.pop %v2267
        %v2286 = vtanh.pop %v2269
        %v2287 = vmul.f32 %v2271, %v995
        %v2288 = vmul.f32 %v2272, %v995
        %v2289 = vmul.f32 %v2273, %v995
        %v2290 = vmul.f32 %v2274, %v995
        %v2291 = vmul.f32 %v2275, %v995
        %v2292 = vmul.f32 %v2276, %v995
        %v2293 = vmul.f32 %v2277, %v995
        %v2294 = vmul.f32 %v2278, %v995
        %v2295 = vmul.f32 %v2279, %v995
        %v2296 = vmul.f32 %v2280, %v995
        %v2297 = vmul.f32 %v2281, %v995
        %v2298 = vmul.f32 %v2282, %v995
        %v2299 = vmul.f32 %v2283, %v995
        %v2300 = vmul.f32 %v2284, %v995
        %v2301 = vmul.f32 %v2285, %v995
        %v2302 = vmul.f32 %v2286, %v995
        %2303 = vset.pattern.permute.xlu0 5
        %2304 = vperm.xlu0 %2303, %v2078
        %v2305 = vpop.permute.xlu0 %2304
        %2307 = vset.pattern.permute.xlu0 5
        %2308 = vperm.xlu0 %2307, %v2079
        %v2309 = vpop.permute.xlu0 %2308
        %2311 = vset.pattern.permute.xlu0 5
        %2312 = vperm.xlu0 %2311, %v2080
        %v2313 = vpop.permute.xlu0 %2312
        %2315 = vset.pattern.permute.xlu0 5
        %2316 = vperm.xlu0 %2315, %v2081
        %v2317 = vpop.permute.xlu0 %2316
        %2319 = vset.pattern.permute.xlu0 5
        %2320 = vperm.xlu0 %2319, %v2082
        %v2321 = vpop.permute.xlu0 %2320
        %2323 = vset.pattern.permute.xlu0 5
        %2324 = vperm.xlu0 %2323, %v2083
        %v2325 = vpop.permute.xlu0 %2324
        %2327 = vset.pattern.permute.xlu0 5
        %2328 = vperm.xlu0 %2327, %v2084
        %v2329 = vpop.permute.xlu0 %2328
        %2331 = vset.pattern.permute.xlu0 5
        %2332 = vperm.xlu0 %2331, %v2085
        %v2333 = vpop.permute.xlu0 %2332
        %2335 = vset.pattern.permute.xlu0 5
        %2336 = vperm.xlu0 %2335, %v2086
        %v2337 = vpop.permute.xlu0 %2336
        %2339 = vset.pattern.permute.xlu0 5
        %2340 = vperm.xlu0 %2339, %v2087
        %v2341 = vpop.permute.xlu0 %2340
        %2343 = vset.pattern.permute.xlu0 5
        %2344 = vperm.xlu0 %2343, %v2088
        %v2345 = vpop.permute.xlu0 %2344
        %2347 = vset.pattern.permute.xlu0 5
        %2348 = vperm.xlu0 %2347, %v2089
        %v2349 = vpop.permute.xlu0 %2348
        %2351 = vset.pattern.permute.xlu0 5
        %2352 = vperm.xlu0 %2351, %v2090
        %v2353 = vpop.permute.xlu0 %2352
        %2355 = vset.pattern.permute.xlu0 5
        %2356 = vperm.xlu0 %2355, %v2091
        %v2357 = vpop.permute.xlu0 %2356
        %2359 = vset.pattern.permute.xlu0 5
        %2360 = vperm.xlu0 %2359, %v2092
        %v2361 = vpop.permute.xlu0 %2360
        %2363 = vset.pattern.permute.xlu0 5
        %2364 = vperm.xlu0 %2363, %v2093
        %v2365 = vpop.permute.xlu0 %2364
        %v2367 = vmul.f32 %v2287, %v2305
        %v2368 = vmul.f32 %v2288, %v2309
        %v2369 = vmul.f32 %v2289, %v2313
        %v2370 = vmul.f32 %v2290, %v2317
        %v2371 = vmul.f32 %v2291, %v2321
        %v2372 = vmul.f32 %v2292, %v2325
        %v2373 = vmul.f32 %v2293, %v2329
        %v2374 = vmul.f32 %v2294, %v2333
        %v2375 = vmul.f32 %v2295, %v2337
        %v2376 = vmul.f32 %v2296, %v2341
        %v2377 = vmul.f32 %v2297, %v2345
        %v2378 = vmul.f32 %v2298, %v2349
        %v2379 = vmul.f32 %v2299, %v2353
        %v2380 = vmul.f32 %v2300, %v2357
        %v2381 = vmul.f32 %v2301, %v2361
        %v2382 = vmul.f32 %v2302, %v2365
        %v2383 = vadd.f32 %v2190, %v2367
        %v2384 = vadd.f32 %v2191, %v2368
        %v2385 = vadd.f32 %v2192, %v2369
        %v2386 = vadd.f32 %v2193, %v2370
        %v2387 = vadd.f32 %v2194, %v2371
        %v2388 = vadd.f32 %v2195, %v2372
        %v2389 = vadd.f32 %v2196, %v2373
        %v2390 = vadd.f32 %v2197, %v2374
        %v2391 = vadd.f32 %v2198, %v2375
        %v2392 = vadd.f32 %v2199, %v2376
        %v2393 = vadd.f32 %v2200, %v2377
        %v2394 = vadd.f32 %v2201, %v2378
        %v2395 = vadd.f32 %v2202, %v2379
        %v2396 = vadd.f32 %v2203, %v2380
        %v2397 = vadd.f32 %v2204, %v2381
        %v2398 = vadd.f32 %v2205, %v2382
        %v2399 = vld [vmem:[%s1336] sm:$0xff]
        %v2400 = vld [vmem:[%s1336 + $0x8] sm:$0xff]
        %v2401 = vld [vmem:[%s1336 + $0x10] sm:$0xff]
        %v2402 = vld [vmem:[%s1336 + $0x18] sm:$0xff]
        %v2403 = vld [vmem:[%s1336 + $0x20] sm:$0xff]
        %v2404 = vld [vmem:[%s1336 + $0x28] sm:$0xff]
        %v2405 = vld [vmem:[%s1336 + $0x30] sm:$0xff]
        %v2406 = vld [vmem:[%s1336 + $0x38] sm:$0xff]
        %v2407 = vpack.c.bf16 %v2400, %v2399
        %v2408 = vpack.c.bf16 %v2402, %v2401
        %v2409 = vpack.c.bf16 %v2404, %v2403
        %v2410 = vpack.c.bf16 %v2406, %v2405
        %v2411 = vld [vmem:[%s1349] sm:$0x1]
        %v2413 = vperm.slane %v2411, 0
        %2415 = vmatpush.bf16.msra.mxu0 0
        %2416 = vmatpush.bf16.msra.mxu0 0
        %2417 = vmatpush.bf16.msra.mxu0 0
        %2418 = vmatpush.bf16.msra.mxu0 0
        %2419 = vmatpush.bf16.msra.mxu0 %v2410
        %2420 = vmatpush.bf16.msra.mxu0 %v2409
        %2421 = vmatpush.bf16.msra.mxu0 %v2408
        %2422 = vmatpush.bf16.msra.mxu0 %v2407
        %2423 = vmatmul.bf16.gmra.mxu0 %v1796
        %v2424 = vpop.f32.mrf.mxu0
        %v2425 = vadd.f32 %v2413, %v2424
        %v2426 = vpop.f32.mrf.mxu0
        %v2427 = vadd.f32 %v2413, %v2426
        %2428 = vmatmul.bf16.gmra.mxu0 %v1799
        %v2429 = vpop.f32.mrf.mxu0
        %v2430 = vadd.f32 %v2413, %v2429
        %v2431 = vpop.f32.mrf.mxu0
        %v2432 = vadd.f32 %v2413, %v2431
        %2433 = vmatmul.bf16.gmra.mxu0 %v1802
        %v2434 = vpop.f32.mrf.mxu0
        %v2435 = vadd.f32 %v2413, %v2434
        %v2436 = vpop.f32.mrf.mxu0
        %v2437 = vadd.f32 %v2413, %v2436
        %2438 = vmatmul.bf16.gmra.mxu0 %v1805
        %v2439 = vpop.f32.mrf.mxu0
        %v2440 = vadd.f32 %v2413, %v2439
        %v2441 = vpop.f32.mrf.mxu0
        %v2442 = vadd.f32 %v2413, %v2441
        %2443 = vmatmul.bf16.gmra.mxu0 %v1808
        %v2444 = vpop.f32.mrf.mxu0
        %v2445 = vadd.f32 %v2413, %v2444
        %v2446 = vpop.f32.mrf.mxu0
        %v2447 = vadd.f32 %v2413, %v2446
        %2448 = vmatmul.bf16.gmra.mxu0 %v1811
        %v2449 = vpop.f32.mrf.mxu0
        %v2450 = vadd.f32 %v2413, %v2449
        %v2451 = vpop.f32.mrf.mxu0
        %v2452 = vadd.f32 %v2413, %v2451
        %2453 = vmatmul.bf16.gmra.mxu0 %v1814
        %v2454 = vpop.f32.mrf.mxu0
        %v2455 = vadd.f32 %v2413, %v2454
        %v2456 = vpop.f32.mrf.mxu0
        %v2457 = vadd.f32 %v2413, %v2456
        %2458 = vmatmul.bf16.gmra.mxu0 %v1817
        %v2459 = vpop.f32.mrf.mxu0
        %v2460 = vadd.f32 %v2413, %v2459
        %v2461 = vpop.f32.mrf.mxu0
        %v2462 = vadd.f32 %v2413, %v2461
        %2463 = vdwg.mxu0
        %v2464 = vtanh.pop %v2425
        %v2465 = vtanh.pop %v2427
        %v2466 = vtanh.pop %v2430
        %v2467 = vtanh.pop %v2432
        %v2468 = vtanh.pop %v2435
        %v2469 = vtanh.pop %v2437
        %v2470 = vtanh.pop %v2440
        %v2471 = vtanh.pop %v2442
        %v2472 = vtanh.pop %v2445
        %v2473 = vtanh.pop %v2447
        %v2474 = vtanh.pop %v2450
        %v2475 = vtanh.pop %v2452
        %v2476 = vtanh.pop %v2455
        %v2477 = vtanh.pop %v2457
        %v2478 = vtanh.pop %v2460
        %v2479 = vtanh.pop %v2462
        %v2480 = vmul.f32 %v2464, %v995
        %v2481 = vmul.f32 %v2465, %v995
        %v2482 = vmul.f32 %v2466, %v995
        %v2483 = vmul.f32 %v2467, %v995
        %v2484 = vmul.f32 %v2468, %v995
        %v2485 = vmul.f32 %v2469, %v995
        %v2486 = vmul.f32 %v2470, %v995
        %v2487 = vmul.f32 %v2471, %v995
        %v2488 = vmul.f32 %v2472, %v995
        %v2489 = vmul.f32 %v2473, %v995
        %v2490 = vmul.f32 %v2474, %v995
        %v2491 = vmul.f32 %v2475, %v995
        %v2492 = vmul.f32 %v2476, %v995
        %v2493 = vmul.f32 %v2477, %v995
        %v2494 = vmul.f32 %v2478, %v995
        %v2495 = vmul.f32 %v2479, %v995
        %2496 = vset.pattern.permute.xlu0 6
        %2497 = vperm.xlu0 %2496, %v2078
        %v2498 = vpop.permute.xlu0 %2497
        %2500 = vset.pattern.permute.xlu0 6
        %2501 = vperm.xlu0 %2500, %v2079
        %v2502 = vpop.permute.xlu0 %2501
        %2504 = vset.pattern.permute.xlu0 6
        %2505 = vperm.xlu0 %2504, %v2080
        %v2506 = vpop.permute.xlu0 %2505
        %2508 = vset.pattern.permute.xlu0 6
        %2509 = vperm.xlu0 %2508, %v2081
        %v2510 = vpop.permute.xlu0 %2509
        %2512 = vset.pattern.permute.xlu0 6
        %2513 = vperm.xlu0 %2512, %v2082
        %v2514 = vpop.permute.xlu0 %2513
        %2516 = vset.pattern.permute.xlu0 6
        %2517 = vperm.xlu0 %2516, %v2083
        %v2518 = vpop.permute.xlu0 %2517
        %2520 = vset.pattern.permute.xlu0 6
        %2521 = vperm.xlu0 %2520, %v2084
        %v2522 = vpop.permute.xlu0 %2521
        %2524 = vset.pattern.permute.xlu0 6
        %2525 = vperm.xlu0 %2524, %v2085
        %v2526 = vpop.permute.xlu0 %2525
        %2528 = vset.pattern.permute.xlu0 6
        %2529 = vperm.xlu0 %2528, %v2086
        %v2530 = vpop.permute.xlu0 %2529
        %2532 = vset.pattern.permute.xlu0 6
        %2533 = vperm.xlu0 %2532, %v2087
        %v2534 = vpop.permute.xlu0 %2533
        %2536 = vset.pattern.permute.xlu0 6
        %2537 = vperm.xlu0 %2536, %v2088
        %v2538 = vpop.permute.xlu0 %2537
        %2540 = vset.pattern.permute.xlu0 6
        %2541 = vperm.xlu0 %2540, %v2089
        %v2542 = vpop.permute.xlu0 %2541
        %2544 = vset.pattern.permute.xlu0 6
        %2545 = vperm.xlu0 %2544, %v2090
        %v2546 = vpop.permute.xlu0 %2545
        %2548 = vset.pattern.permute.xlu0 6
        %2549 = vperm.xlu0 %2548, %v2091
        %v2550 = vpop.permute.xlu0 %2549
        %2552 = vset.pattern.permute.xlu0 6
        %2553 = vperm.xlu0 %2552, %v2092
        %v2554 = vpop.permute.xlu0 %2553
        %2556 = vset.pattern.permute.xlu0 6
        %2557 = vperm.xlu0 %2556, %v2093
        %v2558 = vpop.permute.xlu0 %2557
        %v2560 = vmul.f32 %v2480, %v2498
        %v2561 = vmul.f32 %v2481, %v2502
        %v2562 = vmul.f32 %v2482, %v2506
        %v2563 = vmul.f32 %v2483, %v2510
        %v2564 = vmul.f32 %v2484, %v2514
        %v2565 = vmul.f32 %v2485, %v2518
        %v2566 = vmul.f32 %v2486, %v2522
        %v2567 = vmul.f32 %v2487, %v2526
        %v2568 = vmul.f32 %v2488, %v2530
        %v2569 = vmul.f32 %v2489, %v2534
        %v2570 = vmul.f32 %v2490, %v2538
        %v2571 = vmul.f32 %v2491, %v2542
        %v2572 = vmul.f32 %v2492, %v2546
        %v2573 = vmul.f32 %v2493, %v2550
        %v2574 = vmul.f32 %v2494, %v2554
        %v2575 = vmul.f32 %v2495, %v2558
        %v2576 = vadd.f32 %v2383, %v2560
        %v2577 = vadd.f32 %v2384, %v2561
        %v2578 = vadd.f32 %v2385, %v2562
        %v2579 = vadd.f32 %v2386, %v2563
        %v2580 = vadd.f32 %v2387, %v2564
        %v2581 = vadd.f32 %v2388, %v2565
        %v2582 = vadd.f32 %v2389, %v2566
        %v2583 = vadd.f32 %v2390, %v2567
        %v2584 = vadd.f32 %v2391, %v2568
        %v2585 = vadd.f32 %v2392, %v2569
        %v2586 = vadd.f32 %v2393, %v2570
        %v2587 = vadd.f32 %v2394, %v2571
        %v2588 = vadd.f32 %v2395, %v2572
        %v2589 = vadd.f32 %v2396, %v2573
        %v2590 = vadd.f32 %v2397, %v2574
        %v2591 = vadd.f32 %v2398, %v2575
        %v2592 = vld [vmem:[%s1531] sm:$0xff]
        %v2593 = vld [vmem:[%s1531 + $0x8] sm:$0xff]
        %v2594 = vld [vmem:[%s1531 + $0x10] sm:$0xff]
        %v2595 = vld [vmem:[%s1531 + $0x18] sm:$0xff]
        %v2596 = vld [vmem:[%s1531 + $0x20] sm:$0xff]
        %v2597 = vld [vmem:[%s1531 + $0x28] sm:$0xff]
        %v2598 = vld [vmem:[%s1531 + $0x30] sm:$0xff]
        %v2599 = vld [vmem:[%s1531 + $0x38] sm:$0xff]
        %v2600 = vpack.c.bf16 %v2593, %v2592
        %v2601 = vpack.c.bf16 %v2595, %v2594
        %v2602 = vpack.c.bf16 %v2597, %v2596
        %v2603 = vpack.c.bf16 %v2599, %v2598
        %v2604 = vld [vmem:[%s1544] sm:$0x1]
        %v2606 = vperm.slane %v2604, 0
        %2608 = vmatpush.bf16.msra.mxu0 0
        %2609 = vmatpush.bf16.msra.mxu0 0
        %2610 = vmatpush.bf16.msra.mxu0 0
        %2611 = vmatpush.bf16.msra.mxu0 0
        %2612 = vmatpush.bf16.msra.mxu0 %v2603
        %2613 = vmatpush.bf16.msra.mxu0 %v2602
        %2614 = vmatpush.bf16.msra.mxu0 %v2601
        %2615 = vmatpush.bf16.msra.mxu0 %v2600
        %2616 = vmatmul.bf16.gmra.mxu0 %v1796
        %v2617 = vpop.f32.mrf.mxu0
        %v2618 = vadd.f32 %v2606, %v2617
        %v2619 = vpop.f32.mrf.mxu0
        %v2620 = vadd.f32 %v2606, %v2619
        %2621 = vmatmul.bf16.gmra.mxu0 %v1799
        %v2622 = vpop.f32.mrf.mxu0
        %v2623 = vadd.f32 %v2606, %v2622
        %v2624 = vpop.f32.mrf.mxu0
        %v2625 = vadd.f32 %v2606, %v2624
        %2626 = vmatmul.bf16.gmra.mxu0 %v1802
        %v2627 = vpop.f32.mrf.mxu0
        %v2628 = vadd.f32 %v2606, %v2627
        %v2629 = vpop.f32.mrf.mxu0
        %v2630 = vadd.f32 %v2606, %v2629
        %2631 = vmatmul.bf16.gmra.mxu0 %v1805
        %v2632 = vpop.f32.mrf.mxu0
        %v2633 = vadd.f32 %v2606, %v2632
        %v2634 = vpop.f32.mrf.mxu0
        %v2635 = vadd.f32 %v2606, %v2634
        %2636 = vmatmul.bf16.gmra.mxu0 %v1808
        %v2637 = vpop.f32.mrf.mxu0
        %v2638 = vadd.f32 %v2606, %v2637
        %v2639 = vpop.f32.mrf.mxu0
        %v2640 = vadd.f32 %v2606, %v2639
        %2641 = vmatmul.bf16.gmra.mxu0 %v1811
        %v2642 = vpop.f32.mrf.mxu0
        %v2643 = vadd.f32 %v2606, %v2642
        %v2644 = vpop.f32.mrf.mxu0
        %v2645 = vadd.f32 %v2606, %v2644
        %2646 = vmatmul.bf16.gmra.mxu0 %v1814
        %v2647 = vpop.f32.mrf.mxu0
        %v2648 = vadd.f32 %v2606, %v2647
        %v2649 = vpop.f32.mrf.mxu0
        %v2650 = vadd.f32 %v2606, %v2649
        %2651 = vmatmul.bf16.gmra.mxu0 %v1817
        %v2652 = vpop.f32.mrf.mxu0
        %v2653 = vadd.f32 %v2606, %v2652
        %v2654 = vpop.f32.mrf.mxu0
        %v2655 = vadd.f32 %v2606, %v2654
        %2656 = vdwg.mxu0
        %v2657 = vtanh.pop %v2618
        %v2658 = vtanh.pop %v2620
        %v2659 = vtanh.pop %v2623
        %v2660 = vtanh.pop %v2625
        %v2661 = vtanh.pop %v2628
        %v2662 = vtanh.pop %v2630
        %v2663 = vtanh.pop %v2633
        %v2664 = vtanh.pop %v2635
        %v2665 = vtanh.pop %v2638
        %v2666 = vtanh.pop %v2640
        %v2667 = vtanh.pop %v2643
        %v2668 = vtanh.pop %v2645
        %v2669 = vtanh.pop %v2648
        %v2670 = vtanh.pop %v2650
        %v2671 = vtanh.pop %v2653
        %v2672 = vtanh.pop %v2655
        %v2673 = vmul.f32 %v2657, %v995
        %v2674 = vmul.f32 %v2658, %v995
        %v2675 = vmul.f32 %v2659, %v995
        %v2676 = vmul.f32 %v2660, %v995
        %v2677 = vmul.f32 %v2661, %v995
        %v2678 = vmul.f32 %v2662, %v995
        %v2679 = vmul.f32 %v2663, %v995
        %v2680 = vmul.f32 %v2664, %v995
        %v2681 = vmul.f32 %v2665, %v995
        %v2682 = vmul.f32 %v2666, %v995
        %v2683 = vmul.f32 %v2667, %v995
        %v2684 = vmul.f32 %v2668, %v995
        %v2685 = vmul.f32 %v2669, %v995
        %v2686 = vmul.f32 %v2670, %v995
        %v2687 = vmul.f32 %v2671, %v995
        %v2688 = vmul.f32 %v2672, %v995
        %2689 = vset.pattern.permute.xlu0 7
        %2690 = vperm.xlu0 %2689, %v2078
        %v2691 = vpop.permute.xlu0 %2690
        %2693 = vset.pattern.permute.xlu0 7
        %2694 = vperm.xlu0 %2693, %v2079
        %v2695 = vpop.permute.xlu0 %2694
        %2697 = vset.pattern.permute.xlu0 7
        %2698 = vperm.xlu0 %2697, %v2080
        %v2699 = vpop.permute.xlu0 %2698
        %2701 = vset.pattern.permute.xlu0 7
        %2702 = vperm.xlu0 %2701, %v2081
        %v2703 = vpop.permute.xlu0 %2702
        %2705 = vset.pattern.permute.xlu0 7
        %2706 = vperm.xlu0 %2705, %v2082
        %v2707 = vpop.permute.xlu0 %2706
        %2709 = vset.pattern.permute.xlu0 7
        %2710 = vperm.xlu0 %2709, %v2083
        %v2711 = vpop.permute.xlu0 %2710
        %2713 = vset.pattern.permute.xlu0 7
        %2714 = vperm.xlu0 %2713, %v2084
        %v2715 = vpop.permute.xlu0 %2714
        %2717 = vset.pattern.permute.xlu0 7
        %2718 = vperm.xlu0 %2717, %v2085
        %v2719 = vpop.permute.xlu0 %2718
        %2721 = vset.pattern.permute.xlu0 7
        %2722 = vperm.xlu0 %2721, %v2086
        %v2723 = vpop.permute.xlu0 %2722
        %2725 = vset.pattern.permute.xlu0 7
        %2726 = vperm.xlu0 %2725, %v2087
        %v2727 = vpop.permute.xlu0 %2726
        %2729 = vset.pattern.permute.xlu0 7
        %2730 = vperm.xlu0 %2729, %v2088
        %v2731 = vpop.permute.xlu0 %2730
        %2733 = vset.pattern.permute.xlu0 7
        %2734 = vperm.xlu0 %2733, %v2089
        %v2735 = vpop.permute.xlu0 %2734
        %2737 = vset.pattern.permute.xlu0 7
        %2738 = vperm.xlu0 %2737, %v2090
        %v2739 = vpop.permute.xlu0 %2738
        %2741 = vset.pattern.permute.xlu0 7
        %2742 = vperm.xlu0 %2741, %v2091
        %v2743 = vpop.permute.xlu0 %2742
        %2745 = vset.pattern.permute.xlu0 7
        %2746 = vperm.xlu0 %2745, %v2092
        %v2747 = vpop.permute.xlu0 %2746
        %2749 = vset.pattern.permute.xlu0 7
        %2750 = vperm.xlu0 %2749, %v2093
        %v2751 = vpop.permute.xlu0 %2750
        %v2753 = vmul.f32 %v2673, %v2691
        %v2754 = vmul.f32 %v2674, %v2695
        %v2755 = vmul.f32 %v2675, %v2699
        %v2756 = vmul.f32 %v2676, %v2703
        %v2757 = vmul.f32 %v2677, %v2707
        %v2758 = vmul.f32 %v2678, %v2711
        %v2759 = vmul.f32 %v2679, %v2715
        %v2760 = vmul.f32 %v2680, %v2719
        %v2761 = vmul.f32 %v2681, %v2723
        %v2762 = vmul.f32 %v2682, %v2727
        %v2763 = vmul.f32 %v2683, %v2731
        %v2764 = vmul.f32 %v2684, %v2735
        %v2765 = vmul.f32 %v2685, %v2739
        %v2766 = vmul.f32 %v2686, %v2743
        %v2767 = vmul.f32 %v2687, %v2747
        %v2768 = vmul.f32 %v2688, %v2751
        %v2769 = vadd.f32 %v2576, %v2753
        %v2770 = vadd.f32 %v2577, %v2754
        %v2771 = vadd.f32 %v2578, %v2755
        %v2772 = vadd.f32 %v2579, %v2756
        %v2773 = vadd.f32 %v2580, %v2757
        %v2774 = vadd.f32 %v2581, %v2758
        %v2775 = vadd.f32 %v2582, %v2759
        %v2776 = vadd.f32 %v2583, %v2760
        %v2777 = vadd.f32 %v2584, %v2761
        %v2778 = vadd.f32 %v2585, %v2762
        %v2779 = vadd.f32 %v2586, %v2763
        %v2780 = vadd.f32 %v2587, %v2764
        %v2781 = vadd.f32 %v2588, %v2765
        %v2782 = vadd.f32 %v2589, %v2766
        %v2783 = vadd.f32 %v2590, %v2767
        %v2784 = vadd.f32 %v2591, %v2768
        %v2785 = vadd.f32 %v1742, %v1965
        %v2786 = vadd.f32 %v1743, %v1966
        %v2787 = vadd.f32 %v1744, %v1967
        %v2788 = vadd.f32 %v1745, %v1968
        %v2789 = vadd.f32 %v1746, %v1969
        %v2790 = vadd.f32 %v1747, %v1970
        %v2791 = vadd.f32 %v1748, %v1971
        %v2792 = vadd.f32 %v1749, %v1972
        %v2793 = vadd.f32 %v1750, %v1973
        %v2794 = vadd.f32 %v1751, %v1974
        %v2795 = vadd.f32 %v1752, %v1975
        %v2796 = vadd.f32 %v1753, %v1976
        %v2797 = vadd.f32 %v1754, %v1977
        %v2798 = vadd.f32 %v1755, %v1978
        %v2799 = vadd.f32 %v1756, %v1979
        %v2800 = vadd.f32 %v1757, %v1980
        %v2801 = vadd.f32 %v2785, %v2769
        %v2802 = vadd.f32 %v2786, %v2770
        %v2803 = vadd.f32 %v2787, %v2771
        %v2804 = vadd.f32 %v2788, %v2772
        %v2805 = vadd.f32 %v2789, %v2773
        %v2806 = vadd.f32 %v2790, %v2774
        %v2807 = vadd.f32 %v2791, %v2775
        %v2808 = vadd.f32 %v2792, %v2776
        %v2809 = vadd.f32 %v2793, %v2777
        %v2810 = vadd.f32 %v2794, %v2778
        %v2811 = vadd.f32 %v2795, %v2779
        %v2812 = vadd.f32 %v2796, %v2780
        %v2813 = vadd.f32 %v2797, %v2781
        %v2814 = vadd.f32 %v2798, %v2782
        %v2815 = vadd.f32 %v2799, %v2783
        %v2816 = vadd.f32 %v2800, %v2784
        %v2817 = vld [vmem:[%s432] sm:$0xff]
        %v2818 = vld [vmem:[%s432 + $0x8] sm:$0xff]
        %v2819 = vld [vmem:[%s432 + $0x10] sm:$0xff]
        %v2820 = vld [vmem:[%s432 + $0x18] sm:$0xff]
        %v2821 = vld [vmem:[%s432 + $0x20] sm:$0xff]
        %v2822 = vld [vmem:[%s432 + $0x28] sm:$0xff]
        %v2823 = vld [vmem:[%s432 + $0x30] sm:$0xff]
        %v2824 = vld [vmem:[%s432 + $0x38] sm:$0xff]
        %v2825 = vld [vmem:[%s432 + $0x40] sm:$0xff]
        %v2826 = vld [vmem:[%s432 + $0x48] sm:$0xff]
        %v2827 = vld [vmem:[%s432 + $0x50] sm:$0xff]
        %v2828 = vld [vmem:[%s432 + $0x58] sm:$0xff]
        %v2829 = vld [vmem:[%s432 + $0x60] sm:$0xff]
        %v2830 = vld [vmem:[%s432 + $0x68] sm:$0xff]
        %v2831 = vld [vmem:[%s432 + $0x70] sm:$0xff]
        %v2832 = vld [vmem:[%s432 + $0x78] sm:$0xff]
        %s2833 = scalar_lea.vmem %s9, 128
        %v2834 = vld [vmem:[%s2833] sm:$0xff]
        %v2835 = vld [vmem:[%s2833 + $0x8] sm:$0xff]
        %v2836 = vld [vmem:[%s2833 + $0x10] sm:$0xff]
        %v2837 = vld [vmem:[%s2833 + $0x18] sm:$0xff]
        %v2838 = vld [vmem:[%s2833 + $0x20] sm:$0xff]
        %v2839 = vld [vmem:[%s2833 + $0x28] sm:$0xff]
        %v2840 = vld [vmem:[%s2833 + $0x30] sm:$0xff]
        %v2841 = vld [vmem:[%s2833 + $0x38] sm:$0xff]
        %v2842 = vpack.c.bf16 %v2802, %v2801
        %v2843 = vpack.c.bf16 %v2804, %v2803
        %v2844 = vpack.c.bf16 %v2806, %v2805
        %v2845 = vpack.c.bf16 %v2808, %v2807
        %v2846 = vpack.c.bf16 %v2810, %v2809
        %v2847 = vpack.c.bf16 %v2812, %v2811
        %v2848 = vpack.c.bf16 %v2814, %v2813
        %v2849 = vpack.c.bf16 %v2816, %v2815
        %v2850 = vpack.c.bf16 %v2835, %v2834
        %v2851 = vpack.c.bf16 %v2837, %v2836
        %v2852 = vpack.c.bf16 %v2839, %v2838
        %v2853 = vpack.c.bf16 %v2841, %v2840
        %v2855 = vsel %vm721, %v2842, 0
        %v2858 = vsel %vm721, %v2843, 0
        %v2861 = vsel %vm721, %v2844, 0
        %v2864 = vsel %vm721, %v2845, 0
        %v2867 = vsel %vm721, %v2846, 0
        %v2870 = vsel %vm721, %v2847, 0
        %v2873 = vsel %vm721, %v2848, 0
        %v2876 = vsel %vm721, %v2849, 0
        %2878 = vmatpush.bf16.msra.mxu0 0
        %2879 = vmatpush.bf16.msra.mxu0 0
        %2880 = vmatpush.bf16.msra.mxu0 0
        %2881 = vmatpush.bf16.msra.mxu0 0
        %2882 = vmatpush.bf16.msra.mxu0 %v2853
        %2883 = vmatpush.bf16.msra.mxu0 %v2852
        %2884 = vmatpush.bf16.msra.mxu0 %v2851
        %2885 = vmatpush.bf16.msra.mxu0 %v2850
        %2886 = vmatmul.bf16.gmra.mxu0 %v2855
        %v2887 = vpop.f32.mrf.mxu0
        %v2888 = vadd.f32 0.0, %v2887
        %v2889 = vpop.f32.mrf.mxu0
        %v2890 = vadd.f32 0.0, %v2889
        %2891 = vmatmul.bf16.gmra.mxu0 %v2858
        %v2892 = vpop.f32.mrf.mxu0
        %v2893 = vadd.f32 0.0, %v2892
        %v2894 = vpop.f32.mrf.mxu0
        %v2895 = vadd.f32 0.0, %v2894
        %2896 = vmatmul.bf16.gmra.mxu0 %v2861
        %v2897 = vpop.f32.mrf.mxu0
        %v2898 = vadd.f32 0.0, %v2897
        %v2899 = vpop.f32.mrf.mxu0
        %v2900 = vadd.f32 0.0, %v2899
        %2901 = vmatmul.bf16.gmra.mxu0 %v2864
        %v2902 = vpop.f32.mrf.mxu0
        %v2903 = vadd.f32 0.0, %v2902
        %v2904 = vpop.f32.mrf.mxu0
        %v2905 = vadd.f32 0.0, %v2904
        %2906 = vmatmul.bf16.gmra.mxu0 %v2867
        %v2907 = vpop.f32.mrf.mxu0
        %v2908 = vadd.f32 0.0, %v2907
        %v2909 = vpop.f32.mrf.mxu0
        %v2910 = vadd.f32 0.0, %v2909
        %2911 = vmatmul.bf16.gmra.mxu0 %v2870
        %v2912 = vpop.f32.mrf.mxu0
        %v2913 = vadd.f32 0.0, %v2912
        %v2914 = vpop.f32.mrf.mxu0
        %v2915 = vadd.f32 0.0, %v2914
        %2916 = vmatmul.bf16.gmra.mxu0 %v2873
        %v2917 = vpop.f32.mrf.mxu0
        %v2918 = vadd.f32 0.0, %v2917
        %v2919 = vpop.f32.mrf.mxu0
        %v2920 = vadd.f32 0.0, %v2919
        %2921 = vmatmul.bf16.gmra.mxu0 %v2876
        %v2922 = vpop.f32.mrf.mxu0
        %v2923 = vadd.f32 0.0, %v2922
        %v2924 = vpop.f32.mrf.mxu0
        %v2925 = vadd.f32 0.0, %v2924
        %2926 = vdwg.mxu0
        %v2927 = vadd.f32 %v2817, %v2888
        %v2928 = vadd.f32 %v2818, %v2890
        %v2929 = vadd.f32 %v2819, %v2893
        %v2930 = vadd.f32 %v2820, %v2895
        %v2931 = vadd.f32 %v2821, %v2898
        %v2932 = vadd.f32 %v2822, %v2900
        %v2933 = vadd.f32 %v2823, %v2903
        %v2934 = vadd.f32 %v2824, %v2905
        %v2935 = vadd.f32 %v2825, %v2908
        %v2936 = vadd.f32 %v2826, %v2910
        %v2937 = vadd.f32 %v2827, %v2913
        %v2938 = vadd.f32 %v2828, %v2915
        %v2939 = vadd.f32 %v2829, %v2918
        %v2940 = vadd.f32 %v2830, %v2920
        %v2941 = vadd.f32 %v2831, %v2923
        %v2942 = vadd.f32 %v2832, %v2925
        %2943 = vst [vmem:[%s432] sm:$0xff] %v2927
        %2944 = vst [vmem:[%s432 + $0x8] sm:$0xff] %v2928
        %2945 = vst [vmem:[%s432 + $0x10] sm:$0xff] %v2929
        %2946 = vst [vmem:[%s432 + $0x18] sm:$0xff] %v2930
        %2947 = vst [vmem:[%s432 + $0x20] sm:$0xff] %v2931
        %2948 = vst [vmem:[%s432 + $0x28] sm:$0xff] %v2932
        %2949 = vst [vmem:[%s432 + $0x30] sm:$0xff] %v2933
        %2950 = vst [vmem:[%s432 + $0x38] sm:$0xff] %v2934
        %2951 = vst [vmem:[%s432 + $0x40] sm:$0xff] %v2935
        %2952 = vst [vmem:[%s432 + $0x48] sm:$0xff] %v2936
        %2953 = vst [vmem:[%s432 + $0x50] sm:$0xff] %v2937
        %2954 = vst [vmem:[%s432 + $0x58] sm:$0xff] %v2938
        %2955 = vst [vmem:[%s432 + $0x60] sm:$0xff] %v2939
        %2956 = vst [vmem:[%s432 + $0x68] sm:$0xff] %v2940
        %2957 = vst [vmem:[%s432 + $0x70] sm:$0xff] %v2941
        %2958 = vst [vmem:[%s432 + $0x78] sm:$0xff] %v2942
        %v2959 = vld [vmem:[#allocation6] sm:$0xff]
        %v2960 = vld [vmem:[#allocation6 + $0x8] sm:$0xff]
        %v2961 = vld [vmem:[#allocation6 + $0x10] sm:$0xff]
        %v2962 = vld [vmem:[#allocation6 + $0x18] sm:$0xff]
        %v2963 = vld [vmem:[#allocation6 + $0x20] sm:$0xff]
        %v2964 = vld [vmem:[#allocation6 + $0x28] sm:$0xff]
        %v2965 = vld [vmem:[#allocation6 + $0x30] sm:$0xff]
        %v2966 = vld [vmem:[#allocation6 + $0x38] sm:$0xff]
        %v2967 = vpack.c.bf16 %v2960, %v2959
        %v2968 = vpack.c.bf16 %v2962, %v2961
        %v2969 = vpack.c.bf16 %v2964, %v2963
        %v2970 = vpack.c.bf16 %v2966, %v2965
        %v2971 = vld [vmem:[%s7] sm:$0x1]
        %v2973 = vperm.slane %v2971, 0
        %2975 = vmatpush.bf16.msra.mxu0 0
        %2976 = vmatpush.bf16.msra.mxu0 0
        %2977 = vmatpush.bf16.msra.mxu0 0
        %2978 = vmatpush.bf16.msra.mxu0 0
        %2979 = vmatpush.bf16.msra.mxu0 %v2970
        %2980 = vmatpush.bf16.msra.mxu0 %v2969
        %2981 = vmatpush.bf16.msra.mxu0 %v2968
        %2982 = vmatpush.bf16.msra.mxu0 %v2967
        %2983 = vmatmul.bf16.gmra.mxu0 %v2855
        %v2984 = vpop.f32.mrf.mxu0
        %v2985 = vadd.f32 %v2973, %v2984
        %v2986 = vpop.f32.mrf.mxu0
        %v2987 = vadd.f32 %v2973, %v2986
        %2988 = vmatmul.bf16.gmra.mxu0 %v2858
        %v2989 = vpop.f32.mrf.mxu0
        %v2990 = vadd.f32 %v2973, %v2989
        %v2991 = vpop.f32.mrf.mxu0
        %v2992 = vadd.f32 %v2973, %v2991
        %2993 = vmatmul.bf16.gmra.mxu0 %v2861
        %v2994 = vpop.f32.mrf.mxu0
        %v2995 = vadd.f32 %v2973, %v2994
        %v2996 = vpop.f32.mrf.mxu0
        %v2997 = vadd.f32 %v2973, %v2996
        %2998 = vmatmul.bf16.gmra.mxu0 %v2864
        %v2999 = vpop.f32.mrf.mxu0
        %v3000 = vadd.f32 %v2973, %v2999
        %v3001 = vpop.f32.mrf.mxu0
        %v3002 = vadd.f32 %v2973, %v3001
        %3003 = vmatmul.bf16.gmra.mxu0 %v2867
        %v3004 = vpop.f32.mrf.mxu0
        %v3005 = vadd.f32 %v2973, %v3004
        %v3006 = vpop.f32.mrf.mxu0
        %v3007 = vadd.f32 %v2973, %v3006
        %3008 = vmatmul.bf16.gmra.mxu0 %v2870
        %v3009 = vpop.f32.mrf.mxu0
        %v3010 = vadd.f32 %v2973, %v3009
        %v3011 = vpop.f32.mrf.mxu0
        %v3012 = vadd.f32 %v2973, %v3011
        %3013 = vmatmul.bf16.gmra.mxu0 %v2873
        %v3014 = vpop.f32.mrf.mxu0
        %v3015 = vadd.f32 %v2973, %v3014
        %v3016 = vpop.f32.mrf.mxu0
        %v3017 = vadd.f32 %v2973, %v3016
        %3018 = vmatmul.bf16.gmra.mxu0 %v2876
        %v3019 = vpop.f32.mrf.mxu0
        %v3020 = vadd.f32 %v2973, %v3019
        %v3021 = vpop.f32.mrf.mxu0
        %v3022 = vadd.f32 %v2973, %v3021
        %3023 = vdwg.mxu0
        %v3024 = vtanh.pop %v2985
        %v3025 = vtanh.pop %v2987
        %v3026 = vtanh.pop %v2990
        %v3027 = vtanh.pop %v2992
        %v3028 = vtanh.pop %v2995
        %v3029 = vtanh.pop %v2997
        %v3030 = vtanh.pop %v3000
        %v3031 = vtanh.pop %v3002
        %v3032 = vtanh.pop %v3005
        %v3033 = vtanh.pop %v3007
        %v3034 = vtanh.pop %v3010
        %v3035 = vtanh.pop %v3012
        %v3036 = vtanh.pop %v3015
        %v3037 = vtanh.pop %v3017
        %v3038 = vtanh.pop %v3020
        %v3039 = vtanh.pop %v3022
        %v3040 = vld [vmem:[%s908] sm:$0xff]
        %v3041 = vld [vmem:[%s908 + $0x8] sm:$0xff]
        %v3042 = vld [vmem:[%s908 + $0x10] sm:$0xff]
        %v3043 = vld [vmem:[%s908 + $0x18] sm:$0xff]
        %v3044 = vld [vmem:[%s908 + $0x20] sm:$0xff]
        %v3045 = vld [vmem:[%s908 + $0x28] sm:$0xff]
        %v3046 = vld [vmem:[%s908 + $0x30] sm:$0xff]
        %v3047 = vld [vmem:[%s908 + $0x38] sm:$0xff]
        %v3048 = vpack.c.bf16 %v3041, %v3040
        %v3049 = vpack.c.bf16 %v3043, %v3042
        %v3050 = vpack.c.bf16 %v3045, %v3044
        %v3051 = vpack.c.bf16 %v3047, %v3046
        %v3052 = vld [vmem:[%s921] sm:$0x1]
        %v3054 = vperm.slane %v3052, 0
        %3056 = vmatpush.bf16.msra.mxu0 0
        %3057 = vmatpush.bf16.msra.mxu0 0
        %3058 = vmatpush.bf16.msra.mxu0 0
        %3059 = vmatpush.bf16.msra.mxu0 0
        %3060 = vmatpush.bf16.msra.mxu0 %v3051
        %3061 = vmatpush.bf16.msra.mxu0 %v3050
        %3062 = vmatpush.bf16.msra.mxu0 %v3049
        %3063 = vmatpush.bf16.msra.mxu0 %v3048
        %3064 = vmatmul.bf16.gmra.mxu0 %v2855
        %v3065 = vpop.f32.mrf.mxu0
        %v3066 = vadd.f32 %v3054, %v3065
        %v3067 = vpop.f32.mrf.mxu0
        %v3068 = vadd.f32 %v3054, %v3067
        %3069 = vmatmul.bf16.gmra.mxu0 %v2858
        %v3070 = vpop.f32.mrf.mxu0
        %v3071 = vadd.f32 %v3054, %v3070
        %v3072 = vpop.f32.mrf.mxu0
        %v3073 = vadd.f32 %v3054, %v3072
        %3074 = vmatmul.bf16.gmra.mxu0 %v2861
        %v3075 = vpop.f32.mrf.mxu0
        %v3076 = vadd.f32 %v3054, %v3075
        %v3077 = vpop.f32.mrf.mxu0
        %v3078 = vadd.f32 %v3054, %v3077
        %3079 = vmatmul.bf16.gmra.mxu0 %v2864
        %v3080 = vpop.f32.mrf.mxu0
        %v3081 = vadd.f32 %v3054, %v3080
        %v3082 = vpop.f32.mrf.mxu0
        %v3083 = vadd.f32 %v3054, %v3082
        %3084 = vmatmul.bf16.gmra.mxu0 %v2867
        %v3085 = vpop.f32.mrf.mxu0
        %v3086 = vadd.f32 %v3054, %v3085
        %v3087 = vpop.f32.mrf.mxu0
        %v3088 = vadd.f32 %v3054, %v3087
        %3089 = vmatmul.bf16.gmra.mxu0 %v2870
        %v3090 = vpop.f32.mrf.mxu0
        %v3091 = vadd.f32 %v3054, %v3090
        %v3092 = vpop.f32.mrf.mxu0
        %v3093 = vadd.f32 %v3054, %v3092
        %3094 = vmatmul.bf16.gmra.mxu0 %v2873
        %v3095 = vpop.f32.mrf.mxu0
        %v3096 = vadd.f32 %v3054, %v3095
        %v3097 = vpop.f32.mrf.mxu0
        %v3098 = vadd.f32 %v3054, %v3097
        %3099 = vmatmul.bf16.gmra.mxu0 %v2876
        %v3100 = vpop.f32.mrf.mxu0
        %v3101 = vadd.f32 %v3054, %v3100
        %v3102 = vpop.f32.mrf.mxu0
        %v3103 = vadd.f32 %v3054, %v3102
        %3104 = vdwg.mxu0
        %v3105 = vtanh.pop %v3066
        %v3106 = vtanh.pop %v3068
        %v3107 = vtanh.pop %v3071
        %v3108 = vtanh.pop %v3073
        %v3109 = vtanh.pop %v3076
        %v3110 = vtanh.pop %v3078
        %v3111 = vtanh.pop %v3081
        %v3112 = vtanh.pop %v3083
        %v3113 = vtanh.pop %v3086
        %v3114 = vtanh.pop %v3088
        %v3115 = vtanh.pop %v3091
        %v3116 = vtanh.pop %v3093
        %v3117 = vtanh.pop %v3096
        %v3118 = vtanh.pop %v3098
        %v3119 = vtanh.pop %v3101
        %v3120 = vtanh.pop %v3103
        %v3121 = vmul.f32 %v3105, %v995
        %v3122 = vmul.f32 %v3106, %v995
        %v3123 = vmul.f32 %v3107, %v995
        %v3124 = vmul.f32 %v3108, %v995
        %v3125 = vmul.f32 %v3109, %v995
        %v3126 = vmul.f32 %v3110, %v995
        %v3127 = vmul.f32 %v3111, %v995
        %v3128 = vmul.f32 %v3112, %v995
        %v3129 = vmul.f32 %v3113, %v995
        %v3130 = vmul.f32 %v3114, %v995
        %v3131 = vmul.f32 %v3115, %v995
        %v3132 = vmul.f32 %v3116, %v995
        %v3133 = vmul.f32 %v3117, %v995
        %v3134 = vmul.f32 %v3118, %v995
        %v3135 = vmul.f32 %v3119, %v995
        %v3136 = vmul.f32 %v3120, %v995
        %v3137 = vld [vmem:[%s443] sm:$0xff]
        %v3138 = vld [vmem:[%s443 + $0x8] sm:$0xff]
        %v3139 = vld [vmem:[%s443 + $0x10] sm:$0xff]
        %v3140 = vld [vmem:[%s443 + $0x18] sm:$0xff]
        %v3141 = vld [vmem:[%s443 + $0x20] sm:$0xff]
        %v3142 = vld [vmem:[%s443 + $0x28] sm:$0xff]
        %v3143 = vld [vmem:[%s443 + $0x30] sm:$0xff]
        %v3144 = vld [vmem:[%s443 + $0x38] sm:$0xff]
        %v3145 = vld [vmem:[%s443 + $0x40] sm:$0xff]
        %v3146 = vld [vmem:[%s443 + $0x48] sm:$0xff]
        %v3147 = vld [vmem:[%s443 + $0x50] sm:$0xff]
        %v3148 = vld [vmem:[%s443 + $0x58] sm:$0xff]
        %v3149 = vld [vmem:[%s443 + $0x60] sm:$0xff]
        %v3150 = vld [vmem:[%s443 + $0x68] sm:$0xff]
        %v3151 = vld [vmem:[%s443 + $0x70] sm:$0xff]
        %v3152 = vld [vmem:[%s443 + $0x78] sm:$0xff]
        %3154 = vset.pattern.permute.xlu0 8
        %3155 = vperm.xlu0 %3154, %v3137
        %v3156 = vpop.permute.xlu0 %3155
        %3159 = vset.pattern.permute.xlu0 8
        %3160 = vperm.xlu0 %3159, %v3138
        %v3161 = vpop.permute.xlu0 %3160
        %3164 = vset.pattern.permute.xlu0 8
        %3165 = vperm.xlu0 %3164, %v3139
        %v3166 = vpop.permute.xlu0 %3165
        %3169 = vset.pattern.permute.xlu0 8
        %3170 = vperm.xlu0 %3169, %v3140
        %v3171 = vpop.permute.xlu0 %3170
        %3174 = vset.pattern.permute.xlu0 8
        %3175 = vperm.xlu0 %3174, %v3141
        %v3176 = vpop.permute.xlu0 %3175
        %3179 = vset.pattern.permute.xlu0 8
        %3180 = vperm.xlu0 %3179, %v3142
        %v3181 = vpop.permute.xlu0 %3180
        %3184 = vset.pattern.permute.xlu0 8
        %3185 = vperm.xlu0 %3184, %v3143
        %v3186 = vpop.permute.xlu0 %3185
        %3189 = vset.pattern.permute.xlu0 8
        %3190 = vperm.xlu0 %3189, %v3144
        %v3191 = vpop.permute.xlu0 %3190
        %3194 = vset.pattern.permute.xlu0 8
        %3195 = vperm.xlu0 %3194, %v3145
        %v3196 = vpop.permute.xlu0 %3195
        %3199 = vset.pattern.permute.xlu0 8
        %3200 = vperm.xlu0 %3199, %v3146
        %v3201 = vpop.permute.xlu0 %3200
        %3204 = vset.pattern.permute.xlu0 8
        %3205 = vperm.xlu0 %3204, %v3147
        %v3206 = vpop.permute.xlu0 %3205
        %3209 = vset.pattern.permute.xlu0 8
        %3210 = vperm.xlu0 %3209, %v3148
        %v3211 = vpop.permute.xlu0 %3210
        %3214 = vset.pattern.permute.xlu0 8
        %3215 = vperm.xlu0 %3214, %v3149
        %v3216 = vpop.permute.xlu0 %3215
        %3219 = vset.pattern.permute.xlu0 8
        %3220 = vperm.xlu0 %3219, %v3150
        %v3221 = vpop.permute.xlu0 %3220
        %3224 = vset.pattern.permute.xlu0 8
        %3225 = vperm.xlu0 %3224, %v3151
        %v3226 = vpop.permute.xlu0 %3225
        %3229 = vset.pattern.permute.xlu0 8
        %3230 = vperm.xlu0 %3229, %v3152
        %v3231 = vpop.permute.xlu0 %3230
        %v3233 = vmul.f32 %v3121, %v3156
        %v3234 = vmul.f32 %v3122, %v3161
        %v3235 = vmul.f32 %v3123, %v3166
        %v3236 = vmul.f32 %v3124, %v3171
        %v3237 = vmul.f32 %v3125, %v3176
        %v3238 = vmul.f32 %v3126, %v3181
        %v3239 = vmul.f32 %v3127, %v3186
        %v3240 = vmul.f32 %v3128, %v3191
        %v3241 = vmul.f32 %v3129, %v3196
        %v3242 = vmul.f32 %v3130, %v3201
        %v3243 = vmul.f32 %v3131, %v3206
        %v3244 = vmul.f32 %v3132, %v3211
        %v3245 = vmul.f32 %v3133, %v3216
        %v3246 = vmul.f32 %v3134, %v3221
        %v3247 = vmul.f32 %v3135, %v3226
        %v3248 = vmul.f32 %v3136, %v3231
        %v3249 = vadd.f32 %v3233, 0.0
        %v3250 = vadd.f32 %v3234, 0.0
        %v3251 = vadd.f32 %v3235, 0.0
        %v3252 = vadd.f32 %v3236, 0.0
        %v3253 = vadd.f32 %v3237, 0.0
        %v3254 = vadd.f32 %v3238, 0.0
        %v3255 = vadd.f32 %v3239, 0.0
        %v3256 = vadd.f32 %v3240, 0.0
        %v3257 = vadd.f32 %v3241, 0.0
        %v3258 = vadd.f32 %v3242, 0.0
        %v3259 = vadd.f32 %v3243, 0.0
        %v3260 = vadd.f32 %v3244, 0.0
        %v3261 = vadd.f32 %v3245, 0.0
        %v3262 = vadd.f32 %v3246, 0.0
        %v3263 = vadd.f32 %v3247, 0.0
        %v3264 = vadd.f32 %v3248, 0.0
        %v3265 = vld [vmem:[%s1141] sm:$0xff]
        %v3266 = vld [vmem:[%s1141 + $0x8] sm:$0xff]
        %v3267 = vld [vmem:[%s1141 + $0x10] sm:$0xff]
        %v3268 = vld [vmem:[%s1141 + $0x18] sm:$0xff]
        %v3269 = vld [vmem:[%s1141 + $0x20] sm:$0xff]
        %v3270 = vld [vmem:[%s1141 + $0x28] sm:$0xff]
        %v3271 = vld [vmem:[%s1141 + $0x30] sm:$0xff]
        %v3272 = vld [vmem:[%s1141 + $0x38] sm:$0xff]
        %v3273 = vpack.c.bf16 %v3266, %v3265
        %v3274 = vpack.c.bf16 %v3268, %v3267
        %v3275 = vpack.c.bf16 %v3270, %v3269
        %v3276 = vpack.c.bf16 %v3272, %v3271
        %v3277 = vld [vmem:[%s1154] sm:$0x1]
        %v3279 = vperm.slane %v3277, 0
        %3281 = vmatpush.bf16.msra.mxu0 0
        %3282 = vmatpush.bf16.msra.mxu0 0
        %3283 = vmatpush.bf16.msra.mxu0 0
        %3284 = vmatpush.bf16.msra.mxu0 0
        %3285 = vmatpush.bf16.msra.mxu0 %v3276
        %3286 = vmatpush.bf16.msra.mxu0 %v3275
        %3287 = vmatpush.bf16.msra.mxu0 %v3274
        %3288 = vmatpush.bf16.msra.mxu0 %v3273
        %3289 = vmatmul.bf16.gmra.mxu0 %v2855
        %v3290 = vpop.f32.mrf.mxu0
        %v3291 = vadd.f32 %v3279, %v3290
        %v3292 = vpop.f32.mrf.mxu0
        %v3293 = vadd.f32 %v3279, %v3292
        %3294 = vmatmul.bf16.gmra.mxu0 %v2858
        %v3295 = vpop.f32.mrf.mxu0
        %v3296 = vadd.f32 %v3279, %v3295
        %v3297 = vpop.f32.mrf.mxu0
        %v3298 = vadd.f32 %v3279, %v3297
        %3299 = vmatmul.bf16.gmra.mxu0 %v2861
        %v3300 = vpop.f32.mrf.mxu0
        %v3301 = vadd.f32 %v3279, %v3300
        %v3302 = vpop.f32.mrf.mxu0
        %v3303 = vadd.f32 %v3279, %v3302
        %3304 = vmatmul.bf16.gmra.mxu0 %v2864
        %v3305 = vpop.f32.mrf.mxu0
        %v3306 = vadd.f32 %v3279, %v3305
        %v3307 = vpop.f32.mrf.mxu0
        %v3308 = vadd.f32 %v3279, %v3307
        %3309 = vmatmul.bf16.gmra.mxu0 %v2867
        %v3310 = vpop.f32.mrf.mxu0
        %v3311 = vadd.f32 %v3279, %v3310
        %v3312 = vpop.f32.mrf.mxu0
        %v3313 = vadd.f32 %v3279, %v3312
        %3314 = vmatmul.bf16.gmra.mxu0 %v2870
        %v3315 = vpop.f32.mrf.mxu0
        %v3316 = vadd.f32 %v3279, %v3315
        %v3317 = vpop.f32.mrf.mxu0
        %v3318 = vadd.f32 %v3279, %v3317
        %3319 = vmatmul.bf16.gmra.mxu0 %v2873
        %v3320 = vpop.f32.mrf.mxu0
        %v3321 = vadd.f32 %v3279, %v3320
        %v3322 = vpop.f32.mrf.mxu0
        %v3323 = vadd.f32 %v3279, %v3322
        %3324 = vmatmul.bf16.gmra.mxu0 %v2876
        %v3325 = vpop.f32.mrf.mxu0
        %v3326 = vadd.f32 %v3279, %v3325
        %v3327 = vpop.f32.mrf.mxu0
        %v3328 = vadd.f32 %v3279, %v3327
        %3329 = vdwg.mxu0
        %v3330 = vtanh.pop %v3291
        %v3331 = vtanh.pop %v3293
        %v3332 = vtanh.pop %v3296
        %v3333 = vtanh.pop %v3298
        %v3334 = vtanh.pop %v3301
        %v3335 = vtanh.pop %v3303
        %v3336 = vtanh.pop %v3306
        %v3337 = vtanh.pop %v3308
        %v3338 = vtanh.pop %v3311
        %v3339 = vtanh.pop %v3313
        %v3340 = vtanh.pop %v3316
        %v3341 = vtanh.pop %v3318
        %v3342 = vtanh.pop %v3321
        %v3343 = vtanh.pop %v3323
        %v3344 = vtanh.pop %v3326
        %v3345 = vtanh.pop %v3328
        %v3346 = vmul.f32 %v3330, %v995
        %v3347 = vmul.f32 %v3331, %v995
        %v3348 = vmul.f32 %v3332, %v995
        %v3349 = vmul.f32 %v3333, %v995
        %v3350 = vmul.f32 %v3334, %v995
        %v3351 = vmul.f32 %v3335, %v995
        %v3352 = vmul.f32 %v3336, %v995
        %v3353 = vmul.f32 %v3337, %v995
        %v3354 = vmul.f32 %v3338, %v995
        %v3355 = vmul.f32 %v3339, %v995
        %v3356 = vmul.f32 %v3340, %v995
        %v3357 = vmul.f32 %v3341, %v995
        %v3358 = vmul.f32 %v3342, %v995
        %v3359 = vmul.f32 %v3343, %v995
        %v3360 = vmul.f32 %v3344, %v995
        %v3361 = vmul.f32 %v3345, %v995
        %3362 = vset.pattern.permute.xlu0 9
        %3363 = vperm.xlu0 %3362, %v3137
        %v3364 = vpop.permute.xlu0 %3363
        %3366 = vset.pattern.permute.xlu0 9
        %3367 = vperm.xlu0 %3366, %v3138
        %v3368 = vpop.permute.xlu0 %3367
        %3370 = vset.pattern.permute.xlu0 9
        %3371 = vperm.xlu0 %3370, %v3139
        %v3372 = vpop.permute.xlu0 %3371
        %3374 = vset.pattern.permute.xlu0 9
        %3375 = vperm.xlu0 %3374, %v3140
        %v3376 = vpop.permute.xlu0 %3375
        %3378 = vset.pattern.permute.xlu0 9
        %3379 = vperm.xlu0 %3378, %v3141
        %v3380 = vpop.permute.xlu0 %3379
        %3382 = vset.pattern.permute.xlu0 9
        %3383 = vperm.xlu0 %3382, %v3142
        %v3384 = vpop.permute.xlu0 %3383
        %3386 = vset.pattern.permute.xlu0 9
        %3387 = vperm.xlu0 %3386, %v3143
        %v3388 = vpop.permute.xlu0 %3387
        %3390 = vset.pattern.permute.xlu0 9
        %3391 = vperm.xlu0 %3390, %v3144
        %v3392 = vpop.permute.xlu0 %3391
        %3394 = vset.pattern.permute.xlu0 9
        %3395 = vperm.xlu0 %3394, %v3145
        %v3396 = vpop.permute.xlu0 %3395
        %3398 = vset.pattern.permute.xlu0 9
        %3399 = vperm.xlu0 %3398, %v3146
        %v3400 = vpop.permute.xlu0 %3399
        %3402 = vset.pattern.permute.xlu0 9
        %3403 = vperm.xlu0 %3402, %v3147
        %v3404 = vpop.permute.xlu0 %3403
        %3406 = vset.pattern.permute.xlu0 9
        %3407 = vperm.xlu0 %3406, %v3148
        %v3408 = vpop.permute.xlu0 %3407
        %3410 = vset.pattern.permute.xlu0 9
        %3411 = vperm.xlu0 %3410, %v3149
        %v3412 = vpop.permute.xlu0 %3411
        %3414 = vset.pattern.permute.xlu0 9
        %3415 = vperm.xlu0 %3414, %v3150
        %v3416 = vpop.permute.xlu0 %3415
        %3418 = vset.pattern.permute.xlu0 9
        %3419 = vperm.xlu0 %3418, %v3151
        %v3420 = vpop.permute.xlu0 %3419
        %3422 = vset.pattern.permute.xlu0 9
        %3423 = vperm.xlu0 %3422, %v3152
        %v3424 = vpop.permute.xlu0 %3423
        %v3426 = vmul.f32 %v3346, %v3364
        %v3427 = vmul.f32 %v3347, %v3368
        %v3428 = vmul.f32 %v3348, %v3372
        %v3429 = vmul.f32 %v3349, %v3376
        %v3430 = vmul.f32 %v3350, %v3380
        %v3431 = vmul.f32 %v3351, %v3384
        %v3432 = vmul.f32 %v3352, %v3388
        %v3433 = vmul.f32 %v3353, %v3392
        %v3434 = vmul.f32 %v3354, %v3396
        %v3435 = vmul.f32 %v3355, %v3400
        %v3436 = vmul.f32 %v3356, %v3404
        %v3437 = vmul.f32 %v3357, %v3408
        %v3438 = vmul.f32 %v3358, %v3412
        %v3439 = vmul.f32 %v3359, %v3416
        %v3440 = vmul.f32 %v3360, %v3420
        %v3441 = vmul.f32 %v3361, %v3424
        %v3442 = vadd.f32 %v3249, %v3426
        %v3443 = vadd.f32 %v3250, %v3427
        %v3444 = vadd.f32 %v3251, %v3428
        %v3445 = vadd.f32 %v3252, %v3429
        %v3446 = vadd.f32 %v3253, %v3430
        %v3447 = vadd.f32 %v3254, %v3431
        %v3448 = vadd.f32 %v3255, %v3432
        %v3449 = vadd.f32 %v3256, %v3433
        %v3450 = vadd.f32 %v3257, %v3434
        %v3451 = vadd.f32 %v3258, %v3435
        %v3452 = vadd.f32 %v3259, %v3436
        %v3453 = vadd.f32 %v3260, %v3437
        %v3454 = vadd.f32 %v3261, %v3438
        %v3455 = vadd.f32 %v3262, %v3439
        %v3456 = vadd.f32 %v3263, %v3440
        %v3457 = vadd.f32 %v3264, %v3441
        %v3458 = vld [vmem:[%s1336] sm:$0xff]
        %v3459 = vld [vmem:[%s1336 + $0x8] sm:$0xff]
        %v3460 = vld [vmem:[%s1336 + $0x10] sm:$0xff]
        %v3461 = vld [vmem:[%s1336 + $0x18] sm:$0xff]
        %v3462 = vld [vmem:[%s1336 + $0x20] sm:$0xff]
        %v3463 = vld [vmem:[%s1336 + $0x28] sm:$0xff]
        %v3464 = vld [vmem:[%s1336 + $0x30] sm:$0xff]
        %v3465 = vld [vmem:[%s1336 + $0x38] sm:$0xff]
        %v3466 = vpack.c.bf16 %v3459, %v3458
        %v3467 = vpack.c.bf16 %v3461, %v3460
        %v3468 = vpack.c.bf16 %v3463, %v3462
        %v3469 = vpack.c.bf16 %v3465, %v3464
        %v3470 = vld [vmem:[%s1349] sm:$0x1]
        %v3472 = vperm.slane %v3470, 0
        %3474 = vmatpush.bf16.msra.mxu0 0
        %3475 = vmatpush.bf16.msra.mxu0 0
        %3476 = vmatpush.bf16.msra.mxu0 0
        %3477 = vmatpush.bf16.msra.mxu0 0
        %3478 = vmatpush.bf16.msra.mxu0 %v3469
        %3479 = vmatpush.bf16.msra.mxu0 %v3468
        %3480 = vmatpush.bf16.msra.mxu0 %v3467
        %3481 = vmatpush.bf16.msra.mxu0 %v3466
        %3482 = vmatmul.bf16.gmra.mxu0 %v2855
        %v3483 = vpop.f32.mrf.mxu0
        %v3484 = vadd.f32 %v3472, %v3483
        %v3485 = vpop.f32.mrf.mxu0
        %v3486 = vadd.f32 %v3472, %v3485
        %3487 = vmatmul.bf16.gmra.mxu0 %v2858
        %v3488 = vpop.f32.mrf.mxu0
        %v3489 = vadd.f32 %v3472, %v3488
        %v3490 = vpop.f32.mrf.mxu0
        %v3491 = vadd.f32 %v3472, %v3490
        %3492 = vmatmul.bf16.gmra.mxu0 %v2861
        %v3493 = vpop.f32.mrf.mxu0
        %v3494 = vadd.f32 %v3472, %v3493
        %v3495 = vpop.f32.mrf.mxu0
        %v3496 = vadd.f32 %v3472, %v3495
        %3497 = vmatmul.bf16.gmra.mxu0 %v2864
        %v3498 = vpop.f32.mrf.mxu0
        %v3499 = vadd.f32 %v3472, %v3498
        %v3500 = vpop.f32.mrf.mxu0
        %v3501 = vadd.f32 %v3472, %v3500
        %3502 = vmatmul.bf16.gmra.mxu0 %v2867
        %v3503 = vpop.f32.mrf.mxu0
        %v3504 = vadd.f32 %v3472, %v3503
        %v3505 = vpop.f32.mrf.mxu0
        %v3506 = vadd.f32 %v3472, %v3505
        %3507 = vmatmul.bf16.gmra.mxu0 %v2870
        %v3508 = vpop.f32.mrf.mxu0
        %v3509 = vadd.f32 %v3472, %v3508
        %v3510 = vpop.f32.mrf.mxu0
        %v3511 = vadd.f32 %v3472, %v3510
        %3512 = vmatmul.bf16.gmra.mxu0 %v2873
        %v3513 = vpop.f32.mrf.mxu0
        %v3514 = vadd.f32 %v3472, %v3513
        %v3515 = vpop.f32.mrf.mxu0
        %v3516 = vadd.f32 %v3472, %v3515
        %3517 = vmatmul.bf16.gmra.mxu0 %v2876
        %v3518 = vpop.f32.mrf.mxu0
        %v3519 = vadd.f32 %v3472, %v3518
        %v3520 = vpop.f32.mrf.mxu0
        %v3521 = vadd.f32 %v3472, %v3520
        %3522 = vdwg.mxu0
        %v3523 = vtanh.pop %v3484
        %v3524 = vtanh.pop %v3486
        %v3525 = vtanh.pop %v3489
        %v3526 = vtanh.pop %v3491
        %v3527 = vtanh.pop %v3494
        %v3528 = vtanh.pop %v3496
        %v3529 = vtanh.pop %v3499
        %v3530 = vtanh.pop %v3501
        %v3531 = vtanh.pop %v3504
        %v3532 = vtanh.pop %v3506
        %v3533 = vtanh.pop %v3509
        %v3534 = vtanh.pop %v3511
        %v3535 = vtanh.pop %v3514
        %v3536 = vtanh.pop %v3516
        %v3537 = vtanh.pop %v3519
        %v3538 = vtanh.pop %v3521
        %v3539 = vmul.f32 %v3523, %v995
        %v3540 = vmul.f32 %v3524, %v995
        %v3541 = vmul.f32 %v3525, %v995
        %v3542 = vmul.f32 %v3526, %v995
        %v3543 = vmul.f32 %v3527, %v995
        %v3544 = vmul.f32 %v3528, %v995
        %v3545 = vmul.f32 %v3529, %v995
        %v3546 = vmul.f32 %v3530, %v995
        %v3547 = vmul.f32 %v3531, %v995
        %v3548 = vmul.f32 %v3532, %v995
        %v3549 = vmul.f32 %v3533, %v995
        %v3550 = vmul.f32 %v3534, %v995
        %v3551 = vmul.f32 %v3535, %v995
        %v3552 = vmul.f32 %v3536, %v995
        %v3553 = vmul.f32 %v3537, %v995
        %v3554 = vmul.f32 %v3538, %v995
        %3555 = vset.pattern.permute.xlu0 10
        %3556 = vperm.xlu0 %3555, %v3137
        %v3557 = vpop.permute.xlu0 %3556
        %3559 = vset.pattern.permute.xlu0 10
        %3560 = vperm.xlu0 %3559, %v3138
        %v3561 = vpop.permute.xlu0 %3560
        %3563 = vset.pattern.permute.xlu0 10
        %3564 = vperm.xlu0 %3563, %v3139
        %v3565 = vpop.permute.xlu0 %3564
        %3567 = vset.pattern.permute.xlu0 10
        %3568 = vperm.xlu0 %3567, %v3140
        %v3569 = vpop.permute.xlu0 %3568
        %3571 = vset.pattern.permute.xlu0 10
        %3572 = vperm.xlu0 %3571, %v3141
        %v3573 = vpop.permute.xlu0 %3572
        %3575 = vset.pattern.permute.xlu0 10
        %3576 = vperm.xlu0 %3575, %v3142
        %v3577 = vpop.permute.xlu0 %3576
        %3579 = vset.pattern.permute.xlu0 10
        %3580 = vperm.xlu0 %3579, %v3143
        %v3581 = vpop.permute.xlu0 %3580
        %3583 = vset.pattern.permute.xlu0 10
        %3584 = vperm.xlu0 %3583, %v3144
        %v3585 = vpop.permute.xlu0 %3584
        %3587 = vset.pattern.permute.xlu0 10
        %3588 = vperm.xlu0 %3587, %v3145
        %v3589 = vpop.permute.xlu0 %3588
        %3591 = vset.pattern.permute.xlu0 10
        %3592 = vperm.xlu0 %3591, %v3146
        %v3593 = vpop.permute.xlu0 %3592
        %3595 = vset.pattern.permute.xlu0 10
        %3596 = vperm.xlu0 %3595, %v3147
        %v3597 = vpop.permute.xlu0 %3596
        %3599 = vset.pattern.permute.xlu0 10
        %3600 = vperm.xlu0 %3599, %v3148
        %v3601 = vpop.permute.xlu0 %3600
        %3603 = vset.pattern.permute.xlu0 10
        %3604 = vperm.xlu0 %3603, %v3149
        %v3605 = vpop.permute.xlu0 %3604
        %3607 = vset.pattern.permute.xlu0 10
        %3608 = vperm.xlu0 %3607, %v3150
        %v3609 = vpop.permute.xlu0 %3608
        %3611 = vset.pattern.permute.xlu0 10
        %3612 = vperm.xlu0 %3611, %v3151
        %v3613 = vpop.permute.xlu0 %3612
        %3615 = vset.pattern.permute.xlu0 10
        %3616 = vperm.xlu0 %3615, %v3152
        %v3617 = vpop.permute.xlu0 %3616
        %v3619 = vmul.f32 %v3539, %v3557
        %v3620 = vmul.f32 %v3540, %v3561
        %v3621 = vmul.f32 %v3541, %v3565
        %v3622 = vmul.f32 %v3542, %v3569
        %v3623 = vmul.f32 %v3543, %v3573
        %v3624 = vmul.f32 %v3544, %v3577
        %v3625 = vmul.f32 %v3545, %v3581
        %v3626 = vmul.f32 %v3546, %v3585
        %v3627 = vmul.f32 %v3547, %v3589
        %v3628 = vmul.f32 %v3548, %v3593
        %v3629 = vmul.f32 %v3549, %v3597
        %v3630 = vmul.f32 %v3550, %v3601
        %v3631 = vmul.f32 %v3551, %v3605
        %v3632 = vmul.f32 %v3552, %v3609
        %v3633 = vmul.f32 %v3553, %v3613
        %v3634 = vmul.f32 %v3554, %v3617
        %v3635 = vadd.f32 %v3442, %v3619
        %v3636 = vadd.f32 %v3443, %v3620
        %v3637 = vadd.f32 %v3444, %v3621
        %v3638 = vadd.f32 %v3445, %v3622
        %v3639 = vadd.f32 %v3446, %v3623
        %v3640 = vadd.f32 %v3447, %v3624
        %v3641 = vadd.f32 %v3448, %v3625
        %v3642 = vadd.f32 %v3449, %v3626
        %v3643 = vadd.f32 %v3450, %v3627
        %v3644 = vadd.f32 %v3451, %v3628
        %v3645 = vadd.f32 %v3452, %v3629
        %v3646 = vadd.f32 %v3453, %v3630
        %v3647 = vadd.f32 %v3454, %v3631
        %v3648 = vadd.f32 %v3455, %v3632
        %v3649 = vadd.f32 %v3456, %v3633
        %v3650 = vadd.f32 %v3457, %v3634
        %v3651 = vld [vmem:[%s1531] sm:$0xff]
        %v3652 = vld [vmem:[%s1531 + $0x8] sm:$0xff]
        %v3653 = vld [vmem:[%s1531 + $0x10] sm:$0xff]
        %v3654 = vld [vmem:[%s1531 + $0x18] sm:$0xff]
        %v3655 = vld [vmem:[%s1531 + $0x20] sm:$0xff]
        %v3656 = vld [vmem:[%s1531 + $0x28] sm:$0xff]
        %v3657 = vld [vmem:[%s1531 + $0x30] sm:$0xff]
        %v3658 = vld [vmem:[%s1531 + $0x38] sm:$0xff]
        %v3659 = vpack.c.bf16 %v3652, %v3651
        %v3660 = vpack.c.bf16 %v3654, %v3653
        %v3661 = vpack.c.bf16 %v3656, %v3655
        %v3662 = vpack.c.bf16 %v3658, %v3657
        %v3663 = vld [vmem:[%s1544] sm:$0x1]
        %v3665 = vperm.slane %v3663, 0
        %3667 = vmatpush.bf16.msra.mxu0 0
        %3668 = vmatpush.bf16.msra.mxu0 0
        %3669 = vmatpush.bf16.msra.mxu0 0
        %3670 = vmatpush.bf16.msra.mxu0 0
        %3671 = vmatpush.bf16.msra.mxu0 %v3662
        %3672 = vmatpush.bf16.msra.mxu0 %v3661
        %3673 = vmatpush.bf16.msra.mxu0 %v3660
        %3674 = vmatpush.bf16.msra.mxu0 %v3659
        %3675 = vmatmul.bf16.gmra.mxu0 %v2855
        %v3676 = vpop.f32.mrf.mxu0
        %v3677 = vadd.f32 %v3665, %v3676
        %v3678 = vpop.f32.mrf.mxu0
        %v3679 = vadd.f32 %v3665, %v3678
        %3680 = vmatmul.bf16.gmra.mxu0 %v2858
        %v3681 = vpop.f32.mrf.mxu0
        %v3682 = vadd.f32 %v3665, %v3681
        %v3683 = vpop.f32.mrf.mxu0
        %v3684 = vadd.f32 %v3665, %v3683
        %3685 = vmatmul.bf16.gmra.mxu0 %v2861
        %v3686 = vpop.f32.mrf.mxu0
        %v3687 = vadd.f32 %v3665, %v3686
        %v3688 = vpop.f32.mrf.mxu0
        %v3689 = vadd.f32 %v3665, %v3688
        %3690 = vmatmul.bf16.gmra.mxu0 %v2864
        %v3691 = vpop.f32.mrf.mxu0
        %v3692 = vadd.f32 %v3665, %v3691
        %v3693 = vpop.f32.mrf.mxu0
        %v3694 = vadd.f32 %v3665, %v3693
        %3695 = vmatmul.bf16.gmra.mxu0 %v2867
        %v3696 = vpop.f32.mrf.mxu0
        %v3697 = vadd.f32 %v3665, %v3696
        %v3698 = vpop.f32.mrf.mxu0
        %v3699 = vadd.f32 %v3665, %v3698
        %3700 = vmatmul.bf16.gmra.mxu0 %v2870
        %v3701 = vpop.f32.mrf.mxu0
        %v3702 = vadd.f32 %v3665, %v3701
        %v3703 = vpop.f32.mrf.mxu0
        %v3704 = vadd.f32 %v3665, %v3703
        %3705 = vmatmul.bf16.gmra.mxu0 %v2873
        %v3706 = vpop.f32.mrf.mxu0
        %v3707 = vadd.f32 %v3665, %v3706
        %v3708 = vpop.f32.mrf.mxu0
        %v3709 = vadd.f32 %v3665, %v3708
        %3710 = vmatmul.bf16.gmra.mxu0 %v2876
        %v3711 = vpop.f32.mrf.mxu0
        %v3712 = vadd.f32 %v3665, %v3711
        %v3713 = vpop.f32.mrf.mxu0
        %v3714 = vadd.f32 %v3665, %v3713
        %3715 = vdwg.mxu0
        %v3716 = vtanh.pop %v3677
        %v3717 = vtanh.pop %v3679
        %v3718 = vtanh.pop %v3682
        %v3719 = vtanh.pop %v3684
        %v3720 = vtanh.pop %v3687
        %v3721 = vtanh.pop %v3689
        %v3722 = vtanh.pop %v3692
        %v3723 = vtanh.pop %v3694
        %v3724 = vtanh.pop %v3697
        %v3725 = vtanh.pop %v3699
        %v3726 = vtanh.pop %v3702
        %v3727 = vtanh.pop %v3704
        %v3728 = vtanh.pop %v3707
        %v3729 = vtanh.pop %v3709
        %v3730 = vtanh.pop %v3712
        %v3731 = vtanh.pop %v3714
        %v3732 = vmul.f32 %v3716, %v995
        %v3733 = vmul.f32 %v3717, %v995
        %v3734 = vmul.f32 %v3718, %v995
        %v3735 = vmul.f32 %v3719, %v995
        %v3736 = vmul.f32 %v3720, %v995
        %v3737 = vmul.f32 %v3721, %v995
        %v3738 = vmul.f32 %v3722, %v995
        %v3739 = vmul.f32 %v3723, %v995
        %v3740 = vmul.f32 %v3724, %v995
        %v3741 = vmul.f32 %v3725, %v995
        %v3742 = vmul.f32 %v3726, %v995
        %v3743 = vmul.f32 %v3727, %v995
        %v3744 = vmul.f32 %v3728, %v995
        %v3745 = vmul.f32 %v3729, %v995
        %v3746 = vmul.f32 %v3730, %v995
        %v3747 = vmul.f32 %v3731, %v995
        %3748 = vset.pattern.permute.xlu0 11
        %3749 = vperm.xlu0 %3748, %v3137
        %v3750 = vpop.permute.xlu0 %3749
        %3752 = vset.pattern.permute.xlu0 11
        %3753 = vperm.xlu0 %3752, %v3138
        %v3754 = vpop.permute.xlu0 %3753
        %3756 = vset.pattern.permute.xlu0 11
        %3757 = vperm.xlu0 %3756, %v3139
        %v3758 = vpop.permute.xlu0 %3757
        %3760 = vset.pattern.permute.xlu0 11
        %3761 = vperm.xlu0 %3760, %v3140
        %v3762 = vpop.permute.xlu0 %3761
        %3764 = vset.pattern.permute.xlu0 11
        %3765 = vperm.xlu0 %3764, %v3141
        %v3766 = vpop.permute.xlu0 %3765
        %3768 = vset.pattern.permute.xlu0 11
        %3769 = vperm.xlu0 %3768, %v3142
        %v3770 = vpop.permute.xlu0 %3769
        %3772 = vset.pattern.permute.xlu0 11
        %3773 = vperm.xlu0 %3772, %v3143
        %v3774 = vpop.permute.xlu0 %3773
        %3776 = vset.pattern.permute.xlu0 11
        %3777 = vperm.xlu0 %3776, %v3144
        %v3778 = vpop.permute.xlu0 %3777
        %3780 = vset.pattern.permute.xlu0 11
        %3781 = vperm.xlu0 %3780, %v3145
        %v3782 = vpop.permute.xlu0 %3781
        %3784 = vset.pattern.permute.xlu0 11
        %3785 = vperm.xlu0 %3784, %v3146
        %v3786 = vpop.permute.xlu0 %3785
        %3788 = vset.pattern.permute.xlu0 11
        %3789 = vperm.xlu0 %3788, %v3147
        %v3790 = vpop.permute.xlu0 %3789
        %3792 = vset.pattern.permute.xlu0 11
        %3793 = vperm.xlu0 %3792, %v3148
        %v3794 = vpop.permute.xlu0 %3793
        %3796 = vset.pattern.permute.xlu0 11
        %3797 = vperm.xlu0 %3796, %v3149
        %v3798 = vpop.permute.xlu0 %3797
        %3800 = vset.pattern.permute.xlu0 11
        %3801 = vperm.xlu0 %3800, %v3150
        %v3802 = vpop.permute.xlu0 %3801
        %3804 = vset.pattern.permute.xlu0 11
        %3805 = vperm.xlu0 %3804, %v3151
        %v3806 = vpop.permute.xlu0 %3805
        %3808 = vset.pattern.permute.xlu0 11
        %3809 = vperm.xlu0 %3808, %v3152
        %v3810 = vpop.permute.xlu0 %3809
        %v3812 = vmul.f32 %v3732, %v3750
        %v3813 = vmul.f32 %v3733, %v3754
        %v3814 = vmul.f32 %v3734, %v3758
        %v3815 = vmul.f32 %v3735, %v3762
        %v3816 = vmul.f32 %v3736, %v3766
        %v3817 = vmul.f32 %v3737, %v3770
        %v3818 = vmul.f32 %v3738, %v3774
        %v3819 = vmul.f32 %v3739, %v3778
        %v3820 = vmul.f32 %v3740, %v3782
        %v3821 = vmul.f32 %v3741, %v3786
        %v3822 = vmul.f32 %v3742, %v3790
        %v3823 = vmul.f32 %v3743, %v3794
        %v3824 = vmul.f32 %v3744, %v3798
        %v3825 = vmul.f32 %v3745, %v3802
        %v3826 = vmul.f32 %v3746, %v3806
        %v3827 = vmul.f32 %v3747, %v3810
        %v3828 = vadd.f32 %v3635, %v3812
        %v3829 = vadd.f32 %v3636, %v3813
        %v3830 = vadd.f32 %v3637, %v3814
        %v3831 = vadd.f32 %v3638, %v3815
        %v3832 = vadd.f32 %v3639, %v3816
        %v3833 = vadd.f32 %v3640, %v3817
        %v3834 = vadd.f32 %v3641, %v3818
        %v3835 = vadd.f32 %v3642, %v3819
        %v3836 = vadd.f32 %v3643, %v3820
        %v3837 = vadd.f32 %v3644, %v3821
        %v3838 = vadd.f32 %v3645, %v3822
        %v3839 = vadd.f32 %v3646, %v3823
        %v3840 = vadd.f32 %v3647, %v3824
        %v3841 = vadd.f32 %v3648, %v3825
        %v3842 = vadd.f32 %v3649, %v3826
        %v3843 = vadd.f32 %v3650, %v3827
        %v3844 = vadd.f32 %v2801, %v3024
        %v3845 = vadd.f32 %v2802, %v3025
        %v3846 = vadd.f32 %v2803, %v3026
        %v3847 = vadd.f32 %v2804, %v3027
        %v3848 = vadd.f32 %v2805, %v3028
        %v3849 = vadd.f32 %v2806, %v3029
        %v3850 = vadd.f32 %v2807, %v3030
        %v3851 = vadd.f32 %v2808, %v3031
        %v3852 = vadd.f32 %v2809, %v3032
        %v3853 = vadd.f32 %v2810, %v3033
        %v3854 = vadd.f32 %v2811, %v3034
        %v3855 = vadd.f32 %v2812, %v3035
        %v3856 = vadd.f32 %v2813, %v3036
        %v3857 = vadd.f32 %v2814, %v3037
        %v3858 = vadd.f32 %v2815, %v3038
        %v3859 = vadd.f32 %v2816, %v3039
        %v3860 = vadd.f32 %v3844, %v3828
        %v3861 = vadd.f32 %v3845, %v3829
        %v3862 = vadd.f32 %v3846, %v3830
        %v3863 = vadd.f32 %v3847, %v3831
        %v3864 = vadd.f32 %v3848, %v3832
        %v3865 = vadd.f32 %v3849, %v3833
        %v3866 = vadd.f32 %v3850, %v3834
        %v3867 = vadd.f32 %v3851, %v3835
        %v3868 = vadd.f32 %v3852, %v3836
        %v3869 = vadd.f32 %v3853, %v3837
        %v3870 = vadd.f32 %v3854, %v3838
        %v3871 = vadd.f32 %v3855, %v3839
        %v3872 = vadd.f32 %v3856, %v3840
        %v3873 = vadd.f32 %v3857, %v3841
        %v3874 = vadd.f32 %v3858, %v3842
        %v3875 = vadd.f32 %v3859, %v3843
        %v3876 = vld [vmem:[%s432] sm:$0xff]
        %v3877 = vld [vmem:[%s432 + $0x8] sm:$0xff]
        %v3878 = vld [vmem:[%s432 + $0x10] sm:$0xff]
        %v3879 = vld [vmem:[%s432 + $0x18] sm:$0xff]
        %v3880 = vld [vmem:[%s432 + $0x20] sm:$0xff]
        %v3881 = vld [vmem:[%s432 + $0x28] sm:$0xff]
        %v3882 = vld [vmem:[%s432 + $0x30] sm:$0xff]
        %v3883 = vld [vmem:[%s432 + $0x38] sm:$0xff]
        %v3884 = vld [vmem:[%s432 + $0x40] sm:$0xff]
        %v3885 = vld [vmem:[%s432 + $0x48] sm:$0xff]
        %v3886 = vld [vmem:[%s432 + $0x50] sm:$0xff]
        %v3887 = vld [vmem:[%s432 + $0x58] sm:$0xff]
        %v3888 = vld [vmem:[%s432 + $0x60] sm:$0xff]
        %v3889 = vld [vmem:[%s432 + $0x68] sm:$0xff]
        %v3890 = vld [vmem:[%s432 + $0x70] sm:$0xff]
        %v3891 = vld [vmem:[%s432 + $0x78] sm:$0xff]
        %s3892 = scalar_lea.vmem %s9, 192
        %v3893 = vld [vmem:[%s3892] sm:$0xff]
        %v3894 = vld [vmem:[%s3892 + $0x8] sm:$0xff]
        %v3895 = vld [vmem:[%s3892 + $0x10] sm:$0xff]
        %v3896 = vld [vmem:[%s3892 + $0x18] sm:$0xff]
        %v3897 = vld [vmem:[%s3892 + $0x20] sm:$0xff]
        %v3898 = vld [vmem:[%s3892 + $0x28] sm:$0xff]
        %v3899 = vld [vmem:[%s3892 + $0x30] sm:$0xff]
        %v3900 = vld [vmem:[%s3892 + $0x38] sm:$0xff]
        %v3901 = vpack.c.bf16 %v3861, %v3860
        %v3902 = vpack.c.bf16 %v3863, %v3862
        %v3903 = vpack.c.bf16 %v3865, %v3864
        %v3904 = vpack.c.bf16 %v3867, %v3866
        %v3905 = vpack.c.bf16 %v3869, %v3868
        %v3906 = vpack.c.bf16 %v3871, %v3870
        %v3907 = vpack.c.bf16 %v3873, %v3872
        %v3908 = vpack.c.bf16 %v3875, %v3874
        %v3909 = vpack.c.bf16 %v3894, %v3893
        %v3910 = vpack.c.bf16 %v3896, %v3895
        %v3911 = vpack.c.bf16 %v3898, %v3897
        %v3912 = vpack.c.bf16 %v3900, %v3899
        %v3914 = vsel %vm721, %v3901, 0
        %v3917 = vsel %vm721, %v3902, 0
        %v3920 = vsel %vm721, %v3903, 0
        %v3923 = vsel %vm721, %v3904, 0
        %v3926 = vsel %vm721, %v3905, 0
        %v3929 = vsel %vm721, %v3906, 0
        %v3932 = vsel %vm721, %v3907, 0
        %v3935 = vsel %vm721, %v3908, 0
        %3937 = vmatpush.bf16.msra.mxu0 0
        %3938 = vmatpush.bf16.msra.mxu0 0
        %3939 = vmatpush.bf16.msra.mxu0 0
        %3940 = vmatpush.bf16.msra.mxu0 0
        %3941 = vmatpush.bf16.msra.mxu0 %v3912
        %3942 = vmatpush.bf16.msra.mxu0 %v3911
        %3943 = vmatpush.bf16.msra.mxu0 %v3910
        %3944 = vmatpush.bf16.msra.mxu0 %v3909
        %3945 = vmatmul.bf16.gmra.mxu0 %v3914
        %v3946 = vpop.f32.mrf.mxu0
        %v3947 = vadd.f32 0.0, %v3946
        %v3948 = vpop.f32.mrf.mxu0
        %v3949 = vadd.f32 0.0, %v3948
        %3950 = vmatmul.bf16.gmra.mxu0 %v3917
        %v3951 = vpop.f32.mrf.mxu0
        %v3952 = vadd.f32 0.0, %v3951
        %v3953 = vpop.f32.mrf.mxu0
        %v3954 = vadd.f32 0.0, %v3953
        %3955 = vmatmul.bf16.gmra.mxu0 %v3920
        %v3956 = vpop.f32.mrf.mxu0
        %v3957 = vadd.f32 0.0, %v3956
        %v3958 = vpop.f32.mrf.mxu0
        %v3959 = vadd.f32 0.0, %v3958
        %3960 = vmatmul.bf16.gmra.mxu0 %v3923
        %v3961 = vpop.f32.mrf.mxu0
        %v3962 = vadd.f32 0.0, %v3961
        %v3963 = vpop.f32.mrf.mxu0
        %v3964 = vadd.f32 0.0, %v3963
        %3965 = vmatmul.bf16.gmra.mxu0 %v3926
        %v3966 = vpop.f32.mrf.mxu0
        %v3967 = vadd.f32 0.0, %v3966
        %v3968 = vpop.f32.mrf.mxu0
        %v3969 = vadd.f32 0.0, %v3968
        %3970 = vmatmul.bf16.gmra.mxu0 %v3929
        %v3971 = vpop.f32.mrf.mxu0
        %v3972 = vadd.f32 0.0, %v3971
        %v3973 = vpop.f32.mrf.mxu0
        %v3974 = vadd.f32 0.0, %v3973
        %3975 = vmatmul.bf16.gmra.mxu0 %v3932
        %v3976 = vpop.f32.mrf.mxu0
        %v3977 = vadd.f32 0.0, %v3976
        %v3978 = vpop.f32.mrf.mxu0
        %v3979 = vadd.f32 0.0, %v3978
        %3980 = vmatmul.bf16.gmra.mxu0 %v3935
        %v3981 = vpop.f32.mrf.mxu0
        %v3982 = vadd.f32 0.0, %v3981
        %v3983 = vpop.f32.mrf.mxu0
        %v3984 = vadd.f32 0.0, %v3983
        %3985 = vdwg.mxu0
        %v3986 = vadd.f32 %v3876, %v3947
        %v3987 = vadd.f32 %v3877, %v3949
        %v3988 = vadd.f32 %v3878, %v3952
        %v3989 = vadd.f32 %v3879, %v3954
        %v3990 = vadd.f32 %v3880, %v3957
        %v3991 = vadd.f32 %v3881, %v3959
        %v3992 = vadd.f32 %v3882, %v3962
        %v3993 = vadd.f32 %v3883, %v3964
        %v3994 = vadd.f32 %v3884, %v3967
        %v3995 = vadd.f32 %v3885, %v3969
        %v3996 = vadd.f32 %v3886, %v3972
        %v3997 = vadd.f32 %v3887, %v3974
        %v3998 = vadd.f32 %v3888, %v3977
        %v3999 = vadd.f32 %v3889, %v3979
        %v4000 = vadd.f32 %v3890, %v3982
        %v4001 = vadd.f32 %v3891, %v3984
        %4002 = vst [vmem:[%s432] sm:$0xff] %v3986
        %4003 = vst [vmem:[%s432 + $0x8] sm:$0xff] %v3987
        %4004 = vst [vmem:[%s432 + $0x10] sm:$0xff] %v3988
        %4005 = vst [vmem:[%s432 + $0x18] sm:$0xff] %v3989
        %4006 = vst [vmem:[%s432 + $0x20] sm:$0xff] %v3990
        %4007 = vst [vmem:[%s432 + $0x28] sm:$0xff] %v3991
        %4008 = vst [vmem:[%s432 + $0x30] sm:$0xff] %v3992
        %4009 = vst [vmem:[%s432 + $0x38] sm:$0xff] %v3993
        %4010 = vst [vmem:[%s432 + $0x40] sm:$0xff] %v3994
        %4011 = vst [vmem:[%s432 + $0x48] sm:$0xff] %v3995
        %4012 = vst [vmem:[%s432 + $0x50] sm:$0xff] %v3996
        %4013 = vst [vmem:[%s432 + $0x58] sm:$0xff] %v3997
        %4014 = vst [vmem:[%s432 + $0x60] sm:$0xff] %v3998
        %4015 = vst [vmem:[%s432 + $0x68] sm:$0xff] %v3999
        %4016 = vst [vmem:[%s432 + $0x70] sm:$0xff] %v4000
        %4017 = vst [vmem:[%s432 + $0x78] sm:$0xff] %v4001
        %v4018 = vld [vmem:[#allocation6] sm:$0xff]
        %v4019 = vld [vmem:[#allocation6 + $0x8] sm:$0xff]
        %v4020 = vld [vmem:[#allocation6 + $0x10] sm:$0xff]
        %v4021 = vld [vmem:[#allocation6 + $0x18] sm:$0xff]
        %v4022 = vld [vmem:[#allocation6 + $0x20] sm:$0xff]
        %v4023 = vld [vmem:[#allocation6 + $0x28] sm:$0xff]
        %v4024 = vld [vmem:[#allocation6 + $0x30] sm:$0xff]
        %v4025 = vld [vmem:[#allocation6 + $0x38] sm:$0xff]
        %v4026 = vpack.c.bf16 %v4019, %v4018
        %v4027 = vpack.c.bf16 %v4021, %v4020
        %v4028 = vpack.c.bf16 %v4023, %v4022
        %v4029 = vpack.c.bf16 %v4025, %v4024
        %v4030 = vld [vmem:[%s7] sm:$0x1]
        %v4032 = vperm.slane %v4030, 0
        %4034 = vmatpush.bf16.msra.mxu0 0
        %4035 = vmatpush.bf16.msra.mxu0 0
        %4036 = vmatpush.bf16.msra.mxu0 0
        %4037 = vmatpush.bf16.msra.mxu0 0
        %4038 = vmatpush.bf16.msra.mxu0 %v4029
        %4039 = vmatpush.bf16.msra.mxu0 %v4028
        %4040 = vmatpush.bf16.msra.mxu0 %v4027
        %4041 = vmatpush.bf16.msra.mxu0 %v4026
        %4042 = vmatmul.bf16.gmra.mxu0 %v3914
        %v4043 = vpop.f32.mrf.mxu0
        %v4044 = vadd.f32 %v4032, %v4043
        %v4045 = vpop.f32.mrf.mxu0
        %v4046 = vadd.f32 %v4032, %v4045
        %4047 = vmatmul.bf16.gmra.mxu0 %v3917
        %v4048 = vpop.f32.mrf.mxu0
        %v4049 = vadd.f32 %v4032, %v4048
        %v4050 = vpop.f32.mrf.mxu0
        %v4051 = vadd.f32 %v4032, %v4050
        %4052 = vmatmul.bf16.gmra.mxu0 %v3920
        %v4053 = vpop.f32.mrf.mxu0
        %v4054 = vadd.f32 %v4032, %v4053
        %v4055 = vpop.f32.mrf.mxu0
        %v4056 = vadd.f32 %v4032, %v4055
        %4057 = vmatmul.bf16.gmra.mxu0 %v3923
        %v4058 = vpop.f32.mrf.mxu0
        %v4059 = vadd.f32 %v4032, %v4058
        %v4060 = vpop.f32.mrf.mxu0
        %v4061 = vadd.f32 %v4032, %v4060
        %4062 = vmatmul.bf16.gmra.mxu0 %v3926
        %v4063 = vpop.f32.mrf.mxu0
        %v4064 = vadd.f32 %v4032, %v4063
        %v4065 = vpop.f32.mrf.mxu0
        %v4066 = vadd.f32 %v4032, %v4065
        %4067 = vmatmul.bf16.gmra.mxu0 %v3929
        %v4068 = vpop.f32.mrf.mxu0
        %v4069 = vadd.f32 %v4032, %v4068
        %v4070 = vpop.f32.mrf.mxu0
        %v4071 = vadd.f32 %v4032, %v4070
        %4072 = vmatmul.bf16.gmra.mxu0 %v3932
        %v4073 = vpop.f32.mrf.mxu0
        %v4074 = vadd.f32 %v4032, %v4073
        %v4075 = vpop.f32.mrf.mxu0
        %v4076 = vadd.f32 %v4032, %v4075
        %4077 = vmatmul.bf16.gmra.mxu0 %v3935
        %v4078 = vpop.f32.mrf.mxu0
        %v4079 = vadd.f32 %v4032, %v4078
        %v4080 = vpop.f32.mrf.mxu0
        %v4081 = vadd.f32 %v4032, %v4080
        %4082 = vdwg.mxu0
        %v4083 = vtanh.pop %v4044
        %v4084 = vtanh.pop %v4046
        %v4085 = vtanh.pop %v4049
        %v4086 = vtanh.pop %v4051
        %v4087 = vtanh.pop %v4054
        %v4088 = vtanh.pop %v4056
        %v4089 = vtanh.pop %v4059
        %v4090 = vtanh.pop %v4061
        %v4091 = vtanh.pop %v4064
        %v4092 = vtanh.pop %v4066
        %v4093 = vtanh.pop %v4069
        %v4094 = vtanh.pop %v4071
        %v4095 = vtanh.pop %v4074
        %v4096 = vtanh.pop %v4076
        %v4097 = vtanh.pop %v4079
        %v4098 = vtanh.pop %v4081
        %v4099 = vld [vmem:[%s908] sm:$0xff]
        %v4100 = vld [vmem:[%s908 + $0x8] sm:$0xff]
        %v4101 = vld [vmem:[%s908 + $0x10] sm:$0xff]
        %v4102 = vld [vmem:[%s908 + $0x18] sm:$0xff]
        %v4103 = vld [vmem:[%s908 + $0x20] sm:$0xff]
        %v4104 = vld [vmem:[%s908 + $0x28] sm:$0xff]
        %v4105 = vld [vmem:[%s908 + $0x30] sm:$0xff]
        %v4106 = vld [vmem:[%s908 + $0x38] sm:$0xff]
        %v4107 = vpack.c.bf16 %v4100, %v4099
        %v4108 = vpack.c.bf16 %v4102, %v4101
        %v4109 = vpack.c.bf16 %v4104, %v4103
        %v4110 = vpack.c.bf16 %v4106, %v4105
        %v4111 = vld [vmem:[%s921] sm:$0x1]
        %v4113 = vperm.slane %v4111, 0
        %4115 = vmatpush.bf16.msra.mxu0 0
        %4116 = vmatpush.bf16.msra.mxu0 0
        %4117 = vmatpush.bf16.msra.mxu0 0
        %4118 = vmatpush.bf16.msra.mxu0 0
        %4119 = vmatpush.bf16.msra.mxu0 %v4110
        %4120 = vmatpush.bf16.msra.mxu0 %v4109
        %4121 = vmatpush.bf16.msra.mxu0 %v4108
        %4122 = vmatpush.bf16.msra.mxu0 %v4107
        %4123 = vmatmul.bf16.gmra.mxu0 %v3914
        %v4124 = vpop.f32.mrf.mxu0
        %v4125 = vadd.f32 %v4113, %v4124
        %v4126 = vpop.f32.mrf.mxu0
        %v4127 = vadd.f32 %v4113, %v4126
        %4128 = vmatmul.bf16.gmra.mxu0 %v3917
        %v4129 = vpop.f32.mrf.mxu0
        %v4130 = vadd.f32 %v4113, %v4129
        %v4131 = vpop.f32.mrf.mxu0
        %v4132 = vadd.f32 %v4113, %v4131
        %4133 = vmatmul.bf16.gmra.mxu0 %v3920
        %v4134 = vpop.f32.mrf.mxu0
        %v4135 = vadd.f32 %v4113, %v4134
        %v4136 = vpop.f32.mrf.mxu0
        %v4137 = vadd.f32 %v4113, %v4136
        %4138 = vmatmul.bf16.gmra.mxu0 %v3923
        %v4139 = vpop.f32.mrf.mxu0
        %v4140 = vadd.f32 %v4113, %v4139
        %v4141 = vpop.f32.mrf.mxu0
        %v4142 = vadd.f32 %v4113, %v4141
        %4143 = vmatmul.bf16.gmra.mxu0 %v3926
        %v4144 = vpop.f32.mrf.mxu0
        %v4145 = vadd.f32 %v4113, %v4144
        %v4146 = vpop.f32.mrf.mxu0
        %v4147 = vadd.f32 %v4113, %v4146
        %4148 = vmatmul.bf16.gmra.mxu0 %v3929
        %v4149 = vpop.f32.mrf.mxu0
        %v4150 = vadd.f32 %v4113, %v4149
        %v4151 = vpop.f32.mrf.mxu0
        %v4152 = vadd.f32 %v4113, %v4151
        %4153 = vmatmul.bf16.gmra.mxu0 %v3932
        %v4154 = vpop.f32.mrf.mxu0
        %v4155 = vadd.f32 %v4113, %v4154
        %v4156 = vpop.f32.mrf.mxu0
        %v4157 = vadd.f32 %v4113, %v4156
        %4158 = vmatmul.bf16.gmra.mxu0 %v3935
        %v4159 = vpop.f32.mrf.mxu0
        %v4160 = vadd.f32 %v4113, %v4159
        %v4161 = vpop.f32.mrf.mxu0
        %v4162 = vadd.f32 %v4113, %v4161
        %4163 = vdwg.mxu0
        %v4164 = vtanh.pop %v4125
        %v4165 = vtanh.pop %v4127
        %v4166 = vtanh.pop %v4130
        %v4167 = vtanh.pop %v4132
        %v4168 = vtanh.pop %v4135
        %v4169 = vtanh.pop %v4137
        %v4170 = vtanh.pop %v4140
        %v4171 = vtanh.pop %v4142
        %v4172 = vtanh.pop %v4145
        %v4173 = vtanh.pop %v4147
        %v4174 = vtanh.pop %v4150
        %v4175 = vtanh.pop %v4152
        %v4176 = vtanh.pop %v4155
        %v4177 = vtanh.pop %v4157
        %v4178 = vtanh.pop %v4160
        %v4179 = vtanh.pop %v4162
        %v4180 = vmul.f32 %v4164, %v995
        %v4181 = vmul.f32 %v4165, %v995
        %v4182 = vmul.f32 %v4166, %v995
        %v4183 = vmul.f32 %v4167, %v995
        %v4184 = vmul.f32 %v4168, %v995
        %v4185 = vmul.f32 %v4169, %v995
        %v4186 = vmul.f32 %v4170, %v995
        %v4187 = vmul.f32 %v4171, %v995
        %v4188 = vmul.f32 %v4172, %v995
        %v4189 = vmul.f32 %v4173, %v995
        %v4190 = vmul.f32 %v4174, %v995
        %v4191 = vmul.f32 %v4175, %v995
        %v4192 = vmul.f32 %v4176, %v995
        %v4193 = vmul.f32 %v4177, %v995
        %v4194 = vmul.f32 %v4178, %v995
        %v4195 = vmul.f32 %v4179, %v995
        %v4196 = vld [vmem:[%s443] sm:$0xff]
        %v4197 = vld [vmem:[%s443 + $0x8] sm:$0xff]
        %v4198 = vld [vmem:[%s443 + $0x10] sm:$0xff]
        %v4199 = vld [vmem:[%s443 + $0x18] sm:$0xff]
        %v4200 = vld [vmem:[%s443 + $0x20] sm:$0xff]
        %v4201 = vld [vmem:[%s443 + $0x28] sm:$0xff]
        %v4202 = vld [vmem:[%s443 + $0x30] sm:$0xff]
        %v4203 = vld [vmem:[%s443 + $0x38] sm:$0xff]
        %v4204 = vld [vmem:[%s443 + $0x40] sm:$0xff]
        %v4205 = vld [vmem:[%s443 + $0x48] sm:$0xff]
        %v4206 = vld [vmem:[%s443 + $0x50] sm:$0xff]
        %v4207 = vld [vmem:[%s443 + $0x58] sm:$0xff]
        %v4208 = vld [vmem:[%s443 + $0x60] sm:$0xff]
        %v4209 = vld [vmem:[%s443 + $0x68] sm:$0xff]
        %v4210 = vld [vmem:[%s443 + $0x70] sm:$0xff]
        %v4211 = vld [vmem:[%s443 + $0x78] sm:$0xff]
        %4213 = vset.pattern.permute.xlu0 12
        %4214 = vperm.xlu0 %4213, %v4196
        %v4215 = vpop.permute.xlu0 %4214
        %4218 = vset.pattern.permute.xlu0 12
        %4219 = vperm.xlu0 %4218, %v4197
        %v4220 = vpop.permute.xlu0 %4219
        %4223 = vset.pattern.permute.xlu0 12
        %4224 = vperm.xlu0 %4223, %v4198
        %v4225 = vpop.permute.xlu0 %4224
        %4228 = vset.pattern.permute.xlu0 12
        %4229 = vperm.xlu0 %4228, %v4199
        %v4230 = vpop.permute.xlu0 %4229
        %4233 = vset.pattern.permute.xlu0 12
        %4234 = vperm.xlu0 %4233, %v4200
        %v4235 = vpop.permute.xlu0 %4234
        %4238 = vset.pattern.permute.xlu0 12
        %4239 = vperm.xlu0 %4238, %v4201
        %v4240 = vpop.permute.xlu0 %4239
        %4243 = vset.pattern.permute.xlu0 12
        %4244 = vperm.xlu0 %4243, %v4202
        %v4245 = vpop.permute.xlu0 %4244
        %4248 = vset.pattern.permute.xlu0 12
        %4249 = vperm.xlu0 %4248, %v4203
        %v4250 = vpop.permute.xlu0 %4249
        %4253 = vset.pattern.permute.xlu0 12
        %4254 = vperm.xlu0 %4253, %v4204
        %v4255 = vpop.permute.xlu0 %4254
        %4258 = vset.pattern.permute.xlu0 12
        %4259 = vperm.xlu0 %4258, %v4205
        %v4260 = vpop.permute.xlu0 %4259
        %4263 = vset.pattern.permute.xlu0 12
        %4264 = vperm.xlu0 %4263, %v4206
        %v4265 = vpop.permute.xlu0 %4264
        %4268 = vset.pattern.permute.xlu0 12
        %4269 = vperm.xlu0 %4268, %v4207
        %v4270 = vpop.permute.xlu0 %4269
        %4273 = vset.pattern.permute.xlu0 12
        %4274 = vperm.xlu0 %4273, %v4208
        %v4275 = vpop.permute.xlu0 %4274
        %4278 = vset.pattern.permute.xlu0 12
        %4279 = vperm.xlu0 %4278, %v4209
        %v4280 = vpop.permute.xlu0 %4279
        %4283 = vset.pattern.permute.xlu0 12
        %4284 = vperm.xlu0 %4283, %v4210
        %v4285 = vpop.permute.xlu0 %4284
        %4288 = vset.pattern.permute.xlu0 12
        %4289 = vperm.xlu0 %4288, %v4211
        %v4290 = vpop.permute.xlu0 %4289
        %v4292 = vmul.f32 %v4180, %v4215
        %v4293 = vmul.f32 %v4181, %v4220
        %v4294 = vmul.f32 %v4182, %v4225
        %v4295 = vmul.f32 %v4183, %v4230
        %v4296 = vmul.f32 %v4184, %v4235
        %v4297 = vmul.f32 %v4185, %v4240
        %v4298 = vmul.f32 %v4186, %v4245
        %v4299 = vmul.f32 %v4187, %v4250
        %v4300 = vmul.f32 %v4188, %v4255
        %v4301 = vmul.f32 %v4189, %v4260
        %v4302 = vmul.f32 %v4190, %v4265
        %v4303 = vmul.f32 %v4191, %v4270
        %v4304 = vmul.f32 %v4192, %v4275
        %v4305 = vmul.f32 %v4193, %v4280
        %v4306 = vmul.f32 %v4194, %v4285
        %v4307 = vmul.f32 %v4195, %v4290
        %v4308 = vadd.f32 %v4292, 0.0
        %v4309 = vadd.f32 %v4293, 0.0
        %v4310 = vadd.f32 %v4294, 0.0
        %v4311 = vadd.f32 %v4295, 0.0
        %v4312 = vadd.f32 %v4296, 0.0
        %v4313 = vadd.f32 %v4297, 0.0
        %v4314 = vadd.f32 %v4298, 0.0
        %v4315 = vadd.f32 %v4299, 0.0
        %v4316 = vadd.f32 %v4300, 0.0
        %v4317 = vadd.f32 %v4301, 0.0
        %v4318 = vadd.f32 %v4302, 0.0
        %v4319 = vadd.f32 %v4303, 0.0
        %v4320 = vadd.f32 %v4304, 0.0
        %v4321 = vadd.f32 %v4305, 0.0
        %v4322 = vadd.f32 %v4306, 0.0
        %v4323 = vadd.f32 %v4307, 0.0
        %v4324 = vld [vmem:[%s1141] sm:$0xff]
        %v4325 = vld [vmem:[%s1141 + $0x8] sm:$0xff]
        %v4326 = vld [vmem:[%s1141 + $0x10] sm:$0xff]
        %v4327 = vld [vmem:[%s1141 + $0x18] sm:$0xff]
        %v4328 = vld [vmem:[%s1141 + $0x20] sm:$0xff]
        %v4329 = vld [vmem:[%s1141 + $0x28] sm:$0xff]
        %v4330 = vld [vmem:[%s1141 + $0x30] sm:$0xff]
        %v4331 = vld [vmem:[%s1141 + $0x38] sm:$0xff]
        %v4332 = vpack.c.bf16 %v4325, %v4324
        %v4333 = vpack.c.bf16 %v4327, %v4326
        %v4334 = vpack.c.bf16 %v4329, %v4328
        %v4335 = vpack.c.bf16 %v4331, %v4330
        %v4336 = vld [vmem:[%s1154] sm:$0x1]
        %v4338 = vperm.slane %v4336, 0
        %4340 = vmatpush.bf16.msra.mxu0 0
        %4341 = vmatpush.bf16.msra.mxu0 0
        %4342 = vmatpush.bf16.msra.mxu0 0
        %4343 = vmatpush.bf16.msra.mxu0 0
        %4344 = vmatpush.bf16.msra.mxu0 %v4335
        %4345 = vmatpush.bf16.msra.mxu0 %v4334
        %4346 = vmatpush.bf16.msra.mxu0 %v4333
        %4347 = vmatpush.bf16.msra.mxu0 %v4332
        %4348 = vmatmul.bf16.gmra.mxu0 %v3914
        %v4349 = vpop.f32.mrf.mxu0
        %v4350 = vadd.f32 %v4338, %v4349
        %v4351 = vpop.f32.mrf.mxu0
        %v4352 = vadd.f32 %v4338, %v4351
        %4353 = vmatmul.bf16.gmra.mxu0 %v3917
        %v4354 = vpop.f32.mrf.mxu0
        %v4355 = vadd.f32 %v4338, %v4354
        %v4356 = vpop.f32.mrf.mxu0
        %v4357 = vadd.f32 %v4338, %v4356
        %4358 = vmatmul.bf16.gmra.mxu0 %v3920
        %v4359 = vpop.f32.mrf.mxu0
        %v4360 = vadd.f32 %v4338, %v4359
        %v4361 = vpop.f32.mrf.mxu0
        %v4362 = vadd.f32 %v4338, %v4361
        %4363 = vmatmul.bf16.gmra.mxu0 %v3923
        %v4364 = vpop.f32.mrf.mxu0
        %v4365 = vadd.f32 %v4338, %v4364
        %v4366 = vpop.f32.mrf.mxu0
        %v4367 = vadd.f32 %v4338, %v4366
        %4368 = vmatmul.bf16.gmra.mxu0 %v3926
        %v4369 = vpop.f32.mrf.mxu0
        %v4370 = vadd.f32 %v4338, %v4369
        %v4371 = vpop.f32.mrf.mxu0
        %v4372 = vadd.f32 %v4338, %v4371
        %4373 = vmatmul.bf16.gmra.mxu0 %v3929
        %v4374 = vpop.f32.mrf.mxu0
        %v4375 = vadd.f32 %v4338, %v4374
        %v4376 = vpop.f32.mrf.mxu0
        %v4377 = vadd.f32 %v4338, %v4376
        %4378 = vmatmul.bf16.gmra.mxu0 %v3932
        %v4379 = vpop.f32.mrf.mxu0
        %v4380 = vadd.f32 %v4338, %v4379
        %v4381 = vpop.f32.mrf.mxu0
        %v4382 = vadd.f32 %v4338, %v4381
        %4383 = vmatmul.bf16.gmra.mxu0 %v3935
        %v4384 = vpop.f32.mrf.mxu0
        %v4385 = vadd.f32 %v4338, %v4384
        %v4386 = vpop.f32.mrf.mxu0
        %v4387 = vadd.f32 %v4338, %v4386
        %4388 = vdwg.mxu0
        %v4389 = vtanh.pop %v4350
        %v4390 = vtanh.pop %v4352
        %v4391 = vtanh.pop %v4355
        %v4392 = vtanh.pop %v4357
        %v4393 = vtanh.pop %v4360
        %v4394 = vtanh.pop %v4362
        %v4395 = vtanh.pop %v4365
        %v4396 = vtanh.pop %v4367
        %v4397 = vtanh.pop %v4370
        %v4398 = vtanh.pop %v4372
        %v4399 = vtanh.pop %v4375
        %v4400 = vtanh.pop %v4377
        %v4401 = vtanh.pop %v4380
        %v4402 = vtanh.pop %v4382
        %v4403 = vtanh.pop %v4385
        %v4404 = vtanh.pop %v4387
        %v4405 = vmul.f32 %v4389, %v995
        %v4406 = vmul.f32 %v4390, %v995
        %v4407 = vmul.f32 %v4391, %v995
        %v4408 = vmul.f32 %v4392, %v995
        %v4409 = vmul.f32 %v4393, %v995
        %v4410 = vmul.f32 %v4394, %v995
        %v4411 = vmul.f32 %v4395, %v995
        %v4412 = vmul.f32 %v4396, %v995
        %v4413 = vmul.f32 %v4397, %v995
        %v4414 = vmul.f32 %v4398, %v995
        %v4415 = vmul.f32 %v4399, %v995
        %v4416 = vmul.f32 %v4400, %v995
        %v4417 = vmul.f32 %v4401, %v995
        %v4418 = vmul.f32 %v4402, %v995
        %v4419 = vmul.f32 %v4403, %v995
        %v4420 = vmul.f32 %v4404, %v995
        %4421 = vset.pattern.permute.xlu0 13
        %4422 = vperm.xlu0 %4421, %v4196
        %v4423 = vpop.permute.xlu0 %4422
        %4425 = vset.pattern.permute.xlu0 13
        %4426 = vperm.xlu0 %4425, %v4197
        %v4427 = vpop.permute.xlu0 %4426
        %4429 = vset.pattern.permute.xlu0 13
        %4430 = vperm.xlu0 %4429, %v4198
        %v4431 = vpop.permute.xlu0 %4430
        %4433 = vset.pattern.permute.xlu0 13
        %4434 = vperm.xlu0 %4433, %v4199
        %v4435 = vpop.permute.xlu0 %4434
        %4437 = vset.pattern.permute.xlu0 13
        %4438 = vperm.xlu0 %4437, %v4200
        %v4439 = vpop.permute.xlu0 %4438
        %4441 = vset.pattern.permute.xlu0 13
        %4442 = vperm.xlu0 %4441, %v4201
        %v4443 = vpop.permute.xlu0 %4442
        %4445 = vset.pattern.permute.xlu0 13
        %4446 = vperm.xlu0 %4445, %v4202
        %v4447 = vpop.permute.xlu0 %4446
        %4449 = vset.pattern.permute.xlu0 13
        %4450 = vperm.xlu0 %4449, %v4203
        %v4451 = vpop.permute.xlu0 %4450
        %4453 = vset.pattern.permute.xlu0 13
        %4454 = vperm.xlu0 %4453, %v4204
        %v4455 = vpop.permute.xlu0 %4454
        %4457 = vset.pattern.permute.xlu0 13
        %4458 = vperm.xlu0 %4457, %v4205
        %v4459 = vpop.permute.xlu0 %4458
        %4461 = vset.pattern.permute.xlu0 13
        %4462 = vperm.xlu0 %4461, %v4206
        %v4463 = vpop.permute.xlu0 %4462
        %4465 = vset.pattern.permute.xlu0 13
        %4466 = vperm.xlu0 %4465, %v4207
        %v4467 = vpop.permute.xlu0 %4466
        %4469 = vset.pattern.permute.xlu0 13
        %4470 = vperm.xlu0 %4469, %v4208
        %v4471 = vpop.permute.xlu0 %4470
        %4473 = vset.pattern.permute.xlu0 13
        %4474 = vperm.xlu0 %4473, %v4209
        %v4475 = vpop.permute.xlu0 %4474
        %4477 = vset.pattern.permute.xlu0 13
        %4478 = vperm.xlu0 %4477, %v4210
        %v4479 = vpop.permute.xlu0 %4478
        %4481 = vset.pattern.permute.xlu0 13
        %4482 = vperm.xlu0 %4481, %v4211
        %v4483 = vpop.permute.xlu0 %4482
        %v4485 = vmul.f32 %v4405, %v4423
        %v4486 = vmul.f32 %v4406, %v4427
        %v4487 = vmul.f32 %v4407, %v4431
        %v4488 = vmul.f32 %v4408, %v4435
        %v4489 = vmul.f32 %v4409, %v4439
        %v4490 = vmul.f32 %v4410, %v4443
        %v4491 = vmul.f32 %v4411, %v4447
        %v4492 = vmul.f32 %v4412, %v4451
        %v4493 = vmul.f32 %v4413, %v4455
        %v4494 = vmul.f32 %v4414, %v4459
        %v4495 = vmul.f32 %v4415, %v4463
        %v4496 = vmul.f32 %v4416, %v4467
        %v4497 = vmul.f32 %v4417, %v4471
        %v4498 = vmul.f32 %v4418, %v4475
        %v4499 = vmul.f32 %v4419, %v4479
        %v4500 = vmul.f32 %v4420, %v4483
        %v4501 = vadd.f32 %v4308, %v4485
        %v4502 = vadd.f32 %v4309, %v4486
        %v4503 = vadd.f32 %v4310, %v4487
        %v4504 = vadd.f32 %v4311, %v4488
        %v4505 = vadd.f32 %v4312, %v4489
        %v4506 = vadd.f32 %v4313, %v4490
        %v4507 = vadd.f32 %v4314, %v4491
        %v4508 = vadd.f32 %v4315, %v4492
        %v4509 = vadd.f32 %v4316, %v4493
        %v4510 = vadd.f32 %v4317, %v4494
        %v4511 = vadd.f32 %v4318, %v4495
        %v4512 = vadd.f32 %v4319, %v4496
        %v4513 = vadd.f32 %v4320, %v4497
        %v4514 = vadd.f32 %v4321, %v4498
        %v4515 = vadd.f32 %v4322, %v4499
        %v4516 = vadd.f32 %v4323, %v4500
        %v4517 = vld [vmem:[%s1336] sm:$0xff]
        %v4518 = vld [vmem:[%s1336 + $0x8] sm:$0xff]
        %v4519 = vld [vmem:[%s1336 + $0x10] sm:$0xff]
        %v4520 = vld [vmem:[%s1336 + $0x18] sm:$0xff]
        %v4521 = vld [vmem:[%s1336 + $0x20] sm:$0xff]
        %v4522 = vld [vmem:[%s1336 + $0x28] sm:$0xff]
        %v4523 = vld [vmem:[%s1336 + $0x30] sm:$0xff]
        %v4524 = vld [vmem:[%s1336 + $0x38] sm:$0xff]
        %v4525 = vpack.c.bf16 %v4518, %v4517
        %v4526 = vpack.c.bf16 %v4520, %v4519
        %v4527 = vpack.c.bf16 %v4522, %v4521
        %v4528 = vpack.c.bf16 %v4524, %v4523
        %v4529 = vld [vmem:[%s1349] sm:$0x1]
        %v4531 = vperm.slane %v4529, 0
        %4533 = vmatpush.bf16.msra.mxu0 0
        %4534 = vmatpush.bf16.msra.mxu0 0
        %4535 = vmatpush.bf16.msra.mxu0 0
        %4536 = vmatpush.bf16.msra.mxu0 0
        %4537 = vmatpush.bf16.msra.mxu0 %v4528
        %4538 = vmatpush.bf16.msra.mxu0 %v4527
        %4539 = vmatpush.bf16.msra.mxu0 %v4526
        %4540 = vmatpush.bf16.msra.mxu0 %v4525
        %4541 = vmatmul.bf16.gmra.mxu0 %v3914
        %v4542 = vpop.f32.mrf.mxu0
        %v4543 = vadd.f32 %v4531, %v4542
        %v4544 = vpop.f32.mrf.mxu0
        %v4545 = vadd.f32 %v4531, %v4544
        %4546 = vmatmul.bf16.gmra.mxu0 %v3917
        %v4547 = vpop.f32.mrf.mxu0
        %v4548 = vadd.f32 %v4531, %v4547
        %v4549 = vpop.f32.mrf.mxu0
        %v4550 = vadd.f32 %v4531, %v4549
        %4551 = vmatmul.bf16.gmra.mxu0 %v3920
        %v4552 = vpop.f32.mrf.mxu0
        %v4553 = vadd.f32 %v4531, %v4552
        %v4554 = vpop.f32.mrf.mxu0
        %v4555 = vadd.f32 %v4531, %v4554
        %4556 = vmatmul.bf16.gmra.mxu0 %v3923
        %v4557 = vpop.f32.mrf.mxu0
        %v4558 = vadd.f32 %v4531, %v4557
        %v4559 = vpop.f32.mrf.mxu0
        %v4560 = vadd.f32 %v4531, %v4559
        %4561 = vmatmul.bf16.gmra.mxu0 %v3926
        %v4562 = vpop.f32.mrf.mxu0
        %v4563 = vadd.f32 %v4531, %v4562
        %v4564 = vpop.f32.mrf.mxu0
        %v4565 = vadd.f32 %v4531, %v4564
        %4566 = vmatmul.bf16.gmra.mxu0 %v3929
        %v4567 = vpop.f32.mrf.mxu0
        %v4568 = vadd.f32 %v4531, %v4567
        %v4569 = vpop.f32.mrf.mxu0
        %v4570 = vadd.f32 %v4531, %v4569
        %4571 = vmatmul.bf16.gmra.mxu0 %v3932
        %v4572 = vpop.f32.mrf.mxu0
        %v4573 = vadd.f32 %v4531, %v4572
        %v4574 = vpop.f32.mrf.mxu0
        %v4575 = vadd.f32 %v4531, %v4574
        %4576 = vmatmul.bf16.gmra.mxu0 %v3935
        %v4577 = vpop.f32.mrf.mxu0
        %v4578 = vadd.f32 %v4531, %v4577
        %v4579 = vpop.f32.mrf.mxu0
        %v4580 = vadd.f32 %v4531, %v4579
        %4581 = vdwg.mxu0
        %v4582 = vtanh.pop %v4543
        %v4583 = vtanh.pop %v4545
        %v4584 = vtanh.pop %v4548
        %v4585 = vtanh.pop %v4550
        %v4586 = vtanh.pop %v4553
        %v4587 = vtanh.pop %v4555
        %v4588 = vtanh.pop %v4558
        %v4589 = vtanh.pop %v4560
        %v4590 = vtanh.pop %v4563
        %v4591 = vtanh.pop %v4565
        %v4592 = vtanh.pop %v4568
        %v4593 = vtanh.pop %v4570
        %v4594 = vtanh.pop %v4573
        %v4595 = vtanh.pop %v4575
        %v4596 = vtanh.pop %v4578
        %v4597 = vtanh.pop %v4580
        %v4598 = vmul.f32 %v4582, %v995
        %v4599 = vmul.f32 %v4583, %v995
        %v4600 = vmul.f32 %v4584, %v995
        %v4601 = vmul.f32 %v4585, %v995
        %v4602 = vmul.f32 %v4586, %v995
        %v4603 = vmul.f32 %v4587, %v995
        %v4604 = vmul.f32 %v4588, %v995
        %v4605 = vmul.f32 %v4589, %v995
        %v4606 = vmul.f32 %v4590, %v995
        %v4607 = vmul.f32 %v4591, %v995
        %v4608 = vmul.f32 %v4592, %v995
        %v4609 = vmul.f32 %v4593, %v995
        %v4610 = vmul.f32 %v4594, %v995
        %v4611 = vmul.f32 %v4595, %v995
        %v4612 = vmul.f32 %v4596, %v995
        %v4613 = vmul.f32 %v4597, %v995
        %4614 = vset.pattern.permute.xlu0 14
        %4615 = vperm.xlu0 %4614, %v4196
        %v4616 = vpop.permute.xlu0 %4615
        %4618 = vset.pattern.permute.xlu0 14
        %4619 = vperm.xlu0 %4618, %v4197
        %v4620 = vpop.permute.xlu0 %4619
        %4622 = vset.pattern.permute.xlu0 14
        %4623 = vperm.xlu0 %4622, %v4198
        %v4624 = vpop.permute.xlu0 %4623
        %4626 = vset.pattern.permute.xlu0 14
        %4627 = vperm.xlu0 %4626, %v4199
        %v4628 = vpop.permute.xlu0 %4627
        %4630 = vset.pattern.permute.xlu0 14
        %4631 = vperm.xlu0 %4630, %v4200
        %v4632 = vpop.permute.xlu0 %4631
        %4634 = vset.pattern.permute.xlu0 14
        %4635 = vperm.xlu0 %4634, %v4201
        %v4636 = vpop.permute.xlu0 %4635
        %4638 = vset.pattern.permute.xlu0 14
        %4639 = vperm.xlu0 %4638, %v4202
        %v4640 = vpop.permute.xlu0 %4639
        %4642 = vset.pattern.permute.xlu0 14
        %4643 = vperm.xlu0 %4642, %v4203
        %v4644 = vpop.permute.xlu0 %4643
        %4646 = vset.pattern.permute.xlu0 14
        %4647 = vperm.xlu0 %4646, %v4204
        %v4648 = vpop.permute.xlu0 %4647
        %4650 = vset.pattern.permute.xlu0 14
        %4651 = vperm.xlu0 %4650, %v4205
        %v4652 = vpop.permute.xlu0 %4651
        %4654 = vset.pattern.permute.xlu0 14
        %4655 = vperm.xlu0 %4654, %v4206
        %v4656 = vpop.permute.xlu0 %4655
        %4658 = vset.pattern.permute.xlu0 14
        %4659 = vperm.xlu0 %4658, %v4207
        %v4660 = vpop.permute.xlu0 %4659
        %4662 = vset.pattern.permute.xlu0 14
        %4663 = vperm.xlu0 %4662, %v4208
        %v4664 = vpop.permute.xlu0 %4663
        %4666 = vset.pattern.permute.xlu0 14
        %4667 = vperm.xlu0 %4666, %v4209
        %v4668 = vpop.permute.xlu0 %4667
        %4670 = vset.pattern.permute.xlu0 14
        %4671 = vperm.xlu0 %4670, %v4210
        %v4672 = vpop.permute.xlu0 %4671
        %4674 = vset.pattern.permute.xlu0 14
        %4675 = vperm.xlu0 %4674, %v4211
        %v4676 = vpop.permute.xlu0 %4675
        %v4678 = vmul.f32 %v4598, %v4616
        %v4679 = vmul.f32 %v4599, %v4620
        %v4680 = vmul.f32 %v4600, %v4624
        %v4681 = vmul.f32 %v4601, %v4628
        %v4682 = vmul.f32 %v4602, %v4632
        %v4683 = vmul.f32 %v4603, %v4636
        %v4684 = vmul.f32 %v4604, %v4640
        %v4685 = vmul.f32 %v4605, %v4644
        %v4686 = vmul.f32 %v4606, %v4648
        %v4687 = vmul.f32 %v4607, %v4652
        %v4688 = vmul.f32 %v4608, %v4656
        %v4689 = vmul.f32 %v4609, %v4660
        %v4690 = vmul.f32 %v4610, %v4664
        %v4691 = vmul.f32 %v4611, %v4668
        %v4692 = vmul.f32 %v4612, %v4672
        %v4693 = vmul.f32 %v4613, %v4676
        %v4694 = vadd.f32 %v4501, %v4678
        %v4695 = vadd.f32 %v4502, %v4679
        %v4696 = vadd.f32 %v4503, %v4680
        %v4697 = vadd.f32 %v4504, %v4681
        %v4698 = vadd.f32 %v4505, %v4682
        %v4699 = vadd.f32 %v4506, %v4683
        %v4700 = vadd.f32 %v4507, %v4684
        %v4701 = vadd.f32 %v4508, %v4685
        %v4702 = vadd.f32 %v4509, %v4686
        %v4703 = vadd.f32 %v4510, %v4687
        %v4704 = vadd.f32 %v4511, %v4688
        %v4705 = vadd.f32 %v4512, %v4689
        %v4706 = vadd.f32 %v4513, %v4690
        %v4707 = vadd.f32 %v4514, %v4691
        %v4708 = vadd.f32 %v4515, %v4692
        %v4709 = vadd.f32 %v4516, %v4693
        %v4710 = vld [vmem:[%s1531] sm:$0xff]
        %v4711 = vld [vmem:[%s1531 + $0x8] sm:$0xff]
        %v4712 = vld [vmem:[%s1531 + $0x10] sm:$0xff]
        %v4713 = vld [vmem:[%s1531 + $0x18] sm:$0xff]
        %v4714 = vld [vmem:[%s1531 + $0x20] sm:$0xff]
        %v4715 = vld [vmem:[%s1531 + $0x28] sm:$0xff]
        %v4716 = vld [vmem:[%s1531 + $0x30] sm:$0xff]
        %v4717 = vld [vmem:[%s1531 + $0x38] sm:$0xff]
        %v4718 = vpack.c.bf16 %v4711, %v4710
        %v4719 = vpack.c.bf16 %v4713, %v4712
        %v4720 = vpack.c.bf16 %v4715, %v4714
        %v4721 = vpack.c.bf16 %v4717, %v4716
        %v4722 = vld [vmem:[%s1544] sm:$0x1]
        %v4724 = vperm.slane %v4722, 0
        %4726 = vmatpush.bf16.msra.mxu0 0
        %4727 = vmatpush.bf16.msra.mxu0 0
        %4728 = vmatpush.bf16.msra.mxu0 0
        %4729 = vmatpush.bf16.msra.mxu0 0
        %4730 = vmatpush.bf16.msra.mxu0 %v4721
        %4731 = vmatpush.bf16.msra.mxu0 %v4720
        %4732 = vmatpush.bf16.msra.mxu0 %v4719
        %4733 = vmatpush.bf16.msra.mxu0 %v4718
        %4734 = vmatmul.bf16.gmra.mxu0 %v3914
        %v4735 = vpop.f32.mrf.mxu0
        %v4736 = vadd.f32 %v4724, %v4735
        %v4737 = vpop.f32.mrf.mxu0
        %v4738 = vadd.f32 %v4724, %v4737
        %4739 = vmatmul.bf16.gmra.mxu0 %v3917
        %v4740 = vpop.f32.mrf.mxu0
        %v4741 = vadd.f32 %v4724, %v4740
        %v4742 = vpop.f32.mrf.mxu0
        %v4743 = vadd.f32 %v4724, %v4742
        %4744 = vmatmul.bf16.gmra.mxu0 %v3920
        %v4745 = vpop.f32.mrf.mxu0
        %v4746 = vadd.f32 %v4724, %v4745
        %v4747 = vpop.f32.mrf.mxu0
        %v4748 = vadd.f32 %v4724, %v4747
        %4749 = vmatmul.bf16.gmra.mxu0 %v3923
        %v4750 = vpop.f32.mrf.mxu0
        %v4751 = vadd.f32 %v4724, %v4750
        %v4752 = vpop.f32.mrf.mxu0
        %v4753 = vadd.f32 %v4724, %v4752
        %4754 = vmatmul.bf16.gmra.mxu0 %v3926
        %v4755 = vpop.f32.mrf.mxu0
        %v4756 = vadd.f32 %v4724, %v4755
        %v4757 = vpop.f32.mrf.mxu0
        %v4758 = vadd.f32 %v4724, %v4757
        %4759 = vmatmul.bf16.gmra.mxu0 %v3929
        %v4760 = vpop.f32.mrf.mxu0
        %v4761 = vadd.f32 %v4724, %v4760
        %v4762 = vpop.f32.mrf.mxu0
        %v4763 = vadd.f32 %v4724, %v4762
        %4764 = vmatmul.bf16.gmra.mxu0 %v3932
        %v4765 = vpop.f32.mrf.mxu0
        %v4766 = vadd.f32 %v4724, %v4765
        %v4767 = vpop.f32.mrf.mxu0
        %v4768 = vadd.f32 %v4724, %v4767
        %4769 = vmatmul.bf16.gmra.mxu0 %v3935
        %v4770 = vpop.f32.mrf.mxu0
        %v4771 = vadd.f32 %v4724, %v4770
        %v4772 = vpop.f32.mrf.mxu0
        %v4773 = vadd.f32 %v4724, %v4772
        %4774 = vdwg.mxu0
        %v4775 = vtanh.pop %v4736
        %v4776 = vtanh.pop %v4738
        %v4777 = vtanh.pop %v4741
        %v4778 = vtanh.pop %v4743
        %v4779 = vtanh.pop %v4746
        %v4780 = vtanh.pop %v4748
        %v4781 = vtanh.pop %v4751
        %v4782 = vtanh.pop %v4753
        %v4783 = vtanh.pop %v4756
        %v4784 = vtanh.pop %v4758
        %v4785 = vtanh.pop %v4761
        %v4786 = vtanh.pop %v4763
        %v4787 = vtanh.pop %v4766
        %v4788 = vtanh.pop %v4768
        %v4789 = vtanh.pop %v4771
        %v4790 = vtanh.pop %v4773
        %v4791 = vmul.f32 %v4775, %v995
        %v4792 = vmul.f32 %v4776, %v995
        %v4793 = vmul.f32 %v4777, %v995
        %v4794 = vmul.f32 %v4778, %v995
        %v4795 = vmul.f32 %v4779, %v995
        %v4796 = vmul.f32 %v4780, %v995
        %v4797 = vmul.f32 %v4781, %v995
        %v4798 = vmul.f32 %v4782, %v995
        %v4799 = vmul.f32 %v4783, %v995
        %v4800 = vmul.f32 %v4784, %v995
        %v4801 = vmul.f32 %v4785, %v995
        %v4802 = vmul.f32 %v4786, %v995
        %v4803 = vmul.f32 %v4787, %v995
        %v4804 = vmul.f32 %v4788, %v995
        %v4805 = vmul.f32 %v4789, %v995
        %v4806 = vmul.f32 %v4790, %v995
        %4807 = vset.pattern.permute.xlu0 15
        %4808 = vperm.xlu0 %4807, %v4196
        %v4809 = vpop.permute.xlu0 %4808
        %4811 = vset.pattern.permute.xlu0 15
        %4812 = vperm.xlu0 %4811, %v4197
        %v4813 = vpop.permute.xlu0 %4812
        %4815 = vset.pattern.permute.xlu0 15
        %4816 = vperm.xlu0 %4815, %v4198
        %v4817 = vpop.permute.xlu0 %4816
        %4819 = vset.pattern.permute.xlu0 15
        %4820 = vperm.xlu0 %4819, %v4199
        %v4821 = vpop.permute.xlu0 %4820
        %4823 = vset.pattern.permute.xlu0 15
        %4824 = vperm.xlu0 %4823, %v4200
        %v4825 = vpop.permute.xlu0 %4824
        %4827 = vset.pattern.permute.xlu0 15
        %4828 = vperm.xlu0 %4827, %v4201
        %v4829 = vpop.permute.xlu0 %4828
        %4831 = vset.pattern.permute.xlu0 15
        %4832 = vperm.xlu0 %4831, %v4202
        %v4833 = vpop.permute.xlu0 %4832
        %4835 = vset.pattern.permute.xlu0 15
        %4836 = vperm.xlu0 %4835, %v4203
        %v4837 = vpop.permute.xlu0 %4836
        %4839 = vset.pattern.permute.xlu0 15
        %4840 = vperm.xlu0 %4839, %v4204
        %v4841 = vpop.permute.xlu0 %4840
        %4843 = vset.pattern.permute.xlu0 15
        %4844 = vperm.xlu0 %4843, %v4205
        %v4845 = vpop.permute.xlu0 %4844
        %4847 = vset.pattern.permute.xlu0 15
        %4848 = vperm.xlu0 %4847, %v4206
        %v4849 = vpop.permute.xlu0 %4848
        %4851 = vset.pattern.permute.xlu0 15
        %4852 = vperm.xlu0 %4851, %v4207
        %v4853 = vpop.permute.xlu0 %4852
        %4855 = vset.pattern.permute.xlu0 15
        %4856 = vperm.xlu0 %4855, %v4208
        %v4857 = vpop.permute.xlu0 %4856
        %4859 = vset.pattern.permute.xlu0 15
        %4860 = vperm.xlu0 %4859, %v4209
        %v4861 = vpop.permute.xlu0 %4860
        %4863 = vset.pattern.permute.xlu0 15
        %4864 = vperm.xlu0 %4863, %v4210
        %v4865 = vpop.permute.xlu0 %4864
        %4867 = vset.pattern.permute.xlu0 15
        %4868 = vperm.xlu0 %4867, %v4211
        %v4869 = vpop.permute.xlu0 %4868
        %v4871 = vmul.f32 %v4791, %v4809
        %v4872 = vmul.f32 %v4792, %v4813
        %v4873 = vmul.f32 %v4793, %v4817
        %v4874 = vmul.f32 %v4794, %v4821
        %v4875 = vmul.f32 %v4795, %v4825
        %v4876 = vmul.f32 %v4796, %v4829
        %v4877 = vmul.f32 %v4797, %v4833
        %v4878 = vmul.f32 %v4798, %v4837
        %v4879 = vmul.f32 %v4799, %v4841
        %v4880 = vmul.f32 %v4800, %v4845
        %v4881 = vmul.f32 %v4801, %v4849
        %v4882 = vmul.f32 %v4802, %v4853
        %v4883 = vmul.f32 %v4803, %v4857
        %v4884 = vmul.f32 %v4804, %v4861
        %v4885 = vmul.f32 %v4805, %v4865
        %v4886 = vmul.f32 %v4806, %v4869
        %v4887 = vadd.f32 %v4694, %v4871
        %v4888 = vadd.f32 %v4695, %v4872
        %v4889 = vadd.f32 %v4696, %v4873
        %v4890 = vadd.f32 %v4697, %v4874
        %v4891 = vadd.f32 %v4698, %v4875
        %v4892 = vadd.f32 %v4699, %v4876
        %v4893 = vadd.f32 %v4700, %v4877
        %v4894 = vadd.f32 %v4701, %v4878
        %v4895 = vadd.f32 %v4702, %v4879
        %v4896 = vadd.f32 %v4703, %v4880
        %v4897 = vadd.f32 %v4704, %v4881
        %v4898 = vadd.f32 %v4705, %v4882
        %v4899 = vadd.f32 %v4706, %v4883
        %v4900 = vadd.f32 %v4707, %v4884
        %v4901 = vadd.f32 %v4708, %v4885
        %v4902 = vadd.f32 %v4709, %v4886
        %v4903 = vadd.f32 %v3860, %v4083
        %v4904 = vadd.f32 %v3861, %v4084
        %v4905 = vadd.f32 %v3862, %v4085
        %v4906 = vadd.f32 %v3863, %v4086
        %v4907 = vadd.f32 %v3864, %v4087
        %v4908 = vadd.f32 %v3865, %v4088
        %v4909 = vadd.f32 %v3866, %v4089
        %v4910 = vadd.f32 %v3867, %v4090
        %v4911 = vadd.f32 %v3868, %v4091
        %v4912 = vadd.f32 %v3869, %v4092
        %v4913 = vadd.f32 %v3870, %v4093
        %v4914 = vadd.f32 %v3871, %v4094
        %v4915 = vadd.f32 %v3872, %v4095
        %v4916 = vadd.f32 %v3873, %v4096
        %v4917 = vadd.f32 %v3874, %v4097
        %v4918 = vadd.f32 %v3875, %v4098
        %v4919 = vadd.f32 %v4903, %v4887
        %v4920 = vadd.f32 %v4904, %v4888
        %v4921 = vadd.f32 %v4905, %v4889
        %v4922 = vadd.f32 %v4906, %v4890
        %v4923 = vadd.f32 %v4907, %v4891
        %v4924 = vadd.f32 %v4908, %v4892
        %v4925 = vadd.f32 %v4909, %v4893
        %v4926 = vadd.f32 %v4910, %v4894
        %v4927 = vadd.f32 %v4911, %v4895
        %v4928 = vadd.f32 %v4912, %v4896
        %v4929 = vadd.f32 %v4913, %v4897
        %v4930 = vadd.f32 %v4914, %v4898
        %v4931 = vadd.f32 %v4915, %v4899
        %v4932 = vadd.f32 %v4916, %v4900
        %v4933 = vadd.f32 %v4917, %v4901
        %v4934 = vadd.f32 %v4918, %v4902
        %v4935 = vld [vmem:[%s432] sm:$0xff]
        %v4936 = vld [vmem:[%s432 + $0x8] sm:$0xff]
        %v4937 = vld [vmem:[%s432 + $0x10] sm:$0xff]
        %v4938 = vld [vmem:[%s432 + $0x18] sm:$0xff]
        %v4939 = vld [vmem:[%s432 + $0x20] sm:$0xff]
        %v4940 = vld [vmem:[%s432 + $0x28] sm:$0xff]
        %v4941 = vld [vmem:[%s432 + $0x30] sm:$0xff]
        %v4942 = vld [vmem:[%s432 + $0x38] sm:$0xff]
        %v4943 = vld [vmem:[%s432 + $0x40] sm:$0xff]
        %v4944 = vld [vmem:[%s432 + $0x48] sm:$0xff]
        %v4945 = vld [vmem:[%s432 + $0x50] sm:$0xff]
        %v4946 = vld [vmem:[%s432 + $0x58] sm:$0xff]
        %v4947 = vld [vmem:[%s432 + $0x60] sm:$0xff]
        %v4948 = vld [vmem:[%s432 + $0x68] sm:$0xff]
        %v4949 = vld [vmem:[%s432 + $0x70] sm:$0xff]
        %v4950 = vld [vmem:[%s432 + $0x78] sm:$0xff]
        %s4951 = scalar_lea.vmem %s9, 256
        %v4952 = vld [vmem:[%s4951] sm:$0xff]
        %v4953 = vld [vmem:[%s4951 + $0x8] sm:$0xff]
        %v4954 = vld [vmem:[%s4951 + $0x10] sm:$0xff]
        %v4955 = vld [vmem:[%s4951 + $0x18] sm:$0xff]
        %v4956 = vld [vmem:[%s4951 + $0x20] sm:$0xff]
        %v4957 = vld [vmem:[%s4951 + $0x28] sm:$0xff]
        %v4958 = vld [vmem:[%s4951 + $0x30] sm:$0xff]
        %v4959 = vld [vmem:[%s4951 + $0x38] sm:$0xff]
        %v4960 = vpack.c.bf16 %v4920, %v4919
        %v4961 = vpack.c.bf16 %v4922, %v4921
        %v4962 = vpack.c.bf16 %v4924, %v4923
        %v4963 = vpack.c.bf16 %v4926, %v4925
        %v4964 = vpack.c.bf16 %v4928, %v4927
        %v4965 = vpack.c.bf16 %v4930, %v4929
        %v4966 = vpack.c.bf16 %v4932, %v4931
        %v4967 = vpack.c.bf16 %v4934, %v4933
        %v4968 = vpack.c.bf16 %v4953, %v4952
        %v4969 = vpack.c.bf16 %v4955, %v4954
        %v4970 = vpack.c.bf16 %v4957, %v4956
        %v4971 = vpack.c.bf16 %v4959, %v4958
        %v4973 = vsel %vm721, %v4960, 0
        %v4976 = vsel %vm721, %v4961, 0
        %v4979 = vsel %vm721, %v4962, 0
        %v4982 = vsel %vm721, %v4963, 0
        %v4985 = vsel %vm721, %v4964, 0
        %v4988 = vsel %vm721, %v4965, 0
        %v4991 = vsel %vm721, %v4966, 0
        %v4994 = vsel %vm721, %v4967, 0
        %4996 = vmatpush.bf16.msra.mxu0 0
        %4997 = vmatpush.bf16.msra.mxu0 0
        %4998 = vmatpush.bf16.msra.mxu0 0
        %4999 = vmatpush.bf16.msra.mxu0 0
        %5000 = vmatpush.bf16.msra.mxu0 %v4971
        %5001 = vmatpush.bf16.msra.mxu0 %v4970
        %5002 = vmatpush.bf16.msra.mxu0 %v4969
        %5003 = vmatpush.bf16.msra.mxu0 %v4968
        %5004 = vmatmul.bf16.gmra.mxu0 %v4973
        %v5005 = vpop.f32.mrf.mxu0
        %v5006 = vadd.f32 0.0, %v5005
        %v5007 = vpop.f32.mrf.mxu0
        %v5008 = vadd.f32 0.0, %v5007
        %5009 = vmatmul.bf16.gmra.mxu0 %v4976
        %v5010 = vpop.f32.mrf.mxu0
        %v5011 = vadd.f32 0.0, %v5010
        %v5012 = vpop.f32.mrf.mxu0
        %v5013 = vadd.f32 0.0, %v5012
        %5014 = vmatmul.bf16.gmra.mxu0 %v4979
        %v5015 = vpop.f32.mrf.mxu0
        %v5016 = vadd.f32 0.0, %v5015
        %v5017 = vpop.f32.mrf.mxu0
        %v5018 = vadd.f32 0.0, %v5017
        %5019 = vmatmul.bf16.gmra.mxu0 %v4982
        %v5020 = vpop.f32.mrf.mxu0
        %v5021 = vadd.f32 0.0, %v5020
        %v5022 = vpop.f32.mrf.mxu0
        %v5023 = vadd.f32 0.0, %v5022
        %5024 = vmatmul.bf16.gmra.mxu0 %v4985
        %v5025 = vpop.f32.mrf.mxu0
        %v5026 = vadd.f32 0.0, %v5025
        %v5027 = vpop.f32.mrf.mxu0
        %v5028 = vadd.f32 0.0, %v5027
        %5029 = vmatmul.bf16.gmra.mxu0 %v4988
        %v5030 = vpop.f32.mrf.mxu0
        %v5031 = vadd.f32 0.0, %v5030
        %v5032 = vpop.f32.mrf.mxu0
        %v5033 = vadd.f32 0.0, %v5032
        %5034 = vmatmul.bf16.gmra.mxu0 %v4991
        %v5035 = vpop.f32.mrf.mxu0
        %v5036 = vadd.f32 0.0, %v5035
        %v5037 = vpop.f32.mrf.mxu0
        %v5038 = vadd.f32 0.0, %v5037
        %5039 = vmatmul.bf16.gmra.mxu0 %v4994
        %v5040 = vpop.f32.mrf.mxu0
        %v5041 = vadd.f32 0.0, %v5040
        %v5042 = vpop.f32.mrf.mxu0
        %v5043 = vadd.f32 0.0, %v5042
        %5044 = vdwg.mxu0
        %v5045 = vadd.f32 %v4935, %v5006
        %v5046 = vadd.f32 %v4936, %v5008
        %v5047 = vadd.f32 %v4937, %v5011
        %v5048 = vadd.f32 %v4938, %v5013
        %v5049 = vadd.f32 %v4939, %v5016
        %v5050 = vadd.f32 %v4940, %v5018
        %v5051 = vadd.f32 %v4941, %v5021
        %v5052 = vadd.f32 %v4942, %v5023
        %v5053 = vadd.f32 %v4943, %v5026
        %v5054 = vadd.f32 %v4944, %v5028
        %v5055 = vadd.f32 %v4945, %v5031
        %v5056 = vadd.f32 %v4946, %v5033
        %v5057 = vadd.f32 %v4947, %v5036
        %v5058 = vadd.f32 %v4948, %v5038
        %v5059 = vadd.f32 %v4949, %v5041
        %v5060 = vadd.f32 %v4950, %v5043
        %5061 = vst [vmem:[%s432] sm:$0xff] %v5045
        %5062 = vst [vmem:[%s432 + $0x8] sm:$0xff] %v5046
        %5063 = vst [vmem:[%s432 + $0x10] sm:$0xff] %v5047
        %5064 = vst [vmem:[%s432 + $0x18] sm:$0xff] %v5048
        %5065 = vst [vmem:[%s432 + $0x20] sm:$0xff] %v5049
        %5066 = vst [vmem:[%s432 + $0x28] sm:$0xff] %v5050
        %5067 = vst [vmem:[%s432 + $0x30] sm:$0xff] %v5051
        %5068 = vst [vmem:[%s432 + $0x38] sm:$0xff] %v5052
        %5069 = vst [vmem:[%s432 + $0x40] sm:$0xff] %v5053
        %5070 = vst [vmem:[%s432 + $0x48] sm:$0xff] %v5054
        %5071 = vst [vmem:[%s432 + $0x50] sm:$0xff] %v5055
        %5072 = vst [vmem:[%s432 + $0x58] sm:$0xff] %v5056
        %5073 = vst [vmem:[%s432 + $0x60] sm:$0xff] %v5057
        %5074 = vst [vmem:[%s432 + $0x68] sm:$0xff] %v5058
        %5075 = vst [vmem:[%s432 + $0x70] sm:$0xff] %v5059
        %5076 = vst [vmem:[%s432 + $0x78] sm:$0xff] %v5060
        %v5077 = vld [vmem:[#allocation6] sm:$0xff]
        %v5078 = vld [vmem:[#allocation6 + $0x8] sm:$0xff]
        %v5079 = vld [vmem:[#allocation6 + $0x10] sm:$0xff]
        %v5080 = vld [vmem:[#allocation6 + $0x18] sm:$0xff]
        %v5081 = vld [vmem:[#allocation6 + $0x20] sm:$0xff]
        %v5082 = vld [vmem:[#allocation6 + $0x28] sm:$0xff]
        %v5083 = vld [vmem:[#allocation6 + $0x30] sm:$0xff]
        %v5084 = vld [vmem:[#allocation6 + $0x38] sm:$0xff]
        %v5085 = vpack.c.bf16 %v5078, %v5077
        %v5086 = vpack.c.bf16 %v5080, %v5079
        %v5087 = vpack.c.bf16 %v5082, %v5081
        %v5088 = vpack.c.bf16 %v5084, %v5083
        %v5089 = vld [vmem:[%s7] sm:$0x1]
        %v5091 = vperm.slane %v5089, 0
        %5093 = vmatpush.bf16.msra.mxu0 0
        %5094 = vmatpush.bf16.msra.mxu0 0
        %5095 = vmatpush.bf16.msra.mxu0 0
        %5096 = vmatpush.bf16.msra.mxu0 0
        %5097 = vmatpush.bf16.msra.mxu0 %v5088
        %5098 = vmatpush.bf16.msra.mxu0 %v5087
        %5099 = vmatpush.bf16.msra.mxu0 %v5086
        %5100 = vmatpush.bf16.msra.mxu0 %v5085
        %5101 = vmatmul.bf16.gmra.mxu0 %v4973
        %v5102 = vpop.f32.mrf.mxu0
        %v5103 = vadd.f32 %v5091, %v5102
        %v5104 = vpop.f32.mrf.mxu0
        %v5105 = vadd.f32 %v5091, %v5104
        %5106 = vmatmul.bf16.gmra.mxu0 %v4976
        %v5107 = vpop.f32.mrf.mxu0
        %v5108 = vadd.f32 %v5091, %v5107
        %v5109 = vpop.f32.mrf.mxu0
        %v5110 = vadd.f32 %v5091, %v5109
        %5111 = vmatmul.bf16.gmra.mxu0 %v4979
        %v5112 = vpop.f32.mrf.mxu0
        %v5113 = vadd.f32 %v5091, %v5112
        %v5114 = vpop.f32.mrf.mxu0
        %v5115 = vadd.f32 %v5091, %v5114
        %5116 = vmatmul.bf16.gmra.mxu0 %v4982
        %v5117 = vpop.f32.mrf.mxu0
        %v5118 = vadd.f32 %v5091, %v5117
        %v5119 = vpop.f32.mrf.mxu0
        %v5120 = vadd.f32 %v5091, %v5119
        %5121 = vmatmul.bf16.gmra.mxu0 %v4985
        %v5122 = vpop.f32.mrf.mxu0
        %v5123 = vadd.f32 %v5091, %v5122
        %v5124 = vpop.f32.mrf.mxu0
        %v5125 = vadd.f32 %v5091, %v5124
        %5126 = vmatmul.bf16.gmra.mxu0 %v4988
        %v5127 = vpop.f32.mrf.mxu0
        %v5128 = vadd.f32 %v5091, %v5127
        %v5129 = vpop.f32.mrf.mxu0
        %v5130 = vadd.f32 %v5091, %v5129
        %5131 = vmatmul.bf16.gmra.mxu0 %v4991
        %v5132 = vpop.f32.mrf.mxu0
        %v5133 = vadd.f32 %v5091, %v5132
        %v5134 = vpop.f32.mrf.mxu0
        %v5135 = vadd.f32 %v5091, %v5134
        %5136 = vmatmul.bf16.gmra.mxu0 %v4994
        %v5137 = vpop.f32.mrf.mxu0
        %v5138 = vadd.f32 %v5091, %v5137
        %v5139 = vpop.f32.mrf.mxu0
        %v5140 = vadd.f32 %v5091, %v5139
        %5141 = vdwg.mxu0
        %v5142 = vtanh.pop %v5103
        %v5143 = vtanh.pop %v5105
        %v5144 = vtanh.pop %v5108
        %v5145 = vtanh.pop %v5110
        %v5146 = vtanh.pop %v5113
        %v5147 = vtanh.pop %v5115
        %v5148 = vtanh.pop %v5118
        %v5149 = vtanh.pop %v5120
        %v5150 = vtanh.pop %v5123
        %v5151 = vtanh.pop %v5125
        %v5152 = vtanh.pop %v5128
        %v5153 = vtanh.pop %v5130
        %v5154 = vtanh.pop %v5133
        %v5155 = vtanh.pop %v5135
        %v5156 = vtanh.pop %v5138
        %v5157 = vtanh.pop %v5140
        %v5158 = vld [vmem:[%s908] sm:$0xff]
        %v5159 = vld [vmem:[%s908 + $0x8] sm:$0xff]
        %v5160 = vld [vmem:[%s908 + $0x10] sm:$0xff]
        %v5161 = vld [vmem:[%s908 + $0x18] sm:$0xff]
        %v5162 = vld [vmem:[%s908 + $0x20] sm:$0xff]
        %v5163 = vld [vmem:[%s908 + $0x28] sm:$0xff]
        %v5164 = vld [vmem:[%s908 + $0x30] sm:$0xff]
        %v5165 = vld [vmem:[%s908 + $0x38] sm:$0xff]
        %v5166 = vpack.c.bf16 %v5159, %v5158
        %v5167 = vpack.c.bf16 %v5161, %v5160
        %v5168 = vpack.c.bf16 %v5163, %v5162
        %v5169 = vpack.c.bf16 %v5165, %v5164
        %v5170 = vld [vmem:[%s921] sm:$0x1]
        %v5172 = vperm.slane %v5170, 0
        %5174 = vmatpush.bf16.msra.mxu0 0
        %5175 = vmatpush.bf16.msra.mxu0 0
        %5176 = vmatpush.bf16.msra.mxu0 0
        %5177 = vmatpush.bf16.msra.mxu0 0
        %5178 = vmatpush.bf16.msra.mxu0 %v5169
        %5179 = vmatpush.bf16.msra.mxu0 %v5168
        %5180 = vmatpush.bf16.msra.mxu0 %v5167
        %5181 = vmatpush.bf16.msra.mxu0 %v5166
        %5182 = vmatmul.bf16.gmra.mxu0 %v4973
        %v5183 = vpop.f32.mrf.mxu0
        %v5184 = vadd.f32 %v5172, %v5183
        %v5185 = vpop.f32.mrf.mxu0
        %v5186 = vadd.f32 %v5172, %v5185
        %5187 = vmatmul.bf16.gmra.mxu0 %v4976
        %v5188 = vpop.f32.mrf.mxu0
        %v5189 = vadd.f32 %v5172, %v5188
        %v5190 = vpop.f32.mrf.mxu0
        %v5191 = vadd.f32 %v5172, %v5190
        %5192 = vmatmul.bf16.gmra.mxu0 %v4979
        %v5193 = vpop.f32.mrf.mxu0
        %v5194 = vadd.f32 %v5172, %v5193
        %v5195 = vpop.f32.mrf.mxu0
        %v5196 = vadd.f32 %v5172, %v5195
        %5197 = vmatmul.bf16.gmra.mxu0 %v4982
        %v5198 = vpop.f32.mrf.mxu0
        %v5199 = vadd.f32 %v5172, %v5198
        %v5200 = vpop.f32.mrf.mxu0
        %v5201 = vadd.f32 %v5172, %v5200
        %5202 = vmatmul.bf16.gmra.mxu0 %v4985
        %v5203 = vpop.f32.mrf.mxu0
        %v5204 = vadd.f32 %v5172, %v5203
        %v5205 = vpop.f32.mrf.mxu0
        %v5206 = vadd.f32 %v5172, %v5205
        %5207 = vmatmul.bf16.gmra.mxu0 %v4988
        %v5208 = vpop.f32.mrf.mxu0
        %v5209 = vadd.f32 %v5172, %v5208
        %v5210 = vpop.f32.mrf.mxu0
        %v5211 = vadd.f32 %v5172, %v5210
        %5212 = vmatmul.bf16.gmra.mxu0 %v4991
        %v5213 = vpop.f32.mrf.mxu0
        %v5214 = vadd.f32 %v5172, %v5213
        %v5215 = vpop.f32.mrf.mxu0
        %v5216 = vadd.f32 %v5172, %v5215
        %5217 = vmatmul.bf16.gmra.mxu0 %v4994
        %v5218 = vpop.f32.mrf.mxu0
        %v5219 = vadd.f32 %v5172, %v5218
        %v5220 = vpop.f32.mrf.mxu0
        %v5221 = vadd.f32 %v5172, %v5220
        %5222 = vdwg.mxu0
        %v5223 = vtanh.pop %v5184
        %v5224 = vtanh.pop %v5186
        %v5225 = vtanh.pop %v5189
        %v5226 = vtanh.pop %v5191
        %v5227 = vtanh.pop %v5194
        %v5228 = vtanh.pop %v5196
        %v5229 = vtanh.pop %v5199
        %v5230 = vtanh.pop %v5201
        %v5231 = vtanh.pop %v5204
        %v5232 = vtanh.pop %v5206
        %v5233 = vtanh.pop %v5209
        %v5234 = vtanh.pop %v5211
        %v5235 = vtanh.pop %v5214
        %v5236 = vtanh.pop %v5216
        %v5237 = vtanh.pop %v5219
        %v5238 = vtanh.pop %v5221
        %v5239 = vmul.f32 %v5223, %v995
        %v5240 = vmul.f32 %v5224, %v995
        %v5241 = vmul.f32 %v5225, %v995
        %v5242 = vmul.f32 %v5226, %v995
        %v5243 = vmul.f32 %v5227, %v995
        %v5244 = vmul.f32 %v5228, %v995
        %v5245 = vmul.f32 %v5229, %v995
        %v5246 = vmul.f32 %v5230, %v995
        %v5247 = vmul.f32 %v5231, %v995
        %v5248 = vmul.f32 %v5232, %v995
        %v5249 = vmul.f32 %v5233, %v995
        %v5250 = vmul.f32 %v5234, %v995
        %v5251 = vmul.f32 %v5235, %v995
        %v5252 = vmul.f32 %v5236, %v995
        %v5253 = vmul.f32 %v5237, %v995
        %v5254 = vmul.f32 %v5238, %v995
        %v5255 = vld [vmem:[%s443] sm:$0xff]
        %v5256 = vld [vmem:[%s443 + $0x8] sm:$0xff]
        %v5257 = vld [vmem:[%s443 + $0x10] sm:$0xff]
        %v5258 = vld [vmem:[%s443 + $0x18] sm:$0xff]
        %v5259 = vld [vmem:[%s443 + $0x20] sm:$0xff]
        %v5260 = vld [vmem:[%s443 + $0x28] sm:$0xff]
        %v5261 = vld [vmem:[%s443 + $0x30] sm:$0xff]
        %v5262 = vld [vmem:[%s443 + $0x38] sm:$0xff]
        %v5263 = vld [vmem:[%s443 + $0x40] sm:$0xff]
        %v5264 = vld [vmem:[%s443 + $0x48] sm:$0xff]
        %v5265 = vld [vmem:[%s443 + $0x50] sm:$0xff]
        %v5266 = vld [vmem:[%s443 + $0x58] sm:$0xff]
        %v5267 = vld [vmem:[%s443 + $0x60] sm:$0xff]
        %v5268 = vld [vmem:[%s443 + $0x68] sm:$0xff]
        %v5269 = vld [vmem:[%s443 + $0x70] sm:$0xff]
        %v5270 = vld [vmem:[%s443 + $0x78] sm:$0xff]
        %5272 = vset.pattern.permute.xlu0 16
        %5273 = vperm.xlu0 %5272, %v5255
        %v5274 = vpop.permute.xlu0 %5273
        %5277 = vset.pattern.permute.xlu0 16
        %5278 = vperm.xlu0 %5277, %v5256
        %v5279 = vpop.permute.xlu0 %5278
        %5282 = vset.pattern.permute.xlu0 16
        %5283 = vperm.xlu0 %5282, %v5257
        %v5284 = vpop.permute.xlu0 %5283
        %5287 = vset.pattern.permute.xlu0 16
        %5288 = vperm.xlu0 %5287, %v5258
        %v5289 = vpop.permute.xlu0 %5288
        %5292 = vset.pattern.permute.xlu0 16
        %5293 = vperm.xlu0 %5292, %v5259
        %v5294 = vpop.permute.xlu0 %5293
        %5297 = vset.pattern.permute.xlu0 16
        %5298 = vperm.xlu0 %5297, %v5260
        %v5299 = vpop.permute.xlu0 %5298
        %5302 = vset.pattern.permute.xlu0 16
        %5303 = vperm.xlu0 %5302, %v5261
        %v5304 = vpop.permute.xlu0 %5303
        %5307 = vset.pattern.permute.xlu0 16
        %5308 = vperm.xlu0 %5307, %v5262
        %v5309 = vpop.permute.xlu0 %5308
        %5312 = vset.pattern.permute.xlu0 16
        %5313 = vperm.xlu0 %5312, %v5263
        %v5314 = vpop.permute.xlu0 %5313
        %5317 = vset.pattern.permute.xlu0 16
        %5318 = vperm.xlu0 %5317, %v5264
        %v5319 = vpop.permute.xlu0 %5318
        %5322 = vset.pattern.permute.xlu0 16
        %5323 = vperm.xlu0 %5322, %v5265
        %v5324 = vpop.permute.xlu0 %5323
        %5327 = vset.pattern.permute.xlu0 16
        %5328 = vperm.xlu0 %5327, %v5266
        %v5329 = vpop.permute.xlu0 %5328
        %5332 = vset.pattern.permute.xlu0 16
        %5333 = vperm.xlu0 %5332, %v5267
        %v5334 = vpop.permute.xlu0 %5333
        %5337 = vset.pattern.permute.xlu0 16
        %5338 = vperm.xlu0 %5337, %v5268
        %v5339 = vpop.permute.xlu0 %5338
        %5342 = vset.pattern.permute.xlu0 16
        %5343 = vperm.xlu0 %5342, %v5269
        %v5344 = vpop.permute.xlu0 %5343
        %5347 = vset.pattern.permute.xlu0 16
        %5348 = vperm.xlu0 %5347, %v5270
        %v5349 = vpop.permute.xlu0 %5348
        %v5351 = vmul.f32 %v5239, %v5274
        %v5352 = vmul.f32 %v5240, %v5279
        %v5353 = vmul.f32 %v5241, %v5284
        %v5354 = vmul.f32 %v5242, %v5289
        %v5355 = vmul.f32 %v5243, %v5294
        %v5356 = vmul.f32 %v5244, %v5299
        %v5357 = vmul.f32 %v5245, %v5304
        %v5358 = vmul.f32 %v5246, %v5309
        %v5359 = vmul.f32 %v5247, %v5314
        %v5360 = vmul.f32 %v5248, %v5319
        %v5361 = vmul.f32 %v5249, %v5324
        %v5362 = vmul.f32 %v5250, %v5329
        %v5363 = vmul.f32 %v5251, %v5334
        %v5364 = vmul.f32 %v5252, %v5339
        %v5365 = vmul.f32 %v5253, %v5344
        %v5366 = vmul.f32 %v5254, %v5349
        %v5367 = vadd.f32 %v5351, 0.0
        %v5368 = vadd.f32 %v5352, 0.0
        %v5369 = vadd.f32 %v5353, 0.0
        %v5370 = vadd.f32 %v5354, 0.0
        %v5371 = vadd.f32 %v5355, 0.0
        %v5372 = vadd.f32 %v5356, 0.0
        %v5373 = vadd.f32 %v5357, 0.0
        %v5374 = vadd.f32 %v5358, 0.0
        %v5375 = vadd.f32 %v5359, 0.0
        %v5376 = vadd.f32 %v5360, 0.0
        %v5377 = vadd.f32 %v5361, 0.0
        %v5378 = vadd.f32 %v5362, 0.0
        %v5379 = vadd.f32 %v5363, 0.0
        %v5380 = vadd.f32 %v5364, 0.0
        %v5381 = vadd.f32 %v5365, 0.0
        %v5382 = vadd.f32 %v5366, 0.0
        %v5383 = vld [vmem:[%s1141] sm:$0xff]
        %v5384 = vld [vmem:[%s1141 + $0x8] sm:$0xff]
        %v5385 = vld [vmem:[%s1141 + $0x10] sm:$0xff]
        %v5386 = vld [vmem:[%s1141 + $0x18] sm:$0xff]
        %v5387 = vld [vmem:[%s1141 + $0x20] sm:$0xff]
        %v5388 = vld [vmem:[%s1141 + $0x28] sm:$0xff]
        %v5389 = vld [vmem:[%s1141 + $0x30] sm:$0xff]
        %v5390 = vld [vmem:[%s1141 + $0x38] sm:$0xff]
        %v5391 = vpack.c.bf16 %v5384, %v5383
        %v5392 = vpack.c.bf16 %v5386, %v5385
        %v5393 = vpack.c.bf16 %v5388, %v5387
        %v5394 = vpack.c.bf16 %v5390, %v5389
        %v5395 = vld [vmem:[%s1154] sm:$0x1]
        %v5397 = vperm.slane %v5395, 0
        %5399 = vmatpush.bf16.msra.mxu0 0
        %5400 = vmatpush.bf16.msra.mxu0 0
        %5401 = vmatpush.bf16.msra.mxu0 0
        %5402 = vmatpush.bf16.msra.mxu0 0
        %5403 = vmatpush.bf16.msra.mxu0 %v5394
        %5404 = vmatpush.bf16.msra.mxu0 %v5393
        %5405 = vmatpush.bf16.msra.mxu0 %v5392
        %5406 = vmatpush.bf16.msra.mxu0 %v5391
        %5407 = vmatmul.bf16.gmra.mxu0 %v4973
        %v5408 = vpop.f32.mrf.mxu0
        %v5409 = vadd.f32 %v5397, %v5408
        %v5410 = vpop.f32.mrf.mxu0
        %v5411 = vadd.f32 %v5397, %v5410
        %5412 = vmatmul.bf16.gmra.mxu0 %v4976
        %v5413 = vpop.f32.mrf.mxu0
        %v5414 = vadd.f32 %v5397, %v5413
        %v5415 = vpop.f32.mrf.mxu0
        %v5416 = vadd.f32 %v5397, %v5415
        %5417 = vmatmul.bf16.gmra.mxu0 %v4979
        %v5418 = vpop.f32.mrf.mxu0
        %v5419 = vadd.f32 %v5397, %v5418
        %v5420 = vpop.f32.mrf.mxu0
        %v5421 = vadd.f32 %v5397, %v5420
        %5422 = vmatmul.bf16.gmra.mxu0 %v4982
        %v5423 = vpop.f32.mrf.mxu0
        %v5424 = vadd.f32 %v5397, %v5423
        %v5425 = vpop.f32.mrf.mxu0
        %v5426 = vadd.f32 %v5397, %v5425
        %5427 = vmatmul.bf16.gmra.mxu0 %v4985
        %v5428 = vpop.f32.mrf.mxu0
        %v5429 = vadd.f32 %v5397, %v5428
        %v5430 = vpop.f32.mrf.mxu0
        %v5431 = vadd.f32 %v5397, %v5430
        %5432 = vmatmul.bf16.gmra.mxu0 %v4988
        %v5433 = vpop.f32.mrf.mxu0
        %v5434 = vadd.f32 %v5397, %v5433
        %v5435 = vpop.f32.mrf.mxu0
        %v5436 = vadd.f32 %v5397, %v5435
        %5437 = vmatmul.bf16.gmra.mxu0 %v4991
        %v5438 = vpop.f32.mrf.mxu0
        %v5439 = vadd.f32 %v5397, %v5438
        %v5440 = vpop.f32.mrf.mxu0
        %v5441 = vadd.f32 %v5397, %v5440
        %5442 = vmatmul.bf16.gmra.mxu0 %v4994
        %v5443 = vpop.f32.mrf.mxu0
        %v5444 = vadd.f32 %v5397, %v5443
        %v5445 = vpop.f32.mrf.mxu0
        %v5446 = vadd.f32 %v5397, %v5445
        %5447 = vdwg.mxu0
        %v5448 = vtanh.pop %v5409
        %v5449 = vtanh.pop %v5411
        %v5450 = vtanh.pop %v5414
        %v5451 = vtanh.pop %v5416
        %v5452 = vtanh.pop %v5419
        %v5453 = vtanh.pop %v5421
        %v5454 = vtanh.pop %v5424
        %v5455 = vtanh.pop %v5426
        %v5456 = vtanh.pop %v5429
        %v5457 = vtanh.pop %v5431
        %v5458 = vtanh.pop %v5434
        %v5459 = vtanh.pop %v5436
        %v5460 = vtanh.pop %v5439
        %v5461 = vtanh.pop %v5441
        %v5462 = vtanh.pop %v5444
        %v5463 = vtanh.pop %v5446
        %v5464 = vmul.f32 %v5448, %v995
        %v5465 = vmul.f32 %v5449, %v995
        %v5466 = vmul.f32 %v5450, %v995
        %v5467 = vmul.f32 %v5451, %v995
        %v5468 = vmul.f32 %v5452, %v995
        %v5469 = vmul.f32 %v5453, %v995
        %v5470 = vmul.f32 %v5454, %v995
        %v5471 = vmul.f32 %v5455, %v995
        %v5472 = vmul.f32 %v5456, %v995
        %v5473 = vmul.f32 %v5457, %v995
        %v5474 = vmul.f32 %v5458, %v995
        %v5475 = vmul.f32 %v5459, %v995
        %v5476 = vmul.f32 %v5460, %v995
        %v5477 = vmul.f32 %v5461, %v995
        %v5478 = vmul.f32 %v5462, %v995
        %v5479 = vmul.f32 %v5463, %v995
        %5480 = vset.pattern.permute.xlu0 17
        %5481 = vperm.xlu0 %5480, %v5255
        %v5482 = vpop.permute.xlu0 %5481
        %5484 = vset.pattern.permute.xlu0 17
        %5485 = vperm.xlu0 %5484, %v5256
        %v5486 = vpop.permute.xlu0 %5485
        %5488 = vset.pattern.permute.xlu0 17
        %5489 = vperm.xlu0 %5488, %v5257
        %v5490 = vpop.permute.xlu0 %5489
        %5492 = vset.pattern.permute.xlu0 17
        %5493 = vperm.xlu0 %5492, %v5258
        %v5494 = vpop.permute.xlu0 %5493
        %5496 = vset.pattern.permute.xlu0 17
        %5497 = vperm.xlu0 %5496, %v5259
        %v5498 = vpop.permute.xlu0 %5497
        %5500 = vset.pattern.permute.xlu0 17
        %5501 = vperm.xlu0 %5500, %v5260
        %v5502 = vpop.permute.xlu0 %5501
        %5504 = vset.pattern.permute.xlu0 17
        %5505 = vperm.xlu0 %5504, %v5261
        %v5506 = vpop.permute.xlu0 %5505
        %5508 = vset.pattern.permute.xlu0 17
        %5509 = vperm.xlu0 %5508, %v5262
        %v5510 = vpop.permute.xlu0 %5509
        %5512 = vset.pattern.permute.xlu0 17
        %5513 = vperm.xlu0 %5512, %v5263
        %v5514 = vpop.permute.xlu0 %5513
        %5516 = vset.pattern.permute.xlu0 17
        %5517 = vperm.xlu0 %5516, %v5264
        %v5518 = vpop.permute.xlu0 %5517
        %5520 = vset.pattern.permute.xlu0 17
        %5521 = vperm.xlu0 %5520, %v5265
        %v5522 = vpop.permute.xlu0 %5521
        %5524 = vset.pattern.permute.xlu0 17
        %5525 = vperm.xlu0 %5524, %v5266
        %v5526 = vpop.permute.xlu0 %5525
        %5528 = vset.pattern.permute.xlu0 17
        %5529 = vperm.xlu0 %5528, %v5267
        %v5530 = vpop.permute.xlu0 %5529
        %5532 = vset.pattern.permute.xlu0 17
        %5533 = vperm.xlu0 %5532, %v5268
        %v5534 = vpop.permute.xlu0 %5533
        %5536 = vset.pattern.permute.xlu0 17
        %5537 = vperm.xlu0 %5536, %v5269
        %v5538 = vpop.permute.xlu0 %5537
        %5540 = vset.pattern.permute.xlu0 17
        %5541 = vperm.xlu0 %5540, %v5270
        %v5542 = vpop.permute.xlu0 %5541
        %v5544 = vmul.f32 %v5464, %v5482
        %v5545 = vmul.f32 %v5465, %v5486
        %v5546 = vmul.f32 %v5466, %v5490
        %v5547 = vmul.f32 %v5467, %v5494
        %v5548 = vmul.f32 %v5468, %v5498
        %v5549 = vmul.f32 %v5469, %v5502
        %v5550 = vmul.f32 %v5470, %v5506
        %v5551 = vmul.f32 %v5471, %v5510
        %v5552 = vmul.f32 %v5472, %v5514
        %v5553 = vmul.f32 %v5473, %v5518
        %v5554 = vmul.f32 %v5474, %v5522
        %v5555 = vmul.f32 %v5475, %v5526
        %v5556 = vmul.f32 %v5476, %v5530
        %v5557 = vmul.f32 %v5477, %v5534
        %v5558 = vmul.f32 %v5478, %v5538
        %v5559 = vmul.f32 %v5479, %v5542
        %v5560 = vadd.f32 %v5367, %v5544
        %v5561 = vadd.f32 %v5368, %v5545
        %v5562 = vadd.f32 %v5369, %v5546
        %v5563 = vadd.f32 %v5370, %v5547
        %v5564 = vadd.f32 %v5371, %v5548
        %v5565 = vadd.f32 %v5372, %v5549
        %v5566 = vadd.f32 %v5373, %v5550
        %v5567 = vadd.f32 %v5374, %v5551
        %v5568 = vadd.f32 %v5375, %v5552
        %v5569 = vadd.f32 %v5376, %v5553
        %v5570 = vadd.f32 %v5377, %v5554
        %v5571 = vadd.f32 %v5378, %v5555
        %v5572 = vadd.f32 %v5379, %v5556
        %v5573 = vadd.f32 %v5380, %v5557
        %v5574 = vadd.f32 %v5381, %v5558
        %v5575 = vadd.f32 %v5382, %v5559
        %v5576 = vld [vmem:[%s1336] sm:$0xff]
        %v5577 = vld [vmem:[%s1336 + $0x8] sm:$0xff]
        %v5578 = vld [vmem:[%s1336 + $0x10] sm:$0xff]
        %v5579 = vld [vmem:[%s1336 + $0x18] sm:$0xff]
        %v5580 = vld [vmem:[%s1336 + $0x20] sm:$0xff]
        %v5581 = vld [vmem:[%s1336 + $0x28] sm:$0xff]
        %v5582 = vld [vmem:[%s1336 + $0x30] sm:$0xff]
        %v5583 = vld [vmem:[%s1336 + $0x38] sm:$0xff]
        %v5584 = vpack.c.bf16 %v5577, %v5576
        %v5585 = vpack.c.bf16 %v5579, %v5578
        %v5586 = vpack.c.bf16 %v5581, %v5580
        %v5587 = vpack.c.bf16 %v5583, %v5582
        %v5588 = vld [vmem:[%s1349] sm:$0x1]
        %v5590 = vperm.slane %v5588, 0
        %5592 = vmatpush.bf16.msra.mxu0 0
        %5593 = vmatpush.bf16.msra.mxu0 0
        %5594 = vmatpush.bf16.msra.mxu0 0
        %5595 = vmatpush.bf16.msra.mxu0 0
        %5596 = vmatpush.bf16.msra.mxu0 %v5587
        %5597 = vmatpush.bf16.msra.mxu0 %v5586
        %5598 = vmatpush.bf16.msra.mxu0 %v5585
        %5599 = vmatpush.bf16.msra.mxu0 %v5584
        %5600 = vmatmul.bf16.gmra.mxu0 %v4973
        %v5601 = vpop.f32.mrf.mxu0
        %v5602 = vadd.f32 %v5590, %v5601
        %v5603 = vpop.f32.mrf.mxu0
        %v5604 = vadd.f32 %v5590, %v5603
        %5605 = vmatmul.bf16.gmra.mxu0 %v4976
        %v5606 = vpop.f32.mrf.mxu0
        %v5607 = vadd.f32 %v5590, %v5606
        %v5608 = vpop.f32.mrf.mxu0
        %v5609 = vadd.f32 %v5590, %v5608
        %5610 = vmatmul.bf16.gmra.mxu0 %v4979
        %v5611 = vpop.f32.mrf.mxu0
        %v5612 = vadd.f32 %v5590, %v5611
        %v5613 = vpop.f32.mrf.mxu0
        %v5614 = vadd.f32 %v5590, %v5613
        %5615 = vmatmul.bf16.gmra.mxu0 %v4982
        %v5616 = vpop.f32.mrf.mxu0
        %v5617 = vadd.f32 %v5590, %v5616
        %v5618 = vpop.f32.mrf.mxu0
        %v5619 = vadd.f32 %v5590, %v5618
        %5620 = vmatmul.bf16.gmra.mxu0 %v4985
        %v5621 = vpop.f32.mrf.mxu0
        %v5622 = vadd.f32 %v5590, %v5621
        %v5623 = vpop.f32.mrf.mxu0
        %v5624 = vadd.f32 %v5590, %v5623
        %5625 = vmatmul.bf16.gmra.mxu0 %v4988
        %v5626 = vpop.f32.mrf.mxu0
        %v5627 = vadd.f32 %v5590, %v5626
        %v5628 = vpop.f32.mrf.mxu0
        %v5629 = vadd.f32 %v5590, %v5628
        %5630 = vmatmul.bf16.gmra.mxu0 %v4991
        %v5631 = vpop.f32.mrf.mxu0
        %v5632 = vadd.f32 %v5590, %v5631
        %v5633 = vpop.f32.mrf.mxu0
        %v5634 = vadd.f32 %v5590, %v5633
        %5635 = vmatmul.bf16.gmra.mxu0 %v4994
        %v5636 = vpop.f32.mrf.mxu0
        %v5637 = vadd.f32 %v5590, %v5636
        %v5638 = vpop.f32.mrf.mxu0
        %v5639 = vadd.f32 %v5590, %v5638
        %5640 = vdwg.mxu0
        %v5641 = vtanh.pop %v5602
        %v5642 = vtanh.pop %v5604
        %v5643 = vtanh.pop %v5607
        %v5644 = vtanh.pop %v5609
        %v5645 = vtanh.pop %v5612
        %v5646 = vtanh.pop %v5614
        %v5647 = vtanh.pop %v5617
        %v5648 = vtanh.pop %v5619
        %v5649 = vtanh.pop %v5622
        %v5650 = vtanh.pop %v5624
        %v5651 = vtanh.pop %v5627
        %v5652 = vtanh.pop %v5629
        %v5653 = vtanh.pop %v5632
        %v5654 = vtanh.pop %v5634
        %v5655 = vtanh.pop %v5637
        %v5656 = vtanh.pop %v5639
        %v5657 = vmul.f32 %v5641, %v995
        %v5658 = vmul.f32 %v5642, %v995
        %v5659 = vmul.f32 %v5643, %v995
        %v5660 = vmul.f32 %v5644, %v995
        %v5661 = vmul.f32 %v5645, %v995
        %v5662 = vmul.f32 %v5646, %v995
        %v5663 = vmul.f32 %v5647, %v995
        %v5664 = vmul.f32 %v5648, %v995
        %v5665 = vmul.f32 %v5649, %v995
        %v5666 = vmul.f32 %v5650, %v995
        %v5667 = vmul.f32 %v5651, %v995
        %v5668 = vmul.f32 %v5652, %v995
        %v5669 = vmul.f32 %v5653, %v995
        %v5670 = vmul.f32 %v5654, %v995
        %v5671 = vmul.f32 %v5655, %v995
        %v5672 = vmul.f32 %v5656, %v995
        %5673 = vset.pattern.permute.xlu0 18
        %5674 = vperm.xlu0 %5673, %v5255
        %v5675 = vpop.permute.xlu0 %5674
        %5677 = vset.pattern.permute.xlu0 18
        %5678 = vperm.xlu0 %5677, %v5256
        %v5679 = vpop.permute.xlu0 %5678
        %5681 = vset.pattern.permute.xlu0 18
        %5682 = vperm.xlu0 %5681, %v5257
        %v5683 = vpop.permute.xlu0 %5682
        %5685 = vset.pattern.permute.xlu0 18
        %5686 = vperm.xlu0 %5685, %v5258
        %v5687 = vpop.permute.xlu0 %5686
        %5689 = vset.pattern.permute.xlu0 18
        %5690 = vperm.xlu0 %5689, %v5259
        %v5691 = vpop.permute.xlu0 %5690
        %5693 = vset.pattern.permute.xlu0 18
        %5694 = vperm.xlu0 %5693, %v5260
        %v5695 = vpop.permute.xlu0 %5694
        %5697 = vset.pattern.permute.xlu0 18
        %5698 = vperm.xlu0 %5697, %v5261
        %v5699 = vpop.permute.xlu0 %5698
        %5701 = vset.pattern.permute.xlu0 18
        %5702 = vperm.xlu0 %5701, %v5262
        %v5703 = vpop.permute.xlu0 %5702
        %5705 = vset.pattern.permute.xlu0 18
        %5706 = vperm.xlu0 %5705, %v5263
        %v5707 = vpop.permute.xlu0 %5706
        %5709 = vset.pattern.permute.xlu0 18
        %5710 = vperm.xlu0 %5709, %v5264
        %v5711 = vpop.permute.xlu0 %5710
        %5713 = vset.pattern.permute.xlu0 18
        %5714 = vperm.xlu0 %5713, %v5265
        %v5715 = vpop.permute.xlu0 %5714
        %5717 = vset.pattern.permute.xlu0 18
        %5718 = vperm.xlu0 %5717, %v5266
        %v5719 = vpop.permute.xlu0 %5718
        %5721 = vset.pattern.permute.xlu0 18
        %5722 = vperm.xlu0 %5721, %v5267
        %v5723 = vpop.permute.xlu0 %5722
        %5725 = vset.pattern.permute.xlu0 18
        %5726 = vperm.xlu0 %5725, %v5268
        %v5727 = vpop.permute.xlu0 %5726
        %5729 = vset.pattern.permute.xlu0 18
        %5730 = vperm.xlu0 %5729, %v5269
        %v5731 = vpop.permute.xlu0 %5730
        %5733 = vset.pattern.permute.xlu0 18
        %5734 = vperm.xlu0 %5733, %v5270
        %v5735 = vpop.permute.xlu0 %5734
        %v5737 = vmul.f32 %v5657, %v5675
        %v5738 = vmul.f32 %v5658, %v5679
        %v5739 = vmul.f32 %v5659, %v5683
        %v5740 = vmul.f32 %v5660, %v5687
        %v5741 = vmul.f32 %v5661, %v5691
        %v5742 = vmul.f32 %v5662, %v5695
        %v5743 = vmul.f32 %v5663, %v5699
        %v5744 = vmul.f32 %v5664, %v5703
        %v5745 = vmul.f32 %v5665, %v5707
        %v5746 = vmul.f32 %v5666, %v5711
        %v5747 = vmul.f32 %v5667, %v5715
        %v5748 = vmul.f32 %v5668, %v5719
        %v5749 = vmul.f32 %v5669, %v5723
        %v5750 = vmul.f32 %v5670, %v5727
        %v5751 = vmul.f32 %v5671, %v5731
        %v5752 = vmul.f32 %v5672, %v5735
        %v5753 = vadd.f32 %v5560, %v5737
        %v5754 = vadd.f32 %v5561, %v5738
        %v5755 = vadd.f32 %v5562, %v5739
        %v5756 = vadd.f32 %v5563, %v5740
        %v5757 = vadd.f32 %v5564, %v5741
        %v5758 = vadd.f32 %v5565, %v5742
        %v5759 = vadd.f32 %v5566, %v5743
        %v5760 = vadd.f32 %v5567, %v5744
        %v5761 = vadd.f32 %v5568, %v5745
        %v5762 = vadd.f32 %v5569, %v5746
        %v5763 = vadd.f32 %v5570, %v5747
        %v5764 = vadd.f32 %v5571, %v5748
        %v5765 = vadd.f32 %v5572, %v5749
        %v5766 = vadd.f32 %v5573, %v5750
        %v5767 = vadd.f32 %v5574, %v5751
        %v5768 = vadd.f32 %v5575, %v5752
        %v5769 = vld [vmem:[%s1531] sm:$0xff]
        %v5770 = vld [vmem:[%s1531 + $0x8] sm:$0xff]
        %v5771 = vld [vmem:[%s1531 + $0x10] sm:$0xff]
        %v5772 = vld [vmem:[%s1531 + $0x18] sm:$0xff]
        %v5773 = vld [vmem:[%s1531 + $0x20] sm:$0xff]
        %v5774 = vld [vmem:[%s1531 + $0x28] sm:$0xff]
        %v5775 = vld [vmem:[%s1531 + $0x30] sm:$0xff]
        %v5776 = vld [vmem:[%s1531 + $0x38] sm:$0xff]
        %v5777 = vpack.c.bf16 %v5770, %v5769
        %v5778 = vpack.c.bf16 %v5772, %v5771
        %v5779 = vpack.c.bf16 %v5774, %v5773
        %v5780 = vpack.c.bf16 %v5776, %v5775
        %v5781 = vld [vmem:[%s1544] sm:$0x1]
        %v5783 = vperm.slane %v5781, 0
        %5785 = vmatpush.bf16.msra.mxu0 0
        %5786 = vmatpush.bf16.msra.mxu0 0
        %5787 = vmatpush.bf16.msra.mxu0 0
        %5788 = vmatpush.bf16.msra.mxu0 0
        %5789 = vmatpush.bf16.msra.mxu0 %v5780
        %5790 = vmatpush.bf16.msra.mxu0 %v5779
        %5791 = vmatpush.bf16.msra.mxu0 %v5778
        %5792 = vmatpush.bf16.msra.mxu0 %v5777
        %5793 = vmatmul.bf16.gmra.mxu0 %v4973
        %v5794 = vpop.f32.mrf.mxu0
        %v5795 = vadd.f32 %v5783, %v5794
        %v5796 = vpop.f32.mrf.mxu0
        %v5797 = vadd.f32 %v5783, %v5796
        %5798 = vmatmul.bf16.gmra.mxu0 %v4976
        %v5799 = vpop.f32.mrf.mxu0
        %v5800 = vadd.f32 %v5783, %v5799
        %v5801 = vpop.f32.mrf.mxu0
        %v5802 = vadd.f32 %v5783, %v5801
        %5803 = vmatmul.bf16.gmra.mxu0 %v4979
        %v5804 = vpop.f32.mrf.mxu0
        %v5805 = vadd.f32 %v5783, %v5804
        %v5806 = vpop.f32.mrf.mxu0
        %v5807 = vadd.f32 %v5783, %v5806
        %5808 = vmatmul.bf16.gmra.mxu0 %v4982
        %v5809 = vpop.f32.mrf.mxu0
        %v5810 = vadd.f32 %v5783, %v5809
        %v5811 = vpop.f32.mrf.mxu0
        %v5812 = vadd.f32 %v5783, %v5811
        %5813 = vmatmul.bf16.gmra.mxu0 %v4985
        %v5814 = vpop.f32.mrf.mxu0
        %v5815 = vadd.f32 %v5783, %v5814
        %v5816 = vpop.f32.mrf.mxu0
        %v5817 = vadd.f32 %v5783, %v5816
        %5818 = vmatmul.bf16.gmra.mxu0 %v4988
        %v5819 = vpop.f32.mrf.mxu0
        %v5820 = vadd.f32 %v5783, %v5819
        %v5821 = vpop.f32.mrf.mxu0
        %v5822 = vadd.f32 %v5783, %v5821
        %5823 = vmatmul.bf16.gmra.mxu0 %v4991
        %v5824 = vpop.f32.mrf.mxu0
        %v5825 = vadd.f32 %v5783, %v5824
        %v5826 = vpop.f32.mrf.mxu0
        %v5827 = vadd.f32 %v5783, %v5826
        %5828 = vmatmul.bf16.gmra.mxu0 %v4994
        %v5829 = vpop.f32.mrf.mxu0
        %v5830 = vadd.f32 %v5783, %v5829
        %v5831 = vpop.f32.mrf.mxu0
        %v5832 = vadd.f32 %v5783, %v5831
        %5833 = vdwg.mxu0
        %v5834 = vtanh.pop %v5795
        %v5835 = vtanh.pop %v5797
        %v5836 = vtanh.pop %v5800
        %v5837 = vtanh.pop %v5802
        %v5838 = vtanh.pop %v5805
        %v5839 = vtanh.pop %v5807
        %v5840 = vtanh.pop %v5810
        %v5841 = vtanh.pop %v5812
        %v5842 = vtanh.pop %v5815
        %v5843 = vtanh.pop %v5817
        %v5844 = vtanh.pop %v5820
        %v5845 = vtanh.pop %v5822
        %v5846 = vtanh.pop %v5825
        %v5847 = vtanh.pop %v5827
        %v5848 = vtanh.pop %v5830
        %v5849 = vtanh.pop %v5832
        %v5850 = vmul.f32 %v5834, %v995
        %v5851 = vmul.f32 %v5835, %v995
        %v5852 = vmul.f32 %v5836, %v995
        %v5853 = vmul.f32 %v5837, %v995
        %v5854 = vmul.f32 %v5838, %v995
        %v5855 = vmul.f32 %v5839, %v995
        %v5856 = vmul.f32 %v5840, %v995
        %v5857 = vmul.f32 %v5841, %v995
        %v5858 = vmul.f32 %v5842, %v995
        %v5859 = vmul.f32 %v5843, %v995
        %v5860 = vmul.f32 %v5844, %v995
        %v5861 = vmul.f32 %v5845, %v995
        %v5862 = vmul.f32 %v5846, %v995
        %v5863 = vmul.f32 %v5847, %v995
        %v5864 = vmul.f32 %v5848, %v995
        %v5865 = vmul.f32 %v5849, %v995
        %5866 = vset.pattern.permute.xlu0 19
        %5867 = vperm.xlu0 %5866, %v5255
        %v5868 = vpop.permute.xlu0 %5867
        %5870 = vset.pattern.permute.xlu0 19
        %5871 = vperm.xlu0 %5870, %v5256
        %v5872 = vpop.permute.xlu0 %5871
        %5874 = vset.pattern.permute.xlu0 19
        %5875 = vperm.xlu0 %5874, %v5257
        %v5876 = vpop.permute.xlu0 %5875
        %5878 = vset.pattern.permute.xlu0 19
        %5879 = vperm.xlu0 %5878, %v5258
        %v5880 = vpop.permute.xlu0 %5879
        %5882 = vset.pattern.permute.xlu0 19
        %5883 = vperm.xlu0 %5882, %v5259
        %v5884 = vpop.permute.xlu0 %5883
        %5886 = vset.pattern.permute.xlu0 19
        %5887 = vperm.xlu0 %5886, %v5260
        %v5888 = vpop.permute.xlu0 %5887
        %5890 = vset.pattern.permute.xlu0 19
        %5891 = vperm.xlu0 %5890, %v5261
        %v5892 = vpop.permute.xlu0 %5891
        %5894 = vset.pattern.permute.xlu0 19
        %5895 = vperm.xlu0 %5894, %v5262
        %v5896 = vpop.permute.xlu0 %5895
        %5898 = vset.pattern.permute.xlu0 19
        %5899 = vperm.xlu0 %5898, %v5263
        %v5900 = vpop.permute.xlu0 %5899
        %5902 = vset.pattern.permute.xlu0 19
        %5903 = vperm.xlu0 %5902, %v5264
        %v5904 = vpop.permute.xlu0 %5903
        %5906 = vset.pattern.permute.xlu0 19
        %5907 = vperm.xlu0 %5906, %v5265
        %v5908 = vpop.permute.xlu0 %5907
        %5910 = vset.pattern.permute.xlu0 19
        %5911 = vperm.xlu0 %5910, %v5266
        %v5912 = vpop.permute.xlu0 %5911
        %5914 = vset.pattern.permute.xlu0 19
        %5915 = vperm.xlu0 %5914, %v5267
        %v5916 = vpop.permute.xlu0 %5915
        %5918 = vset.pattern.permute.xlu0 19
        %5919 = vperm.xlu0 %5918, %v5268
        %v5920 = vpop.permute.xlu0 %5919
        %5922 = vset.pattern.permute.xlu0 19
        %5923 = vperm.xlu0 %5922, %v5269
        %v5924 = vpop.permute.xlu0 %5923
        %5926 = vset.pattern.permute.xlu0 19
        %5927 = vperm.xlu0 %5926, %v5270
        %v5928 = vpop.permute.xlu0 %5927
        %v5930 = vmul.f32 %v5850, %v5868
        %v5931 = vmul.f32 %v5851, %v5872
        %v5932 = vmul.f32 %v5852, %v5876
        %v5933 = vmul.f32 %v5853, %v5880
        %v5934 = vmul.f32 %v5854, %v5884
        %v5935 = vmul.f32 %v5855, %v5888
        %v5936 = vmul.f32 %v5856, %v5892
        %v5937 = vmul.f32 %v5857, %v5896
        %v5938 = vmul.f32 %v5858, %v5900
        %v5939 = vmul.f32 %v5859, %v5904
        %v5940 = vmul.f32 %v5860, %v5908
        %v5941 = vmul.f32 %v5861, %v5912
        %v5942 = vmul.f32 %v5862, %v5916
        %v5943 = vmul.f32 %v5863, %v5920
        %v5944 = vmul.f32 %v5864, %v5924
        %v5945 = vmul.f32 %v5865, %v5928
        %v5946 = vadd.f32 %v5753, %v5930
        %v5947 = vadd.f32 %v5754, %v5931
        %v5948 = vadd.f32 %v5755, %v5932
        %v5949 = vadd.f32 %v5756, %v5933
        %v5950 = vadd.f32 %v5757, %v5934
        %v5951 = vadd.f32 %v5758, %v5935
        %v5952 = vadd.f32 %v5759, %v5936
        %v5953 = vadd.f32 %v5760, %v5937
        %v5954 = vadd.f32 %v5761, %v5938
        %v5955 = vadd.f32 %v5762, %v5939
        %v5956 = vadd.f32 %v5763, %v5940
        %v5957 = vadd.f32 %v5764, %v5941
        %v5958 = vadd.f32 %v5765, %v5942
        %v5959 = vadd.f32 %v5766, %v5943
        %v5960 = vadd.f32 %v5767, %v5944
        %v5961 = vadd.f32 %v5768, %v5945
        %v5962 = vadd.f32 %v4919, %v5142
        %v5963 = vadd.f32 %v4920, %v5143
        %v5964 = vadd.f32 %v4921, %v5144
        %v5965 = vadd.f32 %v4922, %v5145
        %v5966 = vadd.f32 %v4923, %v5146
        %v5967 = vadd.f32 %v4924, %v5147
        %v5968 = vadd.f32 %v4925, %v5148
        %v5969 = vadd.f32 %v4926, %v5149
        %v5970 = vadd.f32 %v4927, %v5150
        %v5971 = vadd.f32 %v4928, %v5151
        %v5972 = vadd.f32 %v4929, %v5152
        %v5973 = vadd.f32 %v4930, %v5153
        %v5974 = vadd.f32 %v4931, %v5154
        %v5975 = vadd.f32 %v4932, %v5155
        %v5976 = vadd.f32 %v4933, %v5156
        %v5977 = vadd.f32 %v4934, %v5157
        %v5978 = vadd.f32 %v5962, %v5946
        %v5979 = vadd.f32 %v5963, %v5947
        %v5980 = vadd.f32 %v5964, %v5948
        %v5981 = vadd.f32 %v5965, %v5949
        %v5982 = vadd.f32 %v5966, %v5950
        %v5983 = vadd.f32 %v5967, %v5951
        %v5984 = vadd.f32 %v5968, %v5952
        %v5985 = vadd.f32 %v5969, %v5953
        %v5986 = vadd.f32 %v5970, %v5954
        %v5987 = vadd.f32 %v5971, %v5955
        %v5988 = vadd.f32 %v5972, %v5956
        %v5989 = vadd.f32 %v5973, %v5957
        %v5990 = vadd.f32 %v5974, %v5958
        %v5991 = vadd.f32 %v5975, %v5959
        %v5992 = vadd.f32 %v5976, %v5960
        %v5993 = vadd.f32 %v5977, %v5961
        %v5994 = vld [vmem:[%s432] sm:$0xff]
        %v5995 = vld [vmem:[%s432 + $0x8] sm:$0xff]
        %v5996 = vld [vmem:[%s432 + $0x10] sm:$0xff]
        %v5997 = vld [vmem:[%s432 + $0x18] sm:$0xff]
        %v5998 = vld [vmem:[%s432 + $0x20] sm:$0xff]
        %v5999 = vld [vmem:[%s432 + $0x28] sm:$0xff]
        %v6000 = vld [vmem:[%s432 + $0x30] sm:$0xff]
        %v6001 = vld [vmem:[%s432 + $0x38] sm:$0xff]
        %v6002 = vld [vmem:[%s432 + $0x40] sm:$0xff]
        %v6003 = vld [vmem:[%s432 + $0x48] sm:$0xff]
        %v6004 = vld [vmem:[%s432 + $0x50] sm:$0xff]
        %v6005 = vld [vmem:[%s432 + $0x58] sm:$0xff]
        %v6006 = vld [vmem:[%s432 + $0x60] sm:$0xff]
        %v6007 = vld [vmem:[%s432 + $0x68] sm:$0xff]
        %v6008 = vld [vmem:[%s432 + $0x70] sm:$0xff]
        %v6009 = vld [vmem:[%s432 + $0x78] sm:$0xff]
        %s6010 = scalar_lea.vmem %s9, 320
        %v6011 = vld [vmem:[%s6010] sm:$0xff]
        %v6012 = vld [vmem:[%s6010 + $0x8] sm:$0xff]
        %v6013 = vld [vmem:[%s6010 + $0x10] sm:$0xff]
        %v6014 = vld [vmem:[%s6010 + $0x18] sm:$0xff]
        %v6015 = vld [vmem:[%s6010 + $0x20] sm:$0xff]
        %v6016 = vld [vmem:[%s6010 + $0x28] sm:$0xff]
        %v6017 = vld [vmem:[%s6010 + $0x30] sm:$0xff]
        %v6018 = vld [vmem:[%s6010 + $0x38] sm:$0xff]
        %v6019 = vpack.c.bf16 %v5979, %v5978
        %v6020 = vpack.c.bf16 %v5981, %v5980
        %v6021 = vpack.c.bf16 %v5983, %v5982
        %v6022 = vpack.c.bf16 %v5985, %v5984
        %v6023 = vpack.c.bf16 %v5987, %v5986
        %v6024 = vpack.c.bf16 %v5989, %v5988
        %v6025 = vpack.c.bf16 %v5991, %v5990
        %v6026 = vpack.c.bf16 %v5993, %v5992
        %v6027 = vpack.c.bf16 %v6012, %v6011
        %v6028 = vpack.c.bf16 %v6014, %v6013
        %v6029 = vpack.c.bf16 %v6016, %v6015
        %v6030 = vpack.c.bf16 %v6018, %v6017
        %v6032 = vsel %vm721, %v6019, 0
        %v6035 = vsel %vm721, %v6020, 0
        %v6038 = vsel %vm721, %v6021, 0
        %v6041 = vsel %vm721, %v6022, 0
        %v6044 = vsel %vm721, %v6023, 0
        %v6047 = vsel %vm721, %v6024, 0
        %v6050 = vsel %vm721, %v6025, 0
        %v6053 = vsel %vm721, %v6026, 0
        %6055 = vmatpush.bf16.msra.mxu0 0
        %6056 = vmatpush.bf16.msra.mxu0 0
        %6057 = vmatpush.bf16.msra.mxu0 0
        %6058 = vmatpush.bf16.msra.mxu0 0
        %6059 = vmatpush.bf16.msra.mxu0 %v6030
        %6060 = vmatpush.bf16.msra.mxu0 %v6029
        %6061 = vmatpush.bf16.msra.mxu0 %v6028
        %6062 = vmatpush.bf16.msra.mxu0 %v6027
        %6063 = vmatmul.bf16.gmra.mxu0 %v6032
        %v6064 = vpop.f32.mrf.mxu0
        %v6065 = vadd.f32 0.0, %v6064
        %v6066 = vpop.f32.mrf.mxu0
        %v6067 = vadd.f32 0.0, %v6066
        %6068 = vmatmul.bf16.gmra.mxu0 %v6035
        %v6069 = vpop.f32.mrf.mxu0
        %v6070 = vadd.f32 0.0, %v6069
        %v6071 = vpop.f32.mrf.mxu0
        %v6072 = vadd.f32 0.0, %v6071
        %6073 = vmatmul.bf16.gmra.mxu0 %v6038
        %v6074 = vpop.f32.mrf.mxu0
        %v6075 = vadd.f32 0.0, %v6074
        %v6076 = vpop.f32.mrf.mxu0
        %v6077 = vadd.f32 0.0, %v6076
        %6078 = vmatmul.bf16.gmra.mxu0 %v6041
        %v6079 = vpop.f32.mrf.mxu0
        %v6080 = vadd.f32 0.0, %v6079
        %v6081 = vpop.f32.mrf.mxu0
        %v6082 = vadd.f32 0.0, %v6081
        %6083 = vmatmul.bf16.gmra.mxu0 %v6044
        %v6084 = vpop.f32.mrf.mxu0
        %v6085 = vadd.f32 0.0, %v6084
        %v6086 = vpop.f32.mrf.mxu0
        %v6087 = vadd.f32 0.0, %v6086
        %6088 = vmatmul.bf16.gmra.mxu0 %v6047
        %v6089 = vpop.f32.mrf.mxu0
        %v6090 = vadd.f32 0.0, %v6089
        %v6091 = vpop.f32.mrf.mxu0
        %v6092 = vadd.f32 0.0, %v6091
        %6093 = vmatmul.bf16.gmra.mxu0 %v6050
        %v6094 = vpop.f32.mrf.mxu0
        %v6095 = vadd.f32 0.0, %v6094
        %v6096 = vpop.f32.mrf.mxu0
        %v6097 = vadd.f32 0.0, %v6096
        %6098 = vmatmul.bf16.gmra.mxu0 %v6053
        %v6099 = vpop.f32.mrf.mxu0
        %v6100 = vadd.f32 0.0, %v6099
        %v6101 = vpop.f32.mrf.mxu0
        %v6102 = vadd.f32 0.0, %v6101
        %6103 = vdwg.mxu0
        %v6104 = vadd.f32 %v5994, %v6065
        %v6105 = vadd.f32 %v5995, %v6067
        %v6106 = vadd.f32 %v5996, %v6070
        %v6107 = vadd.f32 %v5997, %v6072
        %v6108 = vadd.f32 %v5998, %v6075
        %v6109 = vadd.f32 %v5999, %v6077
        %v6110 = vadd.f32 %v6000, %v6080
        %v6111 = vadd.f32 %v6001, %v6082
        %v6112 = vadd.f32 %v6002, %v6085
        %v6113 = vadd.f32 %v6003, %v6087
        %v6114 = vadd.f32 %v6004, %v6090
        %v6115 = vadd.f32 %v6005, %v6092
        %v6116 = vadd.f32 %v6006, %v6095
        %v6117 = vadd.f32 %v6007, %v6097
        %v6118 = vadd.f32 %v6008, %v6100
        %v6119 = vadd.f32 %v6009, %v6102
        %6120 = vst [vmem:[%s432] sm:$0xff] %v6104
        %6121 = vst [vmem:[%s432 + $0x8] sm:$0xff] %v6105
        %6122 = vst [vmem:[%s432 + $0x10] sm:$0xff] %v6106
        %6123 = vst [vmem:[%s432 + $0x18] sm:$0xff] %v6107
        %6124 = vst [vmem:[%s432 + $0x20] sm:$0xff] %v6108
        %6125 = vst [vmem:[%s432 + $0x28] sm:$0xff] %v6109
        %6126 = vst [vmem:[%s432 + $0x30] sm:$0xff] %v6110
        %6127 = vst [vmem:[%s432 + $0x38] sm:$0xff] %v6111
        %6128 = vst [vmem:[%s432 + $0x40] sm:$0xff] %v6112
        %6129 = vst [vmem:[%s432 + $0x48] sm:$0xff] %v6113
        %6130 = vst [vmem:[%s432 + $0x50] sm:$0xff] %v6114
        %6131 = vst [vmem:[%s432 + $0x58] sm:$0xff] %v6115
        %6132 = vst [vmem:[%s432 + $0x60] sm:$0xff] %v6116
        %6133 = vst [vmem:[%s432 + $0x68] sm:$0xff] %v6117
        %6134 = vst [vmem:[%s432 + $0x70] sm:$0xff] %v6118
        %6135 = vst [vmem:[%s432 + $0x78] sm:$0xff] %v6119
        %v6136 = vld [vmem:[#allocation6] sm:$0xff]
        %v6137 = vld [vmem:[#allocation6 + $0x8] sm:$0xff]
        %v6138 = vld [vmem:[#allocation6 + $0x10] sm:$0xff]
        %v6139 = vld [vmem:[#allocation6 + $0x18] sm:$0xff]
        %v6140 = vld [vmem:[#allocation6 + $0x20] sm:$0xff]
        %v6141 = vld [vmem:[#allocation6 + $0x28] sm:$0xff]
        %v6142 = vld [vmem:[#allocation6 + $0x30] sm:$0xff]
        %v6143 = vld [vmem:[#allocation6 + $0x38] sm:$0xff]
        %v6144 = vpack.c.bf16 %v6137, %v6136
        %v6145 = vpack.c.bf16 %v6139, %v6138
        %v6146 = vpack.c.bf16 %v6141, %v6140
        %v6147 = vpack.c.bf16 %v6143, %v6142
        %v6148 = vld [vmem:[%s7] sm:$0x1]
        %v6150 = vperm.slane %v6148, 0
        %6152 = vmatpush.bf16.msra.mxu0 0
        %6153 = vmatpush.bf16.msra.mxu0 0
        %6154 = vmatpush.bf16.msra.mxu0 0
        %6155 = vmatpush.bf16.msra.mxu0 0
        %6156 = vmatpush.bf16.msra.mxu0 %v6147
        %6157 = vmatpush.bf16.msra.mxu0 %v6146
        %6158 = vmatpush.bf16.msra.mxu0 %v6145
        %6159 = vmatpush.bf16.msra.mxu0 %v6144
        %6160 = vmatmul.bf16.gmra.mxu0 %v6032
        %v6161 = vpop.f32.mrf.mxu0
        %v6162 = vadd.f32 %v6150, %v6161
        %v6163 = vpop.f32.mrf.mxu0
        %v6164 = vadd.f32 %v6150, %v6163
        %6165 = vmatmul.bf16.gmra.mxu0 %v6035
        %v6166 = vpop.f32.mrf.mxu0
        %v6167 = vadd.f32 %v6150, %v6166
        %v6168 = vpop.f32.mrf.mxu0
        %v6169 = vadd.f32 %v6150, %v6168
        %6170 = vmatmul.bf16.gmra.mxu0 %v6038
        %v6171 = vpop.f32.mrf.mxu0
        %v6172 = vadd.f32 %v6150, %v6171
        %v6173 = vpop.f32.mrf.mxu0
        %v6174 = vadd.f32 %v6150, %v6173
        %6175 = vmatmul.bf16.gmra.mxu0 %v6041
        %v6176 = vpop.f32.mrf.mxu0
        %v6177 = vadd.f32 %v6150, %v6176
        %v6178 = vpop.f32.mrf.mxu0
        %v6179 = vadd.f32 %v6150, %v6178
        %6180 = vmatmul.bf16.gmra.mxu0 %v6044
        %v6181 = vpop.f32.mrf.mxu0
        %v6182 = vadd.f32 %v6150, %v6181
        %v6183 = vpop.f32.mrf.mxu0
        %v6184 = vadd.f32 %v6150, %v6183
        %6185 = vmatmul.bf16.gmra.mxu0 %v6047
        %v6186 = vpop.f32.mrf.mxu0
        %v6187 = vadd.f32 %v6150, %v6186
        %v6188 = vpop.f32.mrf.mxu0
        %v6189 = vadd.f32 %v6150, %v6188
        %6190 = vmatmul.bf16.gmra.mxu0 %v6050
        %v6191 = vpop.f32.mrf.mxu0
        %v6192 = vadd.f32 %v6150, %v6191
        %v6193 = vpop.f32.mrf.mxu0
        %v6194 = vadd.f32 %v6150, %v6193
        %6195 = vmatmul.bf16.gmra.mxu0 %v6053
        %v6196 = vpop.f32.mrf.mxu0
        %v6197 = vadd.f32 %v6150, %v6196
        %v6198 = vpop.f32.mrf.mxu0
        %v6199 = vadd.f32 %v6150, %v6198
        %6200 = vdwg.mxu0
        %v6201 = vtanh.pop %v6162
        %v6202 = vtanh.pop %v6164
        %v6203 = vtanh.pop %v6167
        %v6204 = vtanh.pop %v6169
        %v6205 = vtanh.pop %v6172
        %v6206 = vtanh.pop %v6174
        %v6207 = vtanh.pop %v6177
        %v6208 = vtanh.pop %v6179
        %v6209 = vtanh.pop %v6182
        %v6210 = vtanh.pop %v6184
        %v6211 = vtanh.pop %v6187
        %v6212 = vtanh.pop %v6189
        %v6213 = vtanh.pop %v6192
        %v6214 = vtanh.pop %v6194
        %v6215 = vtanh.pop %v6197
        %v6216 = vtanh.pop %v6199
        %v6217 = vld [vmem:[%s908] sm:$0xff]
        %v6218 = vld [vmem:[%s908 + $0x8] sm:$0xff]
        %v6219 = vld [vmem:[%s908 + $0x10] sm:$0xff]
        %v6220 = vld [vmem:[%s908 + $0x18] sm:$0xff]
        %v6221 = vld [vmem:[%s908 + $0x20] sm:$0xff]
        %v6222 = vld [vmem:[%s908 + $0x28] sm:$0xff]
        %v6223 = vld [vmem:[%s908 + $0x30] sm:$0xff]
        %v6224 = vld [vmem:[%s908 + $0x38] sm:$0xff]
        %v6225 = vpack.c.bf16 %v6218, %v6217
        %v6226 = vpack.c.bf16 %v6220, %v6219
        %v6227 = vpack.c.bf16 %v6222, %v6221
        %v6228 = vpack.c.bf16 %v6224, %v6223
        %v6229 = vld [vmem:[%s921] sm:$0x1]
        %v6231 = vperm.slane %v6229, 0
        %6233 = vmatpush.bf16.msra.mxu0 0
        %6234 = vmatpush.bf16.msra.mxu0 0
        %6235 = vmatpush.bf16.msra.mxu0 0
        %6236 = vmatpush.bf16.msra.mxu0 0
        %6237 = vmatpush.bf16.msra.mxu0 %v6228
        %6238 = vmatpush.bf16.msra.mxu0 %v6227
        %6239 = vmatpush.bf16.msra.mxu0 %v6226
        %6240 = vmatpush.bf16.msra.mxu0 %v6225
        %6241 = vmatmul.bf16.gmra.mxu0 %v6032
        %v6242 = vpop.f32.mrf.mxu0
        %v6243 = vadd.f32 %v6231, %v6242
        %v6244 = vpop.f32.mrf.mxu0
        %v6245 = vadd.f32 %v6231, %v6244
        %6246 = vmatmul.bf16.gmra.mxu0 %v6035
        %v6247 = vpop.f32.mrf.mxu0
        %v6248 = vadd.f32 %v6231, %v6247
        %v6249 = vpop.f32.mrf.mxu0
        %v6250 = vadd.f32 %v6231, %v6249
        %6251 = vmatmul.bf16.gmra.mxu0 %v6038
        %v6252 = vpop.f32.mrf.mxu0
        %v6253 = vadd.f32 %v6231, %v6252
        %v6254 = vpop.f32.mrf.mxu0
        %v6255 = vadd.f32 %v6231, %v6254
        %6256 = vmatmul.bf16.gmra.mxu0 %v6041
        %v6257 = vpop.f32.mrf.mxu0
        %v6258 = vadd.f32 %v6231, %v6257
        %v6259 = vpop.f32.mrf.mxu0
        %v6260 = vadd.f32 %v6231, %v6259
        %6261 = vmatmul.bf16.gmra.mxu0 %v6044
        %v6262 = vpop.f32.mrf.mxu0
        %v6263 = vadd.f32 %v6231, %v6262
        %v6264 = vpop.f32.mrf.mxu0
        %v6265 = vadd.f32 %v6231, %v6264
        %6266 = vmatmul.bf16.gmra.mxu0 %v6047
        %v6267 = vpop.f32.mrf.mxu0
        %v6268 = vadd.f32 %v6231, %v6267
        %v6269 = vpop.f32.mrf.mxu0
        %v6270 = vadd.f32 %v6231, %v6269
        %6271 = vmatmul.bf16.gmra.mxu0 %v6050
        %v6272 = vpop.f32.mrf.mxu0
        %v6273 = vadd.f32 %v6231, %v6272
        %v6274 = vpop.f32.mrf.mxu0
        %v6275 = vadd.f32 %v6231, %v6274
        %6276 = vmatmul.bf16.gmra.mxu0 %v6053
        %v6277 = vpop.f32.mrf.mxu0
        %v6278 = vadd.f32 %v6231, %v6277
        %v6279 = vpop.f32.mrf.mxu0
        %v6280 = vadd.f32 %v6231, %v6279
        %6281 = vdwg.mxu0
        %v6282 = vtanh.pop %v6243
        %v6283 = vtanh.pop %v6245
        %v6284 = vtanh.pop %v6248
        %v6285 = vtanh.pop %v6250
        %v6286 = vtanh.pop %v6253
        %v6287 = vtanh.pop %v6255
        %v6288 = vtanh.pop %v6258
        %v6289 = vtanh.pop %v6260
        %v6290 = vtanh.pop %v6263
        %v6291 = vtanh.pop %v6265
        %v6292 = vtanh.pop %v6268
        %v6293 = vtanh.pop %v6270
        %v6294 = vtanh.pop %v6273
        %v6295 = vtanh.pop %v6275
        %v6296 = vtanh.pop %v6278
        %v6297 = vtanh.pop %v6280
        %v6298 = vmul.f32 %v6282, %v995
        %v6299 = vmul.f32 %v6283, %v995
        %v6300 = vmul.f32 %v6284, %v995
        %v6301 = vmul.f32 %v6285, %v995
        %v6302 = vmul.f32 %v6286, %v995
        %v6303 = vmul.f32 %v6287, %v995
        %v6304 = vmul.f32 %v6288, %v995
        %v6305 = vmul.f32 %v6289, %v995
        %v6306 = vmul.f32 %v6290, %v995
        %v6307 = vmul.f32 %v6291, %v995
        %v6308 = vmul.f32 %v6292, %v995
        %v6309 = vmul.f32 %v6293, %v995
        %v6310 = vmul.f32 %v6294, %v995
        %v6311 = vmul.f32 %v6295, %v995
        %v6312 = vmul.f32 %v6296, %v995
        %v6313 = vmul.f32 %v6297, %v995
        %v6314 = vld [vmem:[%s443] sm:$0xff]
        %v6315 = vld [vmem:[%s443 + $0x8] sm:$0xff]
        %v6316 = vld [vmem:[%s443 + $0x10] sm:$0xff]
        %v6317 = vld [vmem:[%s443 + $0x18] sm:$0xff]
        %v6318 = vld [vmem:[%s443 + $0x20] sm:$0xff]
        %v6319 = vld [vmem:[%s443 + $0x28] sm:$0xff]
        %v6320 = vld [vmem:[%s443 + $0x30] sm:$0xff]
        %v6321 = vld [vmem:[%s443 + $0x38] sm:$0xff]
        %v6322 = vld [vmem:[%s443 + $0x40] sm:$0xff]
        %v6323 = vld [vmem:[%s443 + $0x48] sm:$0xff]
        %v6324 = vld [vmem:[%s443 + $0x50] sm:$0xff]
        %v6325 = vld [vmem:[%s443 + $0x58] sm:$0xff]
        %v6326 = vld [vmem:[%s443 + $0x60] sm:$0xff]
        %v6327 = vld [vmem:[%s443 + $0x68] sm:$0xff]
        %v6328 = vld [vmem:[%s443 + $0x70] sm:$0xff]
        %v6329 = vld [vmem:[%s443 + $0x78] sm:$0xff]
        %6331 = vset.pattern.permute.xlu0 20
        %6332 = vperm.xlu0 %6331, %v6314
        %v6333 = vpop.permute.xlu0 %6332
        %6336 = vset.pattern.permute.xlu0 20
        %6337 = vperm.xlu0 %6336, %v6315
        %v6338 = vpop.permute.xlu0 %6337
        %6341 = vset.pattern.permute.xlu0 20
        %6342 = vperm.xlu0 %6341, %v6316
        %v6343 = vpop.permute.xlu0 %6342
        %6346 = vset.pattern.permute.xlu0 20
        %6347 = vperm.xlu0 %6346, %v6317
        %v6348 = vpop.permute.xlu0 %6347
        %6351 = vset.pattern.permute.xlu0 20
        %6352 = vperm.xlu0 %6351, %v6318
        %v6353 = vpop.permute.xlu0 %6352
        %6356 = vset.pattern.permute.xlu0 20
        %6357 = vperm.xlu0 %6356, %v6319
        %v6358 = vpop.permute.xlu0 %6357
        %6361 = vset.pattern.permute.xlu0 20
        %6362 = vperm.xlu0 %6361, %v6320
        %v6363 = vpop.permute.xlu0 %6362
        %6366 = vset.pattern.permute.xlu0 20
        %6367 = vperm.xlu0 %6366, %v6321
        %v6368 = vpop.permute.xlu0 %6367
        %6371 = vset.pattern.permute.xlu0 20
        %6372 = vperm.xlu0 %6371, %v6322
        %v6373 = vpop.permute.xlu0 %6372
        %6376 = vset.pattern.permute.xlu0 20
        %6377 = vperm.xlu0 %6376, %v6323
        %v6378 = vpop.permute.xlu0 %6377
        %6381 = vset.pattern.permute.xlu0 20
        %6382 = vperm.xlu0 %6381, %v6324
        %v6383 = vpop.permute.xlu0 %6382
        %6386 = vset.pattern.permute.xlu0 20
        %6387 = vperm.xlu0 %6386, %v6325
        %v6388 = vpop.permute.xlu0 %6387
        %6391 = vset.pattern.permute.xlu0 20
        %6392 = vperm.xlu0 %6391, %v6326
        %v6393 = vpop.permute.xlu0 %6392
        %6396 = vset.pattern.permute.xlu0 20
        %6397 = vperm.xlu0 %6396, %v6327
        %v6398 = vpop.permute.xlu0 %6397
        %6401 = vset.pattern.permute.xlu0 20
        %6402 = vperm.xlu0 %6401, %v6328
        %v6403 = vpop.permute.xlu0 %6402
        %6406 = vset.pattern.permute.xlu0 20
        %6407 = vperm.xlu0 %6406, %v6329
        %v6408 = vpop.permute.xlu0 %6407
        %v6410 = vmul.f32 %v6298, %v6333
        %v6411 = vmul.f32 %v6299, %v6338
        %v6412 = vmul.f32 %v6300, %v6343
        %v6413 = vmul.f32 %v6301, %v6348
        %v6414 = vmul.f32 %v6302, %v6353
        %v6415 = vmul.f32 %v6303, %v6358
        %v6416 = vmul.f32 %v6304, %v6363
        %v6417 = vmul.f32 %v6305, %v6368
        %v6418 = vmul.f32 %v6306, %v6373
        %v6419 = vmul.f32 %v6307, %v6378
        %v6420 = vmul.f32 %v6308, %v6383
        %v6421 = vmul.f32 %v6309, %v6388
        %v6422 = vmul.f32 %v6310, %v6393
        %v6423 = vmul.f32 %v6311, %v6398
        %v6424 = vmul.f32 %v6312, %v6403
        %v6425 = vmul.f32 %v6313, %v6408
        %v6426 = vadd.f32 %v6410, 0.0
        %v6427 = vadd.f32 %v6411, 0.0
        %v6428 = vadd.f32 %v6412, 0.0
        %v6429 = vadd.f32 %v6413, 0.0
        %v6430 = vadd.f32 %v6414, 0.0
        %v6431 = vadd.f32 %v6415, 0.0
        %v6432 = vadd.f32 %v6416, 0.0
        %v6433 = vadd.f32 %v6417, 0.0
        %v6434 = vadd.f32 %v6418, 0.0
        %v6435 = vadd.f32 %v6419, 0.0
        %v6436 = vadd.f32 %v6420, 0.0
        %v6437 = vadd.f32 %v6421, 0.0
        %v6438 = vadd.f32 %v6422, 0.0
        %v6439 = vadd.f32 %v6423, 0.0
        %v6440 = vadd.f32 %v6424, 0.0
        %v6441 = vadd.f32 %v6425, 0.0
        %v6442 = vld [vmem:[%s1141] sm:$0xff]
        %v6443 = vld [vmem:[%s1141 + $0x8] sm:$0xff]
        %v6444 = vld [vmem:[%s1141 + $0x10] sm:$0xff]
        %v6445 = vld [vmem:[%s1141 + $0x18] sm:$0xff]
        %v6446 = vld [vmem:[%s1141 + $0x20] sm:$0xff]
        %v6447 = vld [vmem:[%s1141 + $0x28] sm:$0xff]
        %v6448 = vld [vmem:[%s1141 + $0x30] sm:$0xff]
        %v6449 = vld [vmem:[%s1141 + $0x38] sm:$0xff]
        %v6450 = vpack.c.bf16 %v6443, %v6442
        %v6451 = vpack.c.bf16 %v6445, %v6444
        %v6452 = vpack.c.bf16 %v6447, %v6446
        %v6453 = vpack.c.bf16 %v6449, %v6448
        %v6454 = vld [vmem:[%s1154] sm:$0x1]
        %v6456 = vperm.slane %v6454, 0
        %6458 = vmatpush.bf16.msra.mxu0 0
        %6459 = vmatpush.bf16.msra.mxu0 0
        %6460 = vmatpush.bf16.msra.mxu0 0
        %6461 = vmatpush.bf16.msra.mxu0 0
        %6462 = vmatpush.bf16.msra.mxu0 %v6453
        %6463 = vmatpush.bf16.msra.mxu0 %v6452
        %6464 = vmatpush.bf16.msra.mxu0 %v6451
        %6465 = vmatpush.bf16.msra.mxu0 %v6450
        %6466 = vmatmul.bf16.gmra.mxu0 %v6032
        %v6467 = vpop.f32.mrf.mxu0
        %v6468 = vadd.f32 %v6456, %v6467
        %v6469 = vpop.f32.mrf.mxu0
        %v6470 = vadd.f32 %v6456, %v6469
        %6471 = vmatmul.bf16.gmra.mxu0 %v6035
        %v6472 = vpop.f32.mrf.mxu0
        %v6473 = vadd.f32 %v6456, %v6472
        %v6474 = vpop.f32.mrf.mxu0
        %v6475 = vadd.f32 %v6456, %v6474
        %6476 = vmatmul.bf16.gmra.mxu0 %v6038
        %v6477 = vpop.f32.mrf.mxu0
        %v6478 = vadd.f32 %v6456, %v6477
        %v6479 = vpop.f32.mrf.mxu0
        %v6480 = vadd.f32 %v6456, %v6479
        %6481 = vmatmul.bf16.gmra.mxu0 %v6041
        %v6482 = vpop.f32.mrf.mxu0
        %v6483 = vadd.f32 %v6456, %v6482
        %v6484 = vpop.f32.mrf.mxu0
        %v6485 = vadd.f32 %v6456, %v6484
        %6486 = vmatmul.bf16.gmra.mxu0 %v6044
        %v6487 = vpop.f32.mrf.mxu0
        %v6488 = vadd.f32 %v6456, %v6487
        %v6489 = vpop.f32.mrf.mxu0
        %v6490 = vadd.f32 %v6456, %v6489
        %6491 = vmatmul.bf16.gmra.mxu0 %v6047
        %v6492 = vpop.f32.mrf.mxu0
        %v6493 = vadd.f32 %v6456, %v6492
        %v6494 = vpop.f32.mrf.mxu0
        %v6495 = vadd.f32 %v6456, %v6494
        %6496 = vmatmul.bf16.gmra.mxu0 %v6050
        %v6497 = vpop.f32.mrf.mxu0
        %v6498 = vadd.f32 %v6456, %v6497
        %v6499 = vpop.f32.mrf.mxu0
        %v6500 = vadd.f32 %v6456, %v6499
        %6501 = vmatmul.bf16.gmra.mxu0 %v6053
        %v6502 = vpop.f32.mrf.mxu0
        %v6503 = vadd.f32 %v6456, %v6502
        %v6504 = vpop.f32.mrf.mxu0
        %v6505 = vadd.f32 %v6456, %v6504
        %6506 = vdwg.mxu0
        %v6507 = vtanh.pop %v6468
        %v6508 = vtanh.pop %v6470
        %v6509 = vtanh.pop %v6473
        %v6510 = vtanh.pop %v6475
        %v6511 = vtanh.pop %v6478
        %v6512 = vtanh.pop %v6480
        %v6513 = vtanh.pop %v6483
        %v6514 = vtanh.pop %v6485
        %v6515 = vtanh.pop %v6488
        %v6516 = vtanh.pop %v6490
        %v6517 = vtanh.pop %v6493
        %v6518 = vtanh.pop %v6495
        %v6519 = vtanh.pop %v6498
        %v6520 = vtanh.pop %v6500
        %v6521 = vtanh.pop %v6503
        %v6522 = vtanh.pop %v6505
        %v6523 = vmul.f32 %v6507, %v995
        %v6524 = vmul.f32 %v6508, %v995
        %v6525 = vmul.f32 %v6509, %v995
        %v6526 = vmul.f32 %v6510, %v995
        %v6527 = vmul.f32 %v6511, %v995
        %v6528 = vmul.f32 %v6512, %v995
        %v6529 = vmul.f32 %v6513, %v995
        %v6530 = vmul.f32 %v6514, %v995
        %v6531 = vmul.f32 %v6515, %v995
        %v6532 = vmul.f32 %v6516, %v995
        %v6533 = vmul.f32 %v6517, %v995
        %v6534 = vmul.f32 %v6518, %v995
        %v6535 = vmul.f32 %v6519, %v995
        %v6536 = vmul.f32 %v6520, %v995
        %v6537 = vmul.f32 %v6521, %v995
        %v6538 = vmul.f32 %v6522, %v995
        %6539 = vset.pattern.permute.xlu0 21
        %6540 = vperm.xlu0 %6539, %v6314
        %v6541 = vpop.permute.xlu0 %6540
        %6543 = vset.pattern.permute.xlu0 21
        %6544 = vperm.xlu0 %6543, %v6315
        %v6545 = vpop.permute.xlu0 %6544
        %6547 = vset.pattern.permute.xlu0 21
        %6548 = vperm.xlu0 %6547, %v6316
        %v6549 = vpop.permute.xlu0 %6548
        %6551 = vset.pattern.permute.xlu0 21
        %6552 = vperm.xlu0 %6551, %v6317
        %v6553 = vpop.permute.xlu0 %6552
        %6555 = vset.pattern.permute.xlu0 21
        %6556 = vperm.xlu0 %6555, %v6318
        %v6557 = vpop.permute.xlu0 %6556
        %6559 = vset.pattern.permute.xlu0 21
        %6560 = vperm.xlu0 %6559, %v6319
        %v6561 = vpop.permute.xlu0 %6560
        %6563 = vset.pattern.permute.xlu0 21
        %6564 = vperm.xlu0 %6563, %v6320
        %v6565 = vpop.permute.xlu0 %6564
        %6567 = vset.pattern.permute.xlu0 21
        %6568 = vperm.xlu0 %6567, %v6321
        %v6569 = vpop.permute.xlu0 %6568
        %6571 = vset.pattern.permute.xlu0 21
        %6572 = vperm.xlu0 %6571, %v6322
        %v6573 = vpop.permute.xlu0 %6572
        %6575 = vset.pattern.permute.xlu0 21
        %6576 = vperm.xlu0 %6575, %v6323
        %v6577 = vpop.permute.xlu0 %6576
        %6579 = vset.pattern.permute.xlu0 21
        %6580 = vperm.xlu0 %6579, %v6324
        %v6581 = vpop.permute.xlu0 %6580
        %6583 = vset.pattern.permute.xlu0 21
        %6584 = vperm.xlu0 %6583, %v6325
        %v6585 = vpop.permute.xlu0 %6584
        %6587 = vset.pattern.permute.xlu0 21
        %6588 = vperm.xlu0 %6587, %v6326
        %v6589 = vpop.permute.xlu0 %6588
        %6591 = vset.pattern.permute.xlu0 21
        %6592 = vperm.xlu0 %6591, %v6327
        %v6593 = vpop.permute.xlu0 %6592
        %6595 = vset.pattern.permute.xlu0 21
        %6596 = vperm.xlu0 %6595, %v6328
        %v6597 = vpop.permute.xlu0 %6596
        %6599 = vset.pattern.permute.xlu0 21
        %6600 = vperm.xlu0 %6599, %v6329
        %v6601 = vpop.permute.xlu0 %6600
        %v6603 = vmul.f32 %v6523, %v6541
        %v6604 = vmul.f32 %v6524, %v6545
        %v6605 = vmul.f32 %v6525, %v6549
        %v6606 = vmul.f32 %v6526, %v6553
        %v6607 = vmul.f32 %v6527, %v6557
        %v6608 = vmul.f32 %v6528, %v6561
        %v6609 = vmul.f32 %v6529, %v6565
        %v6610 = vmul.f32 %v6530, %v6569
        %v6611 = vmul.f32 %v6531, %v6573
        %v6612 = vmul.f32 %v6532, %v6577
        %v6613 = vmul.f32 %v6533, %v6581
        %v6614 = vmul.f32 %v6534, %v6585
        %v6615 = vmul.f32 %v6535, %v6589
        %v6616 = vmul.f32 %v6536, %v6593
        %v6617 = vmul.f32 %v6537, %v6597
        %v6618 = vmul.f32 %v6538, %v6601
        %v6619 = vadd.f32 %v6426, %v6603
        %v6620 = vadd.f32 %v6427, %v6604
        %v6621 = vadd.f32 %v6428, %v6605
        %v6622 = vadd.f32 %v6429, %v6606
        %v6623 = vadd.f32 %v6430, %v6607
        %v6624 = vadd.f32 %v6431, %v6608
        %v6625 = vadd.f32 %v6432, %v6609
        %v6626 = vadd.f32 %v6433, %v6610
        %v6627 = vadd.f32 %v6434, %v6611
        %v6628 = vadd.f32 %v6435, %v6612
        %v6629 = vadd.f32 %v6436, %v6613
        %v6630 = vadd.f32 %v6437, %v6614
        %v6631 = vadd.f32 %v6438, %v6615
        %v6632 = vadd.f32 %v6439, %v6616
        %v6633 = vadd.f32 %v6440, %v6617
        %v6634 = vadd.f32 %v6441, %v6618
        %v6635 = vld [vmem:[%s1336] sm:$0xff]
        %v6636 = vld [vmem:[%s1336 + $0x8] sm:$0xff]
        %v6637 = vld [vmem:[%s1336 + $0x10] sm:$0xff]
        %v6638 = vld [vmem:[%s1336 + $0x18] sm:$0xff]
        %v6639 = vld [vmem:[%s1336 + $0x20] sm:$0xff]
        %v6640 = vld [vmem:[%s1336 + $0x28] sm:$0xff]
        %v6641 = vld [vmem:[%s1336 + $0x30] sm:$0xff]
        %v6642 = vld [vmem:[%s1336 + $0x38] sm:$0xff]
        %v6643 = vpack.c.bf16 %v6636, %v6635
        %v6644 = vpack.c.bf16 %v6638, %v6637
        %v6645 = vpack.c.bf16 %v6640, %v6639
        %v6646 = vpack.c.bf16 %v6642, %v6641
        %v6647 = vld [vmem:[%s1349] sm:$0x1]
        %v6649 = vperm.slane %v6647, 0
        %6651 = vmatpush.bf16.msra.mxu0 0
        %6652 = vmatpush.bf16.msra.mxu0 0
        %6653 = vmatpush.bf16.msra.mxu0 0
        %6654 = vmatpush.bf16.msra.mxu0 0
        %6655 = vmatpush.bf16.msra.mxu0 %v6646
        %6656 = vmatpush.bf16.msra.mxu0 %v6645
        %6657 = vmatpush.bf16.msra.mxu0 %v6644
        %6658 = vmatpush.bf16.msra.mxu0 %v6643
        %6659 = vmatmul.bf16.gmra.mxu0 %v6032
        %v6660 = vpop.f32.mrf.mxu0
        %v6661 = vadd.f32 %v6649, %v6660
        %v6662 = vpop.f32.mrf.mxu0
        %v6663 = vadd.f32 %v6649, %v6662
        %6664 = vmatmul.bf16.gmra.mxu0 %v6035
        %v6665 = vpop.f32.mrf.mxu0
        %v6666 = vadd.f32 %v6649, %v6665
        %v6667 = vpop.f32.mrf.mxu0
        %v6668 = vadd.f32 %v6649, %v6667
        %6669 = vmatmul.bf16.gmra.mxu0 %v6038
        %v6670 = vpop.f32.mrf.mxu0
        %v6671 = vadd.f32 %v6649, %v6670
        %v6672 = vpop.f32.mrf.mxu0
        %v6673 = vadd.f32 %v6649, %v6672
        %6674 = vmatmul.bf16.gmra.mxu0 %v6041
        %v6675 = vpop.f32.mrf.mxu0
        %v6676 = vadd.f32 %v6649, %v6675
        %v6677 = vpop.f32.mrf.mxu0
        %v6678 = vadd.f32 %v6649, %v6677
        %6679 = vmatmul.bf16.gmra.mxu0 %v6044
        %v6680 = vpop.f32.mrf.mxu0
        %v6681 = vadd.f32 %v6649, %v6680
        %v6682 = vpop.f32.mrf.mxu0
        %v6683 = vadd.f32 %v6649, %v6682
        %6684 = vmatmul.bf16.gmra.mxu0 %v6047
        %v6685 = vpop.f32.mrf.mxu0
        %v6686 = vadd.f32 %v6649, %v6685
        %v6687 = vpop.f32.mrf.mxu0
        %v6688 = vadd.f32 %v6649, %v6687
        %6689 = vmatmul.bf16.gmra.mxu0 %v6050
        %v6690 = vpop.f32.mrf.mxu0
        %v6691 = vadd.f32 %v6649, %v6690
        %v6692 = vpop.f32.mrf.mxu0
        %v6693 = vadd.f32 %v6649, %v6692
        %6694 = vmatmul.bf16.gmra.mxu0 %v6053
        %v6695 = vpop.f32.mrf.mxu0
        %v6696 = vadd.f32 %v6649, %v6695
        %v6697 = vpop.f32.mrf.mxu0
        %v6698 = vadd.f32 %v6649, %v6697
        %6699 = vdwg.mxu0
        %v6700 = vtanh.pop %v6661
        %v6701 = vtanh.pop %v6663
        %v6702 = vtanh.pop %v6666
        %v6703 = vtanh.pop %v6668
        %v6704 = vtanh.pop %v6671
        %v6705 = vtanh.pop %v6673
        %v6706 = vtanh.pop %v6676
        %v6707 = vtanh.pop %v6678
        %v6708 = vtanh.pop %v6681
        %v6709 = vtanh.pop %v6683
        %v6710 = vtanh.pop %v6686
        %v6711 = vtanh.pop %v6688
        %v6712 = vtanh.pop %v6691
        %v6713 = vtanh.pop %v6693
        %v6714 = vtanh.pop %v6696
        %v6715 = vtanh.pop %v6698
        %v6716 = vmul.f32 %v6700, %v995
        %v6717 = vmul.f32 %v6701, %v995
        %v6718 = vmul.f32 %v6702, %v995
        %v6719 = vmul.f32 %v6703, %v995
        %v6720 = vmul.f32 %v6704, %v995
        %v6721 = vmul.f32 %v6705, %v995
        %v6722 = vmul.f32 %v6706, %v995
        %v6723 = vmul.f32 %v6707, %v995
        %v6724 = vmul.f32 %v6708, %v995
        %v6725 = vmul.f32 %v6709, %v995
        %v6726 = vmul.f32 %v6710, %v995
        %v6727 = vmul.f32 %v6711, %v995
        %v6728 = vmul.f32 %v6712, %v995
        %v6729 = vmul.f32 %v6713, %v995
        %v6730 = vmul.f32 %v6714, %v995
        %v6731 = vmul.f32 %v6715, %v995
        %6732 = vset.pattern.permute.xlu0 22
        %6733 = vperm.xlu0 %6732, %v6314
        %v6734 = vpop.permute.xlu0 %6733
        %6736 = vset.pattern.permute.xlu0 22
        %6737 = vperm.xlu0 %6736, %v6315
        %v6738 = vpop.permute.xlu0 %6737
        %6740 = vset.pattern.permute.xlu0 22
        %6741 = vperm.xlu0 %6740, %v6316
        %v6742 = vpop.permute.xlu0 %6741
        %6744 = vset.pattern.permute.xlu0 22
        %6745 = vperm.xlu0 %6744, %v6317
        %v6746 = vpop.permute.xlu0 %6745
        %6748 = vset.pattern.permute.xlu0 22
        %6749 = vperm.xlu0 %6748, %v6318
        %v6750 = vpop.permute.xlu0 %6749
        %6752 = vset.pattern.permute.xlu0 22
        %6753 = vperm.xlu0 %6752, %v6319
        %v6754 = vpop.permute.xlu0 %6753
        %6756 = vset.pattern.permute.xlu0 22
        %6757 = vperm.xlu0 %6756, %v6320
        %v6758 = vpop.permute.xlu0 %6757
        %6760 = vset.pattern.permute.xlu0 22
        %6761 = vperm.xlu0 %6760, %v6321
        %v6762 = vpop.permute.xlu0 %6761
        %6764 = vset.pattern.permute.xlu0 22
        %6765 = vperm.xlu0 %6764, %v6322
        %v6766 = vpop.permute.xlu0 %6765
        %6768 = vset.pattern.permute.xlu0 22
        %6769 = vperm.xlu0 %6768, %v6323
        %v6770 = vpop.permute.xlu0 %6769
        %6772 = vset.pattern.permute.xlu0 22
        %6773 = vperm.xlu0 %6772, %v6324
        %v6774 = vpop.permute.xlu0 %6773
        %6776 = vset.pattern.permute.xlu0 22
        %6777 = vperm.xlu0 %6776, %v6325
        %v6778 = vpop.permute.xlu0 %6777
        %6780 = vset.pattern.permute.xlu0 22
        %6781 = vperm.xlu0 %6780, %v6326
        %v6782 = vpop.permute.xlu0 %6781
        %6784 = vset.pattern.permute.xlu0 22
        %6785 = vperm.xlu0 %6784, %v6327
        %v6786 = vpop.permute.xlu0 %6785
        %6788 = vset.pattern.permute.xlu0 22
        %6789 = vperm.xlu0 %6788, %v6328
        %v6790 = vpop.permute.xlu0 %6789
        %6792 = vset.pattern.permute.xlu0 22
        %6793 = vperm.xlu0 %6792, %v6329
        %v6794 = vpop.permute.xlu0 %6793
        %v6796 = vmul.f32 %v6716, %v6734
        %v6797 = vmul.f32 %v6717, %v6738
        %v6798 = vmul.f32 %v6718, %v6742
        %v6799 = vmul.f32 %v6719, %v6746
        %v6800 = vmul.f32 %v6720, %v6750
        %v6801 = vmul.f32 %v6721, %v6754
        %v6802 = vmul.f32 %v6722, %v6758
        %v6803 = vmul.f32 %v6723, %v6762
        %v6804 = vmul.f32 %v6724, %v6766
        %v6805 = vmul.f32 %v6725, %v6770
        %v6806 = vmul.f32 %v6726, %v6774
        %v6807 = vmul.f32 %v6727, %v6778
        %v6808 = vmul.f32 %v6728, %v6782
        %v6809 = vmul.f32 %v6729, %v6786
        %v6810 = vmul.f32 %v6730, %v6790
        %v6811 = vmul.f32 %v6731, %v6794
        %v6812 = vadd.f32 %v6619, %v6796
        %v6813 = vadd.f32 %v6620, %v6797
        %v6814 = vadd.f32 %v6621, %v6798
        %v6815 = vadd.f32 %v6622, %v6799
        %v6816 = vadd.f32 %v6623, %v6800
        %v6817 = vadd.f32 %v6624, %v6801
        %v6818 = vadd.f32 %v6625, %v6802
        %v6819 = vadd.f32 %v6626, %v6803
        %v6820 = vadd.f32 %v6627, %v6804
        %v6821 = vadd.f32 %v6628, %v6805
        %v6822 = vadd.f32 %v6629, %v6806
        %v6823 = vadd.f32 %v6630, %v6807
        %v6824 = vadd.f32 %v6631, %v6808
        %v6825 = vadd.f32 %v6632, %v6809
        %v6826 = vadd.f32 %v6633, %v6810
        %v6827 = vadd.f32 %v6634, %v6811
        %v6828 = vld [vmem:[%s1531] sm:$0xff]
        %v6829 = vld [vmem:[%s1531 + $0x8] sm:$0xff]
        %v6830 = vld [vmem:[%s1531 + $0x10] sm:$0xff]
        %v6831 = vld [vmem:[%s1531 + $0x18] sm:$0xff]
        %v6832 = vld [vmem:[%s1531 + $0x20] sm:$0xff]
        %v6833 = vld [vmem:[%s1531 + $0x28] sm:$0xff]
        %v6834 = vld [vmem:[%s1531 + $0x30] sm:$0xff]
        %v6835 = vld [vmem:[%s1531 + $0x38] sm:$0xff]
        %v6836 = vpack.c.bf16 %v6829, %v6828
        %v6837 = vpack.c.bf16 %v6831, %v6830
        %v6838 = vpack.c.bf16 %v6833, %v6832
        %v6839 = vpack.c.bf16 %v6835, %v6834
        %v6840 = vld [vmem:[%s1544] sm:$0x1]
        %v6842 = vperm.slane %v6840, 0
        %6844 = vmatpush.bf16.msra.mxu0 0
        %6845 = vmatpush.bf16.msra.mxu0 0
        %6846 = vmatpush.bf16.msra.mxu0 0
        %6847 = vmatpush.bf16.msra.mxu0 0
        %6848 = vmatpush.bf16.msra.mxu0 %v6839
        %6849 = vmatpush.bf16.msra.mxu0 %v6838
        %6850 = vmatpush.bf16.msra.mxu0 %v6837
        %6851 = vmatpush.bf16.msra.mxu0 %v6836
        %6852 = vmatmul.bf16.gmra.mxu0 %v6032
        %v6853 = vpop.f32.mrf.mxu0
        %v6854 = vadd.f32 %v6842, %v6853
        %v6855 = vpop.f32.mrf.mxu0
        %v6856 = vadd.f32 %v6842, %v6855
        %6857 = vmatmul.bf16.gmra.mxu0 %v6035
        %v6858 = vpop.f32.mrf.mxu0
        %v6859 = vadd.f32 %v6842, %v6858
        %v6860 = vpop.f32.mrf.mxu0
        %v6861 = vadd.f32 %v6842, %v6860
        %6862 = vmatmul.bf16.gmra.mxu0 %v6038
        %v6863 = vpop.f32.mrf.mxu0
        %v6864 = vadd.f32 %v6842, %v6863
        %v6865 = vpop.f32.mrf.mxu0
        %v6866 = vadd.f32 %v6842, %v6865
        %6867 = vmatmul.bf16.gmra.mxu0 %v6041
        %v6868 = vpop.f32.mrf.mxu0
        %v6869 = vadd.f32 %v6842, %v6868
        %v6870 = vpop.f32.mrf.mxu0
        %v6871 = vadd.f32 %v6842, %v6870
        %6872 = vmatmul.bf16.gmra.mxu0 %v6044
        %v6873 = vpop.f32.mrf.mxu0
        %v6874 = vadd.f32 %v6842, %v6873
        %v6875 = vpop.f32.mrf.mxu0
        %v6876 = vadd.f32 %v6842, %v6875
        %6877 = vmatmul.bf16.gmra.mxu0 %v6047
        %v6878 = vpop.f32.mrf.mxu0
        %v6879 = vadd.f32 %v6842, %v6878
        %v6880 = vpop.f32.mrf.mxu0
        %v6881 = vadd.f32 %v6842, %v6880
        %6882 = vmatmul.bf16.gmra.mxu0 %v6050
        %v6883 = vpop.f32.mrf.mxu0
        %v6884 = vadd.f32 %v6842, %v6883
        %v6885 = vpop.f32.mrf.mxu0
        %v6886 = vadd.f32 %v6842, %v6885
        %6887 = vmatmul.bf16.gmra.mxu0 %v6053
        %v6888 = vpop.f32.mrf.mxu0
        %v6889 = vadd.f32 %v6842, %v6888
        %v6890 = vpop.f32.mrf.mxu0
        %v6891 = vadd.f32 %v6842, %v6890
        %6892 = vdwg.mxu0
        %v6893 = vtanh.pop %v6854
        %v6894 = vtanh.pop %v6856
        %v6895 = vtanh.pop %v6859
        %v6896 = vtanh.pop %v6861
        %v6897 = vtanh.pop %v6864
        %v6898 = vtanh.pop %v6866
        %v6899 = vtanh.pop %v6869
        %v6900 = vtanh.pop %v6871
        %v6901 = vtanh.pop %v6874
        %v6902 = vtanh.pop %v6876
        %v6903 = vtanh.pop %v6879
        %v6904 = vtanh.pop %v6881
        %v6905 = vtanh.pop %v6884
        %v6906 = vtanh.pop %v6886
        %v6907 = vtanh.pop %v6889
        %v6908 = vtanh.pop %v6891
        %v6909 = vmul.f32 %v6893, %v995
        %v6910 = vmul.f32 %v6894, %v995
        %v6911 = vmul.f32 %v6895, %v995
        %v6912 = vmul.f32 %v6896, %v995
        %v6913 = vmul.f32 %v6897, %v995
        %v6914 = vmul.f32 %v6898, %v995
        %v6915 = vmul.f32 %v6899, %v995
        %v6916 = vmul.f32 %v6900, %v995
        %v6917 = vmul.f32 %v6901, %v995
        %v6918 = vmul.f32 %v6902, %v995
        %v6919 = vmul.f32 %v6903, %v995
        %v6920 = vmul.f32 %v6904, %v995
        %v6921 = vmul.f32 %v6905, %v995
        %v6922 = vmul.f32 %v6906, %v995
        %v6923 = vmul.f32 %v6907, %v995
        %v6924 = vmul.f32 %v6908, %v995
        %6925 = vset.pattern.permute.xlu0 23
        %6926 = vperm.xlu0 %6925, %v6314
        %v6927 = vpop.permute.xlu0 %6926
        %6929 = vset.pattern.permute.xlu0 23
        %6930 = vperm.xlu0 %6929, %v6315
        %v6931 = vpop.permute.xlu0 %6930
        %6933 = vset.pattern.permute.xlu0 23
        %6934 = vperm.xlu0 %6933, %v6316
        %v6935 = vpop.permute.xlu0 %6934
        %6937 = vset.pattern.permute.xlu0 23
        %6938 = vperm.xlu0 %6937, %v6317
        %v6939 = vpop.permute.xlu0 %6938
        %6941 = vset.pattern.permute.xlu0 23
        %6942 = vperm.xlu0 %6941, %v6318
        %v6943 = vpop.permute.xlu0 %6942
        %6945 = vset.pattern.permute.xlu0 23
        %6946 = vperm.xlu0 %6945, %v6319
        %v6947 = vpop.permute.xlu0 %6946
        %6949 = vset.pattern.permute.xlu0 23
        %6950 = vperm.xlu0 %6949, %v6320
        %v6951 = vpop.permute.xlu0 %6950
        %6953 = vset.pattern.permute.xlu0 23
        %6954 = vperm.xlu0 %6953, %v6321
        %v6955 = vpop.permute.xlu0 %6954
        %6957 = vset.pattern.permute.xlu0 23
        %6958 = vperm.xlu0 %6957, %v6322
        %v6959 = vpop.permute.xlu0 %6958
        %6961 = vset.pattern.permute.xlu0 23
        %6962 = vperm.xlu0 %6961, %v6323
        %v6963 = vpop.permute.xlu0 %6962
        %6965 = vset.pattern.permute.xlu0 23
        %6966 = vperm.xlu0 %6965, %v6324
        %v6967 = vpop.permute.xlu0 %6966
        %6969 = vset.pattern.permute.xlu0 23
        %6970 = vperm.xlu0 %6969, %v6325
        %v6971 = vpop.permute.xlu0 %6970
        %6973 = vset.pattern.permute.xlu0 23
        %6974 = vperm.xlu0 %6973, %v6326
        %v6975 = vpop.permute.xlu0 %6974
        %6977 = vset.pattern.permute.xlu0 23
        %6978 = vperm.xlu0 %6977, %v6327
        %v6979 = vpop.permute.xlu0 %6978
        %6981 = vset.pattern.permute.xlu0 23
        %6982 = vperm.xlu0 %6981, %v6328
        %v6983 = vpop.permute.xlu0 %6982
        %6985 = vset.pattern.permute.xlu0 23
        %6986 = vperm.xlu0 %6985, %v6329
        %v6987 = vpop.permute.xlu0 %6986
        %v6989 = vmul.f32 %v6909, %v6927
        %v6990 = vmul.f32 %v6910, %v6931
        %v6991 = vmul.f32 %v6911, %v6935
        %v6992 = vmul.f32 %v6912, %v6939
        %v6993 = vmul.f32 %v6913, %v6943
        %v6994 = vmul.f32 %v6914, %v6947
        %v6995 = vmul.f32 %v6915, %v6951
        %v6996 = vmul.f32 %v6916, %v6955
        %v6997 = vmul.f32 %v6917, %v6959
        %v6998 = vmul.f32 %v6918, %v6963
        %v6999 = vmul.f32 %v6919, %v6967
        %v7000 = vmul.f32 %v6920, %v6971
        %v7001 = vmul.f32 %v6921, %v6975
        %v7002 = vmul.f32 %v6922, %v6979
        %v7003 = vmul.f32 %v6923, %v6983
        %v7004 = vmul.f32 %v6924, %v6987
        %v7005 = vadd.f32 %v6812, %v6989
        %v7006 = vadd.f32 %v6813, %v6990
        %v7007 = vadd.f32 %v6814, %v6991
        %v7008 = vadd.f32 %v6815, %v6992
        %v7009 = vadd.f32 %v6816, %v6993
        %v7010 = vadd.f32 %v6817, %v6994
        %v7011 = vadd.f32 %v6818, %v6995
        %v7012 = vadd.f32 %v6819, %v6996
        %v7013 = vadd.f32 %v6820, %v6997
        %v7014 = vadd.f32 %v6821, %v6998
        %v7015 = vadd.f32 %v6822, %v6999
        %v7016 = vadd.f32 %v6823, %v7000
        %v7017 = vadd.f32 %v6824, %v7001
        %v7018 = vadd.f32 %v6825, %v7002
        %v7019 = vadd.f32 %v6826, %v7003
        %v7020 = vadd.f32 %v6827, %v7004
        %v7021 = vadd.f32 %v5978, %v6201
        %v7022 = vadd.f32 %v5979, %v6202
        %v7023 = vadd.f32 %v5980, %v6203
        %v7024 = vadd.f32 %v5981, %v6204
        %v7025 = vadd.f32 %v5982, %v6205
        %v7026 = vadd.f32 %v5983, %v6206
        %v7027 = vadd.f32 %v5984, %v6207
        %v7028 = vadd.f32 %v5985, %v6208
        %v7029 = vadd.f32 %v5986, %v6209
        %v7030 = vadd.f32 %v5987, %v6210
        %v7031 = vadd.f32 %v5988, %v6211
        %v7032 = vadd.f32 %v5989, %v6212
        %v7033 = vadd.f32 %v5990, %v6213
        %v7034 = vadd.f32 %v5991, %v6214
        %v7035 = vadd.f32 %v5992, %v6215
        %v7036 = vadd.f32 %v5993, %v6216
        %v7037 = vadd.f32 %v7021, %v7005
        %v7038 = vadd.f32 %v7022, %v7006
        %v7039 = vadd.f32 %v7023, %v7007
        %v7040 = vadd.f32 %v7024, %v7008
        %v7041 = vadd.f32 %v7025, %v7009
        %v7042 = vadd.f32 %v7026, %v7010
        %v7043 = vadd.f32 %v7027, %v7011
        %v7044 = vadd.f32 %v7028, %v7012
        %v7045 = vadd.f32 %v7029, %v7013
        %v7046 = vadd.f32 %v7030, %v7014
        %v7047 = vadd.f32 %v7031, %v7015
        %v7048 = vadd.f32 %v7032, %v7016
        %v7049 = vadd.f32 %v7033, %v7017
        %v7050 = vadd.f32 %v7034, %v7018
        %v7051 = vadd.f32 %v7035, %v7019
        %v7052 = vadd.f32 %v7036, %v7020
        %v7053 = vld [vmem:[%s432] sm:$0xff]
        %v7054 = vld [vmem:[%s432 + $0x8] sm:$0xff]
        %v7055 = vld [vmem:[%s432 + $0x10] sm:$0xff]
        %v7056 = vld [vmem:[%s432 + $0x18] sm:$0xff]
        %v7057 = vld [vmem:[%s432 + $0x20] sm:$0xff]
        %v7058 = vld [vmem:[%s432 + $0x28] sm:$0xff]
        %v7059 = vld [vmem:[%s432 + $0x30] sm:$0xff]
        %v7060 = vld [vmem:[%s432 + $0x38] sm:$0xff]
        %v7061 = vld [vmem:[%s432 + $0x40] sm:$0xff]
        %v7062 = vld [vmem:[%s432 + $0x48] sm:$0xff]
        %v7063 = vld [vmem:[%s432 + $0x50] sm:$0xff]
        %v7064 = vld [vmem:[%s432 + $0x58] sm:$0xff]
        %v7065 = vld [vmem:[%s432 + $0x60] sm:$0xff]
        %v7066 = vld [vmem:[%s432 + $0x68] sm:$0xff]
        %v7067 = vld [vmem:[%s432 + $0x70] sm:$0xff]
        %v7068 = vld [vmem:[%s432 + $0x78] sm:$0xff]
        %s7069 = scalar_lea.vmem %s9, 384
        %v7070 = vld [vmem:[%s7069] sm:$0xff]
        %v7071 = vld [vmem:[%s7069 + $0x8] sm:$0xff]
        %v7072 = vld [vmem:[%s7069 + $0x10] sm:$0xff]
        %v7073 = vld [vmem:[%s7069 + $0x18] sm:$0xff]
        %v7074 = vld [vmem:[%s7069 + $0x20] sm:$0xff]
        %v7075 = vld [vmem:[%s7069 + $0x28] sm:$0xff]
        %v7076 = vld [vmem:[%s7069 + $0x30] sm:$0xff]
        %v7077 = vld [vmem:[%s7069 + $0x38] sm:$0xff]
        %v7078 = vpack.c.bf16 %v7038, %v7037
        %v7079 = vpack.c.bf16 %v7040, %v7039
        %v7080 = vpack.c.bf16 %v7042, %v7041
        %v7081 = vpack.c.bf16 %v7044, %v7043
        %v7082 = vpack.c.bf16 %v7046, %v7045
        %v7083 = vpack.c.bf16 %v7048, %v7047
        %v7084 = vpack.c.bf16 %v7050, %v7049
        %v7085 = vpack.c.bf16 %v7052, %v7051
        %v7086 = vpack.c.bf16 %v7071, %v7070
        %v7087 = vpack.c.bf16 %v7073, %v7072
        %v7088 = vpack.c.bf16 %v7075, %v7074
        %v7089 = vpack.c.bf16 %v7077, %v7076
        %v7091 = vsel %vm721, %v7078, 0
        %v7094 = vsel %vm721, %v7079, 0
        %v7097 = vsel %vm721, %v7080, 0
        %v7100 = vsel %vm721, %v7081, 0
        %v7103 = vsel %vm721, %v7082, 0
        %v7106 = vsel %vm721, %v7083, 0
        %v7109 = vsel %vm721, %v7084, 0
        %v7112 = vsel %vm721, %v7085, 0
        %7114 = vmatpush.bf16.msra.mxu0 0
        %7115 = vmatpush.bf16.msra.mxu0 0
        %7116 = vmatpush.bf16.msra.mxu0 0
        %7117 = vmatpush.bf16.msra.mxu0 0
        %7118 = vmatpush.bf16.msra.mxu0 %v7089
        %7119 = vmatpush.bf16.msra.mxu0 %v7088
        %7120 = vmatpush.bf16.msra.mxu0 %v7087
        %7121 = vmatpush.bf16.msra.mxu0 %v7086
        %7122 = vmatmul.bf16.gmra.mxu0 %v7091
        %v7123 = vpop.f32.mrf.mxu0
        %v7124 = vadd.f32 0.0, %v7123
        %v7125 = vpop.f32.mrf.mxu0
        %v7126 = vadd.f32 0.0, %v7125
        %7127 = vmatmul.bf16.gmra.mxu0 %v7094
        %v7128 = vpop.f32.mrf.mxu0
        %v7129 = vadd.f32 0.0, %v7128
        %v7130 = vpop.f32.mrf.mxu0
        %v7131 = vadd.f32 0.0, %v7130
        %7132 = vmatmul.bf16.gmra.mxu0 %v7097
        %v7133 = vpop.f32.mrf.mxu0
        %v7134 = vadd.f32 0.0, %v7133
        %v7135 = vpop.f32.mrf.mxu0
        %v7136 = vadd.f32 0.0, %v7135
        %7137 = vmatmul.bf16.gmra.mxu0 %v7100
        %v7138 = vpop.f32.mrf.mxu0
        %v7139 = vadd.f32 0.0, %v7138
        %v7140 = vpop.f32.mrf.mxu0
        %v7141 = vadd.f32 0.0, %v7140
        %7142 = vmatmul.bf16.gmra.mxu0 %v7103
        %v7143 = vpop.f32.mrf.mxu0
        %v7144 = vadd.f32 0.0, %v7143
        %v7145 = vpop.f32.mrf.mxu0
        %v7146 = vadd.f32 0.0, %v7145
        %7147 = vmatmul.bf16.gmra.mxu0 %v7106
        %v7148 = vpop.f32.mrf.mxu0
        %v7149 = vadd.f32 0.0, %v7148
        %v7150 = vpop.f32.mrf.mxu0
        %v7151 = vadd.f32 0.0, %v7150
        %7152 = vmatmul.bf16.gmra.mxu0 %v7109
        %v7153 = vpop.f32.mrf.mxu0
        %v7154 = vadd.f32 0.0, %v7153
        %v7155 = vpop.f32.mrf.mxu0
        %v7156 = vadd.f32 0.0, %v7155
        %7157 = vmatmul.bf16.gmra.mxu0 %v7112
        %v7158 = vpop.f32.mrf.mxu0
        %v7159 = vadd.f32 0.0, %v7158
        %v7160 = vpop.f32.mrf.mxu0
        %v7161 = vadd.f32 0.0, %v7160
        %7162 = vdwg.mxu0
        %v7163 = vadd.f32 %v7053, %v7124
        %v7164 = vadd.f32 %v7054, %v7126
        %v7165 = vadd.f32 %v7055, %v7129
        %v7166 = vadd.f32 %v7056, %v7131
        %v7167 = vadd.f32 %v7057, %v7134
        %v7168 = vadd.f32 %v7058, %v7136
        %v7169 = vadd.f32 %v7059, %v7139
        %v7170 = vadd.f32 %v7060, %v7141
        %v7171 = vadd.f32 %v7061, %v7144
        %v7172 = vadd.f32 %v7062, %v7146
        %v7173 = vadd.f32 %v7063, %v7149
        %v7174 = vadd.f32 %v7064, %v7151
        %v7175 = vadd.f32 %v7065, %v7154
        %v7176 = vadd.f32 %v7066, %v7156
        %v7177 = vadd.f32 %v7067, %v7159
        %v7178 = vadd.f32 %v7068, %v7161
        %7179 = vst [vmem:[%s432] sm:$0xff] %v7163
        %7180 = vst [vmem:[%s432 + $0x8] sm:$0xff] %v7164
        %7181 = vst [vmem:[%s432 + $0x10] sm:$0xff] %v7165
        %7182 = vst [vmem:[%s432 + $0x18] sm:$0xff] %v7166
        %7183 = vst [vmem:[%s432 + $0x20] sm:$0xff] %v7167
        %7184 = vst [vmem:[%s432 + $0x28] sm:$0xff] %v7168
        %7185 = vst [vmem:[%s432 + $0x30] sm:$0xff] %v7169
        %7186 = vst [vmem:[%s432 + $0x38] sm:$0xff] %v7170
        %7187 = vst [vmem:[%s432 + $0x40] sm:$0xff] %v7171
        %7188 = vst [vmem:[%s432 + $0x48] sm:$0xff] %v7172
        %7189 = vst [vmem:[%s432 + $0x50] sm:$0xff] %v7173
        %7190 = vst [vmem:[%s432 + $0x58] sm:$0xff] %v7174
        %7191 = vst [vmem:[%s432 + $0x60] sm:$0xff] %v7175
        %7192 = vst [vmem:[%s432 + $0x68] sm:$0xff] %v7176
        %7193 = vst [vmem:[%s432 + $0x70] sm:$0xff] %v7177
        %7194 = vst [vmem:[%s432 + $0x78] sm:$0xff] %v7178
        %v7195 = vld [vmem:[#allocation6] sm:$0xff]
        %v7196 = vld [vmem:[#allocation6 + $0x8] sm:$0xff]
        %v7197 = vld [vmem:[#allocation6 + $0x10] sm:$0xff]
        %v7198 = vld [vmem:[#allocation6 + $0x18] sm:$0xff]
        %v7199 = vld [vmem:[#allocation6 + $0x20] sm:$0xff]
        %v7200 = vld [vmem:[#allocation6 + $0x28] sm:$0xff]
        %v7201 = vld [vmem:[#allocation6 + $0x30] sm:$0xff]
        %v7202 = vld [vmem:[#allocation6 + $0x38] sm:$0xff]
        %v7203 = vpack.c.bf16 %v7196, %v7195
        %v7204 = vpack.c.bf16 %v7198, %v7197
        %v7205 = vpack.c.bf16 %v7200, %v7199
        %v7206 = vpack.c.bf16 %v7202, %v7201
        %v7207 = vld [vmem:[%s7] sm:$0x1]
        %v7209 = vperm.slane %v7207, 0
        %7211 = vmatpush.bf16.msra.mxu0 0
        %7212 = vmatpush.bf16.msra.mxu0 0
        %7213 = vmatpush.bf16.msra.mxu0 0
        %7214 = vmatpush.bf16.msra.mxu0 0
        %7215 = vmatpush.bf16.msra.mxu0 %v7206
        %7216 = vmatpush.bf16.msra.mxu0 %v7205
        %7217 = vmatpush.bf16.msra.mxu0 %v7204
        %7218 = vmatpush.bf16.msra.mxu0 %v7203
        %7219 = vmatmul.bf16.gmra.mxu0 %v7091
        %v7220 = vpop.f32.mrf.mxu0
        %v7221 = vadd.f32 %v7209, %v7220
        %v7222 = vpop.f32.mrf.mxu0
        %v7223 = vadd.f32 %v7209, %v7222
        %7224 = vmatmul.bf16.gmra.mxu0 %v7094
        %v7225 = vpop.f32.mrf.mxu0
        %v7226 = vadd.f32 %v7209, %v7225
        %v7227 = vpop.f32.mrf.mxu0
        %v7228 = vadd.f32 %v7209, %v7227
        %7229 = vmatmul.bf16.gmra.mxu0 %v7097
        %v7230 = vpop.f32.mrf.mxu0
        %v7231 = vadd.f32 %v7209, %v7230
        %v7232 = vpop.f32.mrf.mxu0
        %v7233 = vadd.f32 %v7209, %v7232
        %7234 = vmatmul.bf16.gmra.mxu0 %v7100
        %v7235 = vpop.f32.mrf.mxu0
        %v7236 = vadd.f32 %v7209, %v7235
        %v7237 = vpop.f32.mrf.mxu0
        %v7238 = vadd.f32 %v7209, %v7237
        %7239 = vmatmul.bf16.gmra.mxu0 %v7103
        %v7240 = vpop.f32.mrf.mxu0
        %v7241 = vadd.f32 %v7209, %v7240
        %v7242 = vpop.f32.mrf.mxu0
        %v7243 = vadd.f32 %v7209, %v7242
        %7244 = vmatmul.bf16.gmra.mxu0 %v7106
        %v7245 = vpop.f32.mrf.mxu0
        %v7246 = vadd.f32 %v7209, %v7245
        %v7247 = vpop.f32.mrf.mxu0
        %v7248 = vadd.f32 %v7209, %v7247
        %7249 = vmatmul.bf16.gmra.mxu0 %v7109
        %v7250 = vpop.f32.mrf.mxu0
        %v7251 = vadd.f32 %v7209, %v7250
        %v7252 = vpop.f32.mrf.mxu0
        %v7253 = vadd.f32 %v7209, %v7252
        %7254 = vmatmul.bf16.gmra.mxu0 %v7112
        %v7255 = vpop.f32.mrf.mxu0
        %v7256 = vadd.f32 %v7209, %v7255
        %v7257 = vpop.f32.mrf.mxu0
        %v7258 = vadd.f32 %v7209, %v7257
        %7259 = vdwg.mxu0
        %v7260 = vtanh.pop %v7221
        %v7261 = vtanh.pop %v7223
        %v7262 = vtanh.pop %v7226
        %v7263 = vtanh.pop %v7228
        %v7264 = vtanh.pop %v7231
        %v7265 = vtanh.pop %v7233
        %v7266 = vtanh.pop %v7236
        %v7267 = vtanh.pop %v7238
        %v7268 = vtanh.pop %v7241
        %v7269 = vtanh.pop %v7243
        %v7270 = vtanh.pop %v7246
        %v7271 = vtanh.pop %v7248
        %v7272 = vtanh.pop %v7251
        %v7273 = vtanh.pop %v7253
        %v7274 = vtanh.pop %v7256
        %v7275 = vtanh.pop %v7258
        %v7276 = vld [vmem:[%s908] sm:$0xff]
        %v7277 = vld [vmem:[%s908 + $0x8] sm:$0xff]
        %v7278 = vld [vmem:[%s908 + $0x10] sm:$0xff]
        %v7279 = vld [vmem:[%s908 + $0x18] sm:$0xff]
        %v7280 = vld [vmem:[%s908 + $0x20] sm:$0xff]
        %v7281 = vld [vmem:[%s908 + $0x28] sm:$0xff]
        %v7282 = vld [vmem:[%s908 + $0x30] sm:$0xff]
        %v7283 = vld [vmem:[%s908 + $0x38] sm:$0xff]
        %v7284 = vpack.c.bf16 %v7277, %v7276
        %v7285 = vpack.c.bf16 %v7279, %v7278
        %v7286 = vpack.c.bf16 %v7281, %v7280
        %v7287 = vpack.c.bf16 %v7283, %v7282
        %v7288 = vld [vmem:[%s921] sm:$0x1]
        %v7290 = vperm.slane %v7288, 0
        %7292 = vmatpush.bf16.msra.mxu0 0
        %7293 = vmatpush.bf16.msra.mxu0 0
        %7294 = vmatpush.bf16.msra.mxu0 0
        %7295 = vmatpush.bf16.msra.mxu0 0
        %7296 = vmatpush.bf16.msra.mxu0 %v7287
        %7297 = vmatpush.bf16.msra.mxu0 %v7286
        %7298 = vmatpush.bf16.msra.mxu0 %v7285
        %7299 = vmatpush.bf16.msra.mxu0 %v7284
        %7300 = vmatmul.bf16.gmra.mxu0 %v7091
        %v7301 = vpop.f32.mrf.mxu0
        %v7302 = vadd.f32 %v7290, %v7301
        %v7303 = vpop.f32.mrf.mxu0
        %v7304 = vadd.f32 %v7290, %v7303
        %7305 = vmatmul.bf16.gmra.mxu0 %v7094
        %v7306 = vpop.f32.mrf.mxu0
        %v7307 = vadd.f32 %v7290, %v7306
        %v7308 = vpop.f32.mrf.mxu0
        %v7309 = vadd.f32 %v7290, %v7308
        %7310 = vmatmul.bf16.gmra.mxu0 %v7097
        %v7311 = vpop.f32.mrf.mxu0
        %v7312 = vadd.f32 %v7290, %v7311
        %v7313 = vpop.f32.mrf.mxu0
        %v7314 = vadd.f32 %v7290, %v7313
        %7315 = vmatmul.bf16.gmra.mxu0 %v7100
        %v7316 = vpop.f32.mrf.mxu0
        %v7317 = vadd.f32 %v7290, %v7316
        %v7318 = vpop.f32.mrf.mxu0
        %v7319 = vadd.f32 %v7290, %v7318
        %7320 = vmatmul.bf16.gmra.mxu0 %v7103
        %v7321 = vpop.f32.mrf.mxu0
        %v7322 = vadd.f32 %v7290, %v7321
        %v7323 = vpop.f32.mrf.mxu0
        %v7324 = vadd.f32 %v7290, %v7323
        %7325 = vmatmul.bf16.gmra.mxu0 %v7106
        %v7326 = vpop.f32.mrf.mxu0
        %v7327 = vadd.f32 %v7290, %v7326
        %v7328 = vpop.f32.mrf.mxu0
        %v7329 = vadd.f32 %v7290, %v7328
        %7330 = vmatmul.bf16.gmra.mxu0 %v7109
        %v7331 = vpop.f32.mrf.mxu0
        %v7332 = vadd.f32 %v7290, %v7331
        %v7333 = vpop.f32.mrf.mxu0
        %v7334 = vadd.f32 %v7290, %v7333
        %7335 = vmatmul.bf16.gmra.mxu0 %v7112
        %v7336 = vpop.f32.mrf.mxu0
        %v7337 = vadd.f32 %v7290, %v7336
        %v7338 = vpop.f32.mrf.mxu0
        %v7339 = vadd.f32 %v7290, %v7338
        %7340 = vdwg.mxu0
        %v7341 = vtanh.pop %v7302
        %v7342 = vtanh.pop %v7304
        %v7343 = vtanh.pop %v7307
        %v7344 = vtanh.pop %v7309
        %v7345 = vtanh.pop %v7312
        %v7346 = vtanh.pop %v7314
        %v7347 = vtanh.pop %v7317
        %v7348 = vtanh.pop %v7319
        %v7349 = vtanh.pop %v7322
        %v7350 = vtanh.pop %v7324
        %v7351 = vtanh.pop %v7327
        %v7352 = vtanh.pop %v7329
        %v7353 = vtanh.pop %v7332
        %v7354 = vtanh.pop %v7334
        %v7355 = vtanh.pop %v7337
        %v7356 = vtanh.pop %v7339
        %v7357 = vmul.f32 %v7341, %v995
        %v7358 = vmul.f32 %v7342, %v995
        %v7359 = vmul.f32 %v7343, %v995
        %v7360 = vmul.f32 %v7344, %v995
        %v7361 = vmul.f32 %v7345, %v995
        %v7362 = vmul.f32 %v7346, %v995
        %v7363 = vmul.f32 %v7347, %v995
        %v7364 = vmul.f32 %v7348, %v995
        %v7365 = vmul.f32 %v7349, %v995
        %v7366 = vmul.f32 %v7350, %v995
        %v7367 = vmul.f32 %v7351, %v995
        %v7368 = vmul.f32 %v7352, %v995
        %v7369 = vmul.f32 %v7353, %v995
        %v7370 = vmul.f32 %v7354, %v995
        %v7371 = vmul.f32 %v7355, %v995
        %v7372 = vmul.f32 %v7356, %v995
        %v7373 = vld [vmem:[%s443] sm:$0xff]
        %v7374 = vld [vmem:[%s443 + $0x8] sm:$0xff]
        %v7375 = vld [vmem:[%s443 + $0x10] sm:$0xff]
        %v7376 = vld [vmem:[%s443 + $0x18] sm:$0xff]
        %v7377 = vld [vmem:[%s443 + $0x20] sm:$0xff]
        %v7378 = vld [vmem:[%s443 + $0x28] sm:$0xff]
        %v7379 = vld [vmem:[%s443 + $0x30] sm:$0xff]
        %v7380 = vld [vmem:[%s443 + $0x38] sm:$0xff]
        %v7381 = vld [vmem:[%s443 + $0x40] sm:$0xff]
        %v7382 = vld [vmem:[%s443 + $0x48] sm:$0xff]
        %v7383 = vld [vmem:[%s443 + $0x50] sm:$0xff]
        %v7384 = vld [vmem:[%s443 + $0x58] sm:$0xff]
        %v7385 = vld [vmem:[%s443 + $0x60] sm:$0xff]
        %v7386 = vld [vmem:[%s443 + $0x68] sm:$0xff]
        %v7387 = vld [vmem:[%s443 + $0x70] sm:$0xff]
        %v7388 = vld [vmem:[%s443 + $0x78] sm:$0xff]
        %7390 = vset.pattern.permute.xlu0 24
        %7391 = vperm.xlu0 %7390, %v7373
        %v7392 = vpop.permute.xlu0 %7391
        %7395 = vset.pattern.permute.xlu0 24
        %7396 = vperm.xlu0 %7395, %v7374
        %v7397 = vpop.permute.xlu0 %7396
        %7400 = vset.pattern.permute.xlu0 24
        %7401 = vperm.xlu0 %7400, %v7375
        %v7402 = vpop.permute.xlu0 %7401
        %7405 = vset.pattern.permute.xlu0 24
        %7406 = vperm.xlu0 %7405, %v7376
        %v7407 = vpop.permute.xlu0 %7406
        %7410 = vset.pattern.permute.xlu0 24
        %7411 = vperm.xlu0 %7410, %v7377
        %v7412 = vpop.permute.xlu0 %7411
        %7415 = vset.pattern.permute.xlu0 24
        %7416 = vperm.xlu0 %7415, %v7378
        %v7417 = vpop.permute.xlu0 %7416
        %7420 = vset.pattern.permute.xlu0 24
        %7421 = vperm.xlu0 %7420, %v7379
        %v7422 = vpop.permute.xlu0 %7421
        %7425 = vset.pattern.permute.xlu0 24
        %7426 = vperm.xlu0 %7425, %v7380
        %v7427 = vpop.permute.xlu0 %7426
        %7430 = vset.pattern.permute.xlu0 24
        %7431 = vperm.xlu0 %7430, %v7381
        %v7432 = vpop.permute.xlu0 %7431
        %7435 = vset.pattern.permute.xlu0 24
        %7436 = vperm.xlu0 %7435, %v7382
        %v7437 = vpop.permute.xlu0 %7436
        %7440 = vset.pattern.permute.xlu0 24
        %7441 = vperm.xlu0 %7440, %v7383
        %v7442 = vpop.permute.xlu0 %7441
        %7445 = vset.pattern.permute.xlu0 24
        %7446 = vperm.xlu0 %7445, %v7384
        %v7447 = vpop.permute.xlu0 %7446
        %7450 = vset.pattern.permute.xlu0 24
        %7451 = vperm.xlu0 %7450, %v7385
        %v7452 = vpop.permute.xlu0 %7451
        %7455 = vset.pattern.permute.xlu0 24
        %7456 = vperm.xlu0 %7455, %v7386
        %v7457 = vpop.permute.xlu0 %7456
        %7460 = vset.pattern.permute.xlu0 24
        %7461 = vperm.xlu0 %7460, %v7387
        %v7462 = vpop.permute.xlu0 %7461
        %7465 = vset.pattern.permute.xlu0 24
        %7466 = vperm.xlu0 %7465, %v7388
        %v7467 = vpop.permute.xlu0 %7466
        %v7469 = vmul.f32 %v7357, %v7392
        %v7470 = vmul.f32 %v7358, %v7397
        %v7471 = vmul.f32 %v7359, %v7402
        %v7472 = vmul.f32 %v7360, %v7407
        %v7473 = vmul.f32 %v7361, %v7412
        %v7474 = vmul.f32 %v7362, %v7417
        %v7475 = vmul.f32 %v7363, %v7422
        %v7476 = vmul.f32 %v7364, %v7427
        %v7477 = vmul.f32 %v7365, %v7432
        %v7478 = vmul.f32 %v7366, %v7437
        %v7479 = vmul.f32 %v7367, %v7442
        %v7480 = vmul.f32 %v7368, %v7447
        %v7481 = vmul.f32 %v7369, %v7452
        %v7482 = vmul.f32 %v7370, %v7457
        %v7483 = vmul.f32 %v7371, %v7462
        %v7484 = vmul.f32 %v7372, %v7467
        %v7485 = vadd.f32 %v7469, 0.0
        %v7486 = vadd.f32 %v7470, 0.0
        %v7487 = vadd.f32 %v7471, 0.0
        %v7488 = vadd.f32 %v7472, 0.0
        %v7489 = vadd.f32 %v7473, 0.0
        %v7490 = vadd.f32 %v7474, 0.0
        %v7491 = vadd.f32 %v7475, 0.0
        %v7492 = vadd.f32 %v7476, 0.0
        %v7493 = vadd.f32 %v7477, 0.0
        %v7494 = vadd.f32 %v7478, 0.0
        %v7495 = vadd.f32 %v7479, 0.0
        %v7496 = vadd.f32 %v7480, 0.0
        %v7497 = vadd.f32 %v7481, 0.0
        %v7498 = vadd.f32 %v7482, 0.0
        %v7499 = vadd.f32 %v7483, 0.0
        %v7500 = vadd.f32 %v7484, 0.0
        %v7501 = vld [vmem:[%s1141] sm:$0xff]
        %v7502 = vld [vmem:[%s1141 + $0x8] sm:$0xff]
        %v7503 = vld [vmem:[%s1141 + $0x10] sm:$0xff]
        %v7504 = vld [vmem:[%s1141 + $0x18] sm:$0xff]
        %v7505 = vld [vmem:[%s1141 + $0x20] sm:$0xff]
        %v7506 = vld [vmem:[%s1141 + $0x28] sm:$0xff]
        %v7507 = vld [vmem:[%s1141 + $0x30] sm:$0xff]
        %v7508 = vld [vmem:[%s1141 + $0x38] sm:$0xff]
        %v7509 = vpack.c.bf16 %v7502, %v7501
        %v7510 = vpack.c.bf16 %v7504, %v7503
        %v7511 = vpack.c.bf16 %v7506, %v7505
        %v7512 = vpack.c.bf16 %v7508, %v7507
        %v7513 = vld [vmem:[%s1154] sm:$0x1]
        %v7515 = vperm.slane %v7513, 0
        %7517 = vmatpush.bf16.msra.mxu0 0
        %7518 = vmatpush.bf16.msra.mxu0 0
        %7519 = vmatpush.bf16.msra.mxu0 0
        %7520 = vmatpush.bf16.msra.mxu0 0
        %7521 = vmatpush.bf16.msra.mxu0 %v7512
        %7522 = vmatpush.bf16.msra.mxu0 %v7511
        %7523 = vmatpush.bf16.msra.mxu0 %v7510
        %7524 = vmatpush.bf16.msra.mxu0 %v7509
        %7525 = vmatmul.bf16.gmra.mxu0 %v7091
        %v7526 = vpop.f32.mrf.mxu0
        %v7527 = vadd.f32 %v7515, %v7526
        %v7528 = vpop.f32.mrf.mxu0
        %v7529 = vadd.f32 %v7515, %v7528
        %7530 = vmatmul.bf16.gmra.mxu0 %v7094
        %v7531 = vpop.f32.mrf.mxu0
        %v7532 = vadd.f32 %v7515, %v7531
        %v7533 = vpop.f32.mrf.mxu0
        %v7534 = vadd.f32 %v7515, %v7533
        %7535 = vmatmul.bf16.gmra.mxu0 %v7097
        %v7536 = vpop.f32.mrf.mxu0
        %v7537 = vadd.f32 %v7515, %v7536
        %v7538 = vpop.f32.mrf.mxu0
        %v7539 = vadd.f32 %v7515, %v7538
        %7540 = vmatmul.bf16.gmra.mxu0 %v7100
        %v7541 = vpop.f32.mrf.mxu0
        %v7542 = vadd.f32 %v7515, %v7541
        %v7543 = vpop.f32.mrf.mxu0
        %v7544 = vadd.f32 %v7515, %v7543
        %7545 = vmatmul.bf16.gmra.mxu0 %v7103
        %v7546 = vpop.f32.mrf.mxu0
        %v7547 = vadd.f32 %v7515, %v7546
        %v7548 = vpop.f32.mrf.mxu0
        %v7549 = vadd.f32 %v7515, %v7548
        %7550 = vmatmul.bf16.gmra.mxu0 %v7106
        %v7551 = vpop.f32.mrf.mxu0
        %v7552 = vadd.f32 %v7515, %v7551
        %v7553 = vpop.f32.mrf.mxu0
        %v7554 = vadd.f32 %v7515, %v7553
        %7555 = vmatmul.bf16.gmra.mxu0 %v7109
        %v7556 = vpop.f32.mrf.mxu0
        %v7557 = vadd.f32 %v7515, %v7556
        %v7558 = vpop.f32.mrf.mxu0
        %v7559 = vadd.f32 %v7515, %v7558
        %7560 = vmatmul.bf16.gmra.mxu0 %v7112
        %v7561 = vpop.f32.mrf.mxu0
        %v7562 = vadd.f32 %v7515, %v7561
        %v7563 = vpop.f32.mrf.mxu0
        %v7564 = vadd.f32 %v7515, %v7563
        %7565 = vdwg.mxu0
        %v7566 = vtanh.pop %v7527
        %v7567 = vtanh.pop %v7529
        %v7568 = vtanh.pop %v7532
        %v7569 = vtanh.pop %v7534
        %v7570 = vtanh.pop %v7537
        %v7571 = vtanh.pop %v7539
        %v7572 = vtanh.pop %v7542
        %v7573 = vtanh.pop %v7544
        %v7574 = vtanh.pop %v7547
        %v7575 = vtanh.pop %v7549
        %v7576 = vtanh.pop %v7552
        %v7577 = vtanh.pop %v7554
        %v7578 = vtanh.pop %v7557
        %v7579 = vtanh.pop %v7559
        %v7580 = vtanh.pop %v7562
        %v7581 = vtanh.pop %v7564
        %v7582 = vmul.f32 %v7566, %v995
        %v7583 = vmul.f32 %v7567, %v995
        %v7584 = vmul.f32 %v7568, %v995
        %v7585 = vmul.f32 %v7569, %v995
        %v7586 = vmul.f32 %v7570, %v995
        %v7587 = vmul.f32 %v7571, %v995
        %v7588 = vmul.f32 %v7572, %v995
        %v7589 = vmul.f32 %v7573, %v995
        %v7590 = vmul.f32 %v7574, %v995
        %v7591 = vmul.f32 %v7575, %v995
        %v7592 = vmul.f32 %v7576, %v995
        %v7593 = vmul.f32 %v7577, %v995
        %v7594 = vmul.f32 %v7578, %v995
        %v7595 = vmul.f32 %v7579, %v995
        %v7596 = vmul.f32 %v7580, %v995
        %v7597 = vmul.f32 %v7581, %v995
        %7598 = vset.pattern.permute.xlu0 25
        %7599 = vperm.xlu0 %7598, %v7373
        %v7600 = vpop.permute.xlu0 %7599
        %7602 = vset.pattern.permute.xlu0 25
        %7603 = vperm.xlu0 %7602, %v7374
        %v7604 = vpop.permute.xlu0 %7603
        %7606 = vset.pattern.permute.xlu0 25
        %7607 = vperm.xlu0 %7606, %v7375
        %v7608 = vpop.permute.xlu0 %7607
        %7610 = vset.pattern.permute.xlu0 25
        %7611 = vperm.xlu0 %7610, %v7376
        %v7612 = vpop.permute.xlu0 %7611
        %7614 = vset.pattern.permute.xlu0 25
        %7615 = vperm.xlu0 %7614, %v7377
        %v7616 = vpop.permute.xlu0 %7615
        %7618 = vset.pattern.permute.xlu0 25
        %7619 = vperm.xlu0 %7618, %v7378
        %v7620 = vpop.permute.xlu0 %7619
        %7622 = vset.pattern.permute.xlu0 25
        %7623 = vperm.xlu0 %7622, %v7379
        %v7624 = vpop.permute.xlu0 %7623
        %7626 = vset.pattern.permute.xlu0 25
        %7627 = vperm.xlu0 %7626, %v7380
        %v7628 = vpop.permute.xlu0 %7627
        %7630 = vset.pattern.permute.xlu0 25
        %7631 = vperm.xlu0 %7630, %v7381
        %v7632 = vpop.permute.xlu0 %7631
        %7634 = vset.pattern.permute.xlu0 25
        %7635 = vperm.xlu0 %7634, %v7382
        %v7636 = vpop.permute.xlu0 %7635
        %7638 = vset.pattern.permute.xlu0 25
        %7639 = vperm.xlu0 %7638, %v7383
        %v7640 = vpop.permute.xlu0 %7639
        %7642 = vset.pattern.permute.xlu0 25
        %7643 = vperm.xlu0 %7642, %v7384
        %v7644 = vpop.permute.xlu0 %7643
        %7646 = vset.pattern.permute.xlu0 25
        %7647 = vperm.xlu0 %7646, %v7385
        %v7648 = vpop.permute.xlu0 %7647
        %7650 = vset.pattern.permute.xlu0 25
        %7651 = vperm.xlu0 %7650, %v7386
        %v7652 = vpop.permute.xlu0 %7651
        %7654 = vset.pattern.permute.xlu0 25
        %7655 = vperm.xlu0 %7654, %v7387
        %v7656 = vpop.permute.xlu0 %7655
        %7658 = vset.pattern.permute.xlu0 25
        %7659 = vperm.xlu0 %7658, %v7388
        %v7660 = vpop.permute.xlu0 %7659
        %v7662 = vmul.f32 %v7582, %v7600
        %v7663 = vmul.f32 %v7583, %v7604
        %v7664 = vmul.f32 %v7584, %v7608
        %v7665 = vmul.f32 %v7585, %v7612
        %v7666 = vmul.f32 %v7586, %v7616
        %v7667 = vmul.f32 %v7587, %v7620
        %v7668 = vmul.f32 %v7588, %v7624
        %v7669 = vmul.f32 %v7589, %v7628
        %v7670 = vmul.f32 %v7590, %v7632
        %v7671 = vmul.f32 %v7591, %v7636
        %v7672 = vmul.f32 %v7592, %v7640
        %v7673 = vmul.f32 %v7593, %v7644
        %v7674 = vmul.f32 %v7594, %v7648
        %v7675 = vmul.f32 %v7595, %v7652
        %v7676 = vmul.f32 %v7596, %v7656
        %v7677 = vmul.f32 %v7597, %v7660
        %v7678 = vadd.f32 %v7485, %v7662
        %v7679 = vadd.f32 %v7486, %v7663
        %v7680 = vadd.f32 %v7487, %v7664
        %v7681 = vadd.f32 %v7488, %v7665
        %v7682 = vadd.f32 %v7489, %v7666
        %v7683 = vadd.f32 %v7490, %v7667
        %v7684 = vadd.f32 %v7491, %v7668
        %v7685 = vadd.f32 %v7492, %v7669
        %v7686 = vadd.f32 %v7493, %v7670
        %v7687 = vadd.f32 %v7494, %v7671
        %v7688 = vadd.f32 %v7495, %v7672
        %v7689 = vadd.f32 %v7496, %v7673
        %v7690 = vadd.f32 %v7497, %v7674
        %v7691 = vadd.f32 %v7498, %v7675
        %v7692 = vadd.f32 %v7499, %v7676
        %v7693 = vadd.f32 %v7500, %v7677
        %v7694 = vld [vmem:[%s1336] sm:$0xff]
        %v7695 = vld [vmem:[%s1336 + $0x8] sm:$0xff]
        %v7696 = vld [vmem:[%s1336 + $0x10] sm:$0xff]
        %v7697 = vld [vmem:[%s1336 + $0x18] sm:$0xff]
        %v7698 = vld [vmem:[%s1336 + $0x20] sm:$0xff]
        %v7699 = vld [vmem:[%s1336 + $0x28] sm:$0xff]
        %v7700 = vld [vmem:[%s1336 + $0x30] sm:$0xff]
        %v7701 = vld [vmem:[%s1336 + $0x38] sm:$0xff]
        %v7702 = vpack.c.bf16 %v7695, %v7694
        %v7703 = vpack.c.bf16 %v7697, %v7696
        %v7704 = vpack.c.bf16 %v7699, %v7698
        %v7705 = vpack.c.bf16 %v7701, %v7700
        %v7706 = vld [vmem:[%s1349] sm:$0x1]
        %v7708 = vperm.slane %v7706, 0
        %7710 = vmatpush.bf16.msra.mxu0 0
        %7711 = vmatpush.bf16.msra.mxu0 0
        %7712 = vmatpush.bf16.msra.mxu0 0
        %7713 = vmatpush.bf16.msra.mxu0 0
        %7714 = vmatpush.bf16.msra.mxu0 %v7705
        %7715 = vmatpush.bf16.msra.mxu0 %v7704
        %7716 = vmatpush.bf16.msra.mxu0 %v7703
        %7717 = vmatpush.bf16.msra.mxu0 %v7702
        %7718 = vmatmul.bf16.gmra.mxu0 %v7091
        %v7719 = vpop.f32.mrf.mxu0
        %v7720 = vadd.f32 %v7708, %v7719
        %v7721 = vpop.f32.mrf.mxu0
        %v7722 = vadd.f32 %v7708, %v7721
        %7723 = vmatmul.bf16.gmra.mxu0 %v7094
        %v7724 = vpop.f32.mrf.mxu0
        %v7725 = vadd.f32 %v7708, %v7724
        %v7726 = vpop.f32.mrf.mxu0
        %v7727 = vadd.f32 %v7708, %v7726
        %7728 = vmatmul.bf16.gmra.mxu0 %v7097
        %v7729 = vpop.f32.mrf.mxu0
        %v7730 = vadd.f32 %v7708, %v7729
        %v7731 = vpop.f32.mrf.mxu0
        %v7732 = vadd.f32 %v7708, %v7731
        %7733 = vmatmul.bf16.gmra.mxu0 %v7100
        %v7734 = vpop.f32.mrf.mxu0
        %v7735 = vadd.f32 %v7708, %v7734
        %v7736 = vpop.f32.mrf.mxu0
        %v7737 = vadd.f32 %v7708, %v7736
        %7738 = vmatmul.bf16.gmra.mxu0 %v7103
        %v7739 = vpop.f32.mrf.mxu0
        %v7740 = vadd.f32 %v7708, %v7739
        %v7741 = vpop.f32.mrf.mxu0
        %v7742 = vadd.f32 %v7708, %v7741
        %7743 = vmatmul.bf16.gmra.mxu0 %v7106
        %v7744 = vpop.f32.mrf.mxu0
        %v7745 = vadd.f32 %v7708, %v7744
        %v7746 = vpop.f32.mrf.mxu0
        %v7747 = vadd.f32 %v7708, %v7746
        %7748 = vmatmul.bf16.gmra.mxu0 %v7109
        %v7749 = vpop.f32.mrf.mxu0
        %v7750 = vadd.f32 %v7708, %v7749
        %v7751 = vpop.f32.mrf.mxu0
        %v7752 = vadd.f32 %v7708, %v7751
        %7753 = vmatmul.bf16.gmra.mxu0 %v7112
        %v7754 = vpop.f32.mrf.mxu0
        %v7755 = vadd.f32 %v7708, %v7754
        %v7756 = vpop.f32.mrf.mxu0
        %v7757 = vadd.f32 %v7708, %v7756
        %7758 = vdwg.mxu0
        %v7759 = vtanh.pop %v7720
        %v7760 = vtanh.pop %v7722
        %v7761 = vtanh.pop %v7725
        %v7762 = vtanh.pop %v7727
        %v7763 = vtanh.pop %v7730
        %v7764 = vtanh.pop %v7732
        %v7765 = vtanh.pop %v7735
        %v7766 = vtanh.pop %v7737
        %v7767 = vtanh.pop %v7740
        %v7768 = vtanh.pop %v7742
        %v7769 = vtanh.pop %v7745
        %v7770 = vtanh.pop %v7747
        %v7771 = vtanh.pop %v7750
        %v7772 = vtanh.pop %v7752
        %v7773 = vtanh.pop %v7755
        %v7774 = vtanh.pop %v7757
        %v7775 = vmul.f32 %v7759, %v995
        %v7776 = vmul.f32 %v7760, %v995
        %v7777 = vmul.f32 %v7761, %v995
        %v7778 = vmul.f32 %v7762, %v995
        %v7779 = vmul.f32 %v7763, %v995
        %v7780 = vmul.f32 %v7764, %v995
        %v7781 = vmul.f32 %v7765, %v995
        %v7782 = vmul.f32 %v7766, %v995
        %v7783 = vmul.f32 %v7767, %v995
        %v7784 = vmul.f32 %v7768, %v995
        %v7785 = vmul.f32 %v7769, %v995
        %v7786 = vmul.f32 %v7770, %v995
        %v7787 = vmul.f32 %v7771, %v995
        %v7788 = vmul.f32 %v7772, %v995
        %v7789 = vmul.f32 %v7773, %v995
        %v7790 = vmul.f32 %v7774, %v995
        %7791 = vset.pattern.permute.xlu0 26
        %7792 = vperm.xlu0 %7791, %v7373
        %v7793 = vpop.permute.xlu0 %7792
        %7795 = vset.pattern.permute.xlu0 26
        %7796 = vperm.xlu0 %7795, %v7374
        %v7797 = vpop.permute.xlu0 %7796
        %7799 = vset.pattern.permute.xlu0 26
        %7800 = vperm.xlu0 %7799, %v7375
        %v7801 = vpop.permute.xlu0 %7800
        %7803 = vset.pattern.permute.xlu0 26
        %7804 = vperm.xlu0 %7803, %v7376
        %v7805 = vpop.permute.xlu0 %7804
        %7807 = vset.pattern.permute.xlu0 26
        %7808 = vperm.xlu0 %7807, %v7377
        %v7809 = vpop.permute.xlu0 %7808
        %7811 = vset.pattern.permute.xlu0 26
        %7812 = vperm.xlu0 %7811, %v7378
        %v7813 = vpop.permute.xlu0 %7812
        %7815 = vset.pattern.permute.xlu0 26
        %7816 = vperm.xlu0 %7815, %v7379
        %v7817 = vpop.permute.xlu0 %7816
        %7819 = vset.pattern.permute.xlu0 26
        %7820 = vperm.xlu0 %7819, %v7380
        %v7821 = vpop.permute.xlu0 %7820
        %7823 = vset.pattern.permute.xlu0 26
        %7824 = vperm.xlu0 %7823, %v7381
        %v7825 = vpop.permute.xlu0 %7824
        %7827 = vset.pattern.permute.xlu0 26
        %7828 = vperm.xlu0 %7827, %v7382
        %v7829 = vpop.permute.xlu0 %7828
        %7831 = vset.pattern.permute.xlu0 26
        %7832 = vperm.xlu0 %7831, %v7383
        %v7833 = vpop.permute.xlu0 %7832
        %7835 = vset.pattern.permute.xlu0 26
        %7836 = vperm.xlu0 %7835, %v7384
        %v7837 = vpop.permute.xlu0 %7836
        %7839 = vset.pattern.permute.xlu0 26
        %7840 = vperm.xlu0 %7839, %v7385
        %v7841 = vpop.permute.xlu0 %7840
        %7843 = vset.pattern.permute.xlu0 26
        %7844 = vperm.xlu0 %7843, %v7386
        %v7845 = vpop.permute.xlu0 %7844
        %7847 = vset.pattern.permute.xlu0 26
        %7848 = vperm.xlu0 %7847, %v7387
        %v7849 = vpop.permute.xlu0 %7848
        %7851 = vset.pattern.permute.xlu0 26
        %7852 = vperm.xlu0 %7851, %v7388
        %v7853 = vpop.permute.xlu0 %7852
        %v7855 = vmul.f32 %v7775, %v7793
        %v7856 = vmul.f32 %v7776, %v7797
        %v7857 = vmul.f32 %v7777, %v7801
        %v7858 = vmul.f32 %v7778, %v7805
        %v7859 = vmul.f32 %v7779, %v7809
        %v7860 = vmul.f32 %v7780, %v7813
        %v7861 = vmul.f32 %v7781, %v7817
        %v7862 = vmul.f32 %v7782, %v7821
        %v7863 = vmul.f32 %v7783, %v7825
        %v7864 = vmul.f32 %v7784, %v7829
        %v7865 = vmul.f32 %v7785, %v7833
        %v7866 = vmul.f32 %v7786, %v7837
        %v7867 = vmul.f32 %v7787, %v7841
        %v7868 = vmul.f32 %v7788, %v7845
        %v7869 = vmul.f32 %v7789, %v7849
        %v7870 = vmul.f32 %v7790, %v7853
        %v7871 = vadd.f32 %v7678, %v7855
        %v7872 = vadd.f32 %v7679, %v7856
        %v7873 = vadd.f32 %v7680, %v7857
        %v7874 = vadd.f32 %v7681, %v7858
        %v7875 = vadd.f32 %v7682, %v7859
        %v7876 = vadd.f32 %v7683, %v7860
        %v7877 = vadd.f32 %v7684, %v7861
        %v7878 = vadd.f32 %v7685, %v7862
        %v7879 = vadd.f32 %v7686, %v7863
        %v7880 = vadd.f32 %v7687, %v7864
        %v7881 = vadd.f32 %v7688, %v7865
        %v7882 = vadd.f32 %v7689, %v7866
        %v7883 = vadd.f32 %v7690, %v7867
        %v7884 = vadd.f32 %v7691, %v7868
        %v7885 = vadd.f32 %v7692, %v7869
        %v7886 = vadd.f32 %v7693, %v7870
        %v7887 = vld [vmem:[%s1531] sm:$0xff]
        %v7888 = vld [vmem:[%s1531 + $0x8] sm:$0xff]
        %v7889 = vld [vmem:[%s1531 + $0x10] sm:$0xff]
        %v7890 = vld [vmem:[%s1531 + $0x18] sm:$0xff]
        %v7891 = vld [vmem:[%s1531 + $0x20] sm:$0xff]
        %v7892 = vld [vmem:[%s1531 + $0x28] sm:$0xff]
        %v7893 = vld [vmem:[%s1531 + $0x30] sm:$0xff]
        %v7894 = vld [vmem:[%s1531 + $0x38] sm:$0xff]
        %v7895 = vpack.c.bf16 %v7888, %v7887
        %v7896 = vpack.c.bf16 %v7890, %v7889
        %v7897 = vpack.c.bf16 %v7892, %v7891
        %v7898 = vpack.c.bf16 %v7894, %v7893
        %v7899 = vld [vmem:[%s1544] sm:$0x1]
        %v7901 = vperm.slane %v7899, 0
        %7903 = vmatpush.bf16.msra.mxu0 0
        %7904 = vmatpush.bf16.msra.mxu0 0
        %7905 = vmatpush.bf16.msra.mxu0 0
        %7906 = vmatpush.bf16.msra.mxu0 0
        %7907 = vmatpush.bf16.msra.mxu0 %v7898
        %7908 = vmatpush.bf16.msra.mxu0 %v7897
        %7909 = vmatpush.bf16.msra.mxu0 %v7896
        %7910 = vmatpush.bf16.msra.mxu0 %v7895
        %7911 = vmatmul.bf16.gmra.mxu0 %v7091
        %v7912 = vpop.f32.mrf.mxu0
        %v7913 = vadd.f32 %v7901, %v7912
        %v7914 = vpop.f32.mrf.mxu0
        %v7915 = vadd.f32 %v7901, %v7914
        %7916 = vmatmul.bf16.gmra.mxu0 %v7094
        %v7917 = vpop.f32.mrf.mxu0
        %v7918 = vadd.f32 %v7901, %v7917
        %v7919 = vpop.f32.mrf.mxu0
        %v7920 = vadd.f32 %v7901, %v7919
        %7921 = vmatmul.bf16.gmra.mxu0 %v7097
        %v7922 = vpop.f32.mrf.mxu0
        %v7923 = vadd.f32 %v7901, %v7922
        %v7924 = vpop.f32.mrf.mxu0
        %v7925 = vadd.f32 %v7901, %v7924
        %7926 = vmatmul.bf16.gmra.mxu0 %v7100
        %v7927 = vpop.f32.mrf.mxu0
        %v7928 = vadd.f32 %v7901, %v7927
        %v7929 = vpop.f32.mrf.mxu0
        %v7930 = vadd.f32 %v7901, %v7929
        %7931 = vmatmul.bf16.gmra.mxu0 %v7103
        %v7932 = vpop.f32.mrf.mxu0
        %v7933 = vadd.f32 %v7901, %v7932
        %v7934 = vpop.f32.mrf.mxu0
        %v7935 = vadd.f32 %v7901, %v7934
        %7936 = vmatmul.bf16.gmra.mxu0 %v7106
        %v7937 = vpop.f32.mrf.mxu0
        %v7938 = vadd.f32 %v7901, %v7937
        %v7939 = vpop.f32.mrf.mxu0
        %v7940 = vadd.f32 %v7901, %v7939
        %7941 = vmatmul.bf16.gmra.mxu0 %v7109
        %v7942 = vpop.f32.mrf.mxu0
        %v7943 = vadd.f32 %v7901, %v7942
        %v7944 = vpop.f32.mrf.mxu0
        %v7945 = vadd.f32 %v7901, %v7944
        %7946 = vmatmul.bf16.gmra.mxu0 %v7112
        %v7947 = vpop.f32.mrf.mxu0
        %v7948 = vadd.f32 %v7901, %v7947
        %v7949 = vpop.f32.mrf.mxu0
        %v7950 = vadd.f32 %v7901, %v7949
        %7951 = vdwg.mxu0
        %v7952 = vtanh.pop %v7913
        %v7953 = vtanh.pop %v7915
        %v7954 = vtanh.pop %v7918
        %v7955 = vtanh.pop %v7920
        %v7956 = vtanh.pop %v7923
        %v7957 = vtanh.pop %v7925
        %v7958 = vtanh.pop %v7928
        %v7959 = vtanh.pop %v7930
        %v7960 = vtanh.pop %v7933
        %v7961 = vtanh.pop %v7935
        %v7962 = vtanh.pop %v7938
        %v7963 = vtanh.pop %v7940
        %v7964 = vtanh.pop %v7943
        %v7965 = vtanh.pop %v7945
        %v7966 = vtanh.pop %v7948
        %v7967 = vtanh.pop %v7950
        %v7968 = vmul.f32 %v7952, %v995
        %v7969 = vmul.f32 %v7953, %v995
        %v7970 = vmul.f32 %v7954, %v995
        %v7971 = vmul.f32 %v7955, %v995
        %v7972 = vmul.f32 %v7956, %v995
        %v7973 = vmul.f32 %v7957, %v995
        %v7974 = vmul.f32 %v7958, %v995
        %v7975 = vmul.f32 %v7959, %v995
        %v7976 = vmul.f32 %v7960, %v995
        %v7977 = vmul.f32 %v7961, %v995
        %v7978 = vmul.f32 %v7962, %v995
        %v7979 = vmul.f32 %v7963, %v995
        %v7980 = vmul.f32 %v7964, %v995
        %v7981 = vmul.f32 %v7965, %v995
        %v7982 = vmul.f32 %v7966, %v995
        %v7983 = vmul.f32 %v7967, %v995
        %7984 = vset.pattern.permute.xlu0 27
        %7985 = vperm.xlu0 %7984, %v7373
        %v7986 = vpop.permute.xlu0 %7985
        %7988 = vset.pattern.permute.xlu0 27
        %7989 = vperm.xlu0 %7988, %v7374
        %v7990 = vpop.permute.xlu0 %7989
        %7992 = vset.pattern.permute.xlu0 27
        %7993 = vperm.xlu0 %7992, %v7375
        %v7994 = vpop.permute.xlu0 %7993
        %7996 = vset.pattern.permute.xlu0 27
        %7997 = vperm.xlu0 %7996, %v7376
        %v7998 = vpop.permute.xlu0 %7997
        %8000 = vset.pattern.permute.xlu0 27
        %8001 = vperm.xlu0 %8000, %v7377
        %v8002 = vpop.permute.xlu0 %8001
        %8004 = vset.pattern.permute.xlu0 27
        %8005 = vperm.xlu0 %8004, %v7378
        %v8006 = vpop.permute.xlu0 %8005
        %8008 = vset.pattern.permute.xlu0 27
        %8009 = vperm.xlu0 %8008, %v7379
        %v8010 = vpop.permute.xlu0 %8009
        %8012 = vset.pattern.permute.xlu0 27
        %8013 = vperm.xlu0 %8012, %v7380
        %v8014 = vpop.permute.xlu0 %8013
        %8016 = vset.pattern.permute.xlu0 27
        %8017 = vperm.xlu0 %8016, %v7381
        %v8018 = vpop.permute.xlu0 %8017
        %8020 = vset.pattern.permute.xlu0 27
        %8021 = vperm.xlu0 %8020, %v7382
        %v8022 = vpop.permute.xlu0 %8021
        %8024 = vset.pattern.permute.xlu0 27
        %8025 = vperm.xlu0 %8024, %v7383
        %v8026 = vpop.permute.xlu0 %8025
        %8028 = vset.pattern.permute.xlu0 27
        %8029 = vperm.xlu0 %8028, %v7384
        %v8030 = vpop.permute.xlu0 %8029
        %8032 = vset.pattern.permute.xlu0 27
        %8033 = vperm.xlu0 %8032, %v7385
        %v8034 = vpop.permute.xlu0 %8033
        %8036 = vset.pattern.permute.xlu0 27
        %8037 = vperm.xlu0 %8036, %v7386
        %v8038 = vpop.permute.xlu0 %8037
        %8040 = vset.pattern.permute.xlu0 27
        %8041 = vperm.xlu0 %8040, %v7387
        %v8042 = vpop.permute.xlu0 %8041
        %8044 = vset.pattern.permute.xlu0 27
        %8045 = vperm.xlu0 %8044, %v7388
        %v8046 = vpop.permute.xlu0 %8045
        %v8048 = vmul.f32 %v7968, %v7986
        %v8049 = vmul.f32 %v7969, %v7990
        %v8050 = vmul.f32 %v7970, %v7994
        %v8051 = vmul.f32 %v7971, %v7998
        %v8052 = vmul.f32 %v7972, %v8002
        %v8053 = vmul.f32 %v7973, %v8006
        %v8054 = vmul.f32 %v7974, %v8010
        %v8055 = vmul.f32 %v7975, %v8014
        %v8056 = vmul.f32 %v7976, %v8018
        %v8057 = vmul.f32 %v7977, %v8022
        %v8058 = vmul.f32 %v7978, %v8026
        %v8059 = vmul.f32 %v7979, %v8030
        %v8060 = vmul.f32 %v7980, %v8034
        %v8061 = vmul.f32 %v7981, %v8038
        %v8062 = vmul.f32 %v7982, %v8042
        %v8063 = vmul.f32 %v7983, %v8046
        %v8064 = vadd.f32 %v7871, %v8048
        %v8065 = vadd.f32 %v7872, %v8049
        %v8066 = vadd.f32 %v7873, %v8050
        %v8067 = vadd.f32 %v7874, %v8051
        %v8068 = vadd.f32 %v7875, %v8052
        %v8069 = vadd.f32 %v7876, %v8053
        %v8070 = vadd.f32 %v7877, %v8054
        %v8071 = vadd.f32 %v7878, %v8055
        %v8072 = vadd.f32 %v7879, %v8056
        %v8073 = vadd.f32 %v7880, %v8057
        %v8074 = vadd.f32 %v7881, %v8058
        %v8075 = vadd.f32 %v7882, %v8059
        %v8076 = vadd.f32 %v7883, %v8060
        %v8077 = vadd.f32 %v7884, %v8061
        %v8078 = vadd.f32 %v7885, %v8062
        %v8079 = vadd.f32 %v7886, %v8063
        %v8080 = vadd.f32 %v7037, %v7260
        %v8081 = vadd.f32 %v7038, %v7261
        %v8082 = vadd.f32 %v7039, %v7262
        %v8083 = vadd.f32 %v7040, %v7263
        %v8084 = vadd.f32 %v7041, %v7264
        %v8085 = vadd.f32 %v7042, %v7265
        %v8086 = vadd.f32 %v7043, %v7266
        %v8087 = vadd.f32 %v7044, %v7267
        %v8088 = vadd.f32 %v7045, %v7268
        %v8089 = vadd.f32 %v7046, %v7269
        %v8090 = vadd.f32 %v7047, %v7270
        %v8091 = vadd.f32 %v7048, %v7271
        %v8092 = vadd.f32 %v7049, %v7272
        %v8093 = vadd.f32 %v7050, %v7273
        %v8094 = vadd.f32 %v7051, %v7274
        %v8095 = vadd.f32 %v7052, %v7275
        %v8096 = vadd.f32 %v8080, %v8064
        %v8097 = vadd.f32 %v8081, %v8065
        %v8098 = vadd.f32 %v8082, %v8066
        %v8099 = vadd.f32 %v8083, %v8067
        %v8100 = vadd.f32 %v8084, %v8068
        %v8101 = vadd.f32 %v8085, %v8069
        %v8102 = vadd.f32 %v8086, %v8070
        %v8103 = vadd.f32 %v8087, %v8071
        %v8104 = vadd.f32 %v8088, %v8072
        %v8105 = vadd.f32 %v8089, %v8073
        %v8106 = vadd.f32 %v8090, %v8074
        %v8107 = vadd.f32 %v8091, %v8075
        %v8108 = vadd.f32 %v8092, %v8076
        %v8109 = vadd.f32 %v8093, %v8077
        %v8110 = vadd.f32 %v8094, %v8078
        %v8111 = vadd.f32 %v8095, %v8079
        %v8112 = vld [vmem:[%s432] sm:$0xff]
        %v8113 = vld [vmem:[%s432 + $0x8] sm:$0xff]
        %v8114 = vld [vmem:[%s432 + $0x10] sm:$0xff]
        %v8115 = vld [vmem:[%s432 + $0x18] sm:$0xff]
        %v8116 = vld [vmem:[%s432 + $0x20] sm:$0xff]
        %v8117 = vld [vmem:[%s432 + $0x28] sm:$0xff]
        %v8118 = vld [vmem:[%s432 + $0x30] sm:$0xff]
        %v8119 = vld [vmem:[%s432 + $0x38] sm:$0xff]
        %v8120 = vld [vmem:[%s432 + $0x40] sm:$0xff]
        %v8121 = vld [vmem:[%s432 + $0x48] sm:$0xff]
        %v8122 = vld [vmem:[%s432 + $0x50] sm:$0xff]
        %v8123 = vld [vmem:[%s432 + $0x58] sm:$0xff]
        %v8124 = vld [vmem:[%s432 + $0x60] sm:$0xff]
        %v8125 = vld [vmem:[%s432 + $0x68] sm:$0xff]
        %v8126 = vld [vmem:[%s432 + $0x70] sm:$0xff]
        %v8127 = vld [vmem:[%s432 + $0x78] sm:$0xff]
        %s8128 = scalar_lea.vmem %s9, 448
        %v8129 = vld [vmem:[%s8128] sm:$0xff]
        %v8130 = vld [vmem:[%s8128 + $0x8] sm:$0xff]
        %v8131 = vld [vmem:[%s8128 + $0x10] sm:$0xff]
        %v8132 = vld [vmem:[%s8128 + $0x18] sm:$0xff]
        %v8133 = vld [vmem:[%s8128 + $0x20] sm:$0xff]
        %v8134 = vld [vmem:[%s8128 + $0x28] sm:$0xff]
        %v8135 = vld [vmem:[%s8128 + $0x30] sm:$0xff]
        %v8136 = vld [vmem:[%s8128 + $0x38] sm:$0xff]
        %v8137 = vpack.c.bf16 %v8097, %v8096
        %v8138 = vpack.c.bf16 %v8099, %v8098
        %v8139 = vpack.c.bf16 %v8101, %v8100
        %v8140 = vpack.c.bf16 %v8103, %v8102
        %v8141 = vpack.c.bf16 %v8105, %v8104
        %v8142 = vpack.c.bf16 %v8107, %v8106
        %v8143 = vpack.c.bf16 %v8109, %v8108
        %v8144 = vpack.c.bf16 %v8111, %v8110
        %v8145 = vpack.c.bf16 %v8130, %v8129
        %v8146 = vpack.c.bf16 %v8132, %v8131
        %v8147 = vpack.c.bf16 %v8134, %v8133
        %v8148 = vpack.c.bf16 %v8136, %v8135
        %v8150 = vsel %vm721, %v8137, 0
        %v8153 = vsel %vm721, %v8138, 0
        %v8156 = vsel %vm721, %v8139, 0
        %v8159 = vsel %vm721, %v8140, 0
        %v8162 = vsel %vm721, %v8141, 0
        %v8165 = vsel %vm721, %v8142, 0
        %v8168 = vsel %vm721, %v8143, 0
        %v8171 = vsel %vm721, %v8144, 0
        %8173 = vmatpush.bf16.msra.mxu0 0
        %8174 = vmatpush.bf16.msra.mxu0 0
        %8175 = vmatpush.bf16.msra.mxu0 0
        %8176 = vmatpush.bf16.msra.mxu0 0
        %8177 = vmatpush.bf16.msra.mxu0 %v8148
        %8178 = vmatpush.bf16.msra.mxu0 %v8147
        %8179 = vmatpush.bf16.msra.mxu0 %v8146
        %8180 = vmatpush.bf16.msra.mxu0 %v8145
        %8181 = vmatmul.bf16.gmra.mxu0 %v8150
        %v8182 = vpop.f32.mrf.mxu0
        %v8183 = vadd.f32 0.0, %v8182
        %v8184 = vpop.f32.mrf.mxu0
        %v8185 = vadd.f32 0.0, %v8184
        %8186 = vmatmul.bf16.gmra.mxu0 %v8153
        %v8187 = vpop.f32.mrf.mxu0
        %v8188 = vadd.f32 0.0, %v8187
        %v8189 = vpop.f32.mrf.mxu0
        %v8190 = vadd.f32 0.0, %v8189
        %8191 = vmatmul.bf16.gmra.mxu0 %v8156
        %v8192 = vpop.f32.mrf.mxu0
        %v8193 = vadd.f32 0.0, %v8192
        %v8194 = vpop.f32.mrf.mxu0
        %v8195 = vadd.f32 0.0, %v8194
        %8196 = vmatmul.bf16.gmra.mxu0 %v8159
        %v8197 = vpop.f32.mrf.mxu0
        %v8198 = vadd.f32 0.0, %v8197
        %v8199 = vpop.f32.mrf.mxu0
        %v8200 = vadd.f32 0.0, %v8199
        %8201 = vmatmul.bf16.gmra.mxu0 %v8162
        %v8202 = vpop.f32.mrf.mxu0
        %v8203 = vadd.f32 0.0, %v8202
        %v8204 = vpop.f32.mrf.mxu0
        %v8205 = vadd.f32 0.0, %v8204
        %8206 = vmatmul.bf16.gmra.mxu0 %v8165
        %v8207 = vpop.f32.mrf.mxu0
        %v8208 = vadd.f32 0.0, %v8207
        %v8209 = vpop.f32.mrf.mxu0
        %v8210 = vadd.f32 0.0, %v8209
        %8211 = vmatmul.bf16.gmra.mxu0 %v8168
        %v8212 = vpop.f32.mrf.mxu0
        %v8213 = vadd.f32 0.0, %v8212
        %v8214 = vpop.f32.mrf.mxu0
        %v8215 = vadd.f32 0.0, %v8214
        %8216 = vmatmul.bf16.gmra.mxu0 %v8171
        %v8217 = vpop.f32.mrf.mxu0
        %v8218 = vadd.f32 0.0, %v8217
        %v8219 = vpop.f32.mrf.mxu0
        %v8220 = vadd.f32 0.0, %v8219
        %8221 = vdwg.mxu0
        %v8222 = vadd.f32 %v8112, %v8183
        %v8223 = vadd.f32 %v8113, %v8185
        %v8224 = vadd.f32 %v8114, %v8188
        %v8225 = vadd.f32 %v8115, %v8190
        %v8226 = vadd.f32 %v8116, %v8193
        %v8227 = vadd.f32 %v8117, %v8195
        %v8228 = vadd.f32 %v8118, %v8198
        %v8229 = vadd.f32 %v8119, %v8200
        %v8230 = vadd.f32 %v8120, %v8203
        %v8231 = vadd.f32 %v8121, %v8205
        %v8232 = vadd.f32 %v8122, %v8208
        %v8233 = vadd.f32 %v8123, %v8210
        %v8234 = vadd.f32 %v8124, %v8213
        %v8235 = vadd.f32 %v8125, %v8215
        %v8236 = vadd.f32 %v8126, %v8218
        %v8237 = vadd.f32 %v8127, %v8220
        %8238 = vst [vmem:[%s432] sm:$0xff] %v8222
        %8239 = vst [vmem:[%s432 + $0x8] sm:$0xff] %v8223
        %8240 = vst [vmem:[%s432 + $0x10] sm:$0xff] %v8224
        %8241 = vst [vmem:[%s432 + $0x18] sm:$0xff] %v8225
        %8242 = vst [vmem:[%s432 + $0x20] sm:$0xff] %v8226
        %8243 = vst [vmem:[%s432 + $0x28] sm:$0xff] %v8227
        %8244 = vst [vmem:[%s432 + $0x30] sm:$0xff] %v8228
        %8245 = vst [vmem:[%s432 + $0x38] sm:$0xff] %v8229
        %8246 = vst [vmem:[%s432 + $0x40] sm:$0xff] %v8230
        %8247 = vst [vmem:[%s432 + $0x48] sm:$0xff] %v8231
        %8248 = vst [vmem:[%s432 + $0x50] sm:$0xff] %v8232
        %8249 = vst [vmem:[%s432 + $0x58] sm:$0xff] %v8233
        %8250 = vst [vmem:[%s432 + $0x60] sm:$0xff] %v8234
        %8251 = vst [vmem:[%s432 + $0x68] sm:$0xff] %v8235
        %8252 = vst [vmem:[%s432 + $0x70] sm:$0xff] %v8236
        %8253 = vst [vmem:[%s432 + $0x78] sm:$0xff] %v8237
        %s8254 = sand.u32 %s278, 1
        %s8255 = scalar_lea.sflag [#allocation5], %s8254
        %s8256 = sand.u32 %s278, 1
        %s8257 = smul.addr %s8256, 128
        %s8258 = scalar_lea.vmem [#allocation8], %s8257
        // Predicated region
        $region73: #{tpu_custom_call.1} parent=63 // pred_check
          %p8259 = pneg %p288
        $region74: #{tpu_custom_call.1} parent=63 // pred_check_branch
          %8261 = sbr.rel (%p8259) target = $region76
        $region75: #{tpu_custom_call.1} parent=63 // pred_region
          %s8262 = smul.u32 16, %s29
          %8264 = vsyncadd %s8255, 0
          %s8265 = smul.addr %s8262, 8
          %s8266 = scalar_lea.hbm %s11, %s8265
          %s8267 = sshll.u32 %s8258, 4
          %s8268 = int_to_ptr.vmem [resolvable:$true] %s8267
          %s8269 = sshll.u32 %s8266, 4
          %s8270 = int_to_ptr.hbm [resolvable:$true] %s8269
          %8275 = dma.vmem_to_hbm [thread:$0]  %s8268, 2048, %s8270, %s8255, 128, 128, 8
        $region76: #{tpu_custom_call.1} parent=63 // pred_fallthru
          _
      $region64: #{tpu_custom_call.1} parent=5 // pred_fallthru
        _
      %p8276 = scmp.le.s32.totalorder 2, %s24
      // Predicated region
      $region77: #{tpu_custom_call.1} parent=5 // pred_check
        %p8277 = pneg %p8276
      $region78: #{tpu_custom_call.1} parent=5 // pred_check_branch
        %8279 = sbr.rel (%p8277) target = $region80
      $region79: #{tpu_custom_call.1} parent=5 // pred_region
        %s8280 = ssub.s32 %s24, 2
        // Predicated region
        $region81: #{tpu_custom_call.1} parent=79 // pred_check
          %p8281 = pneg %p294
        $region82: #{tpu_custom_call.1} parent=79 // pred_check_branch
          %8283 = sbr.rel (%p8281) target = $region84
        $region83: #{tpu_custom_call.1} parent=79 // pred_region
          %s8284 = sand.u32 %s279, 1
          %s8285 = scalar_lea.sflag [#allocation5], %s8284
          %s8286 = sand.u32 %s279, 1
          %s8287 = smul.addr %s8286, 128
          %s8288 = scalar_lea.vmem [#allocation8], %s8287
          %8290 = dma.done %s8285, 2048
        $region84: #{tpu_custom_call.1} parent=79 // pred_fallthru
          _
      $region80: #{tpu_custom_call.1} parent=5 // pred_fallthru
        _
    $region6: #{tpu_custom_call.1} parent=1 // loop_footer
      %s28 = sadd.s32 1, %s24
    $region7: #{tpu_custom_call.1} parent=1 // loop_footer_branch
      %23 = sbr.rel target = $region3
    $region8: #{tpu_custom_call.1} parent=1 // loop_exit
      _
    %8291 = vsyncpa [#allocation4], 1
    %s8292 = scalar_lea.sflag [#allocation4], 1
    %8293 = vsyncpa %s8292, 1
    %8294 = vsyncpa [#allocation7], 1
    %8295 = vsyncpa [#allocation5], 1
    %s8296 = scalar_lea.sflag [#allocation5], 1
    %8297 = vsyncpa %s8296, 1

</llo_original>
